<compile_context>
chip_gen: v7x
topology: tpu7x:2x2x1
jax: 0.10.0
libtpu: 0.0.40
codegen_flags: <defaults>
</compile_context>

<pallas_src>
import functools

import jax
import jax.numpy as jnp
from jax.experimental import pallas as pl
from jax.experimental.pallas import tpu as pltpu


# ---------------------------------------------------------------------------
# helpers
# ---------------------------------------------------------------------------

def _round_up(x, m):
    return ((x + m - 1) // m) * m


# ---------------------------------------------------------------------------
# Pallas kernels
# ---------------------------------------------------------------------------

def _matmul_fused_kernel(*refs, apply_relu, has_residual, has_scale,
                         dual_output, single_k):
    """out = maybe_relu((X @ W) [* scale] + bias [+ residual]).

    Grid = (M tiles, N tiles, K tiles); K is innermost 'arbitrary'.  With
    `dual_output` the raw f32 matmul result and the activated (bf16) result
    are emitted as two outputs (stem conv1: raw pre-BN feature + bn1/ReLU).
    All matmul operands are bf16; accumulation and the epilogue are f32.
    """
    it = iter(refs)
    x_ref = next(it)
    w_ref = next(it)
    scale_ref = next(it) if has_scale else None
    bias_ref = next(it)
    res_ref = next(it) if has_residual else None
    if dual_output:
        raw_ref = next(it)
        act_ref = next(it)
    else:
        raw_ref = None
        act_ref = next(it)
    acc_ref = next(it, None)            # f32 VMEM scratch, only when K is split

    def _dot():
        return jnp.dot(x_ref[...], w_ref[...],
                       preferred_element_type=jnp.float32)

    def _epilogue(acc):
        y = acc
        if has_scale:
            y = y * scale_ref[...]
        y = y + bias_ref[...]
        if has_residual:
            y = y + res_ref[...].astype(jnp.float32)
        if apply_relu:
            y = jnp.maximum(y, 0.0)
        return y

    if single_k:
        acc = _dot()
        if dual_output:
            raw_ref[...] = acc.astype(raw_ref.dtype)
        act_ref[...] = _epilogue(acc).astype(act_ref.dtype)
    else:
        k = pl.program_id(2)

        @pl.when(k == 0)
        def _():
            acc_ref[...] = jnp.zeros_like(acc_ref)

        acc_ref[...] += _dot()

        @pl.when(k == pl.num_programs(2) - 1)
        def _():
            acc = acc_ref[...]
            if dual_output:
                raw_ref[...] = acc.astype(raw_ref.dtype)
            act_ref[...] = _epilogue(acc).astype(act_ref.dtype)


def _maxpool_kernel(x_ref, o_ref, *, tho, wo, c):
    """3x3 / stride-2 / pad-1 max pool.

    The padded input has its W axis pre-folded into (Wo+1, 2*C) so the
    stride-2 column structure lives in the dense 128-lane minor dim.  One
    batch element's padded image stays resident in VMEM across the row-tile
    grid axis; the tho output rows are written with one coarse store.
    """
    j = pl.program_id(1)
    rows = []
    for r in range(tho):                          # small, static, unrolled
        ho = j * tho + r
        r0 = x_ref[0, 2 * ho, :, :]               # (wo+1, 2c)
        r1 = x_ref[0, 2 * ho + 1, :, :]
        r2 = x_ref[0, 2 * ho + 2, :, :]
        hmax = jnp.maximum(jnp.maximum(r0, r1), r2).astype(jnp.float32)
        even = hmax[:, :c]                        # padded columns 0,2,4,...
        odd = hmax[:, c:]                         # padded columns 1,3,5,...
        e = jnp.maximum(even, odd)
        rows.append(jnp.maximum(e[:wo, :], even[1:wo + 1, :]))
    # single coarse store per grid step (avoids tho separate masked stores)
    o_ref[0] = jnp.stack(rows, axis=0).astype(o_ref.dtype)


# ---------------------------------------------------------------------------
# Pallas wrappers
# ---------------------------------------------------------------------------

_K_SPLIT_THRESHOLD = 2048


def fused_matmul(x, w, bias, *, scale=None, residual=None, apply_relu=False,
                 dual_output=False, act_dtype=jnp.bfloat16):
    """x:(M,K) @ w:(K,N) with fused per-channel affine, residual and ReLU."""
    M, K = x.shape
    _, N = w.shape

    x = x.astype(jnp.bfloat16)
    w = w.astype(jnp.bfloat16)
    bias2 = bias.reshape(1, N).astype(jnp.float32)
    has_scale = scale is not None
    scale2 = scale.reshape(1, N).astype(jnp.float32) if has_scale else None
    has_residual = residual is not None
    if has_residual:
        residual = residual.astype(jnp.bfloat16)   # upcast inside the epilogue

    # --- M tiling ------------------------------------------------------------
    Mp = _round_up(M, 8)
    if Mp != M:
        x = jnp.pad(x, ((0, Mp - M), (0, 0)))
        if has_residual:
            residual = jnp.pad(residual, ((0, Mp - M), (0, 0)))
    tm = 256 if Mp >= 256 else Mp

    # --- N tiling: 256 to match the 256x256 MXU, full extent for small N -----
    tn = 256 if N >= 256 else N

    # --- K: pad to a 128-multiple so the x tile's lane dim is dense; only
    #     split K when it is genuinely large ----------------------------------
    if K <= _K_SPLIT_THRESHOLD:
        Kp = _round_up(K, 128)
        tk = Kp
    else:
        tk = 1024
        Kp = _round_up(K, tk)
    if Kp != K:
        x = jnp.pad(x, ((0, 0), (0, Kp - K)))
        w = jnp.pad(w, ((0, Kp - K), (0, 0)))
    nk = Kp // tk
    single_k = (nk == 1)

    mg = pl.cdiv(Mp, tm)
    ng = pl.cdiv(N, tn)
    # v7x megacore: ensure the 'parallel' axes have >= 2 steps when possible so
    # both TensorCores get work (negligible cost on single-TC v5e/v6e).
    if mg * ng == 1 and Mp >= 16:
        tm = _round_up((Mp + 1) // 2, 8)
        mg = pl.cdiv(Mp, tm)

    grid = (mg, ng, nk)

    if single_k:
        w_spec = pl.BlockSpec((tk, tn), lambda i, j, k: (k, j))
    else:
        # deeper buffering on the weight stream hides the DMA of the K-split
        w_spec = pl.BlockSpec((tk, tn), lambda i, j, k: (k, j),
                              pipeline_mode=pl.Buffered(3))

    in_specs = [pl.BlockSpec((tm, tk), lambda i, j, k: (i, k)), w_spec]
    inputs = [x, w]
    if has_scale:
        in_specs.append(pl.BlockSpec((1, tn), lambda i, j, k: (0, j)))
        inputs.append(scale2)
    in_specs.append(pl.BlockSpec((1, tn), lambda i, j, k: (0, j)))
    inputs.append(bias2)
    if has_residual:
        in_specs.append(pl.BlockSpec((tm, tn), lambda i, j, k: (i, j)))
        inputs.append(residual)

    out_spec = pl.BlockSpec((tm, tn), lambda i, j, k: (i, j))
    act_bytes = jnp.dtype(act_dtype).itemsize
    if dual_output:
        out_shape = (jax.ShapeDtypeStruct((Mp, N), jnp.float32),
                     jax.ShapeDtypeStruct((Mp, N), act_dtype))
        out_specs = (out_spec, out_spec)
        out_bytes = Mp * N * (4 + act_bytes)
    else:
        out_shape = jax.ShapeDtypeStruct((Mp, N), act_dtype)
        out_specs = out_spec
        out_bytes = Mp * N * act_bytes

    scratch_shapes = [] if single_k else [pltpu.VMEM((tm, tn), jnp.float32)]

    kernel = functools.partial(
        _matmul_fused_kernel,
        apply_relu=apply_relu,
        has_residual=has_residual,
        has_scale=has_scale,
        dual_output=dual_output,
        single_k=single_k,
    )

    bytes_accessed = (Mp * Kp * 2 + Kp * N * 2 + out_bytes
                      + (Mp * N * 2 if has_residual else 0) + N * 8)

    out = pl.pallas_call(
        kernel,
        out_shape=out_shape,
        grid_spec=pltpu.PrefetchScalarGridSpec(
            num_scalar_prefetch=0,
            grid=grid,
            in_specs=in_specs,
            out_specs=out_specs,
            scratch_shapes=scratch_shapes,
        ),
        compiler_params=pltpu.CompilerParams(
            dimension_semantics=("parallel", "parallel", "arbitrary"),
            vmem_limit_bytes=32 * 1024 * 1024),
        cost_estimate=pl.CostEstimate(flops=2 * Mp * Kp * N,
                                      transcendentals=0,
                                      bytes_accessed=int(bytes_accessed)),
    )(*inputs)

    if dual_output:
        return out[0][:M], out[1][:M]
    return out[:M]


def conv2d_bn_act(x, w, bias, *, scale=None, stride=1, pad=0,
                  apply_relu=False, residual=None, dual_output=False,
                  act_dtype=jnp.bfloat16):
    """NHWC conv + folded-BN affine (+ residual, ReLU) via im2col + Pallas."""
    B, H, W, Cin = x.shape
    kh, kw, _, Cout = w.shape
    x = x.astype(jnp.bfloat16)                     # bf16 activation I/O
    if kh == 1 and kw == 1 and pad == 0:
        xs = x if stride == 1 else x[:, ::stride, ::stride, :]
        Ho, Wo = xs.shape[1], xs.shape[2]
        cols = xs.reshape(B * Ho * Wo, Cin)        # bf16, free reshape
    else:
        Ho = (H + 2 * pad - kh) // stride + 1
        Wo = (W + 2 * pad - kw) // stride + 1
        # TODO(synk): gather the kh*kw taps inside the kernel (pl.ANY input +
        # per-tap DMA / halo blocks) instead of materializing the bf16 im2col
        # matrix in HBM; kept host-side for lowering robustness.
        xp = jnp.pad(x, ((0, 0), (pad, pad), (pad, pad), (0, 0)))
        patches = [xp[:, di:di + stride * Ho:stride,
                      dj:dj + stride * Wo:stride, :]
                   for di in range(kh) for dj in range(kw)]
        cols = jnp.stack(patches, axis=3).reshape(B * Ho * Wo, kh * kw * Cin)

    wm = w.reshape(kh * kw * Cin, Cout)
    res2d = None if residual is None else residual.reshape(B * Ho * Wo, Cout)
    y = fused_matmul(cols, wm, bias, scale=scale, residual=res2d,
                     apply_relu=apply_relu, dual_output=dual_output,
                     act_dtype=act_dtype)
    if dual_output:
        raw, act = y
        return raw.reshape(B, Ho, Wo, Cout), act.reshape(B, Ho, Wo, Cout)
    return y.reshape(B, Ho, Wo, Cout)


def maxpool_3x3_s2(x):
    """MaxPool2d(kernel_size=3, stride=2, padding=1) in NHWC (bf16 I/O)."""
    B, H, W, C = x.shape
    Ho = (H - 1) // 2 + 1
    Wo = (W - 1) // 2 + 1
    Hpe = 2 * Ho + 1
    Wpe = 2 * Wo + 2            # even: stride-2 column pairs fold into lanes
    neg = jnp.finfo(x.dtype).min
    xp = jnp.pad(x, ((0, 0), (1, Hpe - H - 1), (1, Wpe - W - 1), (0, 0)),
                 constant_values=neg)
    # Free reshape: fold the stride-2 column pairs into the channel/lane dim.
    xf = xp.reshape(B, Hpe, Wo + 1, 2 * C)

    tho = 1
    for d in range(min(8, Ho), 0, -1):             # rows per grid step
        if Ho % d == 0:
            tho = d
            break

    return pl.pallas_call(
        functools.partial(_maxpool_kernel, tho=tho, wo=Wo, c=C),
        out_shape=jax.ShapeDtypeStruct((B, Ho, Wo, C), x.dtype),
        grid_spec=pltpu.PrefetchScalarGridSpec(
            num_scalar_prefetch=0,
            grid=(B, Ho // tho),
            in_specs=[pl.BlockSpec((1, Hpe, Wo + 1, 2 * C),
                                   lambda b, j: (b, 0, 0, 0))],
            out_specs=pl.BlockSpec((1, tho, Wo, C),
                                   lambda b, j: (b, j, 0, 0)),
        ),
        compiler_params=pltpu.CompilerParams(
            dimension_semantics=("parallel", "arbitrary")),
    )(xf)


# ---------------------------------------------------------------------------
# Deterministic synthetic parameters (ResNet-50 stem + layer1 + layer2 shapes)
# BN scale is folded into bf16 weights at init for every conv except conv1
# (whose raw pre-BN output is a returned feature).
# ---------------------------------------------------------------------------

def _conv_w(key, kh, kw, cin, cout):
    return jax.random.normal(key, (kh, kw, cin, cout), jnp.float32) \
        * (1.0 / jnp.sqrt(float(kh * kw * cin)))


def _bn_fold(key, c, eps=1e-5):
    k1, k2, k3, k4 = jax.random.split(key, 4)
    gamma = 1.0 + 0.1 * jax.random.normal(k1, (c,), jnp.float32)
    beta = 0.1 * jax.random.normal(k2, (c,), jnp.float32)
    mean = 0.1 * jax.random.normal(k3, (c,), jnp.float32)
    var = 1.0 + 0.1 * jax.random.uniform(k4, (c,), jnp.float32)
    scale = gamma / jnp.sqrt(var + eps)
    bias = beta - mean * scale
    return scale, bias


def _fold_conv(w, scale, bias):
    # BN scale folded into the conv weights; matmul epilogue is just `+ bias`.
    return (w * scale.reshape(1, 1, 1, -1)).astype(jnp.bfloat16), bias


def init_params(key):
    keys = iter(jax.random.split(key, 256))

    conv1_w = _conv_w(next(keys), 7, 7, 3, 64)
    s1, b1 = _bn_fold(next(keys), 64)
    params = {
        'conv1_w': conv1_w.astype(jnp.bfloat16),   # NOT folded: raw out needed
        'conv1_scale': s1,
        'conv1_bias': b1,
    }

    def make_block(inplanes, planes):
        width, out = planes, planes * 4
        w1 = _conv_w(next(keys), 1, 1, inplanes, width)
        w1, bb1 = _fold_conv(w1, *_bn_fold(next(keys), width))
        w2 = _conv_w(next(keys), 3, 3, width, width)
        w2, bb2 = _fold_conv(w2, *_bn_fold(next(keys), width))
        w3 = _conv_w(next(keys), 1, 1, width, out)
        w3, bb3 = _fold_conv(w3, *_bn_fold(next(keys), out))
        return {'w1': w1, 'b1': bb1, 'w2': w2, 'b2': bb2, 'w3': w3, 'b3': bb3}

    # layer1: 3 bottlenecks, 64 -> 256
    params['layer1'] = [make_block(64 if i == 0 else 256, 64) for i in range(3)]
    wd = _conv_w(next(keys), 1, 1, 64, 256)
    params['layer1_ds'] = _fold_conv(wd, *_bn_fold(next(keys), 256))
    # layer2: 4 bottlenecks, 256 -> 512, stride 2 on first
    params['layer2'] = [make_block(256 if i == 0 else 512, 128)
                        for i in range(4)]
    wd = _conv_w(next(keys), 1, 1, 256, 512)
    params['layer2_ds'] = _fold_conv(wd, *_bn_fold(next(keys), 512))
    return params


# ---------------------------------------------------------------------------
# Forward pass (mirrors the PyTorch Resnet module)
# ---------------------------------------------------------------------------

def _bottleneck(x, blk, stride, downsample):
    if downsample is not None:
        wd, bd = downsample
        identity = conv2d_bn_act(x, wd, bd, stride=stride, pad=0)
    else:
        identity = x
    h = conv2d_bn_act(x, blk['w1'], blk['b1'], stride=1, pad=0,
                      apply_relu=True)
    h = conv2d_bn_act(h, blk['w2'], blk['b2'], stride=stride, pad=1,
                      apply_relu=True)
    # conv3 + bn3 + residual add + final ReLU fused in one Pallas matmul.
    return conv2d_bn_act(h, blk['w3'], blk['b3'], stride=1, pad=0,
                         apply_relu=True, residual=identity)


def resnet_forward(x_nchw, params):
    x = jnp.transpose(x_nchw, (0, 2, 3, 1)).astype(jnp.bfloat16)   # -> NHWC

    # layer0 output = raw conv1 (pre-BN, f32); bn1+ReLU are fused into the
    # same matmul epilogue as a second (bf16) output feeding the maxpool.
    out0, t = conv2d_bn_act(x, params['conv1_w'], params['conv1_bias'],
                            scale=params['conv1_scale'], stride=2, pad=3,
                            apply_relu=True, dual_output=True)

    out1 = maxpool_3x3_s2(t)

    # resnet50 layer1 (3 bottlenecks)
    h = out1
    for i, blk in enumerate(params['layer1']):
        h = _bottleneck(h, blk, stride=1,
                        downsample=params['layer1_ds'] if i == 0 else None)
    out2 = h

    # resnet50 layer2 (4 bottlenecks, stride 2 on first)
    for i, blk in enumerate(params['layer2']):
        h = _bottleneck(h, blk, stride=2 if i == 0 else 1,
                        downsample=params['layer2_ds'] if i == 0 else None)
    out3 = h

    to_nchw = lambda a: jnp.transpose(a, (0, 3, 1, 2)).astype(jnp.float32)
    return to_nchw(out0), to_nchw(out1), to_nchw(out2), to_nchw(out3)


# ---------------------------------------------------------------------------

if __name__ == "__main__":
    key = jax.random.PRNGKey(0)
    pkey, xkey = jax.random.split(key)
    params = init_params(pkey)

    # Small NCHW input, 3 channels as required by the ResNet-50 stem.
    x = jax.random.normal(xkey, (2, 3, 32, 32), jnp.float32)

    outs = jax.jit(resnet_forward)(x, params)
    outs = jax.block_until_ready(outs)

    expected = [(2, 64, 16, 16), (2, 64, 8, 8), (2, 256, 8, 8), (2, 512, 4, 4)]
    for o, shp in zip(outs, expected):
        assert o.shape == shp, (o.shape, shp)
        assert jnp.all(jnp.isfinite(o))

    print("KERNEL_OK")
</pallas_src>

<mosaic_0001>
module attributes {stable_mosaic.version = 11 : i64} {
  func.func @_matmul_fused_kernel(%arg0: i32, %arg1: i32, %arg2: i32, %arg3: memref<256x256xbf16, #tpu.memory_space<vmem>>, %arg4: memref<256x64xbf16, #tpu.memory_space<vmem>>, %arg5: memref<1x64xf32, #tpu.memory_space<vmem>>, %arg6: memref<1x64xf32, #tpu.memory_space<vmem>>, %arg7: memref<256x64xf32, #tpu.memory_space<vmem>>, %arg8: memref<256x64xbf16, #tpu.memory_space<vmem>>) attributes {dimension_semantics = [#tpu.dimension_semantics<parallel>, #tpu.dimension_semantics<parallel>, #tpu.dimension_semantics<arbitrary>], iteration_bounds = array<i64: 2, 1, 1>, scalar_prefetch = 0 : i64, scratch_operands = 0 : i64, tpu.core_type = #tpu.core_type<tc>, window_params = [{transform_indices = @transform_0, window_bounds = array<i64: 256, 256>}, {transform_indices = @transform_1, window_bounds = array<i64: 256, 64>}, {transform_indices = @transform_2, window_bounds = array<i64: 1, 64>}, {transform_indices = @transform_3, window_bounds = array<i64: 1, 64>}, {transform_indices = @transform_4, window_bounds = array<i64: 256, 64>}, {transform_indices = @transform_5, window_bounds = array<i64: 256, 64>}]} {
    %c0 = arith.constant 0 : index
    %c0_0 = arith.constant 0 : index
    %0 = vector.load %arg3[%c0, %c0_0] : memref<256x256xbf16, #tpu.memory_space<vmem>>, vector<256x256xbf16>
    %c0_1 = arith.constant 0 : index
    %c0_2 = arith.constant 0 : index
    %1 = vector.load %arg4[%c0_1, %c0_2] : memref<256x64xbf16, #tpu.memory_space<vmem>>, vector<256x64xbf16>
    %cst = arith.constant dense<0.000000e+00> : vector<256x64xf32>
    %2 = tpu.matmul %0, %1, %cst {dimension_numbers = #tpu.dot_dimension_numbers<[1], [0], [0], [1], [0, 0, 1, 1], [], []>} : vector<256x256xbf16>, vector<256x64xbf16>, vector<256x64xf32> -> vector<256x64xf32>
    %c0_3 = arith.constant 0 : index
    %c0_4 = arith.constant 0 : index
    %3 = vector.load %arg7[%c0_3, %c0_4] : memref<256x64xf32, #tpu.memory_space<vmem>>, vector<256x64xf32>
    tpu.vector_store %arg7[%c0_3, %c0_4], %2 {strides = array<i32>} : memref<256x64xf32, #tpu.memory_space<vmem>>, vector<256x64xf32>,
    %c0_5 = arith.constant 0 : index
    %c0_6 = arith.constant 0 : index
    %4 = vector.load %arg5[%c0_5, %c0_6] : memref<1x64xf32, #tpu.memory_space<vmem>>, vector<1x64xf32>
    %5 = vector.broadcast %4 : vector<1x64xf32> to vector<256x64xf32>
    %6 = arith.mulf %2, %5 : vector<256x64xf32>
    %c0_7 = arith.constant 0 : index
    %c0_8 = arith.constant 0 : index
    %7 = vector.load %arg6[%c0_7, %c0_8] : memref<1x64xf32, #tpu.memory_space<vmem>>, vector<1x64xf32>
    %8 = vector.broadcast %7 : vector<1x64xf32> to vector<256x64xf32>
    %9 = arith.addf %6, %8 : vector<256x64xf32>
    %cst_9 = arith.constant 0.000000e+00 : f32
    %10 = vector.broadcast %cst_9 : f32 to vector<256x64xf32>
    %11 = arith.maximumf %9, %10 : vector<256x64xf32>
    %12 = arith.truncf %11 : vector<256x64xf32> to vector<256x64xbf16>
    %c0_10 = arith.constant 0 : index
    %c0_11 = arith.constant 0 : index
    %13 = vector.load %arg8[%c0_10, %c0_11] : memref<256x64xbf16, #tpu.memory_space<vmem>>, vector<256x64xbf16>
    tpu.vector_store %arg8[%c0_10, %c0_11], %12 {strides = array<i32>} : memref<256x64xbf16, #tpu.memory_space<vmem>>, vector<256x64xbf16>,
    return
  }
  func.func @transform_0(%arg0: i32, %arg1: i32, %arg2: i32) -> (i32, i32) {
    %c0_i32 = arith.constant 0 : i32
    return %arg0, %arg2 : i32, i32
  }
  func.func @transform_1(%arg0: i32, %arg1: i32, %arg2: i32) -> (i32, i32) {
    %c0_i32 = arith.constant 0 : i32
    return %arg2, %arg1 : i32, i32
  }
  func.func @transform_2(%arg0: i32, %arg1: i32, %arg2: i32) -> (i32, i32) {
    %c0_i32 = arith.constant 0 : i32
    %c0_i32_0 = arith.constant 0 : i32
    return %c0_i32, %arg1 : i32, i32
  }
  func.func @transform_3(%arg0: i32, %arg1: i32, %arg2: i32) -> (i32, i32) {
    %c0_i32 = arith.constant 0 : i32
    %c0_i32_0 = arith.constant 0 : i32
    return %c0_i32, %arg1 : i32, i32
  }
  func.func @transform_4(%arg0: i32, %arg1: i32, %arg2: i32) -> (i32, i32) {
    %c0_i32 = arith.constant 0 : i32
    return %arg0, %arg1 : i32, i32
  }
  func.func @transform_5(%arg0: i32, %arg1: i32, %arg2: i32) -> (i32, i32) {
    %c0_i32 = arith.constant 0 : i32
    return %arg0, %arg1 : i32, i32
  }
}

module attributes {stable_mosaic.version = 11 : i64} {
  func.func @_maxpool_kernel(%arg0: i32, %arg1: i32, %arg2: memref<1x17x9x128xbf16, #tpu.memory_space<vmem>>, %arg3: memref<1x8x8x64xbf16, #tpu.memory_space<vmem>>) attributes {dimension_semantics = [#tpu.dimension_semantics<parallel>, #tpu.dimension_semantics<arbitrary>], iteration_bounds = array<i64: 2, 1>, scalar_prefetch = 0 : i64, scratch_operands = 0 : i64, tpu.core_type = #tpu.core_type<tc>, window_params = [{transform_indices = @transform_0, window_bounds = array<i64: 1, 17, 9, 128>}, {transform_indices = @transform_1, window_bounds = array<i64: 1, 8, 8, 64>}]} {
    %c8_i32 = arith.constant 8 : i32
    %0 = arith.muli %arg1, %c8_i32 : i32
    %c0_i32 = arith.constant 0 : i32
    %1 = arith.addi %0, %c0_i32 : i32
    %c2_i32 = arith.constant 2 : i32
    %2 = arith.muli %c2_i32, %1 : i32
    %c0 = arith.constant 0 : index
    %3 = arith.index_cast %2 : i32 to index
    %c0_0 = arith.constant 0 : index
    %c0_1 = arith.constant 0 : index
    %4 = vector.load %arg2[%c0, %3, %c0_0, %c0_1] : memref<1x17x9x128xbf16, #tpu.memory_space<vmem>>, vector<1x1x9x128xbf16>
    %5 = vector.shape_cast %4 : vector<1x1x9x128xbf16> to vector<9x128xbf16>
    %c2_i32_2 = arith.constant 2 : i32
    %6 = arith.muli %c2_i32_2, %1 : i32
    %c1_i32 = arith.constant 1 : i32
    %7 = arith.addi %6, %c1_i32 : i32
    %c0_3 = arith.constant 0 : index
    %8 = arith.index_cast %7 : i32 to index
    %c0_4 = arith.constant 0 : index
    %c0_5 = arith.constant 0 : index
    %9 = vector.load %arg2[%c0_3, %8, %c0_4, %c0_5] : memref<1x17x9x128xbf16, #tpu.memory_space<vmem>>, vector<1x1x9x128xbf16>
    %10 = vector.shape_cast %9 : vector<1x1x9x128xbf16> to vector<9x128xbf16>
    %c2_i32_6 = arith.constant 2 : i32
    %11 = arith.muli %c2_i32_6, %1 : i32
    %c2_i32_7 = arith.constant 2 : i32
    %12 = arith.addi %11, %c2_i32_7 : i32
    %c0_8 = arith.constant 0 : index
    %13 = arith.index_cast %12 : i32 to index
    %c0_9 = arith.constant 0 : index
    %c0_10 = arith.constant 0 : index
    %14 = vector.load %arg2[%c0_8, %13, %c0_9, %c0_10] : memref<1x17x9x128xbf16, #tpu.memory_space<vmem>>, vector<1x1x9x128xbf16>
    %15 = vector.shape_cast %14 : vector<1x1x9x128xbf16> to vector<9x128xbf16>
    %16 = arith.maximumf %5, %10 : vector<9x128xbf16>
    %17 = arith.maximumf %16, %15 : vector<9x128xbf16>
    %18 = arith.extf %17 : vector<9x128xbf16> to vector<9x128xf32>
    %19 = vector.extract_strided_slice %18 {offsets = [0, 0], sizes = [9, 64], strides = [1, 1]} : vector<9x128xf32> to vector<9x64xf32>
    %20 = vector.extract_strided_slice %18 {offsets = [0, 64], sizes = [9, 64], strides = [1, 1]} : vector<9x128xf32> to vector<9x64xf32>
    %21 = arith.maximumf %19, %20 : vector<9x64xf32>
    %22 = vector.extract_strided_slice %21 {offsets = [0, 0], sizes = [8, 64], strides = [1, 1]} : vector<9x64xf32> to vector<8x64xf32>
    %23 = vector.extract_strided_slice %19 {offsets = [1, 0], sizes = [8, 64], strides = [1, 1]} : vector<9x64xf32> to vector<8x64xf32>
    %24 = arith.maximumf %22, %23 : vector<8x64xf32>
    %c8_i32_11 = arith.constant 8 : i32
    %25 = arith.muli %arg1, %c8_i32_11 : i32
    %c1_i32_12 = arith.constant 1 : i32
    %26 = arith.addi %25, %c1_i32_12 : i32
    %c2_i32_13 = arith.constant 2 : i32
    %27 = arith.muli %c2_i32_13, %26 : i32
    %c0_14 = arith.constant 0 : index
    %28 = arith.index_cast %27 : i32 to index
    %c0_15 = arith.constant 0 : index
    %c0_16 = arith.constant 0 : index
    %29 = vector.load %arg2[%c0_14, %28, %c0_15, %c0_16] : memref<1x17x9x128xbf16, #tpu.memory_space<vmem>>, vector<1x1x9x128xbf16>
    %30 = vector.shape_cast %29 : vector<1x1x9x128xbf16> to vector<9x128xbf16>
    %c2_i32_17 = arith.constant 2 : i32
    %31 = arith.muli %c2_i32_17, %26 : i32
    %c1_i32_18 = arith.constant 1 : i32
    %32 = arith.addi %31, %c1_i32_18 : i32
    %c0_19 = arith.constant 0 : index
    %33 = arith.index_cast %32 : i32 to index
    %c0_20 = arith.constant 0 : index
    %c0_21 = arith.constant 0 : index
    %34 = vector.load %arg2[%c0_19, %33, %c0_20, %c0_21] : memref<1x17x9x128xbf16, #tpu.memory_space<vmem>>, vector<1x1x9x128xbf16>
    %35 = vector.shape_cast %34 : vector<1x1x9x128xbf16> to vector<9x128xbf16>
    %c2_i32_22 = arith.constant 2 : i32
    %36 = arith.muli %c2_i32_22, %26 : i32
    %c2_i32_23 = arith.constant 2 : i32
    %37 = arith.addi %36, %c2_i32_23 : i32
    %c0_24 = arith.constant 0 : index
    %38 = arith.index_cast %37 : i32 to index
    %c0_25 = arith.constant 0 : index
    %c0_26 = arith.constant 0 : index
    %39 = vector.load %arg2[%c0_24, %38, %c0_25, %c0_26] : memref<1x17x9x128xbf16, #tpu.memory_space<vmem>>, vector<1x1x9x128xbf16>
    %40 = vector.shape_cast %39 : vector<1x1x9x128xbf16> to vector<9x128xbf16>
    %41 = arith.maximumf %30, %35 : vector<9x128xbf16>
    %42 = arith.maximumf %41, %40 : vector<9x128xbf16>
    %43 = arith.extf %42 : vector<9x128xbf16> to vector<9x128xf32>
    %44 = vector.extract_strided_slice %43 {offsets = [0, 0], sizes = [9, 64], strides = [1, 1]} : vector<9x128xf32> to vector<9x64xf32>
    %45 = vector.extract_strided_slice %43 {offsets = [0, 64], sizes = [9, 64], strides = [1, 1]} : vector<9x128xf32> to vector<9x64xf32>
    %46 = arith.maximumf %44, %45 : vector<9x64xf32>
    %47 = vector.extract_strided_slice %46 {offsets = [0, 0], sizes = [8, 64], strides = [1, 1]} : vector<9x64xf32> to vector<8x64xf32>
    %48 = vector.extract_strided_slice %44 {offsets = [1, 0], sizes = [8, 64], strides = [1, 1]} : vector<9x64xf32> to vector<8x64xf32>
    %49 = arith.maximumf %47, %48 : vector<8x64xf32>
    %c8_i32_27 = arith.constant 8 : i32
    %50 = arith.muli %arg1, %c8_i32_27 : i32
    %c2_i32_28 = arith.constant 2 : i32
    %51 = arith.addi %50, %c2_i32_28 : i32
    %c2_i32_29 = arith.constant 2 : i32
    %52 = arith.muli %c2_i32_29, %51 : i32
    %c0_30 = arith.constant 0 : index
    %53 = arith.index_cast %52 : i32 to index
    %c0_31 = arith.constant 0 : index
    %c0_32 = arith.constant 0 : index
    %54 = vector.load %arg2[%c0_30, %53, %c0_31, %c0_32] : memref<1x17x9x128xbf16, #tpu.memory_space<vmem>>, vector<1x1x9x128xbf16>
    %55 = vector.shape_cast %54 : vector<1x1x9x128xbf16> to vector<9x128xbf16>
    %c2_i32_33 = arith.constant 2 : i32
    %56 = arith.muli %c2_i32_33, %51 : i32
    %c1_i32_34 = arith.constant 1 : i32
    %57 = arith.addi %56, %c1_i32_34 : i32
    %c0_35 = arith.constant 0 : index
    %58 = arith.index_cast %57 : i32 to index
    %c0_36 = arith.constant 0 : index
    %c0_37 = arith.constant 0 : index
    %59 = vector.load %arg2[%c0_35, %58, %c0_36, %c0_37] : memref<1x17x9x128xbf16, #tpu.memory_space<vmem>>, vector<1x1x9x128xbf16>
    %60 = vector.shape_cast %59 : vector<1x1x9x128xbf16> to vector<9x128xbf16>
    %c2_i32_38 = arith.constant 2 : i32
    %61 = arith.muli %c2_i32_38, %51 : i32
    %c2_i32_39 = arith.constant 2 : i32
    %62 = arith.addi %61, %c2_i32_39 : i32
    %c0_40 = arith.constant 0 : index
    %63 = arith.index_cast %62 : i32 to index
    %c0_41 = arith.constant 0 : index
    %c0_42 = arith.constant 0 : index
    %64 = vector.load %arg2[%c0_40, %63, %c0_41, %c0_42] : memref<1x17x9x128xbf16, #tpu.memory_space<vmem>>, vector<1x1x9x128xbf16>
    %65 = vector.shape_cast %64 : vector<1x1x9x128xbf16> to vector<9x128xbf16>
    %66 = arith.maximumf %55, %60 : vector<9x128xbf16>
    %67 = arith.maximumf %66, %65 : vector<9x128xbf16>
    %68 = arith.extf %67 : vector<9x128xbf16> to vector<9x128xf32>
    %69 = vector.extract_strided_slice %68 {offsets = [0, 0], sizes = [9, 64], strides = [1, 1]} : vector<9x128xf32> to vector<9x64xf32>
    %70 = vector.extract_strided_slice %68 {offsets = [0, 64], sizes = [9, 64], strides = [1, 1]} : vector<9x128xf32> to vector<9x64xf32>
    %71 = arith.maximumf %69, %70 : vector<9x64xf32>
    %72 = vector.extract_strided_slice %71 {offsets = [0, 0], sizes = [8, 64], strides = [1, 1]} : vector<9x64xf32> to vector<8x64xf32>
    %73 = vector.extract_strided_slice %69 {offsets = [1, 0], sizes = [8, 64], strides = [1, 1]} : vector<9x64xf32> to vector<8x64xf32>
    %74 = arith.maximumf %72, %73 : vector<8x64xf32>
    %c8_i32_43 = arith.constant 8 : i32
    %75 = arith.muli %arg1, %c8_i32_43 : i32
    %c3_i32 = arith.constant 3 : i32
    %76 = arith.addi %75, %c3_i32 : i32
    %c2_i32_44 = arith.constant 2 : i32
    %77 = arith.muli %c2_i32_44, %76 : i32
    %c0_45 = arith.constant 0 : index
    %78 = arith.index_cast %77 : i32 to index
    %c0_46 = arith.constant 0 : index
    %c0_47 = arith.constant 0 : index
    %79 = vector.load %arg2[%c0_45, %78, %c0_46, %c0_47] : memref<1x17x9x128xbf16, #tpu.memory_space<vmem>>, vector<1x1x9x128xbf16>
    %80 = vector.shape_cast %79 : vector<1x1x9x128xbf16> to vector<9x128xbf16>
    %c2_i32_48 = arith.constant 2 : i32
    %81 = arith.muli %c2_i32_48, %76 : i32
    %c1_i32_49 = arith.constant 1 : i32
    %82 = arith.addi %81, %c1_i32_49 : i32
    %c0_50 = arith.constant 0 : index
    %83 = arith.index_cast %82 : i32 to index
    %c0_51 = arith.constant 0 : index
    %c0_52 = arith.constant 0 : index
    %84 = vector.load %arg2[%c0_50, %83, %c0_51, %c0_52] : memref<1x17x9x128xbf16, #tpu.memory_space<vmem>>, vector<1x1x9x128xbf16>
    %85 = vector.shape_cast %84 : vector<1x1x9x128xbf16> to vector<9x128xbf16>
    %c2_i32_53 = arith.constant 2 : i32
    %86 = arith.muli %c2_i32_53, %76 : i32
    %c2_i32_54 = arith.constant 2 : i32
    %87 = arith.addi %86, %c2_i32_54 : i32
    %c0_55 = arith.constant 0 : index
    %88 = arith.index_cast %87 : i32 to index
    %c0_56 = arith.constant 0 : index
    %c0_57 = arith.constant 0 : index
    %89 = vector.load %arg2[%c0_55, %88, %c0_56, %c0_57] : memref<1x17x9x128xbf16, #tpu.memory_space<vmem>>, vector<1x1x9x128xbf16>
    %90 = vector.shape_cast %89 : vector<1x1x9x128xbf16> to vector<9x128xbf16>
    %91 = arith.maximumf %80, %85 : vector<9x128xbf16>
    %92 = arith.maximumf %91, %90 : vector<9x128xbf16>
    %93 = arith.extf %92 : vector<9x128xbf16> to vector<9x128xf32>
    %94 = vector.extract_strided_slice %93 {offsets = [0, 0], sizes = [9, 64], strides = [1, 1]} : vector<9x128xf32> to vector<9x64xf32>
    %95 = vector.extract_strided_slice %93 {offsets = [0, 64], sizes = [9, 64], strides = [1, 1]} : vector<9x128xf32> to vector<9x64xf32>
    %96 = arith.maximumf %94, %95 : vector<9x64xf32>
    %97 = vector.extract_strided_slice %96 {offsets = [0, 0], sizes = [8, 64], strides = [1, 1]} : vector<9x64xf32> to vector<8x64xf32>
    %98 = vector.extract_strided_slice %94 {offsets = [1, 0], sizes = [8, 64], strides = [1, 1]} : vector<9x64xf32> to vector<8x64xf32>
    %99 = arith.maximumf %97, %98 : vector<8x64xf32>
    %c8_i32_58 = arith.constant 8 : i32
    %100 = arith.muli %arg1, %c8_i32_58 : i32
    %c4_i32 = arith.constant 4 : i32
    %101 = arith.addi %100, %c4_i32 : i32
    %c2_i32_59 = arith.constant 2 : i32
    %102 = arith.muli %c2_i32_59, %101 : i32
    %c0_60 = arith.constant 0 : index
    %103 = arith.index_cast %102 : i32 to index
    %c0_61 = arith.constant 0 : index
    %c0_62 = arith.constant 0 : index
    %104 = vector.load %arg2[%c0_60, %103, %c0_61, %c0_62] : memref<1x17x9x128xbf16, #tpu.memory_space<vmem>>, vector<1x1x9x128xbf16>
    %105 = vector.shape_cast %104 : vector<1x1x9x128xbf16> to vector<9x128xbf16>
    %c2_i32_63 = arith.constant 2 : i32
    %106 = arith.muli %c2_i32_63, %101 : i32
    %c1_i32_64 = arith.constant 1 : i32
    %107 = arith.addi %106, %c1_i32_64 : i32
    %c0_65 = arith.constant 0 : index
    %108 = arith.index_cast %107 : i32 to index
    %c0_66 = arith.constant 0 : index
    %c0_67 = arith.constant 0 : index
    %109 = vector.load %arg2[%c0_65, %108, %c0_66, %c0_67] : memref<1x17x9x128xbf16, #tpu.memory_space<vmem>>, vector<1x1x9x128xbf16>
    %110 = vector.shape_cast %109 : vector<1x1x9x128xbf16> to vector<9x128xbf16>
    %c2_i32_68 = arith.constant 2 : i32
    %111 = arith.muli %c2_i32_68, %101 : i32
    %c2_i32_69 = arith.constant 2 : i32
    %112 = arith.addi %111, %c2_i32_69 : i32
    %c0_70 = arith.constant 0 : index
    %113 = arith.index_cast %112 : i32 to index
    %c0_71 = arith.constant 0 : index
    %c0_72 = arith.constant 0 : index
    %114 = vector.load %arg2[%c0_70, %113, %c0_71, %c0_72] : memref<1x17x9x128xbf16, #tpu.memory_space<vmem>>, vector<1x1x9x128xbf16>
    %115 = vector.shape_cast %114 : vector<1x1x9x128xbf16> to vector<9x128xbf16>
    %116 = arith.maximumf %105, %110 : vector<9x128xbf16>
    %117 = arith.maximumf %116, %115 : vector<9x128xbf16>
    %118 = arith.extf %117 : vector<9x128xbf16> to vector<9x128xf32>
    %119 = vector.extract_strided_slice %118 {offsets = [0, 0], sizes = [9, 64], strides = [1, 1]} : vector<9x128xf32> to vector<9x64xf32>
    %120 = vector.extract_strided_slice %118 {offsets = [0, 64], sizes = [9, 64], strides = [1, 1]} : vector<9x128xf32> to vector<9x64xf32>
    %121 = arith.maximumf %119, %120 : vector<9x64xf32>
    %122 = vector.extract_strided_slice %121 {offsets = [0, 0], sizes = [8, 64], strides = [1, 1]} : vector<9x64xf32> to vector<8x64xf32>
    %123 = vector.extract_strided_slice %119 {offsets = [1, 0], sizes = [8, 64], strides = [1, 1]} : vector<9x64xf32> to vector<8x64xf32>
    %124 = arith.maximumf %122, %123 : vector<8x64xf32>
    %c8_i32_73 = arith.constant 8 : i32
    %125 = arith.muli %arg1, %c8_i32_73 : i32
    %c5_i32 = arith.constant 5 : i32
    %126 = arith.addi %125, %c5_i32 : i32
    %c2_i32_74 = arith.constant 2 : i32
    %127 = arith.muli %c2_i32_74, %126 : i32
    %c0_75 = arith.constant 0 : index
    %128 = arith.index_cast %127 : i32 to index
    %c0_76 = arith.constant 0 : index
    %c0_77 = arith.constant 0 : index
    %129 = vector.load %arg2[%c0_75, %128, %c0_76, %c0_77] : memref<1x17x9x128xbf16, #tpu.memory_space<vmem>>, vector<1x1x9x128xbf16>
    %130 = vector.shape_cast %129 : vector<1x1x9x128xbf16> to vector<9x128xbf16>
    %c2_i32_78 = arith.constant 2 : i32
    %131 = arith.muli %c2_i32_78, %126 : i32
    %c1_i32_79 = arith.constant 1 : i32
    %132 = arith.addi %131, %c1_i32_79 : i32
    %c0_80 = arith.constant 0 : index
    %133 = arith.index_cast %132 : i32 to index
    %c0_81 = arith.constant 0 : index
    %c0_82 = arith.constant 0 : index
    %134 = vector.load %arg2[%c0_80, %133, %c0_81, %c0_82] : memref<1x17x9x128xbf16, #tpu.memory_space<vmem>>, vector<1x1x9x128xbf16>
    %135 = vector.shape_cast %134 : vector<1x1x9x128xbf16> to vector<9x128xbf16>
    %c2_i32_83 = arith.constant 2 : i32
    %136 = arith.muli %c2_i32_83, %126 : i32
    %c2_i32_84 = arith.constant 2 : i32
    %137 = arith.addi %136, %c2_i32_84 : i32
    %c0_85 = arith.constant 0 : index
    %138 = arith.index_cast %137 : i32 to index
    %c0_86 = arith.constant 0 : index
    %c0_87 = arith.constant 0 : index
    %139 = vector.load %arg2[%c0_85, %138, %c0_86, %c0_87] : memref<1x17x9x128xbf16, #tpu.memory_space<vmem>>, vector<1x1x9x128xbf16>
    %140 = vector.shape_cast %139 : vector<1x1x9x128xbf16> to vector<9x128xbf16>
    %141 = arith.maximumf %130, %135 : vector<9x128xbf16>
    %142 = arith.maximumf %141, %140 : vector<9x128xbf16>
    %143 = arith.extf %142 : vector<9x128xbf16> to vector<9x128xf32>
    %144 = vector.extract_strided_slice %143 {offsets = [0, 0], sizes = [9, 64], strides = [1, 1]} : vector<9x128xf32> to vector<9x64xf32>
    %145 = vector.extract_strided_slice %143 {offsets = [0, 64], sizes = [9, 64], strides = [1, 1]} : vector<9x128xf32> to vector<9x64xf32>
    %146 = arith.maximumf %144, %145 : vector<9x64xf32>
    %147 = vector.extract_strided_slice %146 {offsets = [0, 0], sizes = [8, 64], strides = [1, 1]} : vector<9x64xf32> to vector<8x64xf32>
    %148 = vector.extract_strided_slice %144 {offsets = [1, 0], sizes = [8, 64], strides = [1, 1]} : vector<9x64xf32> to vector<8x64xf32>
    %149 = arith.maximumf %147, %148 : vector<8x64xf32>
    %c8_i32_88 = arith.constant 8 : i32
    %150 = arith.muli %arg1, %c8_i32_88 : i32
    %c6_i32 = arith.constant 6 : i32
    %151 = arith.addi %150, %c6_i32 : i32
    %c2_i32_89 = arith.constant 2 : i32
    %152 = arith.muli %c2_i32_89, %151 : i32
    %c0_90 = arith.constant 0 : index
    %153 = arith.index_cast %152 : i32 to index
    %c0_91 = arith.constant 0 : index
    %c0_92 = arith.constant 0 : index
    %154 = vector.load %arg2[%c0_90, %153, %c0_91, %c0_92] : memref<1x17x9x128xbf16, #tpu.memory_space<vmem>>, vector<1x1x9x128xbf16>
    %155 = vector.shape_cast %154 : vector<1x1x9x128xbf16> to vector<9x128xbf16>
    %c2_i32_93 = arith.constant 2 : i32
    %156 = arith.muli %c2_i32_93, %151 : i32
    %c1_i32_94 = arith.constant 1 : i32
    %157 = arith.addi %156, %c1_i32_94 : i32
    %c0_95 = arith.constant 0 : index
    %158 = arith.index_cast %157 : i32 to index
    %c0_96 = arith.constant 0 : index
    %c0_97 = arith.constant 0 : index
    %159 = vector.load %arg2[%c0_95, %158, %c0_96, %c0_97] : memref<1x17x9x128xbf16, #tpu.memory_space<vmem>>, vector<1x1x9x128xbf16>
    %160 = vector.shape_cast %159 : vector<1x1x9x128xbf16> to vector<9x128xbf16>
    %c2_i32_98 = arith.constant 2 : i32
    %161 = arith.muli %c2_i32_98, %151 : i32
    %c2_i32_99 = arith.constant 2 : i32
    %162 = arith.addi %161, %c2_i32_99 : i32
    %c0_100 = arith.constant 0 : index
    %163 = arith.index_cast %162 : i32 to index
    %c0_101 = arith.constant 0 : index
    %c0_102 = arith.constant 0 : index
    %164 = vector.load %arg2[%c0_100, %163, %c0_101, %c0_102] : memref<1x17x9x128xbf16, #tpu.memory_space<vmem>>, vector<1x1x9x128xbf16>
    %165 = vector.shape_cast %164 : vector<1x1x9x128xbf16> to vector<9x128xbf16>
    %166 = arith.maximumf %155, %160 : vector<9x128xbf16>
    %167 = arith.maximumf %166, %165 : vector<9x128xbf16>
    %168 = arith.extf %167 : vector<9x128xbf16> to vector<9x128xf32>
    %169 = vector.extract_strided_slice %168 {offsets = [0, 0], sizes = [9, 64], strides = [1, 1]} : vector<9x128xf32> to vector<9x64xf32>
    %170 = vector.extract_strided_slice %168 {offsets = [0, 64], sizes = [9, 64], strides = [1, 1]} : vector<9x128xf32> to vector<9x64xf32>
    %171 = arith.maximumf %169, %170 : vector<9x64xf32>
    %172 = vector.extract_strided_slice %171 {offsets = [0, 0], sizes = [8, 64], strides = [1, 1]} : vector<9x64xf32> to vector<8x64xf32>
    %173 = vector.extract_strided_slice %169 {offsets = [1, 0], sizes = [8, 64], strides = [1, 1]} : vector<9x64xf32> to vector<8x64xf32>
    %174 = arith.maximumf %172, %173 : vector<8x64xf32>
    %c8_i32_103 = arith.constant 8 : i32
    %175 = arith.muli %arg1, %c8_i32_103 : i32
    %c7_i32 = arith.constant 7 : i32
    %176 = arith.addi %175, %c7_i32 : i32
    %c2_i32_104 = arith.constant 2 : i32
    %177 = arith.muli %c2_i32_104, %176 : i32
    %c0_105 = arith.constant 0 : index
    %178 = arith.index_cast %177 : i32 to index
    %c0_106 = arith.constant 0 : index
    %c0_107 = arith.constant 0 : index
    %179 = vector.load %arg2[%c0_105, %178, %c0_106, %c0_107] : memref<1x17x9x128xbf16, #tpu.memory_space<vmem>>, vector<1x1x9x128xbf16>
    %180 = vector.shape_cast %179 : vector<1x1x9x128xbf16> to vector<9x128xbf16>
    %c2_i32_108 = arith.constant 2 : i32
    %181 = arith.muli %c2_i32_108, %176 : i32
    %c1_i32_109 = arith.constant 1 : i32
    %182 = arith.addi %181, %c1_i32_109 : i32
    %c0_110 = arith.constant 0 : index
    %183 = arith.index_cast %182 : i32 to index
    %c0_111 = arith.constant 0 : index
    %c0_112 = arith.constant 0 : index
    %184 = vector.load %arg2[%c0_110, %183, %c0_111, %c0_112] : memref<1x17x9x128xbf16, #tpu.memory_space<vmem>>, vector<1x1x9x128xbf16>
    %185 = vector.shape_cast %184 : vector<1x1x9x128xbf16> to vector<9x128xbf16>
    %c2_i32_113 = arith.constant 2 : i32
    %186 = arith.muli %c2_i32_113, %176 : i32
    %c2_i32_114 = arith.constant 2 : i32
    %187 = arith.addi %186, %c2_i32_114 : i32
    %c0_115 = arith.constant 0 : index
    %188 = arith.index_cast %187 : i32 to index
    %c0_116 = arith.constant 0 : index
    %c0_117 = arith.constant 0 : index
    %189 = vector.load %arg2[%c0_115, %188, %c0_116, %c0_117] : memref<1x17x9x128xbf16, #tpu.memory_space<vmem>>, vector<1x1x9x128xbf16>
    %190 = vector.shape_cast %189 : vector<1x1x9x128xbf16> to vector<9x128xbf16>
    %191 = arith.maximumf %180, %185 : vector<9x128xbf16>
    %192 = arith.maximumf %191, %190 : vector<9x128xbf16>
    %193 = arith.extf %192 : vector<9x128xbf16> to vector<9x128xf32>
    %194 = vector.extract_strided_slice %193 {offsets = [0, 0], sizes = [9, 64], strides = [1, 1]} : vector<9x128xf32> to vector<9x64xf32>
    %195 = vector.extract_strided_slice %193 {offsets = [0, 64], sizes = [9, 64], strides = [1, 1]} : vector<9x128xf32> to vector<9x64xf32>
    %196 = arith.maximumf %194, %195 : vector<9x64xf32>
    %197 = vector.extract_strided_slice %196 {offsets = [0, 0], sizes = [8, 64], strides = [1, 1]} : vector<9x64xf32> to vector<8x64xf32>
    %198 = vector.extract_strided_slice %194 {offsets = [1, 0], sizes = [8, 64], strides = [1, 1]} : vector<9x64xf32> to vector<8x64xf32>
    %199 = arith.maximumf %197, %198 : vector<8x64xf32>
    %200 = vector.shape_cast %24 : vector<8x64xf32> to vector<1x8x64xf32>
    %201 = vector.shape_cast %49 : vector<8x64xf32> to vector<1x8x64xf32>
    %202 = vector.shape_cast %74 : vector<8x64xf32> to vector<1x8x64xf32>
    %203 = vector.shape_cast %99 : vector<8x64xf32> to vector<1x8x64xf32>
    %204 = vector.shape_cast %124 : vector<8x64xf32> to vector<1x8x64xf32>
    %205 = vector.shape_cast %149 : vector<8x64xf32> to vector<1x8x64xf32>
    %206 = vector.shape_cast %174 : vector<8x64xf32> to vector<1x8x64xf32>
    %207 = vector.shape_cast %199 : vector<8x64xf32> to vector<1x8x64xf32>
    %208 = tpu.concatenate %200, %201, %202, %203, %204, %205, %206, %207 in 0 : vector<1x8x64xf32>, vector<1x8x64xf32>, vector<1x8x64xf32>, vector<1x8x64xf32>, vector<1x8x64xf32>, vector<1x8x64xf32>, vector<1x8x64xf32>, vector<1x8x64xf32> -> vector<8x8x64xf32>
    %209 = arith.truncf %208 : vector<8x8x64xf32> to vector<8x8x64xbf16>
    %c0_118 = arith.constant 0 : index
    %c0_119 = arith.constant 0 : index
    %c0_120 = arith.constant 0 : index
    %c0_121 = arith.constant 0 : index
    %210 = vector.load %arg3[%c0_118, %c0_119, %c0_120, %c0_121] : memref<1x8x8x64xbf16, #tpu.memory_space<vmem>>, vector<1x8x8x64xbf16>
    %211 = vector.shape_cast %210 : vector<1x8x8x64xbf16> to vector<8x8x64xbf16>
    %212 = vector.shape_cast %209 : vector<8x8x64xbf16> to vector<1x8x8x64xbf16>
    tpu.vector_store %arg3[%c0_118, %c0_119, %c0_120, %c0_121], %212 {strides = array<i32>} : memref<1x8x8x64xbf16, #tpu.memory_space<vmem>>, vector<1x8x8x64xbf16>,
    return
  }
  func.func @transform_0(%arg0: i32, %arg1: i32) -> (i32, i32, i32, i32) {
    %c0_i32 = arith.constant 0 : i32
    %c0_i32_0 = arith.constant 0 : i32
    %c0_i32_1 = arith.constant 0 : i32
    %c0_i32_2 = arith.constant 0 : i32
    return %arg0, %c0_i32, %c0_i32_0, %c0_i32_1 : i32, i32, i32, i32
  }
  func.func @transform_1(%arg0: i32, %arg1: i32) -> (i32, i32, i32, i32) {
    %c0_i32 = arith.constant 0 : i32
    %c0_i32_0 = arith.constant 0 : i32
    %c0_i32_1 = arith.constant 0 : i32
    return %arg0, %arg1, %c0_i32, %c0_i32_0 : i32, i32, i32, i32
  }
}

module attributes {stable_mosaic.version = 11 : i64} {
  func.func @_matmul_fused_kernel(%arg0: i32, %arg1: i32, %arg2: i32, %arg3: memref<64x128xbf16, #tpu.memory_space<vmem>>, %arg4: memref<128x64xbf16, #tpu.memory_space<vmem>>, %arg5: memref<1x64xf32, #tpu.memory_space<vmem>>, %arg6: memref<64x64xbf16, #tpu.memory_space<vmem>>) attributes {dimension_semantics = [#tpu.dimension_semantics<parallel>, #tpu.dimension_semantics<parallel>, #tpu.dimension_semantics<arbitrary>], iteration_bounds = array<i64: 2, 1, 1>, scalar_prefetch = 0 : i64, scratch_operands = 0 : i64, tpu.core_type = #tpu.core_type<tc>, window_params = [{transform_indices = @transform_0, window_bounds = array<i64: 64, 128>}, {transform_indices = @transform_1, window_bounds = array<i64: 128, 64>}, {transform_indices = @transform_2, window_bounds = array<i64: 1, 64>}, {transform_indices = @transform_3, window_bounds = array<i64: 64, 64>}]} {
    %c0 = arith.constant 0 : index
    %c0_0 = arith.constant 0 : index
    %0 = vector.load %arg3[%c0, %c0_0] : memref<64x128xbf16, #tpu.memory_space<vmem>>, vector<64x128xbf16>
    %c0_1 = arith.constant 0 : index
    %c0_2 = arith.constant 0 : index
    %1 = vector.load %arg4[%c0_1, %c0_2] : memref<128x64xbf16, #tpu.memory_space<vmem>>, vector<128x64xbf16>
    %cst = arith.constant dense<0.000000e+00> : vector<64x64xf32>
    %2 = tpu.matmul %0, %1, %cst {dimension_numbers = #tpu.dot_dimension_numbers<[1], [0], [0], [1], [0, 0, 1, 1], [], []>} : vector<64x128xbf16>, vector<128x64xbf16>, vector<64x64xf32> -> vector<64x64xf32>
    %c0_3 = arith.constant 0 : index
    %c0_4 = arith.constant 0 : index
    %3 = vector.load %arg5[%c0_3, %c0_4] : memref<1x64xf32, #tpu.memory_space<vmem>>, vector<1x64xf32>
    %4 = vector.broadcast %3 : vector<1x64xf32> to vector<64x64xf32>
    %5 = arith.addf %2, %4 : vector<64x64xf32>
    %cst_5 = arith.constant 0.000000e+00 : f32
    %6 = vector.broadcast %cst_5 : f32 to vector<64x64xf32>
    %7 = arith.maximumf %5, %6 : vector<64x64xf32>
    %8 = arith.truncf %7 : vector<64x64xf32> to vector<64x64xbf16>
    %c0_6 = arith.constant 0 : index
    %c0_7 = arith.constant 0 : index
    %9 = vector.load %arg6[%c0_6, %c0_7] : memref<64x64xbf16, #tpu.memory_space<vmem>>, vector<64x64xbf16>
    tpu.vector_store %arg6[%c0_6, %c0_7], %8 {strides = array<i32>} : memref<64x64xbf16, #tpu.memory_space<vmem>>, vector<64x64xbf16>,
    return
  }
  func.func @transform_0(%arg0: i32, %arg1: i32, %arg2: i32) -> (i32, i32) {
    %c0_i32 = arith.constant 0 : i32
    return %arg0, %arg2 : i32, i32
  }
  func.func @transform_1(%arg0: i32, %arg1: i32, %arg2: i32) -> (i32, i32) {
    %c0_i32 = arith.constant 0 : i32
    return %arg2, %arg1 : i32, i32
  }
  func.func @transform_2(%arg0: i32, %arg1: i32, %arg2: i32) -> (i32, i32) {
    %c0_i32 = arith.constant 0 : i32
    %c0_i32_0 = arith.constant 0 : i32
    return %c0_i32, %arg1 : i32, i32
  }
  func.func @transform_3(%arg0: i32, %arg1: i32, %arg2: i32) -> (i32, i32) {
    %c0_i32 = arith.constant 0 : i32
    return %arg0, %arg1 : i32, i32
  }
}

module attributes {stable_mosaic.version = 11 : i64} {
  func.func @_matmul_fused_kernel(%arg0: i32, %arg1: i32, %arg2: i32, %arg3: memref<64x640xbf16, #tpu.memory_space<vmem>>, %arg4: memref<640x64xbf16, #tpu.memory_space<vmem>>, %arg5: memref<1x64xf32, #tpu.memory_space<vmem>>, %arg6: memref<64x64xbf16, #tpu.memory_space<vmem>>) attributes {dimension_semantics = [#tpu.dimension_semantics<parallel>, #tpu.dimension_semantics<parallel>, #tpu.dimension_semantics<arbitrary>], iteration_bounds = array<i64: 2, 1, 1>, scalar_prefetch = 0 : i64, scratch_operands = 0 : i64, tpu.core_type = #tpu.core_type<tc>, window_params = [{transform_indices = @transform_0, window_bounds = array<i64: 64, 640>}, {transform_indices = @transform_1, window_bounds = array<i64: 640, 64>}, {transform_indices = @transform_2, window_bounds = array<i64: 1, 64>}, {transform_indices = @transform_3, window_bounds = array<i64: 64, 64>}]} {
    %c0 = arith.constant 0 : index
    %c0_0 = arith.constant 0 : index
    %0 = vector.load %arg3[%c0, %c0_0] : memref<64x640xbf16, #tpu.memory_space<vmem>>, vector<64x640xbf16>
    %c0_1 = arith.constant 0 : index
    %c0_2 = arith.constant 0 : index
    %1 = vector.load %arg4[%c0_1, %c0_2] : memref<640x64xbf16, #tpu.memory_space<vmem>>, vector<640x64xbf16>
    %cst = arith.constant dense<0.000000e+00> : vector<64x64xf32>
    %2 = tpu.matmul %0, %1, %cst {dimension_numbers = #tpu.dot_dimension_numbers<[1], [0], [0], [1], [0, 0, 1, 1], [], []>} : vector<64x640xbf16>, vector<640x64xbf16>, vector<64x64xf32> -> vector<64x64xf32>
    %c0_3 = arith.constant 0 : index
    %c0_4 = arith.constant 0 : index
    %3 = vector.load %arg5[%c0_3, %c0_4] : memref<1x64xf32, #tpu.memory_space<vmem>>, vector<1x64xf32>
    %4 = vector.broadcast %3 : vector<1x64xf32> to vector<64x64xf32>
    %5 = arith.addf %2, %4 : vector<64x64xf32>
    %cst_5 = arith.constant 0.000000e+00 : f32
    %6 = vector.broadcast %cst_5 : f32 to vector<64x64xf32>
    %7 = arith.maximumf %5, %6 : vector<64x64xf32>
    %8 = arith.truncf %7 : vector<64x64xf32> to vector<64x64xbf16>
    %c0_6 = arith.constant 0 : index
    %c0_7 = arith.constant 0 : index
    %9 = vector.load %arg6[%c0_6, %c0_7] : memref<64x64xbf16, #tpu.memory_space<vmem>>, vector<64x64xbf16>
    tpu.vector_store %arg6[%c0_6, %c0_7], %8 {strides = array<i32>} : memref<64x64xbf16, #tpu.memory_space<vmem>>, vector<64x64xbf16>,
    return
  }
  func.func @transform_0(%arg0: i32, %arg1: i32, %arg2: i32) -> (i32, i32) {
    %c0_i32 = arith.constant 0 : i32
    return %arg0, %arg2 : i32, i32
  }
  func.func @transform_1(%arg0: i32, %arg1: i32, %arg2: i32) -> (i32, i32) {
    %c0_i32 = arith.constant 0 : i32
    return %arg2, %arg1 : i32, i32
  }
  func.func @transform_2(%arg0: i32, %arg1: i32, %arg2: i32) -> (i32, i32) {
    %c0_i32 = arith.constant 0 : i32
    %c0_i32_0 = arith.constant 0 : i32
    return %c0_i32, %arg1 : i32, i32
  }
  func.func @transform_3(%arg0: i32, %arg1: i32, %arg2: i32) -> (i32, i32) {
    %c0_i32 = arith.constant 0 : i32
    return %arg0, %arg1 : i32, i32
  }
}

module attributes {stable_mosaic.version = 11 : i64} {
  func.func @_matmul_fused_kernel(%arg0: i32, %arg1: i32, %arg2: i32, %arg3: memref<64x128xbf16, #tpu.memory_space<vmem>>, %arg4: memref<128x256xbf16, #tpu.memory_space<vmem>>, %arg5: memref<1x256xf32, #tpu.memory_space<vmem>>, %arg6: memref<64x256xbf16, #tpu.memory_space<vmem>>, %arg7: memref<64x256xbf16, #tpu.memory_space<vmem>>) attributes {dimension_semantics = [#tpu.dimension_semantics<parallel>, #tpu.dimension_semantics<parallel>, #tpu.dimension_semantics<arbitrary>], iteration_bounds = array<i64: 2, 1, 1>, scalar_prefetch = 0 : i64, scratch_operands = 0 : i64, tpu.core_type = #tpu.core_type<tc>, window_params = [{transform_indices = @transform_0, window_bounds = array<i64: 64, 128>}, {transform_indices = @transform_1, window_bounds = array<i64: 128, 256>}, {transform_indices = @transform_2, window_bounds = array<i64: 1, 256>}, {transform_indices = @transform_3, window_bounds = array<i64: 64, 256>}, {transform_indices = @transform_4, window_bounds = array<i64: 64, 256>}]} {
    %c0 = arith.constant 0 : index
    %c0_0 = arith.constant 0 : index
    %0 = vector.load %arg3[%c0, %c0_0] : memref<64x128xbf16, #tpu.memory_space<vmem>>, vector<64x128xbf16>
    %c0_1 = arith.constant 0 : index
    %c0_2 = arith.constant 0 : index
    %1 = vector.load %arg4[%c0_1, %c0_2] : memref<128x256xbf16, #tpu.memory_space<vmem>>, vector<128x256xbf16>
    %cst = arith.constant dense<0.000000e+00> : vector<64x256xf32>
    %2 = tpu.matmul %0, %1, %cst {dimension_numbers = #tpu.dot_dimension_numbers<[1], [0], [0], [1], [0, 0, 1, 1], [], []>} : vector<64x128xbf16>, vector<128x256xbf16>, vector<64x256xf32> -> vector<64x256xf32>
    %c0_3 = arith.constant 0 : index
    %c0_4 = arith.constant 0 : index
    %3 = vector.load %arg5[%c0_3, %c0_4] : memref<1x256xf32, #tpu.memory_space<vmem>>, vector<1x256xf32>
    %4 = vector.broadcast %3 : vector<1x256xf32> to vector<64x256xf32>
    %5 = arith.addf %2, %4 : vector<64x256xf32>
    %c0_5 = arith.constant 0 : index
    %c0_6 = arith.constant 0 : index
    %6 = vector.load %arg6[%c0_5, %c0_6] : memref<64x256xbf16, #tpu.memory_space<vmem>>, vector<64x256xbf16>
    %7 = arith.extf %6 : vector<64x256xbf16> to vector<64x256xf32>
    %8 = arith.addf %5, %7 : vector<64x256xf32>
    %cst_7 = arith.constant 0.000000e+00 : f32
    %9 = vector.broadcast %cst_7 : f32 to vector<64x256xf32>
    %10 = arith.maximumf %8, %9 : vector<64x256xf32>
    %11 = arith.truncf %10 : vector<64x256xf32> to vector<64x256xbf16>
    %c0_8 = arith.constant 0 : index
    %c0_9 = arith.constant 0 : index
    %12 = vector.load %arg7[%c0_8, %c0_9] : memref<64x256xbf16, #tpu.memory_space<vmem>>, vector<64x256xbf16>
    tpu.vector_store %arg7[%c0_8, %c0_9], %11 {strides = array<i32>} : memref<64x256xbf16, #tpu.memory_space<vmem>>, vector<64x256xbf16>,
    return
  }
  func.func @transform_0(%arg0: i32, %arg1: i32, %arg2: i32) -> (i32, i32) {
    %c0_i32 = arith.constant 0 : i32
    return %arg0, %arg2 : i32, i32
  }
  func.func @transform_1(%arg0: i32, %arg1: i32, %arg2: i32) -> (i32, i32) {
    %c0_i32 = arith.constant 0 : i32
    return %arg2, %arg1 : i32, i32
  }
  func.func @transform_2(%arg0: i32, %arg1: i32, %arg2: i32) -> (i32, i32) {
    %c0_i32 = arith.constant 0 : i32
    %c0_i32_0 = arith.constant 0 : i32
    return %c0_i32, %arg1 : i32, i32
  }
  func.func @transform_3(%arg0: i32, %arg1: i32, %arg2: i32) -> (i32, i32) {
    %c0_i32 = arith.constant 0 : i32
    return %arg0, %arg1 : i32, i32
  }
  func.func @transform_4(%arg0: i32, %arg1: i32, %arg2: i32) -> (i32, i32) {
    %c0_i32 = arith.constant 0 : i32
    return %arg0, %arg1 : i32, i32
  }
}

module attributes {stable_mosaic.version = 11 : i64} {
  func.func @_matmul_fused_kernel(%arg0: i32, %arg1: i32, %arg2: i32, %arg3: memref<64x128xbf16, #tpu.memory_space<vmem>>, %arg4: memref<128x256xbf16, #tpu.memory_space<vmem>>, %arg5: memref<1x256xf32, #tpu.memory_space<vmem>>, %arg6: memref<64x256xbf16, #tpu.memory_space<vmem>>) attributes {dimension_semantics = [#tpu.dimension_semantics<parallel>, #tpu.dimension_semantics<parallel>, #tpu.dimension_semantics<arbitrary>], iteration_bounds = array<i64: 2, 1, 1>, scalar_prefetch = 0 : i64, scratch_operands = 0 : i64, tpu.core_type = #tpu.core_type<tc>, window_params = [{transform_indices = @transform_0, window_bounds = array<i64: 64, 128>}, {transform_indices = @transform_1, window_bounds = array<i64: 128, 256>}, {transform_indices = @transform_2, window_bounds = array<i64: 1, 256>}, {transform_indices = @transform_3, window_bounds = array<i64: 64, 256>}]} {
    %c0 = arith.constant 0 : index
    %c0_0 = arith.constant 0 : index
    %0 = vector.load %arg3[%c0, %c0_0] : memref<64x128xbf16, #tpu.memory_space<vmem>>, vector<64x128xbf16>
    %c0_1 = arith.constant 0 : index
    %c0_2 = arith.constant 0 : index
    %1 = vector.load %arg4[%c0_1, %c0_2] : memref<128x256xbf16, #tpu.memory_space<vmem>>, vector<128x256xbf16>
    %cst = arith.constant dense<0.000000e+00> : vector<64x256xf32>
    %2 = tpu.matmul %0, %1, %cst {dimension_numbers = #tpu.dot_dimension_numbers<[1], [0], [0], [1], [0, 0, 1, 1], [], []>} : vector<64x128xbf16>, vector<128x256xbf16>, vector<64x256xf32> -> vector<64x256xf32>
    %c0_3 = arith.constant 0 : index
    %c0_4 = arith.constant 0 : index
    %3 = vector.load %arg5[%c0_3, %c0_4] : memref<1x256xf32, #tpu.memory_space<vmem>>, vector<1x256xf32>
    %4 = vector.broadcast %3 : vector<1x256xf32> to vector<64x256xf32>
    %5 = arith.addf %2, %4 : vector<64x256xf32>
    %6 = arith.truncf %5 : vector<64x256xf32> to vector<64x256xbf16>
    %c0_5 = arith.constant 0 : index
    %c0_6 = arith.constant 0 : index
    %7 = vector.load %arg6[%c0_5, %c0_6] : memref<64x256xbf16, #tpu.memory_space<vmem>>, vector<64x256xbf16>
    tpu.vector_store %arg6[%c0_5, %c0_6], %6 {strides = array<i32>} : memref<64x256xbf16, #tpu.memory_space<vmem>>, vector<64x256xbf16>,
    return
  }
  func.func @transform_0(%arg0: i32, %arg1: i32, %arg2: i32) -> (i32, i32) {
    %c0_i32 = arith.constant 0 : i32
    return %arg0, %arg2 : i32, i32
  }
  func.func @transform_1(%arg0: i32, %arg1: i32, %arg2: i32) -> (i32, i32) {
    %c0_i32 = arith.constant 0 : i32
    return %arg2, %arg1 : i32, i32
  }
  func.func @transform_2(%arg0: i32, %arg1: i32, %arg2: i32) -> (i32, i32) {
    %c0_i32 = arith.constant 0 : i32
    %c0_i32_0 = arith.constant 0 : i32
    return %c0_i32, %arg1 : i32, i32
  }
  func.func @transform_3(%arg0: i32, %arg1: i32, %arg2: i32) -> (i32, i32) {
    %c0_i32 = arith.constant 0 : i32
    return %arg0, %arg1 : i32, i32
  }
}

module attributes {stable_mosaic.version = 11 : i64} {
  func.func @_matmul_fused_kernel(%arg0: i32, %arg1: i32, %arg2: i32, %arg3: memref<64x256xbf16, #tpu.memory_space<vmem>>, %arg4: memref<256x128xbf16, #tpu.memory_space<vmem>>, %arg5: memref<1x128xf32, #tpu.memory_space<vmem>>, %arg6: memref<64x128xbf16, #tpu.memory_space<vmem>>) attributes {dimension_semantics = [#tpu.dimension_semantics<parallel>, #tpu.dimension_semantics<parallel>, #tpu.dimension_semantics<arbitrary>], iteration_bounds = array<i64: 2, 1, 1>, scalar_prefetch = 0 : i64, scratch_operands = 0 : i64, tpu.core_type = #tpu.core_type<tc>, window_params = [{transform_indices = @transform_0, window_bounds = array<i64: 64, 256>}, {transform_indices = @transform_1, window_bounds = array<i64: 256, 128>}, {transform_indices = @transform_2, window_bounds = array<i64: 1, 128>}, {transform_indices = @transform_3, window_bounds = array<i64: 64, 128>}]} {
    %c0 = arith.constant 0 : index
    %c0_0 = arith.constant 0 : index
    %0 = vector.load %arg3[%c0, %c0_0] : memref<64x256xbf16, #tpu.memory_space<vmem>>, vector<64x256xbf16>
    %c0_1 = arith.constant 0 : index
    %c0_2 = arith.constant 0 : index
    %1 = vector.load %arg4[%c0_1, %c0_2] : memref<256x128xbf16, #tpu.memory_space<vmem>>, vector<256x128xbf16>
    %cst = arith.constant dense<0.000000e+00> : vector<64x128xf32>
    %2 = tpu.matmul %0, %1, %cst {dimension_numbers = #tpu.dot_dimension_numbers<[1], [0], [0], [1], [0, 0, 1, 1], [], []>} : vector<64x256xbf16>, vector<256x128xbf16>, vector<64x128xf32> -> vector<64x128xf32>
    %c0_3 = arith.constant 0 : index
    %c0_4 = arith.constant 0 : index
    %3 = vector.load %arg5[%c0_3, %c0_4] : memref<1x128xf32, #tpu.memory_space<vmem>>, vector<1x128xf32>
    %4 = vector.broadcast %3 : vector<1x128xf32> to vector<64x128xf32>
    %5 = arith.addf %2, %4 : vector<64x128xf32>
    %cst_5 = arith.constant 0.000000e+00 : f32
    %6 = vector.broadcast %cst_5 : f32 to vector<64x128xf32>
    %7 = arith.maximumf %5, %6 : vector<64x128xf32>
    %8 = arith.truncf %7 : vector<64x128xf32> to vector<64x128xbf16>
    %c0_6 = arith.constant 0 : index
    %c0_7 = arith.constant 0 : index
    %9 = vector.load %arg6[%c0_6, %c0_7] : memref<64x128xbf16, #tpu.memory_space<vmem>>, vector<64x128xbf16>
    tpu.vector_store %arg6[%c0_6, %c0_7], %8 {strides = array<i32>} : memref<64x128xbf16, #tpu.memory_space<vmem>>, vector<64x128xbf16>,
    return
  }
  func.func @transform_0(%arg0: i32, %arg1: i32, %arg2: i32) -> (i32, i32) {
    %c0_i32 = arith.constant 0 : i32
    return %arg0, %arg2 : i32, i32
  }
  func.func @transform_1(%arg0: i32, %arg1: i32, %arg2: i32) -> (i32, i32) {
    %c0_i32 = arith.constant 0 : i32
    return %arg2, %arg1 : i32, i32
  }
  func.func @transform_2(%arg0: i32, %arg1: i32, %arg2: i32) -> (i32, i32) {
    %c0_i32 = arith.constant 0 : i32
    %c0_i32_0 = arith.constant 0 : i32
    return %c0_i32, %arg1 : i32, i32
  }
  func.func @transform_3(%arg0: i32, %arg1: i32, %arg2: i32) -> (i32, i32) {
    %c0_i32 = arith.constant 0 : i32
    return %arg0, %arg1 : i32, i32
  }
}

module attributes {stable_mosaic.version = 11 : i64} {
  func.func @_matmul_fused_kernel(%arg0: i32, %arg1: i32, %arg2: i32, %arg3: memref<64x256xbf16, #tpu.memory_space<vmem>>, %arg4: memref<256x64xbf16, #tpu.memory_space<vmem>>, %arg5: memref<1x64xf32, #tpu.memory_space<vmem>>, %arg6: memref<64x64xbf16, #tpu.memory_space<vmem>>) attributes {dimension_semantics = [#tpu.dimension_semantics<parallel>, #tpu.dimension_semantics<parallel>, #tpu.dimension_semantics<arbitrary>], iteration_bounds = array<i64: 2, 1, 1>, scalar_prefetch = 0 : i64, scratch_operands = 0 : i64, tpu.core_type = #tpu.core_type<tc>, window_params = [{transform_indices = @transform_0, window_bounds = array<i64: 64, 256>}, {transform_indices = @transform_1, window_bounds = array<i64: 256, 64>}, {transform_indices = @transform_2, window_bounds = array<i64: 1, 64>}, {transform_indices = @transform_3, window_bounds = array<i64: 64, 64>}]} {
    %c0 = arith.constant 0 : index
    %c0_0 = arith.constant 0 : index
    %0 = vector.load %arg3[%c0, %c0_0] : memref<64x256xbf16, #tpu.memory_space<vmem>>, vector<64x256xbf16>
    %c0_1 = arith.constant 0 : index
    %c0_2 = arith.constant 0 : index
    %1 = vector.load %arg4[%c0_1, %c0_2] : memref<256x64xbf16, #tpu.memory_space<vmem>>, vector<256x64xbf16>
    %cst = arith.constant dense<0.000000e+00> : vector<64x64xf32>
    %2 = tpu.matmul %0, %1, %cst {dimension_numbers = #tpu.dot_dimension_numbers<[1], [0], [0], [1], [0, 0, 1, 1], [], []>} : vector<64x256xbf16>, vector<256x64xbf16>, vector<64x64xf32> -> vector<64x64xf32>
    %c0_3 = arith.constant 0 : index
    %c0_4 = arith.constant 0 : index
    %3 = vector.load %arg5[%c0_3, %c0_4] : memref<1x64xf32, #tpu.memory_space<vmem>>, vector<1x64xf32>
    %4 = vector.broadcast %3 : vector<1x64xf32> to vector<64x64xf32>
    %5 = arith.addf %2, %4 : vector<64x64xf32>
    %cst_5 = arith.constant 0.000000e+00 : f32
    %6 = vector.broadcast %cst_5 : f32 to vector<64x64xf32>
    %7 = arith.maximumf %5, %6 : vector<64x64xf32>
    %8 = arith.truncf %7 : vector<64x64xf32> to vector<64x64xbf16>
    %c0_6 = arith.constant 0 : index
    %c0_7 = arith.constant 0 : index
    %9 = vector.load %arg6[%c0_6, %c0_7] : memref<64x64xbf16, #tpu.memory_space<vmem>>, vector<64x64xbf16>
    tpu.vector_store %arg6[%c0_6, %c0_7], %8 {strides = array<i32>} : memref<64x64xbf16, #tpu.memory_space<vmem>>, vector<64x64xbf16>,
    return
  }
  func.func @transform_0(%arg0: i32, %arg1: i32, %arg2: i32) -> (i32, i32) {
    %c0_i32 = arith.constant 0 : i32
    return %arg0, %arg2 : i32, i32
  }
  func.func @transform_1(%arg0: i32, %arg1: i32, %arg2: i32) -> (i32, i32) {
    %c0_i32 = arith.constant 0 : i32
    return %arg2, %arg1 : i32, i32
  }
  func.func @transform_2(%arg0: i32, %arg1: i32, %arg2: i32) -> (i32, i32) {
    %c0_i32 = arith.constant 0 : i32
    %c0_i32_0 = arith.constant 0 : i32
    return %c0_i32, %arg1 : i32, i32
  }
  func.func @transform_3(%arg0: i32, %arg1: i32, %arg2: i32) -> (i32, i32) {
    %c0_i32 = arith.constant 0 : i32
    return %arg0, %arg1 : i32, i32
  }
}

module attributes {stable_mosaic.version = 11 : i64} {
  func.func @_matmul_fused_kernel(%arg0: i32, %arg1: i32, %arg2: i32, %arg3: memref<16x1152xbf16, #tpu.memory_space<vmem>>, %arg4: memref<1152x128xbf16, #tpu.memory_space<vmem>>, %arg5: memref<1x128xf32, #tpu.memory_space<vmem>>, %arg6: memref<16x128xbf16, #tpu.memory_space<vmem>>) attributes {dimension_semantics = [#tpu.dimension_semantics<parallel>, #tpu.dimension_semantics<parallel>, #tpu.dimension_semantics<arbitrary>], iteration_bounds = array<i64: 2, 1, 1>, scalar_prefetch = 0 : i64, scratch_operands = 0 : i64, tpu.core_type = #tpu.core_type<tc>, window_params = [{transform_indices = @transform_0, window_bounds = array<i64: 16, 1152>}, {transform_indices = @transform_1, window_bounds = array<i64: 1152, 128>}, {transform_indices = @transform_2, window_bounds = array<i64: 1, 128>}, {transform_indices = @transform_3, window_bounds = array<i64: 16, 128>}]} {
    %c0 = arith.constant 0 : index
    %c0_0 = arith.constant 0 : index
    %0 = vector.load %arg3[%c0, %c0_0] : memref<16x1152xbf16, #tpu.memory_space<vmem>>, vector<16x1152xbf16>
    %c0_1 = arith.constant 0 : index
    %c0_2 = arith.constant 0 : index
    %1 = vector.load %arg4[%c0_1, %c0_2] : memref<1152x128xbf16, #tpu.memory_space<vmem>>, vector<1152x128xbf16>
    %cst = arith.constant dense<0.000000e+00> : vector<16x128xf32>
    %2 = tpu.matmul %0, %1, %cst {dimension_numbers = #tpu.dot_dimension_numbers<[1], [0], [0], [1], [0, 0, 1, 1], [], []>} : vector<16x1152xbf16>, vector<1152x128xbf16>, vector<16x128xf32> -> vector<16x128xf32>
    %c0_3 = arith.constant 0 : index
    %c0_4 = arith.constant 0 : index
    %3 = vector.load %arg5[%c0_3, %c0_4] : memref<1x128xf32, #tpu.memory_space<vmem>>, vector<1x128xf32>
    %4 = vector.broadcast %3 : vector<1x128xf32> to vector<16x128xf32>
    %5 = arith.addf %2, %4 : vector<16x128xf32>
    %cst_5 = arith.constant 0.000000e+00 : f32
    %6 = vector.broadcast %cst_5 : f32 to vector<16x128xf32>
    %7 = arith.maximumf %5, %6 : vector<16x128xf32>
    %8 = arith.truncf %7 : vector<16x128xf32> to vector<16x128xbf16>
    %c0_6 = arith.constant 0 : index
    %c0_7 = arith.constant 0 : index
    %9 = vector.load %arg6[%c0_6, %c0_7] : memref<16x128xbf16, #tpu.memory_space<vmem>>, vector<16x128xbf16>
    tpu.vector_store %arg6[%c0_6, %c0_7], %8 {strides = array<i32>} : memref<16x128xbf16, #tpu.memory_space<vmem>>, vector<16x128xbf16>,
    return
  }
  func.func @transform_0(%arg0: i32, %arg1: i32, %arg2: i32) -> (i32, i32) {
    %c0_i32 = arith.constant 0 : i32
    return %arg0, %arg2 : i32, i32
  }
  func.func @transform_1(%arg0: i32, %arg1: i32, %arg2: i32) -> (i32, i32) {
    %c0_i32 = arith.constant 0 : i32
    return %arg2, %arg1 : i32, i32
  }
  func.func @transform_2(%arg0: i32, %arg1: i32, %arg2: i32) -> (i32, i32) {
    %c0_i32 = arith.constant 0 : i32
    %c0_i32_0 = arith.constant 0 : i32
    return %c0_i32, %arg1 : i32, i32
  }
  func.func @transform_3(%arg0: i32, %arg1: i32, %arg2: i32) -> (i32, i32) {
    %c0_i32 = arith.constant 0 : i32
    return %arg0, %arg1 : i32, i32
  }
}

module attributes {stable_mosaic.version = 11 : i64} {
  func.func @_matmul_fused_kernel(%arg0: i32, %arg1: i32, %arg2: i32, %arg3: memref<32x256xbf16, #tpu.memory_space<vmem>>, %arg4: memref<256x256xbf16, #tpu.memory_space<vmem>>, %arg5: memref<1x256xf32, #tpu.memory_space<vmem>>, %arg6: memref<32x256xbf16, #tpu.memory_space<vmem>>) attributes {dimension_semantics = [#tpu.dimension_semantics<parallel>, #tpu.dimension_semantics<parallel>, #tpu.dimension_semantics<arbitrary>], iteration_bounds = array<i64: 1, 2, 1>, scalar_prefetch = 0 : i64, scratch_operands = 0 : i64, tpu.core_type = #tpu.core_type<tc>, window_params = [{transform_indices = @transform_0, window_bounds = array<i64: 32, 256>}, {transform_indices = @transform_1, window_bounds = array<i64: 256, 256>}, {transform_indices = @transform_2, window_bounds = array<i64: 1, 256>}, {transform_indices = @transform_3, window_bounds = array<i64: 32, 256>}]} {
    %c0 = arith.constant 0 : index
    %c0_0 = arith.constant 0 : index
    %0 = vector.load %arg3[%c0, %c0_0] : memref<32x256xbf16, #tpu.memory_space<vmem>>, vector<32x256xbf16>
    %c0_1 = arith.constant 0 : index
    %c0_2 = arith.constant 0 : index
    %1 = vector.load %arg4[%c0_1, %c0_2] : memref<256x256xbf16, #tpu.memory_space<vmem>>, vector<256x256xbf16>
    %cst = arith.constant dense<0.000000e+00> : vector<32x256xf32>
    %2 = tpu.matmul %0, %1, %cst {dimension_numbers = #tpu.dot_dimension_numbers<[1], [0], [0], [1], [0, 0, 1, 1], [], []>} : vector<32x256xbf16>, vector<256x256xbf16>, vector<32x256xf32> -> vector<32x256xf32>
    %c0_3 = arith.constant 0 : index
    %c0_4 = arith.constant 0 : index
    %3 = vector.load %arg5[%c0_3, %c0_4] : memref<1x256xf32, #tpu.memory_space<vmem>>, vector<1x256xf32>
    %4 = vector.broadcast %3 : vector<1x256xf32> to vector<32x256xf32>
    %5 = arith.addf %2, %4 : vector<32x256xf32>
    %6 = arith.truncf %5 : vector<32x256xf32> to vector<32x256xbf16>
    %c0_5 = arith.constant 0 : index
    %c0_6 = arith.constant 0 : index
    %7 = vector.load %arg6[%c0_5, %c0_6] : memref<32x256xbf16, #tpu.memory_space<vmem>>, vector<32x256xbf16>
    tpu.vector_store %arg6[%c0_5, %c0_6], %6 {strides = array<i32>} : memref<32x256xbf16, #tpu.memory_space<vmem>>, vector<32x256xbf16>,
    return
  }
  func.func @transform_0(%arg0: i32, %arg1: i32, %arg2: i32) -> (i32, i32) {
    %c0_i32 = arith.constant 0 : i32
    return %arg0, %arg2 : i32, i32
  }
  func.func @transform_1(%arg0: i32, %arg1: i32, %arg2: i32) -> (i32, i32) {
    %c0_i32 = arith.constant 0 : i32
    return %arg2, %arg1 : i32, i32
  }
  func.func @transform_2(%arg0: i32, %arg1: i32, %arg2: i32) -> (i32, i32) {
    %c0_i32 = arith.constant 0 : i32
    %c0_i32_0 = arith.constant 0 : i32
    return %c0_i32, %arg1 : i32, i32
  }
  func.func @transform_3(%arg0: i32, %arg1: i32, %arg2: i32) -> (i32, i32) {
    %c0_i32 = arith.constant 0 : i32
    return %arg0, %arg1 : i32, i32
  }
}

module attributes {stable_mosaic.version = 11 : i64} {
  func.func @_matmul_fused_kernel(%arg0: i32, %arg1: i32, %arg2: i32, %arg3: memref<32x128xbf16, #tpu.memory_space<vmem>>, %arg4: memref<128x256xbf16, #tpu.memory_space<vmem>>, %arg5: memref<1x256xf32, #tpu.memory_space<vmem>>, %arg6: memref<32x256xbf16, #tpu.memory_space<vmem>>, %arg7: memref<32x256xbf16, #tpu.memory_space<vmem>>) attributes {dimension_semantics = [#tpu.dimension_semantics<parallel>, #tpu.dimension_semantics<parallel>, #tpu.dimension_semantics<arbitrary>], iteration_bounds = array<i64: 1, 2, 1>, scalar_prefetch = 0 : i64, scratch_operands = 0 : i64, tpu.core_type = #tpu.core_type<tc>, window_params = [{transform_indices = @transform_0, window_bounds = array<i64: 32, 128>}, {transform_indices = @transform_1, window_bounds = array<i64: 128, 256>}, {transform_indices = @transform_2, window_bounds = array<i64: 1, 256>}, {transform_indices = @transform_3, window_bounds = array<i64: 32, 256>}, {transform_indices = @transform_4, window_bounds = array<i64: 32, 256>}]} {
    %c0 = arith.constant 0 : index
    %c0_0 = arith.constant 0 : index
    %0 = vector.load %arg3[%c0, %c0_0] : memref<32x128xbf16, #tpu.memory_space<vmem>>, vector<32x128xbf16>
    %c0_1 = arith.constant 0 : index
    %c0_2 = arith.constant 0 : index
    %1 = vector.load %arg4[%c0_1, %c0_2] : memref<128x256xbf16, #tpu.memory_space<vmem>>, vector<128x256xbf16>
    %cst = arith.constant dense<0.000000e+00> : vector<32x256xf32>
    %2 = tpu.matmul %0, %1, %cst {dimension_numbers = #tpu.dot_dimension_numbers<[1], [0], [0], [1], [0, 0, 1, 1], [], []>} : vector<32x128xbf16>, vector<128x256xbf16>, vector<32x256xf32> -> vector<32x256xf32>
    %c0_3 = arith.constant 0 : index
    %c0_4 = arith.constant 0 : index
    %3 = vector.load %arg5[%c0_3, %c0_4] : memref<1x256xf32, #tpu.memory_space<vmem>>, vector<1x256xf32>
    %4 = vector.broadcast %3 : vector<1x256xf32> to vector<32x256xf32>
    %5 = arith.addf %2, %4 : vector<32x256xf32>
    %c0_5 = arith.constant 0 : index
    %c0_6 = arith.constant 0 : index
    %6 = vector.load %arg6[%c0_5, %c0_6] : memref<32x256xbf16, #tpu.memory_space<vmem>>, vector<32x256xbf16>
    %7 = arith.extf %6 : vector<32x256xbf16> to vector<32x256xf32>
    %8 = arith.addf %5, %7 : vector<32x256xf32>
    %cst_7 = arith.constant 0.000000e+00 : f32
    %9 = vector.broadcast %cst_7 : f32 to vector<32x256xf32>
    %10 = arith.maximumf %8, %9 : vector<32x256xf32>
    %11 = arith.truncf %10 : vector<32x256xf32> to vector<32x256xbf16>
    %c0_8 = arith.constant 0 : index
    %c0_9 = arith.constant 0 : index
    %12 = vector.load %arg7[%c0_8, %c0_9] : memref<32x256xbf16, #tpu.memory_space<vmem>>, vector<32x256xbf16>
    tpu.vector_store %arg7[%c0_8, %c0_9], %11 {strides = array<i32>} : memref<32x256xbf16, #tpu.memory_space<vmem>>, vector<32x256xbf16>,
    return
  }
  func.func @transform_0(%arg0: i32, %arg1: i32, %arg2: i32) -> (i32, i32) {
    %c0_i32 = arith.constant 0 : i32
    return %arg0, %arg2 : i32, i32
  }
  func.func @transform_1(%arg0: i32, %arg1: i32, %arg2: i32) -> (i32, i32) {
    %c0_i32 = arith.constant 0 : i32
    return %arg2, %arg1 : i32, i32
  }
  func.func @transform_2(%arg0: i32, %arg1: i32, %arg2: i32) -> (i32, i32) {
    %c0_i32 = arith.constant 0 : i32
    %c0_i32_0 = arith.constant 0 : i32
    return %c0_i32, %arg1 : i32, i32
  }
  func.func @transform_3(%arg0: i32, %arg1: i32, %arg2: i32) -> (i32, i32) {
    %c0_i32 = arith.constant 0 : i32
    return %arg0, %arg1 : i32, i32
  }
  func.func @transform_4(%arg0: i32, %arg1: i32, %arg2: i32) -> (i32, i32) {
    %c0_i32 = arith.constant 0 : i32
    return %arg0, %arg1 : i32, i32
  }
}

module attributes {stable_mosaic.version = 11 : i64} {
  func.func @_matmul_fused_kernel(%arg0: i32, %arg1: i32, %arg2: i32, %arg3: memref<16x512xbf16, #tpu.memory_space<vmem>>, %arg4: memref<512x128xbf16, #tpu.memory_space<vmem>>, %arg5: memref<1x128xf32, #tpu.memory_space<vmem>>, %arg6: memref<16x128xbf16, #tpu.memory_space<vmem>>) attributes {dimension_semantics = [#tpu.dimension_semantics<parallel>, #tpu.dimension_semantics<parallel>, #tpu.dimension_semantics<arbitrary>], iteration_bounds = array<i64: 2, 1, 1>, scalar_prefetch = 0 : i64, scratch_operands = 0 : i64, tpu.core_type = #tpu.core_type<tc>, window_params = [{transform_indices = @transform_0, window_bounds = array<i64: 16, 512>}, {transform_indices = @transform_1, window_bounds = array<i64: 512, 128>}, {transform_indices = @transform_2, window_bounds = array<i64: 1, 128>}, {transform_indices = @transform_3, window_bounds = array<i64: 16, 128>}]} {
    %c0 = arith.constant 0 : index
    %c0_0 = arith.constant 0 : index
    %0 = vector.load %arg3[%c0, %c0_0] : memref<16x512xbf16, #tpu.memory_space<vmem>>, vector<16x512xbf16>
    %c0_1 = arith.constant 0 : index
    %c0_2 = arith.constant 0 : index
    %1 = vector.load %arg4[%c0_1, %c0_2] : memref<512x128xbf16, #tpu.memory_space<vmem>>, vector<512x128xbf16>
    %cst = arith.constant dense<0.000000e+00> : vector<16x128xf32>
    %2 = tpu.matmul %0, %1, %cst {dimension_numbers = #tpu.dot_dimension_numbers<[1], [0], [0], [1], [0, 0, 1, 1], [], []>} : vector<16x512xbf16>, vector<512x128xbf16>, vector<16x128xf32> -> vector<16x128xf32>
    %c0_3 = arith.constant 0 : index
    %c0_4 = arith.constant 0 : index
    %3 = vector.load %arg5[%c0_3, %c0_4] : memref<1x128xf32, #tpu.memory_space<vmem>>, vector<1x128xf32>
    %4 = vector.broadcast %3 : vector<1x128xf32> to vector<16x128xf32>
    %5 = arith.addf %2, %4 : vector<16x128xf32>
    %cst_5 = arith.constant 0.000000e+00 : f32
    %6 = vector.broadcast %cst_5 : f32 to vector<16x128xf32>
    %7 = arith.maximumf %5, %6 : vector<16x128xf32>
    %8 = arith.truncf %7 : vector<16x128xf32> to vector<16x128xbf16>
    %c0_6 = arith.constant 0 : index
    %c0_7 = arith.constant 0 : index
    %9 = vector.load %arg6[%c0_6, %c0_7] : memref<16x128xbf16, #tpu.memory_space<vmem>>, vector<16x128xbf16>
    tpu.vector_store %arg6[%c0_6, %c0_7], %8 {strides = array<i32>} : memref<16x128xbf16, #tpu.memory_space<vmem>>, vector<16x128xbf16>,
    return
  }
  func.func @transform_0(%arg0: i32, %arg1: i32, %arg2: i32) -> (i32, i32) {
    %c0_i32 = arith.constant 0 : i32
    return %arg0, %arg2 : i32, i32
  }
  func.func @transform_1(%arg0: i32, %arg1: i32, %arg2: i32) -> (i32, i32) {
    %c0_i32 = arith.constant 0 : i32
    return %arg2, %arg1 : i32, i32
  }
  func.func @transform_2(%arg0: i32, %arg1: i32, %arg2: i32) -> (i32, i32) {
    %c0_i32 = arith.constant 0 : i32
    %c0_i32_0 = arith.constant 0 : i32
    return %c0_i32, %arg1 : i32, i32
  }
  func.func @transform_3(%arg0: i32, %arg1: i32, %arg2: i32) -> (i32, i32) {
    %c0_i32 = arith.constant 0 : i32
    return %arg0, %arg1 : i32, i32
  }
}

</mosaic_0001>

<llo_original>
// kernel: resnet_forward.25
$region0: #{resnet_forward.25}
  #allocation0 [shape = 'u32[]', space=smem, size = 0x4, offset = 0x4, fixed_abs, tag = 'smem constant byte address 0x4 - core index']
  #allocation1 [shape = 'u32[144,128]{1,0:T(1,128)}', space=vmem, size = 0x12000, scoped, tag = 'internal scratch']
  %s0 = inlined_call_operand.vmem [shape: bf16[512,256], index: 0, kind: input, shape index: {}]
  %s1 = inlined_call_operand.vmem [shape: bf16[256,64], index: 1, kind: input, shape index: {}]
  %s2 = inlined_call_operand.vmem [shape: f32[1,64], index: 2, kind: input, shape index: {}]
  %s3 = inlined_call_operand.vmem [shape: f32[1,64], index: 3, kind: input, shape index: {}]
  %s4 = inlined_call_operand.hbm [shape: f32[512,64], index: 4, kind: output, shape index: {0}]
  %s5 = inlined_call_operand.vmem [shape: bf16[512,64], index: 5, kind: output, shape index: {1}]
  %6 = xla_tuple %s4, %s5
  %s7 = sld [smem:[#allocation0]]
  $region57: #{resnet_forward.25} parent=0
    _
  %s9 = ssub.s32 1, %s7
  %s10 = scalar_select 0, %s9, %s7
  $region1: #{resnet_forward.25} parent=0
    #allocation2 [shape = 'u8[262144]{0}', space=vmem, size = 0x40000, scoped, tag = 'output window, operand 0']
    #allocation3 [shape = 's32[2]{0}', space=sflag, size = 0x8, scoped, tag = 'scoped memory for resnet_forward.25']
    %11 = vsyncpa [#allocation3], 0
    %s12 = scalar_lea.sflag [#allocation3], 1
    %13 = vsyncpa %s12, 0
    loop: start=0, step=1, limit=4
    $region2: #{resnet_forward.25} parent=1 // loop_pre_header
      _
    $region3: #{resnet_forward.25} parent=1 // loop_header
      %s15 = sphi 0, %s19
      %p16 = scmp.ge.s32.totalorder %s15, 4
      %s22 = sphi 0, %s41
      %s23 = sphi 0, %s37
      %s24 = sphi 0, %s33
      %s25 = sphi 0, %s22
      %s26 = sphi 0, %s23
      %s27 = sphi 0, %s24
      %s28 = sphi 0, %s25
      %s29 = sphi 0, %s26
      %s30 = sphi 0, %s27
      %s46 = sphi 0, %s48
      %s49 = sphi 0, %s46
      %s50 = sphi 0, %s49
      %s66 = sphi 0, %s50
      %s74 = sphi 0, %s76
      %s77 = sphi 0, %s74
      %s78 = sphi 0, %s77
      %s94 = sphi 0, %s78
      %s100 = sphi 0, %s102
      %s103 = sphi 0, %s100
      %s104 = sphi 0, %s103
      %s120 = sphi 0, %s104
      %s126 = sphi 0, %s128
      %s129 = sphi 0, %s126
      %s130 = sphi 0, %s129
      %s146 = sphi 0, %s130
      %s154 = sphi 0, %s156
      %s157 = sphi 0, %s154
      %s158 = sphi 0, %s157
      %s174 = sphi 0, %s158
      %s182 = sphi 0, %s184
      %s185 = sphi 0, %s182
      %s186 = sphi 0, %s185
      %s202 = sphi 0, %s186
    $region4: #{resnet_forward.25} parent=1 // loop_header_branch
      %18 = sbr.rel (%p16) target = $region8
    $region5: #{resnet_forward.25} parent=1 // loop_body
      %s20 = ssub.s32 %s15, 1
      %s21 = ssub.s32 %s15, 2
      %s31 = sadd.s32 1, %s24
      %p32 = scmp.ge.s32.totalorder %s31, 1
      %s33 = scalar_select %p32, 0, %s31
      %s34 = sadd.s32 1, %s23
      %s35 = scalar_select %p32, %s34, %s23
      %p36 = scmp.ge.s32.totalorder %s35, 1
      %s37 = scalar_select %p36, 0, %s35
      %s38 = sadd.s32 1, %s22
      %s39 = scalar_select %p36, %s38, %s22
      %p40 = scmp.ge.s32.totalorder %s39, 2
      %s41 = scalar_select %p40, 0, %s39
      %s42 = ssub.s32 %s22, %s41
      %s43 = ssub.s32 %s24, %s33
      %s44 = sor.u32 %s42, %s43
      %p45 = scmp.eq.s32.totalorder %s44, 0
      %s47 = sadd.s32 %s46, 1
      %s48 = scalar_select %p45, %s46, %s47
      %p51 = pneg %p45
      %p52 = scmp.eq.s32.totalorder %s15, 1
      %p53 = por %p51, %p52
      %p54 = scmp.ne.s32.totalorder %s46, %s49
      %p55 = scmp.eq.s32.totalorder %s15, 0
      %p56 = por %p54, %p55
      %p57 = scmp.ne.s32.totalorder %s46, %s49
      %p58 = scmp.eq.s32.totalorder %s20, 1
      %p59 = por %p57, %p58
      %p60 = scmp.ne.s32.totalorder %s49, %s50
      %p61 = scmp.eq.s32.totalorder %s20, 0
      %p62 = por %p60, %p61
      %p63 = scmp.ne.s32.totalorder %s49, %s50
      %p64 = scmp.eq.s32.totalorder %s21, 1
      %p65 = por %p63, %p64
      %p67 = scmp.ne.s32.totalorder %s50, %s66
      %p68 = scmp.eq.s32.totalorder %s21, 0
      %p69 = por %p67, %p68
      %s70 = ssub.s32 %s24, %s33
      %s71 = ssub.s32 %s23, %s37
      %s72 = sor.u32 %s70, %s71
      %p73 = scmp.eq.s32.totalorder %s72, 0
      %s75 = sadd.s32 %s74, 1
      %s76 = scalar_select %p73, %s74, %s75
      %p79 = pneg %p73
      %p80 = scmp.eq.s32.totalorder %s15, 1
      %p81 = por %p79, %p80
      %p82 = scmp.ne.s32.totalorder %s74, %s77
      %p83 = scmp.eq.s32.totalorder %s15, 0
      %p84 = por %p82, %p83
      %p85 = scmp.ne.s32.totalorder %s74, %s77
      %p86 = scmp.eq.s32.totalorder %s20, 1
      %p87 = por %p85, %p86
      %p88 = scmp.ne.s32.totalorder %s77, %s78
      %p89 = scmp.eq.s32.totalorder %s20, 0
      %p90 = por %p88, %p89
      %p91 = scmp.ne.s32.totalorder %s77, %s78
      %p92 = scmp.eq.s32.totalorder %s21, 1
      %p93 = por %p91, %p92
      %p95 = scmp.ne.s32.totalorder %s78, %s94
      %p96 = scmp.eq.s32.totalorder %s21, 0
      %p97 = por %p95, %p96
      %s98 = ssub.s32 %s23, %s37
      %p99 = scmp.eq.s32.totalorder %s98, 0
      %s101 = sadd.s32 %s100, 1
      %s102 = scalar_select %p99, %s100, %s101
      %p105 = pneg %p99
      %p106 = scmp.eq.s32.totalorder %s15, 1
      %p107 = por %p105, %p106
      %p108 = scmp.ne.s32.totalorder %s100, %s103
      %p109 = scmp.eq.s32.totalorder %s15, 0
      %p110 = por %p108, %p109
      %p111 = scmp.ne.s32.totalorder %s100, %s103
      %p112 = scmp.eq.s32.totalorder %s20, 1
      %p113 = por %p111, %p112
      %p114 = scmp.ne.s32.totalorder %s103, %s104
      %p115 = scmp.eq.s32.totalorder %s20, 0
      %p116 = por %p114, %p115
      %p117 = scmp.ne.s32.totalorder %s103, %s104
      %p118 = scmp.eq.s32.totalorder %s21, 1
      %p119 = por %p117, %p118
      %p121 = scmp.ne.s32.totalorder %s104, %s120
      %p122 = scmp.eq.s32.totalorder %s21, 0
      %p123 = por %p121, %p122
      %s124 = ssub.s32 %s23, %s37
      %p125 = scmp.eq.s32.totalorder %s124, 0
      %s127 = sadd.s32 %s126, 1
      %s128 = scalar_select %p125, %s126, %s127
      %p131 = pneg %p125
      %p132 = scmp.eq.s32.totalorder %s15, 1
      %p133 = por %p131, %p132
      %p134 = scmp.ne.s32.totalorder %s126, %s129
      %p135 = scmp.eq.s32.totalorder %s15, 0
      %p136 = por %p134, %p135
      %p137 = scmp.ne.s32.totalorder %s126, %s129
      %p138 = scmp.eq.s32.totalorder %s20, 1
      %p139 = por %p137, %p138
      %p140 = scmp.ne.s32.totalorder %s129, %s130
      %p141 = scmp.eq.s32.totalorder %s20, 0
      %p142 = por %p140, %p141
      %p143 = scmp.ne.s32.totalorder %s129, %s130
      %p144 = scmp.eq.s32.totalorder %s21, 1
      %p145 = por %p143, %p144
      %p147 = scmp.ne.s32.totalorder %s130, %s146
      %p148 = scmp.eq.s32.totalorder %s21, 0
      %p149 = por %p147, %p148
      %s150 = ssub.s32 %s22, %s41
      %s151 = ssub.s32 %s23, %s37
      %s152 = sor.u32 %s150, %s151
      %p153 = scmp.eq.s32.totalorder %s152, 0
      %s155 = sadd.s32 %s154, 1
      %s156 = scalar_select %p153, %s154, %s155
      %p159 = pneg %p153
      %p160 = scmp.eq.s32.totalorder %s15, 1
      %p161 = por %p159, %p160
      %p162 = scmp.ne.s32.totalorder %s154, %s157
      %p163 = scmp.eq.s32.totalorder %s15, 0
      %p164 = por %p162, %p163
      %p165 = scmp.ne.s32.totalorder %s154, %s157
      %p166 = scmp.eq.s32.totalorder %s20, 1
      %p167 = por %p165, %p166
      %p168 = scmp.ne.s32.totalorder %s157, %s158
      %p169 = scmp.eq.s32.totalorder %s20, 0
      %p170 = por %p168, %p169
      %p171 = scmp.ne.s32.totalorder %s157, %s158
      %p172 = scmp.eq.s32.totalorder %s21, 1
      %p173 = por %p171, %p172
      %p175 = scmp.ne.s32.totalorder %s158, %s174
      %p176 = scmp.eq.s32.totalorder %s21, 0
      %p177 = por %p175, %p176
      %s178 = ssub.s32 %s22, %s41
      %s179 = ssub.s32 %s23, %s37
      %s180 = sor.u32 %s178, %s179
      %p181 = scmp.eq.s32.totalorder %s180, 0
      %s183 = sadd.s32 %s182, 1
      %s184 = scalar_select %p181, %s182, %s183
      %p187 = pneg %p181
      %p188 = scmp.eq.s32.totalorder %s15, 1
      %p189 = por %p187, %p188
      %p190 = scmp.ne.s32.totalorder %s182, %s185
      %p191 = scmp.eq.s32.totalorder %s15, 0
      %p192 = por %p190, %p191
      %p193 = scmp.ne.s32.totalorder %s182, %s185
      %p194 = scmp.eq.s32.totalorder %s20, 1
      %p195 = por %p193, %p194
      %p196 = scmp.ne.s32.totalorder %s185, %s186
      %p197 = scmp.eq.s32.totalorder %s20, 0
      %p198 = por %p196, %p197
      %p199 = scmp.ne.s32.totalorder %s185, %s186
      %p200 = scmp.eq.s32.totalorder %s21, 1
      %p201 = por %p199, %p200
      %p203 = scmp.ne.s32.totalorder %s186, %s202
      %p204 = scmp.eq.s32.totalorder %s21, 0
      %p205 = por %p203, %p204
      %p206 = scmp.le.s32.totalorder 1, %s15
      %p207 = scmp.lt.s32.totalorder %s15, 3
      %p208 = pnand %p206, %p207
      %p209 = pneg %p208
      // Predicated region
      $region9: #{resnet_forward.25} parent=5 // pred_check
        _
      $region10: #{resnet_forward.25} parent=5 // pred_check_branch
        %211 = sbr.rel (%p208) target = $region12
      $region11: #{resnet_forward.25} parent=5 // pred_region
        %s212 = ssub.s32 %s15, 1
        // Predicated region
        $region13: #{resnet_forward.25} parent=11 // pred_check
          %p213 = pneg %p90
        $region14: #{resnet_forward.25} parent=11 // pred_check_branch
          %215 = sbr.rel (%p213) target = $region16
        $region15: #{resnet_forward.25} parent=11 // pred_region
          %s216 = smul.u32 32, %s27
          %p217 = scmp.lt.s32.totalorder %s216, 31
          %s218 = scalar_select %p217, %s216, 31
          %p219 = scmp.lt.s32.totalorder %s26, 0
          %s220 = scalar_select %p219, %s26, 0
          %s221 = sadd.s32 %s220, %s218
          %s222 = smul.addr %s221, 4
          %s223 = scalar_lea.vmem %s1, %s222
          %s224 = smul.u32 32, %s27
        $region16: #{resnet_forward.25} parent=11 // pred_fallthru
          _
        // Predicated region
        $region17: #{resnet_forward.25} parent=11 // pred_check
          %p225 = pneg %p116
        $region18: #{resnet_forward.25} parent=11 // pred_check_branch
          %227 = sbr.rel (%p225) target = $region20
        $region19: #{resnet_forward.25} parent=11 // pred_region
          %p228 = scmp.lt.s32.totalorder %s26, 0
          %s229 = scalar_select %p228, %s26, 0
          %s230 = scalar_lea.vmem %s2, %s229
        $region20: #{resnet_forward.25} parent=11 // pred_fallthru
          _
        // Predicated region
        $region21: #{resnet_forward.25} parent=11 // pred_check
          %p231 = pneg %p142
        $region22: #{resnet_forward.25} parent=11 // pred_check_branch
          %233 = sbr.rel (%p231) target = $region24
        $region23: #{resnet_forward.25} parent=11 // pred_region
          %p234 = scmp.lt.s32.totalorder %s26, 0
          %s235 = scalar_select %p234, %s26, 0
          %s236 = scalar_lea.vmem %s3, %s235
        $region24: #{resnet_forward.25} parent=11 // pred_fallthru
          _
      $region12: #{resnet_forward.25} parent=5 // pred_fallthru
        _
      %p237 = scmp.lt.s32.totalorder %s15, 2
      // Predicated region
      $region25: #{resnet_forward.25} parent=5 // pred_check
        %p238 = pneg %p237
      $region26: #{resnet_forward.25} parent=5 // pred_check_branch
        %240 = sbr.rel (%p238) target = $region28
      $region27: #{resnet_forward.25} parent=5 // pred_region
        // Predicated region
        $region29: #{resnet_forward.25} parent=27 // pred_check
          %p241 = pneg %p56
        $region30: #{resnet_forward.25} parent=27 // pred_check_branch
          %243 = sbr.rel (%p241) target = $region32
        $region31: #{resnet_forward.25} parent=27 // pred_region
          %s244 = smul.u32 32, %s22
          %s245 = smul.u32 2, %s24
          %p246 = scmp.lt.s32.totalorder %s244, 63
          %s247 = scalar_select %p246, %s244, 63
          %p248 = scmp.lt.s32.totalorder %s245, 1
          %s249 = scalar_select %p248, %s245, 1
          %s250 = smul.addr %s247, 2
          %s251 = sadd.s32 %s249, %s250
          %s252 = smul.addr %s251, 4
          %s253 = scalar_lea.vmem %s0, %s252
          %s254 = smul.u32 32, %s22
          %s255 = smul.u32 2, %s24
        $region32: #{resnet_forward.25} parent=27 // pred_fallthru
          _
      $region28: #{resnet_forward.25} parent=5 // pred_fallthru
        _
      %p256 = scmp.le.s32.totalorder 1, %s15
      %p257 = scmp.lt.s32.totalorder %s15, 3
      %p258 = pnand %p256, %p257
      %p259 = pneg %p258
      // Predicated region
      $region33: #{resnet_forward.25} parent=5 // pred_check
        _
      $region34: #{resnet_forward.25} parent=5 // pred_check_branch
        %261 = sbr.rel (%p258) target = $region36
      $region35: #{resnet_forward.25} parent=5 // pred_region
        %s262 = ssub.s32 %s15, 1
        %s263 = smul.u32 32, %s25
        %s264 = smul.u32 2, %s27
        %p265 = scmp.lt.s32.totalorder %s263, 63
        %s266 = scalar_select %p265, %s263, 63
        %p267 = scmp.lt.s32.totalorder %s264, 1
        %s268 = scalar_select %p267, %s264, 1
        %s269 = smul.addr %s266, 2
        %s270 = sadd.s32 %s268, %s269
        %s271 = smul.addr %s270, 4
        %s272 = scalar_lea.vmem %s0, %s271
        %p273 = pneg %p62
        %p274 = pneg %p59
        %s275 = smul.u32 32, %s27
        %p276 = scmp.lt.s32.totalorder %s275, 31
        %s277 = scalar_select %p276, %s275, 31
        %p278 = scmp.lt.s32.totalorder %s26, 0
        %s279 = scalar_select %p278, %s26, 0
        %s280 = sadd.s32 %s279, %s277
        %s281 = smul.addr %s280, 4
        %s282 = scalar_lea.vmem %s1, %s281
        %p283 = pneg %p90
        %p284 = pneg %p87
        %p285 = scmp.lt.s32.totalorder %s26, 0
        %s286 = scalar_select %p285, %s26, 0
        %s287 = scalar_lea.vmem %s2, %s286
        %p288 = pneg %p116
        %p289 = pneg %p113
        %p290 = scmp.lt.s32.totalorder %s26, 0
        %s291 = scalar_select %p290, %s26, 0
        %s292 = scalar_lea.vmem %s3, %s291
        %p293 = pneg %p142
        %p294 = pneg %p139
        %p295 = pneg %p170
        %p296 = pneg %p167
        %s297 = sand.u32 %s157, 1
        %s298 = scalar_lea.sflag [#allocation3], %s297
        %s299 = sand.u32 %s157, 1
        %s300 = smul.addr %s299, 256
        %s301 = scalar_lea.vmem [#allocation2], %s300
        %p302 = pneg %p198
        %p303 = pneg %p195
        %s304 = smul.u32 32, %s25
        %p305 = scmp.lt.s32.totalorder %s304, 63
        %s306 = scalar_select %p305, %s304, 63
        %p307 = scmp.lt.s32.totalorder %s26, 0
        %s308 = scalar_select %p307, %s26, 0
        %s309 = sadd.s32 %s308, %s306
        %s310 = smul.addr %s309, 4
        %s311 = scalar_lea.vmem %s5, %s310
        %s312 = smul.u32 32, %s25
        %s313 = smul.u32 2, %s27
        %p314 = scmp.lt.s32.totalorder %s312, 63
        %s315 = scalar_select %p314, %s312, 63
        %p316 = scmp.lt.s32.totalorder %s313, 1
        %s317 = scalar_select %p316, %s313, 1
        %s318 = smul.addr %s315, 2
        %s319 = sadd.s32 %s317, %s318
        %s320 = smul.addr %s319, 4
        %s321 = scalar_lea.vmem %s0, %s320
        %s322 = smul.u32 32, %s25
        %s323 = smul.u32 2, %s27
        %s324 = smul.u32 32, %s27
        %p325 = scmp.lt.s32.totalorder %s324, 31
        %s326 = scalar_select %p325, %s324, 31
        %p327 = scmp.lt.s32.totalorder %s26, 0
        %s328 = scalar_select %p327, %s26, 0
        %s329 = sadd.s32 %s328, %s326
        %s330 = smul.addr %s329, 4
        %s331 = scalar_lea.vmem %s1, %s330
        %s332 = smul.u32 32, %s27
        %p333 = scmp.lt.s32.totalorder %s26, 0
        %s334 = scalar_select %p333, %s26, 0
        %s335 = scalar_lea.vmem %s2, %s334
        %p336 = scmp.lt.s32.totalorder %s26, 0
        %s337 = scalar_select %p336, %s26, 0
        %s338 = scalar_lea.vmem %s3, %s337
        %s339 = smul.u32 32, %s25
        %s340 = smul.u32 32, %s25
        %p341 = scmp.lt.s32.totalorder %s340, 63
        %s342 = scalar_select %p341, %s340, 63
        %p343 = scmp.lt.s32.totalorder %s26, 0
        %s344 = scalar_select %p343, %s26, 0
        %s345 = sadd.s32 %s344, %s342
        %s346 = smul.addr %s345, 4
        %s347 = scalar_lea.vmem %s5, %s346
        %s348 = smul.u32 32, %s25
        %v350 = vld [vmem:[%s321] sm:$0xff]
        %v351 = vld [vmem:[%s321 + $0x8] sm:$0xff]
        %v352 = vld [vmem:[%s321 + $0x10] sm:$0xff]
        %v353 = vld [vmem:[%s321 + $0x18] sm:$0xff]
        %v354 = vld [vmem:[%s321 + $0x20] sm:$0xff]
        %v355 = vld [vmem:[%s321 + $0x28] sm:$0xff]
        %v356 = vld [vmem:[%s321 + $0x30] sm:$0xff]
        %v357 = vld [vmem:[%s321 + $0x38] sm:$0xff]
        %v358 = vld [vmem:[%s321 + $0x40] sm:$0xff]
        %v359 = vld [vmem:[%s321 + $0x48] sm:$0xff]
        %v360 = vld [vmem:[%s321 + $0x50] sm:$0xff]
        %v361 = vld [vmem:[%s321 + $0x58] sm:$0xff]
        %v362 = vld [vmem:[%s321 + $0x60] sm:$0xff]
        %v363 = vld [vmem:[%s321 + $0x68] sm:$0xff]
        %v364 = vld [vmem:[%s321 + $0x70] sm:$0xff]
        %v365 = vld [vmem:[%s321 + $0x78] sm:$0xff]
        %v366 = vld [vmem:[%s321 + $0x80] sm:$0xff]
        %v367 = vld [vmem:[%s321 + $0x88] sm:$0xff]
        %v368 = vld [vmem:[%s321 + $0x90] sm:$0xff]
        %v369 = vld [vmem:[%s321 + $0x98] sm:$0xff]
        %v370 = vld [vmem:[%s321 + $0xa0] sm:$0xff]
        %v371 = vld [vmem:[%s321 + $0xa8] sm:$0xff]
        %v372 = vld [vmem:[%s321 + $0xb0] sm:$0xff]
        %v373 = vld [vmem:[%s321 + $0xb8] sm:$0xff]
        %v374 = vld [vmem:[%s321 + $0xc0] sm:$0xff]
        %v375 = vld [vmem:[%s321 + $0xc8] sm:$0xff]
        %v376 = vld [vmem:[%s321 + $0xd0] sm:$0xff]
        %v377 = vld [vmem:[%s321 + $0xd8] sm:$0xff]
        %v378 = vld [vmem:[%s321 + $0xe0] sm:$0xff]
        %v379 = vld [vmem:[%s321 + $0xe8] sm:$0xff]
        %v380 = vld [vmem:[%s321 + $0xf0] sm:$0xff]
        %v381 = vld [vmem:[%s321 + $0xf8] sm:$0xff]
        %v382 = vld [vmem:[%s331] sm:$0xf]
        %v383 = vld [vmem:[%s331 + $0x4] sm:$0xf]
        %v384 = vld [vmem:[%s331 + $0x8] sm:$0xf]
        %v385 = vld [vmem:[%s331 + $0xc] sm:$0xf]
        %v386 = vld [vmem:[%s331 + $0x10] sm:$0xf]
        %v387 = vld [vmem:[%s331 + $0x14] sm:$0xf]
        %v388 = vld [vmem:[%s331 + $0x18] sm:$0xf]
        %v389 = vld [vmem:[%s331 + $0x1c] sm:$0xf]
        %v390 = vld [vmem:[%s331 + $0x20] sm:$0xf]
        %v391 = vld [vmem:[%s331 + $0x24] sm:$0xf]
        %v392 = vld [vmem:[%s331 + $0x28] sm:$0xf]
        %v393 = vld [vmem:[%s331 + $0x2c] sm:$0xf]
        %v394 = vld [vmem:[%s331 + $0x30] sm:$0xf]
        %v395 = vld [vmem:[%s331 + $0x34] sm:$0xf]
        %v396 = vld [vmem:[%s331 + $0x38] sm:$0xf]
        %v397 = vld [vmem:[%s331 + $0x3c] sm:$0xf]
        %v398 = vld [vmem:[%s331 + $0x40] sm:$0xf]
        %v399 = vld [vmem:[%s331 + $0x44] sm:$0xf]
        %v400 = vld [vmem:[%s331 + $0x48] sm:$0xf]
        %v401 = vld [vmem:[%s331 + $0x4c] sm:$0xf]
        %v402 = vld [vmem:[%s331 + $0x50] sm:$0xf]
        %v403 = vld [vmem:[%s331 + $0x54] sm:$0xf]
        %v404 = vld [vmem:[%s331 + $0x58] sm:$0xf]
        %v405 = vld [vmem:[%s331 + $0x5c] sm:$0xf]
        %v406 = vld [vmem:[%s331 + $0x60] sm:$0xf]
        %v407 = vld [vmem:[%s331 + $0x64] sm:$0xf]
        %v408 = vld [vmem:[%s331 + $0x68] sm:$0xf]
        %v409 = vld [vmem:[%s331 + $0x6c] sm:$0xf]
        %v410 = vld [vmem:[%s331 + $0x70] sm:$0xf]
        %v411 = vld [vmem:[%s331 + $0x74] sm:$0xf]
        %v412 = vld [vmem:[%s331 + $0x78] sm:$0xf]
        %v413 = vld [vmem:[%s331 + $0x7c] sm:$0xf]
        %v446 = vunpack.c.l.b16 %v350
        %v447 = vunpack.c.h.b16 %v350
        %v448 = vunpack.c.l.b16 %v351
        %v449 = vunpack.c.h.b16 %v351
        %v450 = vunpack.c.l.b16 %v352
        %v451 = vunpack.c.h.b16 %v352
        %v452 = vunpack.c.l.b16 %v353
        %v453 = vunpack.c.h.b16 %v353
        %v454 = vunpack.c.l.b16 %v354
        %v455 = vunpack.c.h.b16 %v354
        %v456 = vunpack.c.l.b16 %v355
        %v457 = vunpack.c.h.b16 %v355
        %v458 = vunpack.c.l.b16 %v356
        %v459 = vunpack.c.h.b16 %v356
        %v460 = vunpack.c.l.b16 %v357
        %v461 = vunpack.c.h.b16 %v357
        %v462 = vunpack.c.l.b16 %v358
        %v463 = vunpack.c.h.b16 %v358
        %v464 = vunpack.c.l.b16 %v359
        %v465 = vunpack.c.h.b16 %v359
        %v466 = vunpack.c.l.b16 %v360
        %v467 = vunpack.c.h.b16 %v360
        %v468 = vunpack.c.l.b16 %v361
        %v469 = vunpack.c.h.b16 %v361
        %v470 = vunpack.c.l.b16 %v362
        %v471 = vunpack.c.h.b16 %v362
        %v472 = vunpack.c.l.b16 %v363
        %v473 = vunpack.c.h.b16 %v363
        %v474 = vunpack.c.l.b16 %v364
        %v475 = vunpack.c.h.b16 %v364
        %v476 = vunpack.c.l.b16 %v365
        %v477 = vunpack.c.h.b16 %v365
        %v478 = vunpack.c.l.b16 %v366
        %v479 = vunpack.c.h.b16 %v366
        %v480 = vunpack.c.l.b16 %v367
        %v481 = vunpack.c.h.b16 %v367
        %v482 = vunpack.c.l.b16 %v368
        %v483 = vunpack.c.h.b16 %v368
        %v484 = vunpack.c.l.b16 %v369
        %v485 = vunpack.c.h.b16 %v369
        %v486 = vunpack.c.l.b16 %v370
        %v487 = vunpack.c.h.b16 %v370
        %v488 = vunpack.c.l.b16 %v371
        %v489 = vunpack.c.h.b16 %v371
        %v490 = vunpack.c.l.b16 %v372
        %v491 = vunpack.c.h.b16 %v372
        %v492 = vunpack.c.l.b16 %v373
        %v493 = vunpack.c.h.b16 %v373
        %v494 = vunpack.c.l.b16 %v374
        %v495 = vunpack.c.h.b16 %v374
        %v496 = vunpack.c.l.b16 %v375
        %v497 = vunpack.c.h.b16 %v375
        %v498 = vunpack.c.l.b16 %v376
        %v499 = vunpack.c.h.b16 %v376
        %v500 = vunpack.c.l.b16 %v377
        %v501 = vunpack.c.h.b16 %v377
        %v502 = vunpack.c.l.b16 %v378
        %v503 = vunpack.c.h.b16 %v378
        %v504 = vunpack.c.l.b16 %v379
        %v505 = vunpack.c.h.b16 %v379
        %v506 = vunpack.c.l.b16 %v380
        %v507 = vunpack.c.h.b16 %v380
        %v508 = vunpack.c.l.b16 %v381
        %v509 = vunpack.c.h.b16 %v381
        %v510 = vpack.c.b16 %v448, %v446
        %v511 = vpack.c.b16 %v449, %v447
        %v512 = vpack.c.b16 %v452, %v450
        %v513 = vpack.c.b16 %v453, %v451
        %v514 = vpack.c.b16 %v456, %v454
        %v515 = vpack.c.b16 %v457, %v455
        %v516 = vpack.c.b16 %v460, %v458
        %v517 = vpack.c.b16 %v461, %v459
        %v518 = vpack.c.b16 %v464, %v462
        %v519 = vpack.c.b16 %v465, %v463
        %v520 = vpack.c.b16 %v468, %v466
        %v521 = vpack.c.b16 %v469, %v467
        %v522 = vpack.c.b16 %v472, %v470
        %v523 = vpack.c.b16 %v473, %v471
        %v524 = vpack.c.b16 %v476, %v474
        %v525 = vpack.c.b16 %v477, %v475
        %v526 = vpack.c.b16 %v480, %v478
        %v527 = vpack.c.b16 %v481, %v479
        %v528 = vpack.c.b16 %v484, %v482
        %v529 = vpack.c.b16 %v485, %v483
        %v530 = vpack.c.b16 %v488, %v486
        %v531 = vpack.c.b16 %v489, %v487
        %v532 = vpack.c.b16 %v492, %v490
        %v533 = vpack.c.b16 %v493, %v491
        %v534 = vpack.c.b16 %v496, %v494
        %v535 = vpack.c.b16 %v497, %v495
        %v536 = vpack.c.b16 %v500, %v498
        %v537 = vpack.c.b16 %v501, %v499
        %v538 = vpack.c.b16 %v504, %v502
        %v539 = vpack.c.b16 %v505, %v503
        %v540 = vpack.c.b16 %v508, %v506
        %v541 = vpack.c.b16 %v509, %v507
        %v606 = vunpack.c.l.b16 %v382
        %v607 = vunpack.c.l.b16 %v383
        %v608 = vunpack.c.l.b16 %v384
        %v609 = vunpack.c.l.b16 %v385
        %v610 = vunpack.c.l.b16 %v386
        %v611 = vunpack.c.l.b16 %v387
        %v612 = vunpack.c.l.b16 %v388
        %v613 = vunpack.c.l.b16 %v389
        %v614 = vunpack.c.l.b16 %v390
        %v615 = vunpack.c.l.b16 %v391
        %v616 = vunpack.c.l.b16 %v392
        %v617 = vunpack.c.l.b16 %v393
        %v618 = vunpack.c.l.b16 %v394
        %v619 = vunpack.c.l.b16 %v395
        %v620 = vunpack.c.l.b16 %v396
        %v621 = vunpack.c.l.b16 %v397
        %v622 = vunpack.c.l.b16 %v398
        %v623 = vunpack.c.l.b16 %v399
        %v624 = vunpack.c.l.b16 %v400
        %v625 = vunpack.c.l.b16 %v401
        %v626 = vunpack.c.l.b16 %v402
        %v627 = vunpack.c.l.b16 %v403
        %v628 = vunpack.c.l.b16 %v404
        %v629 = vunpack.c.l.b16 %v405
        %v630 = vunpack.c.l.b16 %v406
        %v631 = vunpack.c.l.b16 %v407
        %v632 = vunpack.c.l.b16 %v408
        %v633 = vunpack.c.l.b16 %v409
        %v634 = vunpack.c.l.b16 %v410
        %v635 = vunpack.c.l.b16 %v411
        %v636 = vunpack.c.l.b16 %v412
        %v637 = vunpack.c.l.b16 %v413
        %v638 = vpack.c.b16 %v607, %v606
        %v639 = vpack.c.b16 %v609, %v608
        %v640 = vpack.c.b16 %v611, %v610
        %v641 = vpack.c.b16 %v613, %v612
        %v642 = vpack.c.b16 %v615, %v614
        %v643 = vpack.c.b16 %v617, %v616
        %v644 = vpack.c.b16 %v619, %v618
        %v645 = vpack.c.b16 %v621, %v620
        %v646 = vpack.c.b16 %v623, %v622
        %v647 = vpack.c.b16 %v625, %v624
        %v648 = vpack.c.b16 %v627, %v626
        %v649 = vpack.c.b16 %v629, %v628
        %v650 = vpack.c.b16 %v631, %v630
        %v651 = vpack.c.b16 %v633, %v632
        %v652 = vpack.c.b16 %v635, %v634
        %v653 = vpack.c.b16 %v637, %v636
        %670 = vmatprep.subr.bf16.mxu0 0
        %671 = vmatpush1.bf16.msra.mxu0 %v638
        %672 = vmatprep.subr.bf16.mxu0 0
        %673 = vmatpush1.bf16.msra.mxu0 %v639
        %674 = vmatprep.subr.bf16.mxu0 0
        %675 = vmatpush1.bf16.msra.mxu0 %v640
        %676 = vmatprep.subr.bf16.mxu0 0
        %677 = vmatpush1.bf16.msra.mxu0 %v641
        %678 = vmatprep.subr.bf16.mxu0 0
        %679 = vmatpush1.bf16.msra.mxu0 %v642
        %680 = vmatprep.subr.bf16.mxu0 0
        %681 = vmatpush1.bf16.msra.mxu0 %v643
        %682 = vmatprep.subr.bf16.mxu0 0
        %683 = vmatpush1.bf16.msra.mxu0 %v644
        %684 = vmatprep.subr.bf16.mxu0 0
        %685 = vmatpush1.bf16.msra.mxu0 %v645
        %686 = vmatprep.subr.bf16.mxu0 0
        %687 = vmatpush1.bf16.msra.mxu0 %v646
        %688 = vmatprep.subr.bf16.mxu0 0
        %689 = vmatpush1.bf16.msra.mxu0 %v647
        %690 = vmatprep.subr.bf16.mxu0 0
        %691 = vmatpush1.bf16.msra.mxu0 %v648
        %692 = vmatprep.subr.bf16.mxu0 0
        %693 = vmatpush1.bf16.msra.mxu0 %v649
        %694 = vmatprep.subr.bf16.mxu0 0
        %695 = vmatpush1.bf16.msra.mxu0 %v650
        %696 = vmatprep.subr.bf16.mxu0 0
        %697 = vmatpush1.bf16.msra.mxu0 %v651
        %698 = vmatprep.subr.bf16.mxu0 0
        %699 = vmatpush1.bf16.msra.mxu0 %v652
        %700 = vmatprep.subr.bf16.mxu0 0
        %701 = vmatpush1.bf16.msra.mxu0 %v653
        %702 = vmatprep.mubr.bf16.mxu0 %v511
        %703 = vmatmul.mubr.bf16.gmra.mrb[0].mxu0 %v510
        %v704 = vpop.f32.mrb[0].mxu0
        %v705 = vadd.f32 0.0, %v704
        %v706 = vpop.f32.mrb[0].mxu0
        %v707 = vpop.f32.mrb[0].mxu0
        %v708 = vadd.f32 0.0, %v707
        %v709 = vpop.f32.mrb[0].mxu0
        %710 = vmatprep.mubr.bf16.mxu0 %v513
        %711 = vmatmul.mubr.bf16.gmra.mrb[0].mxu0 %v512
        %v712 = vpop.f32.mrb[0].mxu0
        %v713 = vadd.f32 0.0, %v712
        %v714 = vpop.f32.mrb[0].mxu0
        %v715 = vpop.f32.mrb[0].mxu0
        %v716 = vadd.f32 0.0, %v715
        %v717 = vpop.f32.mrb[0].mxu0
        %718 = vmatprep.mubr.bf16.mxu0 %v515
        %719 = vmatmul.mubr.bf16.gmra.mrb[0].mxu0 %v514
        %v720 = vpop.f32.mrb[0].mxu0
        %v721 = vadd.f32 0.0, %v720
        %v722 = vpop.f32.mrb[0].mxu0
        %v723 = vpop.f32.mrb[0].mxu0
        %v724 = vadd.f32 0.0, %v723
        %v725 = vpop.f32.mrb[0].mxu0
        %726 = vmatprep.mubr.bf16.mxu0 %v517
        %727 = vmatmul.mubr.bf16.gmra.mrb[0].mxu0 %v516
        %v728 = vpop.f32.mrb[0].mxu0
        %v729 = vadd.f32 0.0, %v728
        %v730 = vpop.f32.mrb[0].mxu0
        %v731 = vpop.f32.mrb[0].mxu0
        %v732 = vadd.f32 0.0, %v731
        %v733 = vpop.f32.mrb[0].mxu0
        %734 = vmatprep.mubr.bf16.mxu0 %v519
        %735 = vmatmul.mubr.bf16.gmra.mrb[0].mxu0 %v518
        %v736 = vpop.f32.mrb[0].mxu0
        %v737 = vadd.f32 0.0, %v736
        %v738 = vpop.f32.mrb[0].mxu0
        %v739 = vpop.f32.mrb[0].mxu0
        %v740 = vadd.f32 0.0, %v739
        %v741 = vpop.f32.mrb[0].mxu0
        %742 = vmatprep.mubr.bf16.mxu0 %v521
        %743 = vmatmul.mubr.bf16.gmra.mrb[0].mxu0 %v520
        %v744 = vpop.f32.mrb[0].mxu0
        %v745 = vadd.f32 0.0, %v744
        %v746 = vpop.f32.mrb[0].mxu0
        %v747 = vpop.f32.mrb[0].mxu0
        %v748 = vadd.f32 0.0, %v747
        %v749 = vpop.f32.mrb[0].mxu0
        %750 = vmatprep.mubr.bf16.mxu0 %v523
        %751 = vmatmul.mubr.bf16.gmra.mrb[0].mxu0 %v522
        %v752 = vpop.f32.mrb[0].mxu0
        %v753 = vadd.f32 0.0, %v752
        %v754 = vpop.f32.mrb[0].mxu0
        %v755 = vpop.f32.mrb[0].mxu0
        %v756 = vadd.f32 0.0, %v755
        %v757 = vpop.f32.mrb[0].mxu0
        %758 = vmatprep.mubr.bf16.mxu0 %v525
        %759 = vmatmul.mubr.bf16.gmra.mrb[0].mxu0 %v524
        %v760 = vpop.f32.mrb[0].mxu0
        %v761 = vadd.f32 0.0, %v760
        %v762 = vpop.f32.mrb[0].mxu0
        %v763 = vpop.f32.mrb[0].mxu0
        %v764 = vadd.f32 0.0, %v763
        %v765 = vpop.f32.mrb[0].mxu0
        %766 = vmatprep.mubr.bf16.mxu0 %v527
        %767 = vmatmul.mubr.bf16.gmra.mrb[0].mxu0 %v526
        %v768 = vpop.f32.mrb[0].mxu0
        %v769 = vadd.f32 0.0, %v768
        %v770 = vpop.f32.mrb[0].mxu0
        %v771 = vpop.f32.mrb[0].mxu0
        %v772 = vadd.f32 0.0, %v771
        %v773 = vpop.f32.mrb[0].mxu0
        %774 = vmatprep.mubr.bf16.mxu0 %v529
        %775 = vmatmul.mubr.bf16.gmra.mrb[0].mxu0 %v528
        %v776 = vpop.f32.mrb[0].mxu0
        %v777 = vadd.f32 0.0, %v776
        %v778 = vpop.f32.mrb[0].mxu0
        %v779 = vpop.f32.mrb[0].mxu0
        %v780 = vadd.f32 0.0, %v779
        %v781 = vpop.f32.mrb[0].mxu0
        %782 = vmatprep.mubr.bf16.mxu0 %v531
        %783 = vmatmul.mubr.bf16.gmra.mrb[0].mxu0 %v530
        %v784 = vpop.f32.mrb[0].mxu0
        %v785 = vadd.f32 0.0, %v784
        %v786 = vpop.f32.mrb[0].mxu0
        %v787 = vpop.f32.mrb[0].mxu0
        %v788 = vadd.f32 0.0, %v787
        %v789 = vpop.f32.mrb[0].mxu0
        %790 = vmatprep.mubr.bf16.mxu0 %v533
        %791 = vmatmul.mubr.bf16.gmra.mrb[0].mxu0 %v532
        %v792 = vpop.f32.mrb[0].mxu0
        %v793 = vadd.f32 0.0, %v792
        %v794 = vpop.f32.mrb[0].mxu0
        %v795 = vpop.f32.mrb[0].mxu0
        %v796 = vadd.f32 0.0, %v795
        %v797 = vpop.f32.mrb[0].mxu0
        %798 = vmatprep.mubr.bf16.mxu0 %v535
        %799 = vmatmul.mubr.bf16.gmra.mrb[0].mxu0 %v534
        %v800 = vpop.f32.mrb[0].mxu0
        %v801 = vadd.f32 0.0, %v800
        %v802 = vpop.f32.mrb[0].mxu0
        %v803 = vpop.f32.mrb[0].mxu0
        %v804 = vadd.f32 0.0, %v803
        %v805 = vpop.f32.mrb[0].mxu0
        %806 = vmatprep.mubr.bf16.mxu0 %v537
        %807 = vmatmul.mubr.bf16.gmra.mrb[0].mxu0 %v536
        %v808 = vpop.f32.mrb[0].mxu0
        %v809 = vadd.f32 0.0, %v808
        %v810 = vpop.f32.mrb[0].mxu0
        %v811 = vpop.f32.mrb[0].mxu0
        %v812 = vadd.f32 0.0, %v811
        %v813 = vpop.f32.mrb[0].mxu0
        %814 = vmatprep.mubr.bf16.mxu0 %v539
        %815 = vmatmul.mubr.bf16.gmra.mrb[0].mxu0 %v538
        %v816 = vpop.f32.mrb[0].mxu0
        %v817 = vadd.f32 0.0, %v816
        %v818 = vpop.f32.mrb[0].mxu0
        %v819 = vpop.f32.mrb[0].mxu0
        %v820 = vadd.f32 0.0, %v819
        %v821 = vpop.f32.mrb[0].mxu0
        %822 = vmatprep.mubr.bf16.mxu0 %v541
        %823 = vmatmul.mubr.bf16.gmra.mrb[0].mxu0 %v540
        %v824 = vpop.f32.mrb[0].mxu0
        %v825 = vadd.f32 0.0, %v824
        %v826 = vpop.f32.mrb[0].mxu0
        %v827 = vpop.f32.mrb[0].mxu0
        %v828 = vadd.f32 0.0, %v827
        %v829 = vpop.f32.mrb[0].mxu0
        %830 = vdwg.mxu0
        %vm831 = vcmask 523264
        %832 = vst.msk [vmem:[%s301] sm:$0xff] %vm831, %v705
        %833 = vst.msk [vmem:[%s301 + $0x8] sm:$0xff] %vm831, %v708
        %834 = vst.msk [vmem:[%s301 + $0x10] sm:$0xff] %vm831, %v713
        %835 = vst.msk [vmem:[%s301 + $0x18] sm:$0xff] %vm831, %v716
        %836 = vst.msk [vmem:[%s301 + $0x20] sm:$0xff] %vm831, %v721
        %837 = vst.msk [vmem:[%s301 + $0x28] sm:$0xff] %vm831, %v724
        %838 = vst.msk [vmem:[%s301 + $0x30] sm:$0xff] %vm831, %v729
        %839 = vst.msk [vmem:[%s301 + $0x38] sm:$0xff] %vm831, %v732
        %840 = vst.msk [vmem:[%s301 + $0x40] sm:$0xff] %vm831, %v737
        %841 = vst.msk [vmem:[%s301 + $0x48] sm:$0xff] %vm831, %v740
        %842 = vst.msk [vmem:[%s301 + $0x50] sm:$0xff] %vm831, %v745
        %843 = vst.msk [vmem:[%s301 + $0x58] sm:$0xff] %vm831, %v748
        %844 = vst.msk [vmem:[%s301 + $0x60] sm:$0xff] %vm831, %v753
        %845 = vst.msk [vmem:[%s301 + $0x68] sm:$0xff] %vm831, %v756
        %846 = vst.msk [vmem:[%s301 + $0x70] sm:$0xff] %vm831, %v761
        %847 = vst.msk [vmem:[%s301 + $0x78] sm:$0xff] %vm831, %v764
        %848 = vst.msk [vmem:[%s301 + $0x80] sm:$0xff] %vm831, %v769
        %849 = vst.msk [vmem:[%s301 + $0x88] sm:$0xff] %vm831, %v772
        %850 = vst.msk [vmem:[%s301 + $0x90] sm:$0xff] %vm831, %v777
        %851 = vst.msk [vmem:[%s301 + $0x98] sm:$0xff] %vm831, %v780
        %852 = vst.msk [vmem:[%s301 + $0xa0] sm:$0xff] %vm831, %v785
        %853 = vst.msk [vmem:[%s301 + $0xa8] sm:$0xff] %vm831, %v788
        %854 = vst.msk [vmem:[%s301 + $0xb0] sm:$0xff] %vm831, %v793
        %855 = vst.msk [vmem:[%s301 + $0xb8] sm:$0xff] %vm831, %v796
        %856 = vst.msk [vmem:[%s301 + $0xc0] sm:$0xff] %vm831, %v801
        %857 = vst.msk [vmem:[%s301 + $0xc8] sm:$0xff] %vm831, %v804
        %858 = vst.msk [vmem:[%s301 + $0xd0] sm:$0xff] %vm831, %v809
        %859 = vst.msk [vmem:[%s301 + $0xd8] sm:$0xff] %vm831, %v812
        %860 = vst.msk [vmem:[%s301 + $0xe0] sm:$0xff] %vm831, %v817
        %861 = vst.msk [vmem:[%s301 + $0xe8] sm:$0xff] %vm831, %v820
        %862 = vst.msk [vmem:[%s301 + $0xf0] sm:$0xff] %vm831, %v825
        %863 = vst.msk [vmem:[%s301 + $0xf8] sm:$0xff] %vm831, %v828
        %v864 = vld [vmem:[%s335] sm:$0x1]
        %v866 = vlaneseq
        %v867 = vshrl.u32 %v866, 7
        %v868 = vsub.s32 0, %v867
        %v869 = vrot.slane %v864, %v868
        %v871 = vmul.f32 %v705, %v869
        %v872 = vmul.f32 %v708, %v869
        %v873 = vmul.f32 %v713, %v869
        %v874 = vmul.f32 %v716, %v869
        %v875 = vmul.f32 %v721, %v869
        %v876 = vmul.f32 %v724, %v869
        %v877 = vmul.f32 %v729, %v869
        %v878 = vmul.f32 %v732, %v869
        %v879 = vmul.f32 %v737, %v869
        %v880 = vmul.f32 %v740, %v869
        %v881 = vmul.f32 %v745, %v869
        %v882 = vmul.f32 %v748, %v869
        %v883 = vmul.f32 %v753, %v869
        %v884 = vmul.f32 %v756, %v869
        %v885 = vmul.f32 %v761, %v869
        %v886 = vmul.f32 %v764, %v869
        %v887 = vmul.f32 %v769, %v869
        %v888 = vmul.f32 %v772, %v869
        %v889 = vmul.f32 %v777, %v869
        %v890 = vmul.f32 %v780, %v869
        %v891 = vmul.f32 %v785, %v869
        %v892 = vmul.f32 %v788, %v869
        %v893 = vmul.f32 %v793, %v869
        %v894 = vmul.f32 %v796, %v869
        %v895 = vmul.f32 %v801, %v869
        %v896 = vmul.f32 %v804, %v869
        %v897 = vmul.f32 %v809, %v869
        %v898 = vmul.f32 %v812, %v869
        %v899 = vmul.f32 %v817, %v869
        %v900 = vmul.f32 %v820, %v869
        %v901 = vmul.f32 %v825, %v869
        %v902 = vmul.f32 %v828, %v869
        %v903 = vld [vmem:[%s338] sm:$0x1]
        %v905 = vlaneseq
        %v906 = vshrl.u32 %v905, 7
        %v907 = vsub.s32 0, %v906
        %v908 = vrot.slane %v903, %v907
        %v910 = vadd.f32 %v871, %v908
        %v911 = vadd.f32 %v872, %v908
        %v912 = vadd.f32 %v873, %v908
        %v913 = vadd.f32 %v874, %v908
        %v914 = vadd.f32 %v875, %v908
        %v915 = vadd.f32 %v876, %v908
        %v916 = vadd.f32 %v877, %v908
        %v917 = vadd.f32 %v878, %v908
        %v918 = vadd.f32 %v879, %v908
        %v919 = vadd.f32 %v880, %v908
        %v920 = vadd.f32 %v881, %v908
        %v921 = vadd.f32 %v882, %v908
        %v922 = vadd.f32 %v883, %v908
        %v923 = vadd.f32 %v884, %v908
        %v924 = vadd.f32 %v885, %v908
        %v925 = vadd.f32 %v886, %v908
        %v926 = vadd.f32 %v887, %v908
        %v927 = vadd.f32 %v888, %v908
        %v928 = vadd.f32 %v889, %v908
        %v929 = vadd.f32 %v890, %v908
        %v930 = vadd.f32 %v891, %v908
        %v931 = vadd.f32 %v892, %v908
        %v932 = vadd.f32 %v893, %v908
        %v933 = vadd.f32 %v894, %v908
        %v934 = vadd.f32 %v895, %v908
        %v935 = vadd.f32 %v896, %v908
        %v936 = vadd.f32 %v897, %v908
        %v937 = vadd.f32 %v898, %v908
        %v938 = vadd.f32 %v899, %v908
        %v939 = vadd.f32 %v900, %v908
        %v940 = vadd.f32 %v901, %v908
        %v941 = vadd.f32 %v902, %v908
        %v942 = vmax.f32 %v910, 0.0
        %v943 = vmax.f32 %v911, 0.0
        %v944 = vmax.f32 %v912, 0.0
        %v945 = vmax.f32 %v913, 0.0
        %v946 = vmax.f32 %v914, 0.0
        %v947 = vmax.f32 %v915, 0.0
        %v948 = vmax.f32 %v916, 0.0
        %v949 = vmax.f32 %v917, 0.0
        %v950 = vmax.f32 %v918, 0.0
        %v951 = vmax.f32 %v919, 0.0
        %v952 = vmax.f32 %v920, 0.0
        %v953 = vmax.f32 %v921, 0.0
        %v954 = vmax.f32 %v922, 0.0
        %v955 = vmax.f32 %v923, 0.0
        %v956 = vmax.f32 %v924, 0.0
        %v957 = vmax.f32 %v925, 0.0
        %v958 = vmax.f32 %v926, 0.0
        %v959 = vmax.f32 %v927, 0.0
        %v960 = vmax.f32 %v928, 0.0
        %v961 = vmax.f32 %v929, 0.0
        %v962 = vmax.f32 %v930, 0.0
        %v963 = vmax.f32 %v931, 0.0
        %v964 = vmax.f32 %v932, 0.0
        %v965 = vmax.f32 %v933, 0.0
        %v966 = vmax.f32 %v934, 0.0
        %v967 = vmax.f32 %v935, 0.0
        %v968 = vmax.f32 %v936, 0.0
        %v969 = vmax.f32 %v937, 0.0
        %v970 = vmax.f32 %v938, 0.0
        %v971 = vmax.f32 %v939, 0.0
        %v972 = vmax.f32 %v940, 0.0
        %v973 = vmax.f32 %v941, 0.0
        %v974 = vpack.c.bf16 %v943, %v942
        %v975 = vpack.c.bf16 %v945, %v944
        %v976 = vpack.c.bf16 %v947, %v946
        %v977 = vpack.c.bf16 %v949, %v948
        %v978 = vpack.c.bf16 %v951, %v950
        %v979 = vpack.c.bf16 %v953, %v952
        %v980 = vpack.c.bf16 %v955, %v954
        %v981 = vpack.c.bf16 %v957, %v956
        %v982 = vpack.c.bf16 %v959, %v958
        %v983 = vpack.c.bf16 %v961, %v960
        %v984 = vpack.c.bf16 %v963, %v962
        %v985 = vpack.c.bf16 %v965, %v964
        %v986 = vpack.c.bf16 %v967, %v966
        %v987 = vpack.c.bf16 %v969, %v968
        %v988 = vpack.c.bf16 %v971, %v970
        %v989 = vpack.c.bf16 %v973, %v972
        %v1006 = vunpack.c.l.b16 %v974
        %v1007 = vunpack.c.h.b16 %v974
        %v1008 = vunpack.c.l.b16 %v975
        %v1009 = vunpack.c.h.b16 %v975
        %v1010 = vunpack.c.l.b16 %v976
        %v1011 = vunpack.c.h.b16 %v976
        %v1012 = vunpack.c.l.b16 %v977
        %v1013 = vunpack.c.h.b16 %v977
        %v1014 = vunpack.c.l.b16 %v978
        %v1015 = vunpack.c.h.b16 %v978
        %v1016 = vunpack.c.l.b16 %v979
        %v1017 = vunpack.c.h.b16 %v979
        %v1018 = vunpack.c.l.b16 %v980
        %v1019 = vunpack.c.h.b16 %v980
        %v1020 = vunpack.c.l.b16 %v981
        %v1021 = vunpack.c.h.b16 %v981
        %v1022 = vunpack.c.l.b16 %v982
        %v1023 = vunpack.c.h.b16 %v982
        %v1024 = vunpack.c.l.b16 %v983
        %v1025 = vunpack.c.h.b16 %v983
        %v1026 = vunpack.c.l.b16 %v984
        %v1027 = vunpack.c.h.b16 %v984
        %v1028 = vunpack.c.l.b16 %v985
        %v1029 = vunpack.c.h.b16 %v985
        %v1030 = vunpack.c.l.b16 %v986
        %v1031 = vunpack.c.h.b16 %v986
        %v1032 = vunpack.c.l.b16 %v987
        %v1033 = vunpack.c.h.b16 %v987
        %v1034 = vunpack.c.l.b16 %v988
        %v1035 = vunpack.c.h.b16 %v988
        %v1036 = vunpack.c.l.b16 %v989
        %v1037 = vunpack.c.h.b16 %v989
        %v1038 = vpack.c.b16 %v1006, %v1006
        %v1039 = vpack.c.b16 %v1007, %v1007
        %v1040 = vpack.c.b16 %v1008, %v1008
        %v1041 = vpack.c.b16 %v1009, %v1009
        %v1042 = vpack.c.b16 %v1010, %v1010
        %v1043 = vpack.c.b16 %v1011, %v1011
        %v1044 = vpack.c.b16 %v1012, %v1012
        %v1045 = vpack.c.b16 %v1013, %v1013
        %v1046 = vpack.c.b16 %v1014, %v1014
        %v1047 = vpack.c.b16 %v1015, %v1015
        %v1048 = vpack.c.b16 %v1016, %v1016
        %v1049 = vpack.c.b16 %v1017, %v1017
        %v1050 = vpack.c.b16 %v1018, %v1018
        %v1051 = vpack.c.b16 %v1019, %v1019
        %v1052 = vpack.c.b16 %v1020, %v1020
        %v1053 = vpack.c.b16 %v1021, %v1021
        %v1054 = vpack.c.b16 %v1022, %v1022
        %v1055 = vpack.c.b16 %v1023, %v1023
        %v1056 = vpack.c.b16 %v1024, %v1024
        %v1057 = vpack.c.b16 %v1025, %v1025
        %v1058 = vpack.c.b16 %v1026, %v1026
        %v1059 = vpack.c.b16 %v1027, %v1027
        %v1060 = vpack.c.b16 %v1028, %v1028
        %v1061 = vpack.c.b16 %v1029, %v1029
        %v1062 = vpack.c.b16 %v1030, %v1030
        %v1063 = vpack.c.b16 %v1031, %v1031
        %v1064 = vpack.c.b16 %v1032, %v1032
        %v1065 = vpack.c.b16 %v1033, %v1033
        %v1066 = vpack.c.b16 %v1034, %v1034
        %v1067 = vpack.c.b16 %v1035, %v1035
        %v1068 = vpack.c.b16 %v1036, %v1036
        %v1069 = vpack.c.b16 %v1037, %v1037
        %vm1102 = vcmask 519168
        %1103 = vst.msk [vmem:[%s347] sm:$0xf] %vm1102, %v1038
        %1104 = vst.msk [vmem:[%s347 + $0x4] sm:$0xf] %vm1102, %v1039
        %1105 = vst.msk [vmem:[%s347 + $0x8] sm:$0xf] %vm1102, %v1040
        %1106 = vst.msk [vmem:[%s347 + $0xc] sm:$0xf] %vm1102, %v1041
        %1107 = vst.msk [vmem:[%s347 + $0x10] sm:$0xf] %vm1102, %v1042
        %1108 = vst.msk [vmem:[%s347 + $0x14] sm:$0xf] %vm1102, %v1043
        %1109 = vst.msk [vmem:[%s347 + $0x18] sm:$0xf] %vm1102, %v1044
        %1110 = vst.msk [vmem:[%s347 + $0x1c] sm:$0xf] %vm1102, %v1045
        %1111 = vst.msk [vmem:[%s347 + $0x20] sm:$0xf] %vm1102, %v1046
        %1112 = vst.msk [vmem:[%s347 + $0x24] sm:$0xf] %vm1102, %v1047
        %1113 = vst.msk [vmem:[%s347 + $0x28] sm:$0xf] %vm1102, %v1048
        %1114 = vst.msk [vmem:[%s347 + $0x2c] sm:$0xf] %vm1102, %v1049
        %1115 = vst.msk [vmem:[%s347 + $0x30] sm:$0xf] %vm1102, %v1050
        %1116 = vst.msk [vmem:[%s347 + $0x34] sm:$0xf] %vm1102, %v1051
        %1117 = vst.msk [vmem:[%s347 + $0x38] sm:$0xf] %vm1102, %v1052
        %1118 = vst.msk [vmem:[%s347 + $0x3c] sm:$0xf] %vm1102, %v1053
        %1119 = vst.msk [vmem:[%s347 + $0x40] sm:$0xf] %vm1102, %v1054
        %1120 = vst.msk [vmem:[%s347 + $0x44] sm:$0xf] %vm1102, %v1055
        %1121 = vst.msk [vmem:[%s347 + $0x48] sm:$0xf] %vm1102, %v1056
        %1122 = vst.msk [vmem:[%s347 + $0x4c] sm:$0xf] %vm1102, %v1057
        %1123 = vst.msk [vmem:[%s347 + $0x50] sm:$0xf] %vm1102, %v1058
        %1124 = vst.msk [vmem:[%s347 + $0x54] sm:$0xf] %vm1102, %v1059
        %1125 = vst.msk [vmem:[%s347 + $0x58] sm:$0xf] %vm1102, %v1060
        %1126 = vst.msk [vmem:[%s347 + $0x5c] sm:$0xf] %vm1102, %v1061
        %1127 = vst.msk [vmem:[%s347 + $0x60] sm:$0xf] %vm1102, %v1062
        %1128 = vst.msk [vmem:[%s347 + $0x64] sm:$0xf] %vm1102, %v1063
        %1129 = vst.msk [vmem:[%s347 + $0x68] sm:$0xf] %vm1102, %v1064
        %1130 = vst.msk [vmem:[%s347 + $0x6c] sm:$0xf] %vm1102, %v1065
        %1131 = vst.msk [vmem:[%s347 + $0x70] sm:$0xf] %vm1102, %v1066
        %1132 = vst.msk [vmem:[%s347 + $0x74] sm:$0xf] %vm1102, %v1067
        %1133 = vst.msk [vmem:[%s347 + $0x78] sm:$0xf] %vm1102, %v1068
        %1134 = vst.msk [vmem:[%s347 + $0x7c] sm:$0xf] %vm1102, %v1069
        %s1135 = sand.u32 %s157, 1
        %s1136 = scalar_lea.sflag [#allocation3], %s1135
        %s1137 = sand.u32 %s157, 1
        %s1138 = smul.addr %s1137, 256
        %s1139 = scalar_lea.vmem [#allocation2], %s1138
        %s1140 = smul.u32 32, %s25
        %p1141 = scmp.lt.s32.totalorder %s1140, 63
        %s1142 = scalar_select %p1141, %s1140, 63
        %p1143 = scmp.lt.s32.totalorder %s26, 0
        %s1144 = scalar_select %p1143, %s26, 0
        %s1145 = sadd.s32 %s1144, %s1142
        %s1146 = smul.addr %s1145, 4
        %s1147 = scalar_lea.vmem %s5, %s1146
        // Predicated region
        $region37: #{resnet_forward.25} parent=35 // pred_check
          %p1148 = pneg %p167
        $region38: #{resnet_forward.25} parent=35 // pred_check_branch
          %1150 = sbr.rel (%p1148) target = $region40
        $region39: #{resnet_forward.25} parent=35 // pred_region
          %s1151 = smul.u32 32, %s25
          %s1153 = ssub.s32 4096, 4096
          %1154 = vsyncadd %s1136, %s1153
          %s1155 = sadd.s32 %s26, %s1151
          %s1156 = smul.addr %s1155, 128
          %s1157 = scalar_lea.hbm %s4, %s1156
          %s1158 = sshll.u32 %s1139, 4
          %s1159 = int_to_ptr.vmem [resolvable:$true] %s1158
          %1164 = dma.vmem_to_hbm [thread:$0]  %s1159, 4096, %s1157, %s1136, 128, 128, 8
        $region40: #{resnet_forward.25} parent=35 // pred_fallthru
          _
        // Predicated region
        $region41: #{resnet_forward.25} parent=35 // pred_check
          %p1165 = pneg %p195
        $region42: #{resnet_forward.25} parent=35 // pred_check_branch
          %1167 = sbr.rel (%p1165) target = $region44
        $region43: #{resnet_forward.25} parent=35 // pred_region
          %s1168 = smul.u32 32, %s25
        $region44: #{resnet_forward.25} parent=35 // pred_fallthru
          _
      $region36: #{resnet_forward.25} parent=5 // pred_fallthru
        _
      %p1169 = scmp.le.s32.totalorder 2, %s15
      // Predicated region
      $region45: #{resnet_forward.25} parent=5 // pred_check
        %p1170 = pneg %p1169
      $region46: #{resnet_forward.25} parent=5 // pred_check_branch
        %1172 = sbr.rel (%p1170) target = $region48
      $region47: #{resnet_forward.25} parent=5 // pred_region
        %s1173 = ssub.s32 %s15, 2
        // Predicated region
        $region49: #{resnet_forward.25} parent=47 // pred_check
          %p1174 = pneg %p173
        $region50: #{resnet_forward.25} parent=47 // pred_check_branch
          %1176 = sbr.rel (%p1174) target = $region52
        $region51: #{resnet_forward.25} parent=47 // pred_region
          %s1177 = sand.u32 %s158, 1
          %s1178 = scalar_lea.sflag [#allocation3], %s1177
          %s1179 = sand.u32 %s158, 1
          %s1180 = smul.addr %s1179, 256
          %s1181 = scalar_lea.vmem [#allocation2], %s1180
          %1182 = dma.done %s1178, 4096
        $region52: #{resnet_forward.25} parent=47 // pred_fallthru
          _
        // Predicated region
        $region53: #{resnet_forward.25} parent=47 // pred_check
          %p1183 = pneg %p201
        $region54: #{resnet_forward.25} parent=47 // pred_check_branch
          %1185 = sbr.rel (%p1183) target = $region56
        $region55: #{resnet_forward.25} parent=47 // pred_region
          %s1186 = smul.u32 32, %s28
          %p1187 = scmp.lt.s32.totalorder %s1186, 63
          %s1188 = scalar_select %p1187, %s1186, 63
          %p1189 = scmp.lt.s32.totalorder %s29, 0
          %s1190 = scalar_select %p1189, %s29, 0
          %s1191 = sadd.s32 %s1190, %s1188
          %s1192 = smul.addr %s1191, 4
          %s1193 = scalar_lea.vmem %s5, %s1192
        $region56: #{resnet_forward.25} parent=47 // pred_fallthru
          _
      $region48: #{resnet_forward.25} parent=5 // pred_fallthru
        _
    $region6: #{resnet_forward.25} parent=1 // loop_footer
      %s19 = sadd.s32 1, %s15
    $region7: #{resnet_forward.25} parent=1 // loop_footer_branch
      %14 = sbr.rel target = $region3
    $region8: #{resnet_forward.25} parent=1 // loop_exit
      _
    %1194 = vsyncpa [#allocation3], 1
    %s1195 = scalar_lea.sflag [#allocation3], 1
    %1196 = vsyncpa %s1195, 1

// kernel: resnet_forward.26
$region0: #{resnet_forward.26}
  #allocation0 [shape = 'u32[]', space=smem, size = 0x4, offset = 0x4, fixed_abs, tag = 'smem constant byte address 0x4 - core index']
  #allocation1 [shape = 'u32[144,128]{1,0:T(1,128)}', space=vmem, size = 0x12000, scoped, tag = 'internal scratch']
  %s0 = inlined_call_operand.vmem [shape: bf16[2,17,9,128], index: 0, kind: input, shape index: {}]
  %s1 = inlined_call_operand.vmem [shape: bf16[2,8,8,64], index: 1, kind: output, shape index: {}]
  %s2 = sld [smem:[#allocation0]]
  $region37: #{resnet_forward.26} parent=0
    _
  %s4 = ssub.s32 1, %s2
  %s5 = scalar_select 0, %s4, %s2
  loop: start=0, step=1, limit=4
  $region2: #{resnet_forward.26} parent=0 // loop_pre_header
    _
  $region3: #{resnet_forward.26} parent=0 // loop_header
    %s7 = sphi 0, %s11
    %p8 = scmp.ge.s32.totalorder %s7, 4
    %s14 = sphi 0, %s26
    %s15 = sphi 0, %s22
    %s16 = sphi 0, %s14
    %s17 = sphi 0, %s15
    %s18 = sphi 0, %s16
    %s19 = sphi 0, %s17
    %s29 = sphi 0, %s31
    %s32 = sphi 0, %s29
    %s33 = sphi 0, %s32
    %s49 = sphi 0, %s33
    %s57 = sphi 0, %s59
    %s60 = sphi 0, %s57
    %s61 = sphi 0, %s60
    %s77 = sphi 0, %s61
  $region4: #{resnet_forward.26} parent=0 // loop_header_branch
    %10 = sbr.rel (%p8) target = $region8
  $region5: #{resnet_forward.26} parent=0 // loop_body
    %s12 = ssub.s32 %s7, 1
    %s13 = ssub.s32 %s7, 2
    %s20 = sadd.s32 1, %s15
    %p21 = scmp.ge.s32.totalorder %s20, 1
    %s22 = scalar_select %p21, 0, %s20
    %s23 = sadd.s32 1, %s14
    %s24 = scalar_select %p21, %s23, %s14
    %p25 = scmp.ge.s32.totalorder %s24, 2
    %s26 = scalar_select %p25, 0, %s24
    %s27 = ssub.s32 %s14, %s26
    %p28 = scmp.eq.s32.totalorder %s27, 0
    %s30 = sadd.s32 %s29, 1
    %s31 = scalar_select %p28, %s29, %s30
    %p34 = pneg %p28
    %p35 = scmp.eq.s32.totalorder %s7, 1
    %p36 = por %p34, %p35
    %p37 = scmp.ne.s32.totalorder %s29, %s32
    %p38 = scmp.eq.s32.totalorder %s7, 0
    %p39 = por %p37, %p38
    %p40 = scmp.ne.s32.totalorder %s29, %s32
    %p41 = scmp.eq.s32.totalorder %s12, 1
    %p42 = por %p40, %p41
    %p43 = scmp.ne.s32.totalorder %s32, %s33
    %p44 = scmp.eq.s32.totalorder %s12, 0
    %p45 = por %p43, %p44
    %p46 = scmp.ne.s32.totalorder %s32, %s33
    %p47 = scmp.eq.s32.totalorder %s13, 1
    %p48 = por %p46, %p47
    %p50 = scmp.ne.s32.totalorder %s33, %s49
    %p51 = scmp.eq.s32.totalorder %s13, 0
    %p52 = por %p50, %p51
    %s53 = ssub.s32 %s14, %s26
    %s54 = ssub.s32 %s15, %s22
    %s55 = sor.u32 %s53, %s54
    %p56 = scmp.eq.s32.totalorder %s55, 0
    %s58 = sadd.s32 %s57, 1
    %s59 = scalar_select %p56, %s57, %s58
    %p62 = pneg %p56
    %p63 = scmp.eq.s32.totalorder %s7, 1
    %p64 = por %p62, %p63
    %p65 = scmp.ne.s32.totalorder %s57, %s60
    %p66 = scmp.eq.s32.totalorder %s7, 0
    %p67 = por %p65, %p66
    %p68 = scmp.ne.s32.totalorder %s57, %s60
    %p69 = scmp.eq.s32.totalorder %s12, 1
    %p70 = por %p68, %p69
    %p71 = scmp.ne.s32.totalorder %s60, %s61
    %p72 = scmp.eq.s32.totalorder %s12, 0
    %p73 = por %p71, %p72
    %p74 = scmp.ne.s32.totalorder %s60, %s61
    %p75 = scmp.eq.s32.totalorder %s13, 1
    %p76 = por %p74, %p75
    %p78 = scmp.ne.s32.totalorder %s61, %s77
    %p79 = scmp.eq.s32.totalorder %s13, 0
    %p80 = por %p78, %p79
    %p81 = scmp.le.s32.totalorder 1, %s7
    %p82 = scmp.lt.s32.totalorder %s7, 3
    %p83 = pnand %p81, %p82
    %p84 = pneg %p83
    // Predicated region
    $region9: #{resnet_forward.26} parent=5 // pred_check
      _
    $region10: #{resnet_forward.26} parent=5 // pred_check_branch
      %86 = sbr.rel (%p83) target = $region12
    $region11: #{resnet_forward.26} parent=5 // pred_region
      %s87 = ssub.s32 %s7, 1
    $region12: #{resnet_forward.26} parent=5 // pred_fallthru
      _
    %p88 = scmp.lt.s32.totalorder %s7, 2
    // Predicated region
    $region13: #{resnet_forward.26} parent=5 // pred_check
      %p89 = pneg %p88
    $region14: #{resnet_forward.26} parent=5 // pred_check_branch
      %91 = sbr.rel (%p89) target = $region16
    $region15: #{resnet_forward.26} parent=5 // pred_region
      // Predicated region
      $region17: #{resnet_forward.26} parent=15 // pred_check
        %p92 = pneg %p39
      $region18: #{resnet_forward.26} parent=15 // pred_check_branch
        %94 = sbr.rel (%p92) target = $region20
      $region19: #{resnet_forward.26} parent=15 // pred_region
        %p95 = scmp.lt.s32.totalorder %s14, 1
        %s96 = scalar_select %p95, %s14, 1
        %s97 = smul.addr %s96, 34
        %s98 = smul.addr %s97, 4
        %s99 = scalar_lea.vmem %s0, %s98
      $region20: #{resnet_forward.26} parent=15 // pred_fallthru
        _
    $region16: #{resnet_forward.26} parent=5 // pred_fallthru
      _
    %p100 = scmp.le.s32.totalorder 1, %s7
    %p101 = scmp.lt.s32.totalorder %s7, 3
    %p102 = pnand %p100, %p101
    %p103 = pneg %p102
    // Predicated region
    $region21: #{resnet_forward.26} parent=5 // pred_check
      _
    $region22: #{resnet_forward.26} parent=5 // pred_check_branch
      %105 = sbr.rel (%p102) target = $region24
    $region23: #{resnet_forward.26} parent=5 // pred_region
      %s106 = ssub.s32 %s7, 1
      %p107 = scmp.lt.s32.totalorder %s16, 1
      %s108 = scalar_select %p107, %s16, 1
      %s109 = smul.addr %s108, 34
      %s110 = smul.addr %s109, 4
      %s111 = scalar_lea.vmem %s0, %s110
      %p112 = pneg %p45
      %p113 = pneg %p42
      %p114 = pneg %p73
      %p115 = pneg %p70
      %s116 = smul.u32 8, %s17
      %p117 = scmp.lt.s32.totalorder %s16, 1
      %s118 = scalar_select %p117, %s16, 1
      %p119 = scmp.lt.s32.totalorder %s116, 7
      %s120 = scalar_select %p119, %s116, 7
      %s121 = smul.addr %s118, 8
      %s122 = sadd.s32 %s120, %s121
      %s123 = smul.addr %s122, 4
      %s124 = scalar_lea.vmem %s1, %s123
      %p125 = scmp.lt.s32.totalorder %s16, 1
      %s126 = scalar_select %p125, %s16, 1
      %s127 = smul.addr %s126, 34
      %s128 = smul.addr %s127, 4
      %s129 = scalar_lea.vmem %s0, %s128
      %s130 = smul.u32 8, %s17
      %p131 = scmp.lt.s32.totalorder %s16, 1
      %s132 = scalar_select %p131, %s16, 1
      %p133 = scmp.lt.s32.totalorder %s130, 7
      %s134 = scalar_select %p133, %s130, 7
      %s135 = smul.addr %s132, 8
      %s136 = sadd.s32 %s134, %s135
      %s137 = smul.addr %s136, 4
      %s138 = scalar_lea.vmem %s1, %s137
      %s139 = smul.u32 8, %s17
      %s140 = smul.u32 %s17, 16
      %s141 = smul.u32 %s140, 2
      %s142 = smul.addr %s141, 4
      %s143 = scalar_lea.vmem %s129, %s142
      %v144 = vld [vmem:[%s143] sm:$0xf]
      %v145 = vld [vmem:[%s143 + $0x4] sm:$0x1]
      %s146 = sadd.s32 %s140, 1
      %s147 = smul.u32 %s146, 2
      %s148 = smul.addr %s147, 4
      %s149 = scalar_lea.vmem %s129, %s148
      %v150 = vld [vmem:[%s149] sm:$0xf]
      %v151 = vld [vmem:[%s149 + $0x4] sm:$0x1]
      %s152 = sadd.s32 %s140, 2
      %s153 = smul.u32 %s152, 2
      %s154 = smul.addr %s153, 4
      %s155 = scalar_lea.vmem %s129, %s154
      %v156 = vld [vmem:[%s155] sm:$0xf]
      %v157 = vld [vmem:[%s155 + $0x4] sm:$0x1]
      %v158 = vmax.bf16 %v144, %v150
      %v159 = vmax.bf16 %v145, %v151
      %v160 = vmax.bf16 %v158, %v156
      %v161 = vmax.bf16 %v159, %v157
      %v162 = vunpack.c.l.bf16 %v160
      %v163 = vunpack.c.l.bf16 %v161
      %165 = vrot.lane.b32.xlu0 %v162, 64
      %v166 = vpop.permute.xlu0 %165
      %v168 = vmax.f32 %v162, %v166
      %vm170 = vcmask 1046528
      %v171 = vrot.slane %v162, 1
      %v172 = vrot.slane %v163, 1
      %v173 = vsel %vm170, %v171, %v172
      %v175 = vmax.f32 %v168, %v173
      %s176 = smul.u32 %s17, 8
      %s177 = sadd.s32 %s176, 1
      %s178 = smul.u32 %s177, 2
      %s179 = smul.u32 %s178, 2
      %s180 = smul.addr %s179, 4
      %s181 = scalar_lea.vmem %s129, %s180
      %v182 = vld [vmem:[%s181] sm:$0xf]
      %v183 = vld [vmem:[%s181 + $0x4] sm:$0x1]
      %s184 = sadd.s32 %s178, 1
      %s185 = smul.u32 %s184, 2
      %s186 = smul.addr %s185, 4
      %s187 = scalar_lea.vmem %s129, %s186
      %v188 = vld [vmem:[%s187] sm:$0xf]
      %v189 = vld [vmem:[%s187 + $0x4] sm:$0x1]
      %s190 = sadd.s32 %s178, 2
      %s191 = smul.u32 %s190, 2
      %s192 = smul.addr %s191, 4
      %s193 = scalar_lea.vmem %s129, %s192
      %v194 = vld [vmem:[%s193] sm:$0xf]
      %v195 = vld [vmem:[%s193 + $0x4] sm:$0x1]
      %v196 = vmax.bf16 %v182, %v188
      %v197 = vmax.bf16 %v183, %v189
      %v198 = vmax.bf16 %v196, %v194
      %v199 = vmax.bf16 %v197, %v195
      %v200 = vunpack.c.l.bf16 %v198
      %v201 = vunpack.c.l.bf16 %v199
      %203 = vrot.lane.b32.xlu0 %v200, 64
      %v204 = vpop.permute.xlu0 %203
      %v206 = vmax.f32 %v200, %v204
      %v208 = vrot.slane %v200, 1
      %v209 = vrot.slane %v201, 1
      %v210 = vsel %vm170, %v208, %v209
      %v212 = vmax.f32 %v206, %v210
      %s213 = sadd.s32 %s176, 2
      %s214 = smul.u32 %s213, 2
      %s215 = smul.u32 %s214, 2
      %s216 = smul.addr %s215, 4
      %s217 = scalar_lea.vmem %s129, %s216
      %v218 = vld [vmem:[%s217] sm:$0xf]
      %v219 = vld [vmem:[%s217 + $0x4] sm:$0x1]
      %s220 = sadd.s32 %s214, 1
      %s221 = smul.u32 %s220, 2
      %s222 = smul.addr %s221, 4
      %s223 = scalar_lea.vmem %s129, %s222
      %v224 = vld [vmem:[%s223] sm:$0xf]
      %v225 = vld [vmem:[%s223 + $0x4] sm:$0x1]
      %s226 = sadd.s32 %s214, 2
      %s227 = smul.u32 %s226, 2
      %s228 = smul.addr %s227, 4
      %s229 = scalar_lea.vmem %s129, %s228
      %v230 = vld [vmem:[%s229] sm:$0xf]
      %v231 = vld [vmem:[%s229 + $0x4] sm:$0x1]
      %v232 = vmax.bf16 %v218, %v224
      %v233 = vmax.bf16 %v219, %v225
      %v234 = vmax.bf16 %v232, %v230
      %v235 = vmax.bf16 %v233, %v231
      %v236 = vunpack.c.l.bf16 %v234
      %v237 = vunpack.c.l.bf16 %v235
      %239 = vrot.lane.b32.xlu0 %v236, 64
      %v240 = vpop.permute.xlu0 %239
      %v242 = vmax.f32 %v236, %v240
      %v244 = vrot.slane %v236, 1
      %v245 = vrot.slane %v237, 1
      %v246 = vsel %vm170, %v244, %v245
      %v248 = vmax.f32 %v242, %v246
      %s249 = sadd.s32 %s176, 3
      %s250 = smul.u32 %s249, 2
      %s251 = smul.u32 %s250, 2
      %s252 = smul.addr %s251, 4
      %s253 = scalar_lea.vmem %s129, %s252
      %v254 = vld [vmem:[%s253] sm:$0xf]
      %v255 = vld [vmem:[%s253 + $0x4] sm:$0x1]
      %s256 = sadd.s32 %s250, 1
      %s257 = smul.u32 %s256, 2
      %s258 = smul.addr %s257, 4
      %s259 = scalar_lea.vmem %s129, %s258
      %v260 = vld [vmem:[%s259] sm:$0xf]
      %v261 = vld [vmem:[%s259 + $0x4] sm:$0x1]
      %s262 = sadd.s32 %s250, 2
      %s263 = smul.u32 %s262, 2
      %s264 = smul.addr %s263, 4
      %s265 = scalar_lea.vmem %s129, %s264
      %v266 = vld [vmem:[%s265] sm:$0xf]
      %v267 = vld [vmem:[%s265 + $0x4] sm:$0x1]
      %v268 = vmax.bf16 %v254, %v260
      %v269 = vmax.bf16 %v255, %v261
      %v270 = vmax.bf16 %v268, %v266
      %v271 = vmax.bf16 %v269, %v267
      %v272 = vunpack.c.l.bf16 %v270
      %v273 = vunpack.c.l.bf16 %v271
      %275 = vrot.lane.b32.xlu0 %v272, 64
      %v276 = vpop.permute.xlu0 %275
      %v278 = vmax.f32 %v272, %v276
      %v280 = vrot.slane %v272, 1
      %v281 = vrot.slane %v273, 1
      %v282 = vsel %vm170, %v280, %v281
      %v284 = vmax.f32 %v278, %v282
      %s285 = sadd.s32 %s176, 4
      %s286 = smul.u32 %s285, 2
      %s287 = smul.u32 %s286, 2
      %s288 = smul.addr %s287, 4
      %s289 = scalar_lea.vmem %s129, %s288
      %v290 = vld [vmem:[%s289] sm:$0xf]
      %v291 = vld [vmem:[%s289 + $0x4] sm:$0x1]
      %s292 = sadd.s32 %s286, 1
      %s293 = smul.u32 %s292, 2
      %s294 = smul.addr %s293, 4
      %s295 = scalar_lea.vmem %s129, %s294
      %v296 = vld [vmem:[%s295] sm:$0xf]
      %v297 = vld [vmem:[%s295 + $0x4] sm:$0x1]
      %s298 = sadd.s32 %s286, 2
      %s299 = smul.u32 %s298, 2
      %s300 = smul.addr %s299, 4
      %s301 = scalar_lea.vmem %s129, %s300
      %v302 = vld [vmem:[%s301] sm:$0xf]
      %v303 = vld [vmem:[%s301 + $0x4] sm:$0x1]
      %v304 = vmax.bf16 %v290, %v296
      %v305 = vmax.bf16 %v291, %v297
      %v306 = vmax.bf16 %v304, %v302
      %v307 = vmax.bf16 %v305, %v303
      %v308 = vunpack.c.l.bf16 %v306
      %v309 = vunpack.c.l.bf16 %v307
      %311 = vrot.lane.b32.xlu0 %v308, 64
      %v312 = vpop.permute.xlu0 %311
      %v314 = vmax.f32 %v308, %v312
      %v316 = vrot.slane %v308, 1
      %v317 = vrot.slane %v309, 1
      %v318 = vsel %vm170, %v316, %v317
      %v320 = vmax.f32 %v314, %v318
      %s321 = sadd.s32 %s176, 5
      %s322 = smul.u32 %s321, 2
      %s323 = smul.u32 %s322, 2
      %s324 = smul.addr %s323, 4
      %s325 = scalar_lea.vmem %s129, %s324
      %v326 = vld [vmem:[%s325] sm:$0xf]
      %v327 = vld [vmem:[%s325 + $0x4] sm:$0x1]
      %s328 = sadd.s32 %s322, 1
      %s329 = smul.u32 %s328, 2
      %s330 = smul.addr %s329, 4
      %s331 = scalar_lea.vmem %s129, %s330
      %v332 = vld [vmem:[%s331] sm:$0xf]
      %v333 = vld [vmem:[%s331 + $0x4] sm:$0x1]
      %s334 = sadd.s32 %s322, 2
      %s335 = smul.u32 %s334, 2
      %s336 = smul.addr %s335, 4
      %s337 = scalar_lea.vmem %s129, %s336
      %v338 = vld [vmem:[%s337] sm:$0xf]
      %v339 = vld [vmem:[%s337 + $0x4] sm:$0x1]
      %v340 = vmax.bf16 %v326, %v332
      %v341 = vmax.bf16 %v327, %v333
      %v342 = vmax.bf16 %v340, %v338
      %v343 = vmax.bf16 %v341, %v339
      %v344 = vunpack.c.l.bf16 %v342
      %v345 = vunpack.c.l.bf16 %v343
      %347 = vrot.lane.b32.xlu0 %v344, 64
      %v348 = vpop.permute.xlu0 %347
      %v350 = vmax.f32 %v344, %v348
      %v352 = vrot.slane %v344, 1
      %v353 = vrot.slane %v345, 1
      %v354 = vsel %vm170, %v352, %v353
      %v356 = vmax.f32 %v350, %v354
      %s357 = sadd.s32 %s176, 6
      %s358 = smul.u32 %s357, 2
      %s359 = smul.u32 %s358, 2
      %s360 = smul.addr %s359, 4
      %s361 = scalar_lea.vmem %s129, %s360
      %v362 = vld [vmem:[%s361] sm:$0xf]
      %v363 = vld [vmem:[%s361 + $0x4] sm:$0x1]
      %s364 = sadd.s32 %s358, 1
      %s365 = smul.u32 %s364, 2
      %s366 = smul.addr %s365, 4
      %s367 = scalar_lea.vmem %s129, %s366
      %v368 = vld [vmem:[%s367] sm:$0xf]
      %v369 = vld [vmem:[%s367 + $0x4] sm:$0x1]
      %s370 = sadd.s32 %s358, 2
      %s371 = smul.u32 %s370, 2
      %s372 = smul.addr %s371, 4
      %s373 = scalar_lea.vmem %s129, %s372
      %v374 = vld [vmem:[%s373] sm:$0xf]
      %v375 = vld [vmem:[%s373 + $0x4] sm:$0x1]
      %v376 = vmax.bf16 %v362, %v368
      %v377 = vmax.bf16 %v363, %v369
      %v378 = vmax.bf16 %v376, %v374
      %v379 = vmax.bf16 %v377, %v375
      %v380 = vunpack.c.l.bf16 %v378
      %v381 = vunpack.c.l.bf16 %v379
      %383 = vrot.lane.b32.xlu0 %v380, 64
      %v384 = vpop.permute.xlu0 %383
      %v386 = vmax.f32 %v380, %v384
      %v388 = vrot.slane %v380, 1
      %v389 = vrot.slane %v381, 1
      %v390 = vsel %vm170, %v388, %v389
      %v392 = vmax.f32 %v386, %v390
      %s393 = sadd.s32 %s176, 7
      %s394 = smul.u32 %s393, 2
      %s395 = smul.u32 %s394, 2
      %s396 = smul.addr %s395, 4
      %s397 = scalar_lea.vmem %s129, %s396
      %v398 = vld [vmem:[%s397] sm:$0xf]
      %v399 = vld [vmem:[%s397 + $0x4] sm:$0x1]
      %s400 = sadd.s32 %s394, 1
      %s401 = smul.u32 %s400, 2
      %s402 = smul.addr %s401, 4
      %s403 = scalar_lea.vmem %s129, %s402
      %v404 = vld [vmem:[%s403] sm:$0xf]
      %v405 = vld [vmem:[%s403 + $0x4] sm:$0x1]
      %s406 = sadd.s32 %s394, 2
      %s407 = smul.u32 %s406, 2
      %s408 = smul.addr %s407, 4
      %s409 = scalar_lea.vmem %s129, %s408
      %v410 = vld [vmem:[%s409] sm:$0xf]
      %v411 = vld [vmem:[%s409 + $0x4] sm:$0x1]
      %v412 = vmax.bf16 %v398, %v404
      %v413 = vmax.bf16 %v399, %v405
      %v414 = vmax.bf16 %v412, %v410
      %v415 = vmax.bf16 %v413, %v411
      %v416 = vunpack.c.l.bf16 %v414
      %v417 = vunpack.c.l.bf16 %v415
      %419 = vrot.lane.b32.xlu0 %v416, 64
      %v420 = vpop.permute.xlu0 %419
      %v422 = vmax.f32 %v416, %v420
      %v424 = vrot.slane %v416, 1
      %v425 = vrot.slane %v417, 1
      %v426 = vsel %vm170, %v424, %v425
      %v428 = vmax.f32 %v422, %v426
      %v429 = vpack.c.bf16 %v175, %v175
      %v430 = vpack.c.bf16 %v212, %v212
      %v431 = vpack.c.bf16 %v248, %v248
      %v432 = vpack.c.bf16 %v284, %v284
      %v433 = vpack.c.bf16 %v320, %v320
      %v434 = vpack.c.bf16 %v356, %v356
      %v435 = vpack.c.bf16 %v392, %v392
      %v436 = vpack.c.bf16 %v428, %v428
      %vm437 = vcmask 519168
      %438 = vst.msk [vmem:[%s138] sm:$0xf] %vm437, %v429
      %439 = vst.msk [vmem:[%s138 + $0x4] sm:$0xf] %vm437, %v430
      %440 = vst.msk [vmem:[%s138 + $0x8] sm:$0xf] %vm437, %v431
      %441 = vst.msk [vmem:[%s138 + $0xc] sm:$0xf] %vm437, %v432
      %442 = vst.msk [vmem:[%s138 + $0x10] sm:$0xf] %vm437, %v433
      %443 = vst.msk [vmem:[%s138 + $0x14] sm:$0xf] %vm437, %v434
      %444 = vst.msk [vmem:[%s138 + $0x18] sm:$0xf] %vm437, %v435
      %445 = vst.msk [vmem:[%s138 + $0x1c] sm:$0xf] %vm437, %v436
      %s446 = smul.u32 8, %s17
      %p447 = scmp.lt.s32.totalorder %s16, 1
      %s448 = scalar_select %p447, %s16, 1
      %p449 = scmp.lt.s32.totalorder %s446, 7
      %s450 = scalar_select %p449, %s446, 7
      %s451 = smul.addr %s448, 8
      %s452 = sadd.s32 %s450, %s451
      %s453 = smul.addr %s452, 4
      %s454 = scalar_lea.vmem %s1, %s453
      // Predicated region
      $region25: #{resnet_forward.26} parent=23 // pred_check
        %p455 = pneg %p70
      $region26: #{resnet_forward.26} parent=23 // pred_check_branch
        %457 = sbr.rel (%p455) target = $region28
      $region27: #{resnet_forward.26} parent=23 // pred_region
        %s458 = smul.u32 8, %s17
      $region28: #{resnet_forward.26} parent=23 // pred_fallthru
        _
    $region24: #{resnet_forward.26} parent=5 // pred_fallthru
      _
    %p459 = scmp.le.s32.totalorder 2, %s7
    // Predicated region
    $region29: #{resnet_forward.26} parent=5 // pred_check
      %p460 = pneg %p459
    $region30: #{resnet_forward.26} parent=5 // pred_check_branch
      %462 = sbr.rel (%p460) target = $region32
    $region31: #{resnet_forward.26} parent=5 // pred_region
      %s463 = ssub.s32 %s7, 2
      // Predicated region
      $region33: #{resnet_forward.26} parent=31 // pred_check
        %p464 = pneg %p76
      $region34: #{resnet_forward.26} parent=31 // pred_check_branch
        %466 = sbr.rel (%p464) target = $region36
      $region35: #{resnet_forward.26} parent=31 // pred_region
        %s467 = smul.u32 8, %s19
        %p468 = scmp.lt.s32.totalorder %s18, 1
        %s469 = scalar_select %p468, %s18, 1
        %p470 = scmp.lt.s32.totalorder %s467, 7
        %s471 = scalar_select %p470, %s467, 7
        %s472 = smul.addr %s469, 8
        %s473 = sadd.s32 %s471, %s472
        %s474 = smul.addr %s473, 4
        %s475 = scalar_lea.vmem %s1, %s474
      $region36: #{resnet_forward.26} parent=31 // pred_fallthru
        _
    $region32: #{resnet_forward.26} parent=5 // pred_fallthru
      _
  $region6: #{resnet_forward.26} parent=0 // loop_footer
    %s11 = sadd.s32 1, %s7
  $region7: #{resnet_forward.26} parent=0 // loop_footer_branch
    %6 = sbr.rel target = $region3
  $region8: #{resnet_forward.26} parent=0 // loop_exit
    _

// kernel: resnet_forward.28
$region0: #{resnet_forward.28}
  #allocation0 [shape = 'u32[]', space=smem, size = 0x4, offset = 0x4, fixed_abs, tag = 'smem constant byte address 0x4 - core index']
  #allocation1 [shape = 'u32[144,128]{1,0:T(1,128)}', space=vmem, size = 0x12000, scoped, tag = 'internal scratch']
  %s0 = inlined_call_operand.vmem [shape: bf16[128,128], index: 0, kind: input, shape index: {}]
  %s1 = inlined_call_operand.vmem [shape: bf16[128,64], index: 1, kind: input, shape index: {}]
  %s2 = inlined_call_operand.vmem [shape: f32[1,64], index: 2, kind: input, shape index: {}]
  %s3 = inlined_call_operand.vmem [shape: bf16[128,64], index: 3, kind: output, shape index: {}]
  %s4 = sld [smem:[#allocation0]]
  $region45: #{resnet_forward.28} parent=0
    _
  %s6 = ssub.s32 1, %s4
  %s7 = scalar_select 0, %s6, %s4
  loop: start=0, step=1, limit=4
  $region2: #{resnet_forward.28} parent=0 // loop_pre_header
    _
  $region3: #{resnet_forward.28} parent=0 // loop_header
    %s9 = sphi 0, %s13
    %p10 = scmp.ge.s32.totalorder %s9, 4
    %s16 = sphi 0, %s35
    %s17 = sphi 0, %s31
    %s18 = sphi 0, %s27
    %s19 = sphi 0, %s16
    %s20 = sphi 0, %s17
    %s21 = sphi 0, %s18
    %s22 = sphi 0, %s19
    %s23 = sphi 0, %s20
    %s24 = sphi 0, %s21
    %s40 = sphi 0, %s42
    %s43 = sphi 0, %s40
    %s44 = sphi 0, %s43
    %s60 = sphi 0, %s44
    %s68 = sphi 0, %s70
    %s71 = sphi 0, %s68
    %s72 = sphi 0, %s71
    %s88 = sphi 0, %s72
    %s94 = sphi 0, %s96
    %s97 = sphi 0, %s94
    %s98 = sphi 0, %s97
    %s114 = sphi 0, %s98
    %s122 = sphi 0, %s124
    %s125 = sphi 0, %s122
    %s126 = sphi 0, %s125
    %s142 = sphi 0, %s126
  $region4: #{resnet_forward.28} parent=0 // loop_header_branch
    %12 = sbr.rel (%p10) target = $region8
  $region5: #{resnet_forward.28} parent=0 // loop_body
    %s14 = ssub.s32 %s9, 1
    %s15 = ssub.s32 %s9, 2
    %s25 = sadd.s32 1, %s18
    %p26 = scmp.ge.s32.totalorder %s25, 1
    %s27 = scalar_select %p26, 0, %s25
    %s28 = sadd.s32 1, %s17
    %s29 = scalar_select %p26, %s28, %s17
    %p30 = scmp.ge.s32.totalorder %s29, 1
    %s31 = scalar_select %p30, 0, %s29
    %s32 = sadd.s32 1, %s16
    %s33 = scalar_select %p30, %s32, %s16
    %p34 = scmp.ge.s32.totalorder %s33, 2
    %s35 = scalar_select %p34, 0, %s33
    %s36 = ssub.s32 %s16, %s35
    %s37 = ssub.s32 %s18, %s27
    %s38 = sor.u32 %s36, %s37
    %p39 = scmp.eq.s32.totalorder %s38, 0
    %s41 = sadd.s32 %s40, 1
    %s42 = scalar_select %p39, %s40, %s41
    %p45 = pneg %p39
    %p46 = scmp.eq.s32.totalorder %s9, 1
    %p47 = por %p45, %p46
    %p48 = scmp.ne.s32.totalorder %s40, %s43
    %p49 = scmp.eq.s32.totalorder %s9, 0
    %p50 = por %p48, %p49
    %p51 = scmp.ne.s32.totalorder %s40, %s43
    %p52 = scmp.eq.s32.totalorder %s14, 1
    %p53 = por %p51, %p52
    %p54 = scmp.ne.s32.totalorder %s43, %s44
    %p55 = scmp.eq.s32.totalorder %s14, 0
    %p56 = por %p54, %p55
    %p57 = scmp.ne.s32.totalorder %s43, %s44
    %p58 = scmp.eq.s32.totalorder %s15, 1
    %p59 = por %p57, %p58
    %p61 = scmp.ne.s32.totalorder %s44, %s60
    %p62 = scmp.eq.s32.totalorder %s15, 0
    %p63 = por %p61, %p62
    %s64 = ssub.s32 %s18, %s27
    %s65 = ssub.s32 %s17, %s31
    %s66 = sor.u32 %s64, %s65
    %p67 = scmp.eq.s32.totalorder %s66, 0
    %s69 = sadd.s32 %s68, 1
    %s70 = scalar_select %p67, %s68, %s69
    %p73 = pneg %p67
    %p74 = scmp.eq.s32.totalorder %s9, 1
    %p75 = por %p73, %p74
    %p76 = scmp.ne.s32.totalorder %s68, %s71
    %p77 = scmp.eq.s32.totalorder %s9, 0
    %p78 = por %p76, %p77
    %p79 = scmp.ne.s32.totalorder %s68, %s71
    %p80 = scmp.eq.s32.totalorder %s14, 1
    %p81 = por %p79, %p80
    %p82 = scmp.ne.s32.totalorder %s71, %s72
    %p83 = scmp.eq.s32.totalorder %s14, 0
    %p84 = por %p82, %p83
    %p85 = scmp.ne.s32.totalorder %s71, %s72
    %p86 = scmp.eq.s32.totalorder %s15, 1
    %p87 = por %p85, %p86
    %p89 = scmp.ne.s32.totalorder %s72, %s88
    %p90 = scmp.eq.s32.totalorder %s15, 0
    %p91 = por %p89, %p90
    %s92 = ssub.s32 %s17, %s31
    %p93 = scmp.eq.s32.totalorder %s92, 0
    %s95 = sadd.s32 %s94, 1
    %s96 = scalar_select %p93, %s94, %s95
    %p99 = pneg %p93
    %p100 = scmp.eq.s32.totalorder %s9, 1
    %p101 = por %p99, %p100
    %p102 = scmp.ne.s32.totalorder %s94, %s97
    %p103 = scmp.eq.s32.totalorder %s9, 0
    %p104 = por %p102, %p103
    %p105 = scmp.ne.s32.totalorder %s94, %s97
    %p106 = scmp.eq.s32.totalorder %s14, 1
    %p107 = por %p105, %p106
    %p108 = scmp.ne.s32.totalorder %s97, %s98
    %p109 = scmp.eq.s32.totalorder %s14, 0
    %p110 = por %p108, %p109
    %p111 = scmp.ne.s32.totalorder %s97, %s98
    %p112 = scmp.eq.s32.totalorder %s15, 1
    %p113 = por %p111, %p112
    %p115 = scmp.ne.s32.totalorder %s98, %s114
    %p116 = scmp.eq.s32.totalorder %s15, 0
    %p117 = por %p115, %p116
    %s118 = ssub.s32 %s16, %s35
    %s119 = ssub.s32 %s17, %s31
    %s120 = sor.u32 %s118, %s119
    %p121 = scmp.eq.s32.totalorder %s120, 0
    %s123 = sadd.s32 %s122, 1
    %s124 = scalar_select %p121, %s122, %s123
    %p127 = pneg %p121
    %p128 = scmp.eq.s32.totalorder %s9, 1
    %p129 = por %p127, %p128
    %p130 = scmp.ne.s32.totalorder %s122, %s125
    %p131 = scmp.eq.s32.totalorder %s9, 0
    %p132 = por %p130, %p131
    %p133 = scmp.ne.s32.totalorder %s122, %s125
    %p134 = scmp.eq.s32.totalorder %s14, 1
    %p135 = por %p133, %p134
    %p136 = scmp.ne.s32.totalorder %s125, %s126
    %p137 = scmp.eq.s32.totalorder %s14, 0
    %p138 = por %p136, %p137
    %p139 = scmp.ne.s32.totalorder %s125, %s126
    %p140 = scmp.eq.s32.totalorder %s15, 1
    %p141 = por %p139, %p140
    %p143 = scmp.ne.s32.totalorder %s126, %s142
    %p144 = scmp.eq.s32.totalorder %s15, 0
    %p145 = por %p143, %p144
    %p146 = scmp.le.s32.totalorder 1, %s9
    %p147 = scmp.lt.s32.totalorder %s9, 3
    %p148 = pnand %p146, %p147
    %p149 = pneg %p148
    // Predicated region
    $region9: #{resnet_forward.28} parent=5 // pred_check
      _
    $region10: #{resnet_forward.28} parent=5 // pred_check_branch
      %151 = sbr.rel (%p148) target = $region12
    $region11: #{resnet_forward.28} parent=5 // pred_region
      %s152 = ssub.s32 %s9, 1
      // Predicated region
      $region13: #{resnet_forward.28} parent=11 // pred_check
        %p153 = pneg %p84
      $region14: #{resnet_forward.28} parent=11 // pred_check_branch
        %155 = sbr.rel (%p153) target = $region16
      $region15: #{resnet_forward.28} parent=11 // pred_region
        %s156 = smul.u32 16, %s21
        %p157 = scmp.lt.s32.totalorder %s156, 15
        %s158 = scalar_select %p157, %s156, 15
        %p159 = scmp.lt.s32.totalorder %s20, 0
        %s160 = scalar_select %p159, %s20, 0
        %s161 = sadd.s32 %s160, %s158
        %s162 = smul.addr %s161, 4
        %s163 = scalar_lea.vmem %s1, %s162
        %s164 = smul.u32 16, %s21
      $region16: #{resnet_forward.28} parent=11 // pred_fallthru
        _
      // Predicated region
      $region17: #{resnet_forward.28} parent=11 // pred_check
        %p165 = pneg %p110
      $region18: #{resnet_forward.28} parent=11 // pred_check_branch
        %167 = sbr.rel (%p165) target = $region20
      $region19: #{resnet_forward.28} parent=11 // pred_region
        %p168 = scmp.lt.s32.totalorder %s20, 0
        %s169 = scalar_select %p168, %s20, 0
        %s170 = scalar_lea.vmem %s2, %s169
      $region20: #{resnet_forward.28} parent=11 // pred_fallthru
        _
    $region12: #{resnet_forward.28} parent=5 // pred_fallthru
      _
    %p171 = scmp.lt.s32.totalorder %s9, 2
    // Predicated region
    $region21: #{resnet_forward.28} parent=5 // pred_check
      %p172 = pneg %p171
    $region22: #{resnet_forward.28} parent=5 // pred_check_branch
      %174 = sbr.rel (%p172) target = $region24
    $region23: #{resnet_forward.28} parent=5 // pred_region
      // Predicated region
      $region25: #{resnet_forward.28} parent=23 // pred_check
        %p175 = pneg %p50
      $region26: #{resnet_forward.28} parent=23 // pred_check_branch
        %177 = sbr.rel (%p175) target = $region28
      $region27: #{resnet_forward.28} parent=23 // pred_region
        %s178 = smul.u32 8, %s16
        %p179 = scmp.lt.s32.totalorder %s178, 15
        %s180 = scalar_select %p179, %s178, 15
        %p181 = scmp.lt.s32.totalorder %s18, 0
        %s182 = scalar_select %p181, %s18, 0
        %s183 = sadd.s32 %s182, %s180
        %s184 = smul.addr %s183, 4
        %s185 = scalar_lea.vmem %s0, %s184
        %s186 = smul.u32 8, %s16
      $region28: #{resnet_forward.28} parent=23 // pred_fallthru
        _
    $region24: #{resnet_forward.28} parent=5 // pred_fallthru
      _
    %p187 = scmp.le.s32.totalorder 1, %s9
    %p188 = scmp.lt.s32.totalorder %s9, 3
    %p189 = pnand %p187, %p188
    %p190 = pneg %p189
    // Predicated region
    $region29: #{resnet_forward.28} parent=5 // pred_check
      _
    $region30: #{resnet_forward.28} parent=5 // pred_check_branch
      %192 = sbr.rel (%p189) target = $region32
    $region31: #{resnet_forward.28} parent=5 // pred_region
      %s193 = ssub.s32 %s9, 1
      %s194 = smul.u32 8, %s19
      %p195 = scmp.lt.s32.totalorder %s194, 15
      %s196 = scalar_select %p195, %s194, 15
      %p197 = scmp.lt.s32.totalorder %s21, 0
      %s198 = scalar_select %p197, %s21, 0
      %s199 = sadd.s32 %s198, %s196
      %s200 = smul.addr %s199, 4
      %s201 = scalar_lea.vmem %s0, %s200
      %p202 = pneg %p56
      %p203 = pneg %p53
      %s204 = smul.u32 16, %s21
      %p205 = scmp.lt.s32.totalorder %s204, 15
      %s206 = scalar_select %p205, %s204, 15
      %p207 = scmp.lt.s32.totalorder %s20, 0
      %s208 = scalar_select %p207, %s20, 0
      %s209 = sadd.s32 %s208, %s206
      %s210 = smul.addr %s209, 4
      %s211 = scalar_lea.vmem %s1, %s210
      %p212 = pneg %p84
      %p213 = pneg %p81
      %p214 = scmp.lt.s32.totalorder %s20, 0
      %s215 = scalar_select %p214, %s20, 0
      %s216 = scalar_lea.vmem %s2, %s215
      %p217 = pneg %p110
      %p218 = pneg %p107
      %p219 = pneg %p138
      %p220 = pneg %p135
      %s221 = smul.u32 8, %s19
      %p222 = scmp.lt.s32.totalorder %s221, 15
      %s223 = scalar_select %p222, %s221, 15
      %p224 = scmp.lt.s32.totalorder %s20, 0
      %s225 = scalar_select %p224, %s20, 0
      %s226 = sadd.s32 %s225, %s223
      %s227 = smul.addr %s226, 4
      %s228 = scalar_lea.vmem %s3, %s227
      %s229 = smul.u32 8, %s19
      %p230 = scmp.lt.s32.totalorder %s229, 15
      %s231 = scalar_select %p230, %s229, 15
      %p232 = scmp.lt.s32.totalorder %s21, 0
      %s233 = scalar_select %p232, %s21, 0
      %s234 = sadd.s32 %s233, %s231
      %s235 = smul.addr %s234, 4
      %s236 = scalar_lea.vmem %s0, %s235
      %s237 = smul.u32 8, %s19
      %s238 = smul.u32 16, %s21
      %p239 = scmp.lt.s32.totalorder %s238, 15
      %s240 = scalar_select %p239, %s238, 15
      %p241 = scmp.lt.s32.totalorder %s20, 0
      %s242 = scalar_select %p241, %s20, 0
      %s243 = sadd.s32 %s242, %s240
      %s244 = smul.addr %s243, 4
      %s245 = scalar_lea.vmem %s1, %s244
      %s246 = smul.u32 16, %s21
      %p247 = scmp.lt.s32.totalorder %s20, 0
      %s248 = scalar_select %p247, %s20, 0
      %s249 = scalar_lea.vmem %s2, %s248
      %s250 = smul.u32 8, %s19
      %p251 = scmp.lt.s32.totalorder %s250, 15
      %s252 = scalar_select %p251, %s250, 15
      %p253 = scmp.lt.s32.totalorder %s20, 0
      %s254 = scalar_select %p253, %s20, 0
      %s255 = sadd.s32 %s254, %s252
      %s256 = smul.addr %s255, 4
      %s257 = scalar_lea.vmem %s3, %s256
      %s258 = smul.u32 8, %s19
      %v260 = vld [vmem:[%s236] sm:$0xf]
      %v261 = vld [vmem:[%s236 + $0x4] sm:$0xf]
      %v262 = vld [vmem:[%s236 + $0x8] sm:$0xf]
      %v263 = vld [vmem:[%s236 + $0xc] sm:$0xf]
      %v264 = vld [vmem:[%s236 + $0x10] sm:$0xf]
      %v265 = vld [vmem:[%s236 + $0x14] sm:$0xf]
      %v266 = vld [vmem:[%s236 + $0x18] sm:$0xf]
      %v267 = vld [vmem:[%s236 + $0x1c] sm:$0xf]
      %v268 = vld [vmem:[%s245] sm:$0xf]
      %v269 = vld [vmem:[%s245 + $0x4] sm:$0xf]
      %v270 = vld [vmem:[%s245 + $0x8] sm:$0xf]
      %v271 = vld [vmem:[%s245 + $0xc] sm:$0xf]
      %v272 = vld [vmem:[%s245 + $0x10] sm:$0xf]
      %v273 = vld [vmem:[%s245 + $0x14] sm:$0xf]
      %v274 = vld [vmem:[%s245 + $0x18] sm:$0xf]
      %v275 = vld [vmem:[%s245 + $0x1c] sm:$0xf]
      %v276 = vld [vmem:[%s245 + $0x20] sm:$0xf]
      %v277 = vld [vmem:[%s245 + $0x24] sm:$0xf]
      %v278 = vld [vmem:[%s245 + $0x28] sm:$0xf]
      %v279 = vld [vmem:[%s245 + $0x2c] sm:$0xf]
      %v280 = vld [vmem:[%s245 + $0x30] sm:$0xf]
      %v281 = vld [vmem:[%s245 + $0x34] sm:$0xf]
      %v282 = vld [vmem:[%s245 + $0x38] sm:$0xf]
      %v283 = vld [vmem:[%s245 + $0x3c] sm:$0xf]
      %v284 = vld [vmem:[%s249] sm:$0x1]
      %v286 = vlaneseq
      %v287 = vshrl.u32 %v286, 7
      %v288 = vsub.s32 0, %v287
      %v289 = vrot.slane %v284, %v288
      %v299 = vunpack.c.l.b16 %v260
      %v300 = vunpack.c.l.b16 %v261
      %v301 = vunpack.c.l.b16 %v262
      %v302 = vunpack.c.l.b16 %v263
      %v303 = vunpack.c.l.b16 %v264
      %v304 = vunpack.c.l.b16 %v265
      %v305 = vunpack.c.l.b16 %v266
      %v306 = vunpack.c.l.b16 %v267
      %v307 = vpack.c.b16 %v300, %v299
      %v308 = vpack.c.b16 %v302, %v301
      %v309 = vpack.c.b16 %v304, %v303
      %v310 = vpack.c.b16 %v306, %v305
      %v331 = vunpack.c.l.b16 %v268
      %v332 = vunpack.c.l.b16 %v269
      %v333 = vunpack.c.l.b16 %v270
      %v334 = vunpack.c.l.b16 %v271
      %v335 = vunpack.c.l.b16 %v272
      %v336 = vunpack.c.l.b16 %v273
      %v337 = vunpack.c.l.b16 %v274
      %v338 = vunpack.c.l.b16 %v275
      %v339 = vunpack.c.l.b16 %v276
      %v340 = vunpack.c.l.b16 %v277
      %v341 = vunpack.c.l.b16 %v278
      %v342 = vunpack.c.l.b16 %v279
      %v343 = vunpack.c.l.b16 %v280
      %v344 = vunpack.c.l.b16 %v281
      %v345 = vunpack.c.l.b16 %v282
      %v346 = vunpack.c.l.b16 %v283
      %v347 = vpack.c.b16 %v332, %v331
      %v348 = vpack.c.b16 %v334, %v333
      %v349 = vpack.c.b16 %v336, %v335
      %v350 = vpack.c.b16 %v338, %v337
      %v351 = vpack.c.b16 %v340, %v339
      %v352 = vpack.c.b16 %v342, %v341
      %v353 = vpack.c.b16 %v344, %v343
      %v354 = vpack.c.b16 %v346, %v345
      %363 = vmatprep.subr.bf16.mxu0 0
      %364 = vmatpush1.bf16.msra.mxu0 %v347
      %365 = vmatprep.subr.bf16.mxu0 0
      %366 = vmatpush1.bf16.msra.mxu0 %v348
      %367 = vmatprep.subr.bf16.mxu0 0
      %368 = vmatpush1.bf16.msra.mxu0 %v349
      %369 = vmatprep.subr.bf16.mxu0 0
      %370 = vmatpush1.bf16.msra.mxu0 %v350
      %371 = vmatprep.subr.bf16.mxu0 0
      %372 = vmatpush1.bf16.msra.mxu0 %v351
      %373 = vmatprep.subr.bf16.mxu0 0
      %374 = vmatpush1.bf16.msra.mxu0 %v352
      %375 = vmatprep.subr.bf16.mxu0 0
      %376 = vmatpush1.bf16.msra.mxu0 %v353
      %377 = vmatprep.subr.bf16.mxu0 0
      %378 = vmatpush1.bf16.msra.mxu0 %v354
      %379 = vmatprep.subr.bf16.mxu0 0
      %380 = vmatpush1.bf16.msra.mxu0 0
      %381 = vmatprep.subr.bf16.mxu0 0
      %382 = vmatpush1.bf16.msra.mxu0 0
      %383 = vmatprep.subr.bf16.mxu0 0
      %384 = vmatpush1.bf16.msra.mxu0 0
      %385 = vmatprep.subr.bf16.mxu0 0
      %386 = vmatpush1.bf16.msra.mxu0 0
      %387 = vmatprep.subr.bf16.mxu0 0
      %388 = vmatpush1.bf16.msra.mxu0 0
      %389 = vmatprep.subr.bf16.mxu0 0
      %390 = vmatpush1.bf16.msra.mxu0 0
      %391 = vmatprep.subr.bf16.mxu0 0
      %392 = vmatpush1.bf16.msra.mxu0 0
      %393 = vmatprep.subr.bf16.mxu0 0
      %394 = vmatpush1.bf16.msra.mxu0 0
      %395 = vmatprep.mubr.bf16.mxu0 0
      %396 = vmatmul.mubr.bf16.gmra.mrb[0].mxu0 %v307
      %v397 = vpop.f32.mrb[0].mxu0
      %v398 = vadd.f32 %v289, %v397
      %v399 = vpop.f32.mrb[0].mxu0
      %v400 = vpop.f32.mrb[0].mxu0
      %v401 = vadd.f32 %v289, %v400
      %v402 = vpop.f32.mrb[0].mxu0
      %403 = vmatprep.mubr.bf16.mxu0 0
      %404 = vmatmul.mubr.bf16.gmra.mrb[0].mxu0 %v308
      %v405 = vpop.f32.mrb[0].mxu0
      %v406 = vadd.f32 %v289, %v405
      %v407 = vpop.f32.mrb[0].mxu0
      %v408 = vpop.f32.mrb[0].mxu0
      %v409 = vadd.f32 %v289, %v408
      %v410 = vpop.f32.mrb[0].mxu0
      %411 = vmatprep.mubr.bf16.mxu0 0
      %412 = vmatmul.mubr.bf16.gmra.mrb[0].mxu0 %v309
      %v413 = vpop.f32.mrb[0].mxu0
      %v414 = vadd.f32 %v289, %v413
      %v415 = vpop.f32.mrb[0].mxu0
      %v416 = vpop.f32.mrb[0].mxu0
      %v417 = vadd.f32 %v289, %v416
      %v418 = vpop.f32.mrb[0].mxu0
      %419 = vmatprep.mubr.bf16.mxu0 0
      %420 = vmatmul.mubr.bf16.gmra.mrb[0].mxu0 %v310
      %v421 = vpop.f32.mrb[0].mxu0
      %v422 = vadd.f32 %v289, %v421
      %v423 = vpop.f32.mrb[0].mxu0
      %v424 = vpop.f32.mrb[0].mxu0
      %v425 = vadd.f32 %v289, %v424
      %v426 = vpop.f32.mrb[0].mxu0
      %427 = vdwg.mxu0
      %v428 = vmax.f32 %v398, 0.0
      %v429 = vmax.f32 %v401, 0.0
      %v430 = vmax.f32 %v406, 0.0
      %v431 = vmax.f32 %v409, 0.0
      %v432 = vmax.f32 %v414, 0.0
      %v433 = vmax.f32 %v417, 0.0
      %v434 = vmax.f32 %v422, 0.0
      %v435 = vmax.f32 %v425, 0.0
      %v436 = vpack.c.bf16 %v429, %v428
      %v437 = vpack.c.bf16 %v431, %v430
      %v438 = vpack.c.bf16 %v433, %v432
      %v439 = vpack.c.bf16 %v435, %v434
      %v444 = vunpack.c.l.b16 %v436
      %v445 = vunpack.c.h.b16 %v436
      %v446 = vunpack.c.l.b16 %v437
      %v447 = vunpack.c.h.b16 %v437
      %v448 = vunpack.c.l.b16 %v438
      %v449 = vunpack.c.h.b16 %v438
      %v450 = vunpack.c.l.b16 %v439
      %v451 = vunpack.c.h.b16 %v439
      %v452 = vpack.c.b16 %v444, %v444
      %v453 = vpack.c.b16 %v445, %v445
      %v454 = vpack.c.b16 %v446, %v446
      %v455 = vpack.c.b16 %v447, %v447
      %v456 = vpack.c.b16 %v448, %v448
      %v457 = vpack.c.b16 %v449, %v449
      %v458 = vpack.c.b16 %v450, %v450
      %v459 = vpack.c.b16 %v451, %v451
      %vm468 = vcmask 519168
      %469 = vst.msk [vmem:[%s257] sm:$0xf] %vm468, %v452
      %470 = vst.msk [vmem:[%s257 + $0x4] sm:$0xf] %vm468, %v453
      %471 = vst.msk [vmem:[%s257 + $0x8] sm:$0xf] %vm468, %v454
      %472 = vst.msk [vmem:[%s257 + $0xc] sm:$0xf] %vm468, %v455
      %473 = vst.msk [vmem:[%s257 + $0x10] sm:$0xf] %vm468, %v456
      %474 = vst.msk [vmem:[%s257 + $0x14] sm:$0xf] %vm468, %v457
      %475 = vst.msk [vmem:[%s257 + $0x18] sm:$0xf] %vm468, %v458
      %476 = vst.msk [vmem:[%s257 + $0x1c] sm:$0xf] %vm468, %v459
      %s477 = smul.u32 8, %s19
      %p478 = scmp.lt.s32.totalorder %s477, 15
      %s479 = scalar_select %p478, %s477, 15
      %p480 = scmp.lt.s32.totalorder %s20, 0
      %s481 = scalar_select %p480, %s20, 0
      %s482 = sadd.s32 %s481, %s479
      %s483 = smul.addr %s482, 4
      %s484 = scalar_lea.vmem %s3, %s483
      // Predicated region
      $region33: #{resnet_forward.28} parent=31 // pred_check
        %p485 = pneg %p135
      $region34: #{resnet_forward.28} parent=31 // pred_check_branch
        %487 = sbr.rel (%p485) target = $region36
      $region35: #{resnet_forward.28} parent=31 // pred_region
        %s488 = smul.u32 8, %s19
      $region36: #{resnet_forward.28} parent=31 // pred_fallthru
        _
    $region32: #{resnet_forward.28} parent=5 // pred_fallthru
      _
    %p489 = scmp.le.s32.totalorder 2, %s9
    // Predicated region
    $region37: #{resnet_forward.28} parent=5 // pred_check
      %p490 = pneg %p489
    $region38: #{resnet_forward.28} parent=5 // pred_check_branch
      %492 = sbr.rel (%p490) target = $region40
    $region39: #{resnet_forward.28} parent=5 // pred_region
      %s493 = ssub.s32 %s9, 2
      // Predicated region
      $region41: #{resnet_forward.28} parent=39 // pred_check
        %p494 = pneg %p141
      $region42: #{resnet_forward.28} parent=39 // pred_check_branch
        %496 = sbr.rel (%p494) target = $region44
      $region43: #{resnet_forward.28} parent=39 // pred_region
        %s497 = smul.u32 8, %s22
        %p498 = scmp.lt.s32.totalorder %s497, 15
        %s499 = scalar_select %p498, %s497, 15
        %p500 = scmp.lt.s32.totalorder %s23, 0
        %s501 = scalar_select %p500, %s23, 0
        %s502 = sadd.s32 %s501, %s499
        %s503 = smul.addr %s502, 4
        %s504 = scalar_lea.vmem %s3, %s503
      $region44: #{resnet_forward.28} parent=39 // pred_fallthru
        _
    $region40: #{resnet_forward.28} parent=5 // pred_fallthru
      _
  $region6: #{resnet_forward.28} parent=0 // loop_footer
    %s13 = sadd.s32 1, %s9
  $region7: #{resnet_forward.28} parent=0 // loop_footer_branch
    %8 = sbr.rel target = $region3
  $region8: #{resnet_forward.28} parent=0 // loop_exit
    _

// kernel: resnet_forward.29
$region0: #{resnet_forward.29}
  #allocation0 [shape = 'u32[]', space=smem, size = 0x4, offset = 0x4, fixed_abs, tag = 'smem constant byte address 0x4 - core index']
  #allocation1 [shape = 'u32[144,128]{1,0:T(1,128)}', space=vmem, size = 0x12000, scoped, tag = 'internal scratch']
  %s0 = inlined_call_operand.vmem [shape: bf16[128,640], index: 0, kind: input, shape index: {}]
  %s1 = inlined_call_operand.vmem [shape: bf16[640,64], index: 1, kind: input, shape index: {}]
  %s2 = inlined_call_operand.vmem [shape: f32[1,64], index: 2, kind: input, shape index: {}]
  %s3 = inlined_call_operand.vmem [shape: bf16[128,64], index: 3, kind: output, shape index: {}]
  %s4 = sld [smem:[#allocation0]]
  $region45: #{resnet_forward.29} parent=0
    _
  %s6 = ssub.s32 1, %s4
  %s7 = scalar_select 0, %s6, %s4
  loop: start=0, step=1, limit=4
  $region2: #{resnet_forward.29} parent=0 // loop_pre_header
    _
  $region3: #{resnet_forward.29} parent=0 // loop_header
    %s9 = sphi 0, %s13
    %p10 = scmp.ge.s32.totalorder %s9, 4
    %s16 = sphi 0, %s35
    %s17 = sphi 0, %s31
    %s18 = sphi 0, %s27
    %s19 = sphi 0, %s16
    %s20 = sphi 0, %s17
    %s21 = sphi 0, %s18
    %s22 = sphi 0, %s19
    %s23 = sphi 0, %s20
    %s24 = sphi 0, %s21
    %s40 = sphi 0, %s42
    %s43 = sphi 0, %s40
    %s44 = sphi 0, %s43
    %s60 = sphi 0, %s44
    %s68 = sphi 0, %s70
    %s71 = sphi 0, %s68
    %s72 = sphi 0, %s71
    %s88 = sphi 0, %s72
    %s94 = sphi 0, %s96
    %s97 = sphi 0, %s94
    %s98 = sphi 0, %s97
    %s114 = sphi 0, %s98
    %s122 = sphi 0, %s124
    %s125 = sphi 0, %s122
    %s126 = sphi 0, %s125
    %s142 = sphi 0, %s126
  $region4: #{resnet_forward.29} parent=0 // loop_header_branch
    %12 = sbr.rel (%p10) target = $region8
  $region5: #{resnet_forward.29} parent=0 // loop_body
    %s14 = ssub.s32 %s9, 1
    %s15 = ssub.s32 %s9, 2
    %s25 = sadd.s32 1, %s18
    %p26 = scmp.ge.s32.totalorder %s25, 1
    %s27 = scalar_select %p26, 0, %s25
    %s28 = sadd.s32 1, %s17
    %s29 = scalar_select %p26, %s28, %s17
    %p30 = scmp.ge.s32.totalorder %s29, 1
    %s31 = scalar_select %p30, 0, %s29
    %s32 = sadd.s32 1, %s16
    %s33 = scalar_select %p30, %s32, %s16
    %p34 = scmp.ge.s32.totalorder %s33, 2
    %s35 = scalar_select %p34, 0, %s33
    %s36 = ssub.s32 %s16, %s35
    %s37 = ssub.s32 %s18, %s27
    %s38 = sor.u32 %s36, %s37
    %p39 = scmp.eq.s32.totalorder %s38, 0
    %s41 = sadd.s32 %s40, 1
    %s42 = scalar_select %p39, %s40, %s41
    %p45 = pneg %p39
    %p46 = scmp.eq.s32.totalorder %s9, 1
    %p47 = por %p45, %p46
    %p48 = scmp.ne.s32.totalorder %s40, %s43
    %p49 = scmp.eq.s32.totalorder %s9, 0
    %p50 = por %p48, %p49
    %p51 = scmp.ne.s32.totalorder %s40, %s43
    %p52 = scmp.eq.s32.totalorder %s14, 1
    %p53 = por %p51, %p52
    %p54 = scmp.ne.s32.totalorder %s43, %s44
    %p55 = scmp.eq.s32.totalorder %s14, 0
    %p56 = por %p54, %p55
    %p57 = scmp.ne.s32.totalorder %s43, %s44
    %p58 = scmp.eq.s32.totalorder %s15, 1
    %p59 = por %p57, %p58
    %p61 = scmp.ne.s32.totalorder %s44, %s60
    %p62 = scmp.eq.s32.totalorder %s15, 0
    %p63 = por %p61, %p62
    %s64 = ssub.s32 %s18, %s27
    %s65 = ssub.s32 %s17, %s31
    %s66 = sor.u32 %s64, %s65
    %p67 = scmp.eq.s32.totalorder %s66, 0
    %s69 = sadd.s32 %s68, 1
    %s70 = scalar_select %p67, %s68, %s69
    %p73 = pneg %p67
    %p74 = scmp.eq.s32.totalorder %s9, 1
    %p75 = por %p73, %p74
    %p76 = scmp.ne.s32.totalorder %s68, %s71
    %p77 = scmp.eq.s32.totalorder %s9, 0
    %p78 = por %p76, %p77
    %p79 = scmp.ne.s32.totalorder %s68, %s71
    %p80 = scmp.eq.s32.totalorder %s14, 1
    %p81 = por %p79, %p80
    %p82 = scmp.ne.s32.totalorder %s71, %s72
    %p83 = scmp.eq.s32.totalorder %s14, 0
    %p84 = por %p82, %p83
    %p85 = scmp.ne.s32.totalorder %s71, %s72
    %p86 = scmp.eq.s32.totalorder %s15, 1
    %p87 = por %p85, %p86
    %p89 = scmp.ne.s32.totalorder %s72, %s88
    %p90 = scmp.eq.s32.totalorder %s15, 0
    %p91 = por %p89, %p90
    %s92 = ssub.s32 %s17, %s31
    %p93 = scmp.eq.s32.totalorder %s92, 0
    %s95 = sadd.s32 %s94, 1
    %s96 = scalar_select %p93, %s94, %s95
    %p99 = pneg %p93
    %p100 = scmp.eq.s32.totalorder %s9, 1
    %p101 = por %p99, %p100
    %p102 = scmp.ne.s32.totalorder %s94, %s97
    %p103 = scmp.eq.s32.totalorder %s9, 0
    %p104 = por %p102, %p103
    %p105 = scmp.ne.s32.totalorder %s94, %s97
    %p106 = scmp.eq.s32.totalorder %s14, 1
    %p107 = por %p105, %p106
    %p108 = scmp.ne.s32.totalorder %s97, %s98
    %p109 = scmp.eq.s32.totalorder %s14, 0
    %p110 = por %p108, %p109
    %p111 = scmp.ne.s32.totalorder %s97, %s98
    %p112 = scmp.eq.s32.totalorder %s15, 1
    %p113 = por %p111, %p112
    %p115 = scmp.ne.s32.totalorder %s98, %s114
    %p116 = scmp.eq.s32.totalorder %s15, 0
    %p117 = por %p115, %p116
    %s118 = ssub.s32 %s16, %s35
    %s119 = ssub.s32 %s17, %s31
    %s120 = sor.u32 %s118, %s119
    %p121 = scmp.eq.s32.totalorder %s120, 0
    %s123 = sadd.s32 %s122, 1
    %s124 = scalar_select %p121, %s122, %s123
    %p127 = pneg %p121
    %p128 = scmp.eq.s32.totalorder %s9, 1
    %p129 = por %p127, %p128
    %p130 = scmp.ne.s32.totalorder %s122, %s125
    %p131 = scmp.eq.s32.totalorder %s9, 0
    %p132 = por %p130, %p131
    %p133 = scmp.ne.s32.totalorder %s122, %s125
    %p134 = scmp.eq.s32.totalorder %s14, 1
    %p135 = por %p133, %p134
    %p136 = scmp.ne.s32.totalorder %s125, %s126
    %p137 = scmp.eq.s32.totalorder %s14, 0
    %p138 = por %p136, %p137
    %p139 = scmp.ne.s32.totalorder %s125, %s126
    %p140 = scmp.eq.s32.totalorder %s15, 1
    %p141 = por %p139, %p140
    %p143 = scmp.ne.s32.totalorder %s126, %s142
    %p144 = scmp.eq.s32.totalorder %s15, 0
    %p145 = por %p143, %p144
    %p146 = scmp.le.s32.totalorder 1, %s9
    %p147 = scmp.lt.s32.totalorder %s9, 3
    %p148 = pnand %p146, %p147
    %p149 = pneg %p148
    // Predicated region
    $region9: #{resnet_forward.29} parent=5 // pred_check
      _
    $region10: #{resnet_forward.29} parent=5 // pred_check_branch
      %151 = sbr.rel (%p148) target = $region12
    $region11: #{resnet_forward.29} parent=5 // pred_region
      %s152 = ssub.s32 %s9, 1
      // Predicated region
      $region13: #{resnet_forward.29} parent=11 // pred_check
        %p153 = pneg %p84
      $region14: #{resnet_forward.29} parent=11 // pred_check_branch
        %155 = sbr.rel (%p153) target = $region16
      $region15: #{resnet_forward.29} parent=11 // pred_region
        %s156 = smul.u32 80, %s21
        %p157 = scmp.lt.s32.totalorder %s156, 79
        %s158 = scalar_select %p157, %s156, 79
        %p159 = scmp.lt.s32.totalorder %s20, 0
        %s160 = scalar_select %p159, %s20, 0
        %s161 = sadd.s32 %s160, %s158
        %s162 = smul.addr %s161, 4
        %s163 = scalar_lea.vmem %s1, %s162
        %s164 = smul.u32 80, %s21
      $region16: #{resnet_forward.29} parent=11 // pred_fallthru
        _
      // Predicated region
      $region17: #{resnet_forward.29} parent=11 // pred_check
        %p165 = pneg %p110
      $region18: #{resnet_forward.29} parent=11 // pred_check_branch
        %167 = sbr.rel (%p165) target = $region20
      $region19: #{resnet_forward.29} parent=11 // pred_region
        %p168 = scmp.lt.s32.totalorder %s20, 0
        %s169 = scalar_select %p168, %s20, 0
        %s170 = scalar_lea.vmem %s2, %s169
      $region20: #{resnet_forward.29} parent=11 // pred_fallthru
        _
    $region12: #{resnet_forward.29} parent=5 // pred_fallthru
      _
    %p171 = scmp.lt.s32.totalorder %s9, 2
    // Predicated region
    $region21: #{resnet_forward.29} parent=5 // pred_check
      %p172 = pneg %p171
    $region22: #{resnet_forward.29} parent=5 // pred_check_branch
      %174 = sbr.rel (%p172) target = $region24
    $region23: #{resnet_forward.29} parent=5 // pred_region
      // Predicated region
      $region25: #{resnet_forward.29} parent=23 // pred_check
        %p175 = pneg %p50
      $region26: #{resnet_forward.29} parent=23 // pred_check_branch
        %177 = sbr.rel (%p175) target = $region28
      $region27: #{resnet_forward.29} parent=23 // pred_region
        %s178 = smul.u32 8, %s16
        %s179 = smul.u32 5, %s18
        %p180 = scmp.lt.s32.totalorder %s178, 15
        %s181 = scalar_select %p180, %s178, 15
        %p182 = scmp.lt.s32.totalorder %s179, 4
        %s183 = scalar_select %p182, %s179, 4
        %s184 = smul.addr %s181, 5
        %s185 = sadd.s32 %s183, %s184
        %s186 = smul.addr %s185, 4
        %s187 = scalar_lea.vmem %s0, %s186
        %s188 = smul.u32 8, %s16
        %s189 = smul.u32 5, %s18
      $region28: #{resnet_forward.29} parent=23 // pred_fallthru
        _
    $region24: #{resnet_forward.29} parent=5 // pred_fallthru
      _
    %p190 = scmp.le.s32.totalorder 1, %s9
    %p191 = scmp.lt.s32.totalorder %s9, 3
    %p192 = pnand %p190, %p191
    %p193 = pneg %p192
    // Predicated region
    $region29: #{resnet_forward.29} parent=5 // pred_check
      _
    $region30: #{resnet_forward.29} parent=5 // pred_check_branch
      %195 = sbr.rel (%p192) target = $region32
    $region31: #{resnet_forward.29} parent=5 // pred_region
      %s196 = ssub.s32 %s9, 1
      %s197 = smul.u32 8, %s19
      %s198 = smul.u32 5, %s21
      %p199 = scmp.lt.s32.totalorder %s197, 15
      %s200 = scalar_select %p199, %s197, 15
      %p201 = scmp.lt.s32.totalorder %s198, 4
      %s202 = scalar_select %p201, %s198, 4
      %s203 = smul.addr %s200, 5
      %s204 = sadd.s32 %s202, %s203
      %s205 = smul.addr %s204, 4
      %s206 = scalar_lea.vmem %s0, %s205
      %p207 = pneg %p56
      %p208 = pneg %p53
      %s209 = smul.u32 80, %s21
      %p210 = scmp.lt.s32.totalorder %s209, 79
      %s211 = scalar_select %p210, %s209, 79
      %p212 = scmp.lt.s32.totalorder %s20, 0
      %s213 = scalar_select %p212, %s20, 0
      %s214 = sadd.s32 %s213, %s211
      %s215 = smul.addr %s214, 4
      %s216 = scalar_lea.vmem %s1, %s215
      %p217 = pneg %p84
      %p218 = pneg %p81
      %p219 = scmp.lt.s32.totalorder %s20, 0
      %s220 = scalar_select %p219, %s20, 0
      %s221 = scalar_lea.vmem %s2, %s220
      %p222 = pneg %p110
      %p223 = pneg %p107
      %p224 = pneg %p138
      %p225 = pneg %p135
      %s226 = smul.u32 8, %s19
      %p227 = scmp.lt.s32.totalorder %s226, 15
      %s228 = scalar_select %p227, %s226, 15
      %p229 = scmp.lt.s32.totalorder %s20, 0
      %s230 = scalar_select %p229, %s20, 0
      %s231 = sadd.s32 %s230, %s228
      %s232 = smul.addr %s231, 4
      %s233 = scalar_lea.vmem %s3, %s232
      %s234 = smul.u32 8, %s19
      %s235 = smul.u32 5, %s21
      %p236 = scmp.lt.s32.totalorder %s234, 15
      %s237 = scalar_select %p236, %s234, 15
      %p238 = scmp.lt.s32.totalorder %s235, 4
      %s239 = scalar_select %p238, %s235, 4
      %s240 = smul.addr %s237, 5
      %s241 = sadd.s32 %s239, %s240
      %s242 = smul.addr %s241, 4
      %s243 = scalar_lea.vmem %s0, %s242
      %s244 = smul.u32 8, %s19
      %s245 = smul.u32 5, %s21
      %s246 = smul.u32 80, %s21
      %p247 = scmp.lt.s32.totalorder %s246, 79
      %s248 = scalar_select %p247, %s246, 79
      %p249 = scmp.lt.s32.totalorder %s20, 0
      %s250 = scalar_select %p249, %s20, 0
      %s251 = sadd.s32 %s250, %s248
      %s252 = smul.addr %s251, 4
      %s253 = scalar_lea.vmem %s1, %s252
      %s254 = smul.u32 80, %s21
      %p255 = scmp.lt.s32.totalorder %s20, 0
      %s256 = scalar_select %p255, %s20, 0
      %s257 = scalar_lea.vmem %s2, %s256
      %s258 = smul.u32 8, %s19
      %p259 = scmp.lt.s32.totalorder %s258, 15
      %s260 = scalar_select %p259, %s258, 15
      %p261 = scmp.lt.s32.totalorder %s20, 0
      %s262 = scalar_select %p261, %s20, 0
      %s263 = sadd.s32 %s262, %s260
      %s264 = smul.addr %s263, 4
      %s265 = scalar_lea.vmem %s3, %s264
      %s266 = smul.u32 8, %s19
      %v268 = vld [vmem:[%s243] sm:$0xff]
      %v269 = vld [vmem:[%s243 + $0x8] sm:$0xff]
      %v270 = vld [vmem:[%s243 + $0x10] sm:$0xf]
      %v271 = vld [vmem:[%s243 + $0x14] sm:$0xff]
      %v272 = vld [vmem:[%s243 + $0x1c] sm:$0xff]
      %v273 = vld [vmem:[%s243 + $0x24] sm:$0xf]
      %v274 = vld [vmem:[%s243 + $0x28] sm:$0xff]
      %v275 = vld [vmem:[%s243 + $0x30] sm:$0xff]
      %v276 = vld [vmem:[%s243 + $0x38] sm:$0xf]
      %v277 = vld [vmem:[%s243 + $0x3c] sm:$0xff]
      %v278 = vld [vmem:[%s243 + $0x44] sm:$0xff]
      %v279 = vld [vmem:[%s243 + $0x4c] sm:$0xf]
      %v280 = vld [vmem:[%s243 + $0x50] sm:$0xff]
      %v281 = vld [vmem:[%s243 + $0x58] sm:$0xff]
      %v282 = vld [vmem:[%s243 + $0x60] sm:$0xf]
      %v283 = vld [vmem:[%s243 + $0x64] sm:$0xff]
      %v284 = vld [vmem:[%s243 + $0x6c] sm:$0xff]
      %v285 = vld [vmem:[%s243 + $0x74] sm:$0xf]
      %v286 = vld [vmem:[%s243 + $0x78] sm:$0xff]
      %v287 = vld [vmem:[%s243 + $0x80] sm:$0xff]
      %v288 = vld [vmem:[%s243 + $0x88] sm:$0xf]
      %v289 = vld [vmem:[%s243 + $0x8c] sm:$0xff]
      %v290 = vld [vmem:[%s243 + $0x94] sm:$0xff]
      %v291 = vld [vmem:[%s243 + $0x9c] sm:$0xf]
      %v292 = vld [vmem:[%s253] sm:$0xf]
      %v293 = vld [vmem:[%s253 + $0x4] sm:$0xf]
      %v294 = vld [vmem:[%s253 + $0x8] sm:$0xf]
      %v295 = vld [vmem:[%s253 + $0xc] sm:$0xf]
      %v296 = vld [vmem:[%s253 + $0x10] sm:$0xf]
      %v297 = vld [vmem:[%s253 + $0x14] sm:$0xf]
      %v298 = vld [vmem:[%s253 + $0x18] sm:$0xf]
      %v299 = vld [vmem:[%s253 + $0x1c] sm:$0xf]
      %v300 = vld [vmem:[%s253 + $0x20] sm:$0xf]
      %v301 = vld [vmem:[%s253 + $0x24] sm:$0xf]
      %v302 = vld [vmem:[%s253 + $0x28] sm:$0xf]
      %v303 = vld [vmem:[%s253 + $0x2c] sm:$0xf]
      %v304 = vld [vmem:[%s253 + $0x30] sm:$0xf]
      %v305 = vld [vmem:[%s253 + $0x34] sm:$0xf]
      %v306 = vld [vmem:[%s253 + $0x38] sm:$0xf]
      %v307 = vld [vmem:[%s253 + $0x3c] sm:$0xf]
      %v308 = vld [vmem:[%s253 + $0x40] sm:$0xf]
      %v309 = vld [vmem:[%s253 + $0x44] sm:$0xf]
      %v310 = vld [vmem:[%s253 + $0x48] sm:$0xf]
      %v311 = vld [vmem:[%s253 + $0x4c] sm:$0xf]
      %v312 = vld [vmem:[%s253 + $0x50] sm:$0xf]
      %v313 = vld [vmem:[%s253 + $0x54] sm:$0xf]
      %v314 = vld [vmem:[%s253 + $0x58] sm:$0xf]
      %v315 = vld [vmem:[%s253 + $0x5c] sm:$0xf]
      %v316 = vld [vmem:[%s253 + $0x60] sm:$0xf]
      %v317 = vld [vmem:[%s253 + $0x64] sm:$0xf]
      %v318 = vld [vmem:[%s253 + $0x68] sm:$0xf]
      %v319 = vld [vmem:[%s253 + $0x6c] sm:$0xf]
      %v320 = vld [vmem:[%s253 + $0x70] sm:$0xf]
      %v321 = vld [vmem:[%s253 + $0x74] sm:$0xf]
      %v322 = vld [vmem:[%s253 + $0x78] sm:$0xf]
      %v323 = vld [vmem:[%s253 + $0x7c] sm:$0xf]
      %v324 = vld [vmem:[%s253 + $0x80] sm:$0xf]
      %v325 = vld [vmem:[%s253 + $0x84] sm:$0xf]
      %v326 = vld [vmem:[%s253 + $0x88] sm:$0xf]
      %v327 = vld [vmem:[%s253 + $0x8c] sm:$0xf]
      %v328 = vld [vmem:[%s253 + $0x90] sm:$0xf]
      %v329 = vld [vmem:[%s253 + $0x94] sm:$0xf]
      %v330 = vld [vmem:[%s253 + $0x98] sm:$0xf]
      %v331 = vld [vmem:[%s253 + $0x9c] sm:$0xf]
      %v332 = vld [vmem:[%s253 + $0xa0] sm:$0xf]
      %v333 = vld [vmem:[%s253 + $0xa4] sm:$0xf]
      %v334 = vld [vmem:[%s253 + $0xa8] sm:$0xf]
      %v335 = vld [vmem:[%s253 + $0xac] sm:$0xf]
      %v336 = vld [vmem:[%s253 + $0xb0] sm:$0xf]
      %v337 = vld [vmem:[%s253 + $0xb4] sm:$0xf]
      %v338 = vld [vmem:[%s253 + $0xb8] sm:$0xf]
      %v339 = vld [vmem:[%s253 + $0xbc] sm:$0xf]
      %v340 = vld [vmem:[%s253 + $0xc0] sm:$0xf]
      %v341 = vld [vmem:[%s253 + $0xc4] sm:$0xf]
      %v342 = vld [vmem:[%s253 + $0xc8] sm:$0xf]
      %v343 = vld [vmem:[%s253 + $0xcc] sm:$0xf]
      %v344 = vld [vmem:[%s253 + $0xd0] sm:$0xf]
      %v345 = vld [vmem:[%s253 + $0xd4] sm:$0xf]
      %v346 = vld [vmem:[%s253 + $0xd8] sm:$0xf]
      %v347 = vld [vmem:[%s253 + $0xdc] sm:$0xf]
      %v348 = vld [vmem:[%s253 + $0xe0] sm:$0xf]
      %v349 = vld [vmem:[%s253 + $0xe4] sm:$0xf]
      %v350 = vld [vmem:[%s253 + $0xe8] sm:$0xf]
      %v351 = vld [vmem:[%s253 + $0xec] sm:$0xf]
      %v352 = vld [vmem:[%s253 + $0xf0] sm:$0xf]
      %v353 = vld [vmem:[%s253 + $0xf4] sm:$0xf]
      %v354 = vld [vmem:[%s253 + $0xf8] sm:$0xf]
      %v355 = vld [vmem:[%s253 + $0xfc] sm:$0xf]
      %v356 = vld [vmem:[%s253 + $0x100] sm:$0xf]
      %v357 = vld [vmem:[%s253 + $0x104] sm:$0xf]
      %v358 = vld [vmem:[%s253 + $0x108] sm:$0xf]
      %v359 = vld [vmem:[%s253 + $0x10c] sm:$0xf]
      %v360 = vld [vmem:[%s253 + $0x110] sm:$0xf]
      %v361 = vld [vmem:[%s253 + $0x114] sm:$0xf]
      %v362 = vld [vmem:[%s253 + $0x118] sm:$0xf]
      %v363 = vld [vmem:[%s253 + $0x11c] sm:$0xf]
      %v364 = vld [vmem:[%s253 + $0x120] sm:$0xf]
      %v365 = vld [vmem:[%s253 + $0x124] sm:$0xf]
      %v366 = vld [vmem:[%s253 + $0x128] sm:$0xf]
      %v367 = vld [vmem:[%s253 + $0x12c] sm:$0xf]
      %v368 = vld [vmem:[%s253 + $0x130] sm:$0xf]
      %v369 = vld [vmem:[%s253 + $0x134] sm:$0xf]
      %v370 = vld [vmem:[%s253 + $0x138] sm:$0xf]
      %v371 = vld [vmem:[%s253 + $0x13c] sm:$0xf]
      %v372 = vld [vmem:[%s257] sm:$0x1]
      %v374 = vlaneseq
      %v375 = vshrl.u32 %v374, 7
      %v376 = vsub.s32 0, %v375
      %v377 = vrot.slane %v372, %v376
      %v403 = vunpack.c.l.b16 %v268
      %v404 = vunpack.c.h.b16 %v268
      %v405 = vunpack.c.l.b16 %v269
      %v406 = vunpack.c.h.b16 %v269
      %v407 = vunpack.c.l.b16 %v270
      %v408 = vunpack.c.l.b16 %v271
      %v409 = vunpack.c.h.b16 %v271
      %v410 = vunpack.c.l.b16 %v272
      %v411 = vunpack.c.h.b16 %v272
      %v412 = vunpack.c.l.b16 %v273
      %v413 = vunpack.c.l.b16 %v274
      %v414 = vunpack.c.h.b16 %v274
      %v415 = vunpack.c.l.b16 %v275
      %v416 = vunpack.c.h.b16 %v275
      %v417 = vunpack.c.l.b16 %v276
      %v418 = vunpack.c.l.b16 %v277
      %v419 = vunpack.c.h.b16 %v277
      %v420 = vunpack.c.l.b16 %v278
      %v421 = vunpack.c.h.b16 %v278
      %v422 = vunpack.c.l.b16 %v279
      %v423 = vunpack.c.l.b16 %v280
      %v424 = vunpack.c.h.b16 %v280
      %v425 = vunpack.c.l.b16 %v281
      %v426 = vunpack.c.h.b16 %v281
      %v427 = vunpack.c.l.b16 %v282
      %v428 = vunpack.c.l.b16 %v283
      %v429 = vunpack.c.h.b16 %v283
      %v430 = vunpack.c.l.b16 %v284
      %v431 = vunpack.c.h.b16 %v284
      %v432 = vunpack.c.l.b16 %v285
      %v433 = vunpack.c.l.b16 %v286
      %v434 = vunpack.c.h.b16 %v286
      %v435 = vunpack.c.l.b16 %v287
      %v436 = vunpack.c.h.b16 %v287
      %v437 = vunpack.c.l.b16 %v288
      %v438 = vunpack.c.l.b16 %v289
      %v439 = vunpack.c.h.b16 %v289
      %v440 = vunpack.c.l.b16 %v290
      %v441 = vunpack.c.h.b16 %v290
      %v442 = vunpack.c.l.b16 %v291
      %v443 = vpack.c.b16 %v408, %v403
      %v444 = vpack.c.b16 %v409, %v404
      %v445 = vpack.c.b16 %v410, %v405
      %v446 = vpack.c.b16 %v411, %v406
      %v447 = vpack.c.b16 %v412, %v407
      %v448 = vpack.c.b16 %v418, %v413
      %v449 = vpack.c.b16 %v419, %v414
      %v450 = vpack.c.b16 %v420, %v415
      %v451 = vpack.c.b16 %v421, %v416
      %v452 = vpack.c.b16 %v422, %v417
      %v453 = vpack.c.b16 %v428, %v423
      %v454 = vpack.c.b16 %v429, %v424
      %v455 = vpack.c.b16 %v430, %v425
      %v456 = vpack.c.b16 %v431, %v426
      %v457 = vpack.c.b16 %v432, %v427
      %v458 = vpack.c.b16 %v438, %v433
      %v459 = vpack.c.b16 %v439, %v434
      %v460 = vpack.c.b16 %v440, %v435
      %v461 = vpack.c.b16 %v441, %v436
      %v462 = vpack.c.b16 %v442, %v437
      %v563 = vunpack.c.l.b16 %v292
      %v564 = vunpack.c.l.b16 %v293
      %v565 = vunpack.c.l.b16 %v294
      %v566 = vunpack.c.l.b16 %v295
      %v567 = vunpack.c.l.b16 %v296
      %v568 = vunpack.c.l.b16 %v297
      %v569 = vunpack.c.l.b16 %v298
      %v570 = vunpack.c.l.b16 %v299
      %v571 = vunpack.c.l.b16 %v300
      %v572 = vunpack.c.l.b16 %v301
      %v573 = vunpack.c.l.b16 %v302
      %v574 = vunpack.c.l.b16 %v303
      %v575 = vunpack.c.l.b16 %v304
      %v576 = vunpack.c.l.b16 %v305
      %v577 = vunpack.c.l.b16 %v306
      %v578 = vunpack.c.l.b16 %v307
      %v579 = vunpack.c.l.b16 %v308
      %v580 = vunpack.c.l.b16 %v309
      %v581 = vunpack.c.l.b16 %v310
      %v582 = vunpack.c.l.b16 %v311
      %v583 = vunpack.c.l.b16 %v312
      %v584 = vunpack.c.l.b16 %v313
      %v585 = vunpack.c.l.b16 %v314
      %v586 = vunpack.c.l.b16 %v315
      %v587 = vunpack.c.l.b16 %v316
      %v588 = vunpack.c.l.b16 %v317
      %v589 = vunpack.c.l.b16 %v318
      %v590 = vunpack.c.l.b16 %v319
      %v591 = vunpack.c.l.b16 %v320
      %v592 = vunpack.c.l.b16 %v321
      %v593 = vunpack.c.l.b16 %v322
      %v594 = vunpack.c.l.b16 %v323
      %v595 = vunpack.c.l.b16 %v324
      %v596 = vunpack.c.l.b16 %v325
      %v597 = vunpack.c.l.b16 %v326
      %v598 = vunpack.c.l.b16 %v327
      %v599 = vunpack.c.l.b16 %v328
      %v600 = vunpack.c.l.b16 %v329
      %v601 = vunpack.c.l.b16 %v330
      %v602 = vunpack.c.l.b16 %v331
      %v603 = vunpack.c.l.b16 %v332
      %v604 = vunpack.c.l.b16 %v333
      %v605 = vunpack.c.l.b16 %v334
      %v606 = vunpack.c.l.b16 %v335
      %v607 = vunpack.c.l.b16 %v336
      %v608 = vunpack.c.l.b16 %v337
      %v609 = vunpack.c.l.b16 %v338
      %v610 = vunpack.c.l.b16 %v339
      %v611 = vunpack.c.l.b16 %v340
      %v612 = vunpack.c.l.b16 %v341
      %v613 = vunpack.c.l.b16 %v342
      %v614 = vunpack.c.l.b16 %v343
      %v615 = vunpack.c.l.b16 %v344
      %v616 = vunpack.c.l.b16 %v345
      %v617 = vunpack.c.l.b16 %v346
      %v618 = vunpack.c.l.b16 %v347
      %v619 = vunpack.c.l.b16 %v348
      %v620 = vunpack.c.l.b16 %v349
      %v621 = vunpack.c.l.b16 %v350
      %v622 = vunpack.c.l.b16 %v351
      %v623 = vunpack.c.l.b16 %v352
      %v624 = vunpack.c.l.b16 %v353
      %v625 = vunpack.c.l.b16 %v354
      %v626 = vunpack.c.l.b16 %v355
      %v627 = vunpack.c.l.b16 %v356
      %v628 = vunpack.c.l.b16 %v357
      %v629 = vunpack.c.l.b16 %v358
      %v630 = vunpack.c.l.b16 %v359
      %v631 = vunpack.c.l.b16 %v360
      %v632 = vunpack.c.l.b16 %v361
      %v633 = vunpack.c.l.b16 %v362
      %v634 = vunpack.c.l.b16 %v363
      %v635 = vunpack.c.l.b16 %v364
      %v636 = vunpack.c.l.b16 %v365
      %v637 = vunpack.c.l.b16 %v366
      %v638 = vunpack.c.l.b16 %v367
      %v639 = vunpack.c.l.b16 %v368
      %v640 = vunpack.c.l.b16 %v369
      %v641 = vunpack.c.l.b16 %v370
      %v642 = vunpack.c.l.b16 %v371
      %v643 = vpack.c.b16 %v564, %v563
      %v644 = vpack.c.b16 %v566, %v565
      %v645 = vpack.c.b16 %v568, %v567
      %v646 = vpack.c.b16 %v570, %v569
      %v647 = vpack.c.b16 %v572, %v571
      %v648 = vpack.c.b16 %v574, %v573
      %v649 = vpack.c.b16 %v576, %v575
      %v650 = vpack.c.b16 %v578, %v577
      %v651 = vpack.c.b16 %v580, %v579
      %v652 = vpack.c.b16 %v582, %v581
      %v653 = vpack.c.b16 %v584, %v583
      %v654 = vpack.c.b16 %v586, %v585
      %v655 = vpack.c.b16 %v588, %v587
      %v656 = vpack.c.b16 %v590, %v589
      %v657 = vpack.c.b16 %v592, %v591
      %v658 = vpack.c.b16 %v594, %v593
      %v659 = vpack.c.b16 %v596, %v595
      %v660 = vpack.c.b16 %v598, %v597
      %v661 = vpack.c.b16 %v600, %v599
      %v662 = vpack.c.b16 %v602, %v601
      %v663 = vpack.c.b16 %v604, %v603
      %v664 = vpack.c.b16 %v606, %v605
      %v665 = vpack.c.b16 %v608, %v607
      %v666 = vpack.c.b16 %v610, %v609
      %v667 = vpack.c.b16 %v612, %v611
      %v668 = vpack.c.b16 %v614, %v613
      %v669 = vpack.c.b16 %v616, %v615
      %v670 = vpack.c.b16 %v618, %v617
      %v671 = vpack.c.b16 %v620, %v619
      %v672 = vpack.c.b16 %v622, %v621
      %v673 = vpack.c.b16 %v624, %v623
      %v674 = vpack.c.b16 %v626, %v625
      %v675 = vpack.c.b16 %v628, %v627
      %v676 = vpack.c.b16 %v630, %v629
      %v677 = vpack.c.b16 %v632, %v631
      %v678 = vpack.c.b16 %v634, %v633
      %v679 = vpack.c.b16 %v636, %v635
      %v680 = vpack.c.b16 %v638, %v637
      %v681 = vpack.c.b16 %v640, %v639
      %v682 = vpack.c.b16 %v642, %v641
      %723 = vmatprep.subr.bf16.mxu0 0
      %724 = vmatpush1.bf16.msra.mxu0 %v643
      %725 = vmatprep.subr.bf16.mxu0 0
      %726 = vmatpush1.bf16.msra.mxu0 %v644
      %727 = vmatprep.subr.bf16.mxu0 0
      %728 = vmatpush1.bf16.msra.mxu0 %v645
      %729 = vmatprep.subr.bf16.mxu0 0
      %730 = vmatpush1.bf16.msra.mxu0 %v646
      %731 = vmatprep.subr.bf16.mxu0 0
      %732 = vmatpush1.bf16.msra.mxu0 %v647
      %733 = vmatprep.subr.bf16.mxu0 0
      %734 = vmatpush1.bf16.msra.mxu0 %v648
      %735 = vmatprep.subr.bf16.mxu0 0
      %736 = vmatpush1.bf16.msra.mxu0 %v649
      %737 = vmatprep.subr.bf16.mxu0 0
      %738 = vmatpush1.bf16.msra.mxu0 %v650
      %739 = vmatprep.subr.bf16.mxu0 0
      %740 = vmatpush1.bf16.msra.mxu0 %v651
      %741 = vmatprep.subr.bf16.mxu0 0
      %742 = vmatpush1.bf16.msra.mxu0 %v652
      %743 = vmatprep.subr.bf16.mxu0 0
      %744 = vmatpush1.bf16.msra.mxu0 %v653
      %745 = vmatprep.subr.bf16.mxu0 0
      %746 = vmatpush1.bf16.msra.mxu0 %v654
      %747 = vmatprep.subr.bf16.mxu0 0
      %748 = vmatpush1.bf16.msra.mxu0 %v655
      %749 = vmatprep.subr.bf16.mxu0 0
      %750 = vmatpush1.bf16.msra.mxu0 %v656
      %751 = vmatprep.subr.bf16.mxu0 0
      %752 = vmatpush1.bf16.msra.mxu0 %v657
      %753 = vmatprep.subr.bf16.mxu0 0
      %754 = vmatpush1.bf16.msra.mxu0 %v658
      %755 = vmatprep.mubr.bf16.mxu0 %v444
      %756 = vmatmul.mubr.bf16.gmra.mrb[0].mxu0 %v443
      %v757 = vpop.f32.mrb[0].mxu0
      %v758 = vadd.f32 %v377, %v757
      %v759 = vpop.f32.mrb[0].mxu0
      %v760 = vpop.f32.mrb[0].mxu0
      %v761 = vadd.f32 %v377, %v760
      %v762 = vpop.f32.mrb[0].mxu0
      %763 = vmatprep.mubr.bf16.mxu0 %v449
      %764 = vmatmul.mubr.bf16.gmra.mrb[0].mxu0 %v448
      %v765 = vpop.f32.mrb[0].mxu0
      %v766 = vadd.f32 %v377, %v765
      %v767 = vpop.f32.mrb[0].mxu0
      %v768 = vpop.f32.mrb[0].mxu0
      %v769 = vadd.f32 %v377, %v768
      %v770 = vpop.f32.mrb[0].mxu0
      %771 = vmatprep.mubr.bf16.mxu0 %v454
      %772 = vmatmul.mubr.bf16.gmra.mrb[0].mxu0 %v453
      %v773 = vpop.f32.mrb[0].mxu0
      %v774 = vadd.f32 %v377, %v773
      %v775 = vpop.f32.mrb[0].mxu0
      %v776 = vpop.f32.mrb[0].mxu0
      %v777 = vadd.f32 %v377, %v776
      %v778 = vpop.f32.mrb[0].mxu0
      %779 = vmatprep.mubr.bf16.mxu0 %v459
      %780 = vmatmul.mubr.bf16.gmra.mrb[0].mxu0 %v458
      %v781 = vpop.f32.mrb[0].mxu0
      %v782 = vadd.f32 %v377, %v781
      %v783 = vpop.f32.mrb[0].mxu0
      %v784 = vpop.f32.mrb[0].mxu0
      %v785 = vadd.f32 %v377, %v784
      %v786 = vpop.f32.mrb[0].mxu0
      %787 = vdwg.mxu0
      %788 = vmatprep.subr.bf16.mxu0 0
      %789 = vmatpush1.bf16.msra.mxu0 %v659
      %790 = vmatprep.subr.bf16.mxu0 0
      %791 = vmatpush1.bf16.msra.mxu0 %v660
      %792 = vmatprep.subr.bf16.mxu0 0
      %793 = vmatpush1.bf16.msra.mxu0 %v661
      %794 = vmatprep.subr.bf16.mxu0 0
      %795 = vmatpush1.bf16.msra.mxu0 %v662
      %796 = vmatprep.subr.bf16.mxu0 0
      %797 = vmatpush1.bf16.msra.mxu0 %v663
      %798 = vmatprep.subr.bf16.mxu0 0
      %799 = vmatpush1.bf16.msra.mxu0 %v664
      %800 = vmatprep.subr.bf16.mxu0 0
      %801 = vmatpush1.bf16.msra.mxu0 %v665
      %802 = vmatprep.subr.bf16.mxu0 0
      %803 = vmatpush1.bf16.msra.mxu0 %v666
      %804 = vmatprep.subr.bf16.mxu0 0
      %805 = vmatpush1.bf16.msra.mxu0 %v667
      %806 = vmatprep.subr.bf16.mxu0 0
      %807 = vmatpush1.bf16.msra.mxu0 %v668
      %808 = vmatprep.subr.bf16.mxu0 0
      %809 = vmatpush1.bf16.msra.mxu0 %v669
      %810 = vmatprep.subr.bf16.mxu0 0
      %811 = vmatpush1.bf16.msra.mxu0 %v670
      %812 = vmatprep.subr.bf16.mxu0 0
      %813 = vmatpush1.bf16.msra.mxu0 %v671
      %814 = vmatprep.subr.bf16.mxu0 0
      %815 = vmatpush1.bf16.msra.mxu0 %v672
      %816 = vmatprep.subr.bf16.mxu0 0
      %817 = vmatpush1.bf16.msra.mxu0 %v673
      %818 = vmatprep.subr.bf16.mxu0 0
      %819 = vmatpush1.bf16.msra.mxu0 %v674
      %820 = vmatprep.mubr.bf16.mxu0 %v446
      %821 = vmatmul.mubr.bf16.gmra.mrb[0].mxu0 %v445
      %v822 = vpop.f32.mrb[0].mxu0
      %v823 = vadd.f32 %v758, %v822
      %v824 = vpop.f32.mrb[0].mxu0
      %v825 = vpop.f32.mrb[0].mxu0
      %v826 = vadd.f32 %v761, %v825
      %v827 = vpop.f32.mrb[0].mxu0
      %828 = vmatprep.mubr.bf16.mxu0 %v451
      %829 = vmatmul.mubr.bf16.gmra.mrb[0].mxu0 %v450
      %v830 = vpop.f32.mrb[0].mxu0
      %v831 = vadd.f32 %v766, %v830
      %v832 = vpop.f32.mrb[0].mxu0
      %v833 = vpop.f32.mrb[0].mxu0
      %v834 = vadd.f32 %v769, %v833
      %v835 = vpop.f32.mrb[0].mxu0
      %836 = vmatprep.mubr.bf16.mxu0 %v456
      %837 = vmatmul.mubr.bf16.gmra.mrb[0].mxu0 %v455
      %v838 = vpop.f32.mrb[0].mxu0
      %v839 = vadd.f32 %v774, %v838
      %v840 = vpop.f32.mrb[0].mxu0
      %v841 = vpop.f32.mrb[0].mxu0
      %v842 = vadd.f32 %v777, %v841
      %v843 = vpop.f32.mrb[0].mxu0
      %844 = vmatprep.mubr.bf16.mxu0 %v461
      %845 = vmatmul.mubr.bf16.gmra.mrb[0].mxu0 %v460
      %v846 = vpop.f32.mrb[0].mxu0
      %v847 = vadd.f32 %v782, %v846
      %v848 = vpop.f32.mrb[0].mxu0
      %v849 = vpop.f32.mrb[0].mxu0
      %v850 = vadd.f32 %v785, %v849
      %v851 = vpop.f32.mrb[0].mxu0
      %852 = vdwg.mxu0
      %853 = vmatprep.subr.bf16.mxu0 0
      %854 = vmatpush1.bf16.msra.mxu0 %v675
      %855 = vmatprep.subr.bf16.mxu0 0
      %856 = vmatpush1.bf16.msra.mxu0 %v676
      %857 = vmatprep.subr.bf16.mxu0 0
      %858 = vmatpush1.bf16.msra.mxu0 %v677
      %859 = vmatprep.subr.bf16.mxu0 0
      %860 = vmatpush1.bf16.msra.mxu0 %v678
      %861 = vmatprep.subr.bf16.mxu0 0
      %862 = vmatpush1.bf16.msra.mxu0 %v679
      %863 = vmatprep.subr.bf16.mxu0 0
      %864 = vmatpush1.bf16.msra.mxu0 %v680
      %865 = vmatprep.subr.bf16.mxu0 0
      %866 = vmatpush1.bf16.msra.mxu0 %v681
      %867 = vmatprep.subr.bf16.mxu0 0
      %868 = vmatpush1.bf16.msra.mxu0 %v682
      %869 = vmatprep.subr.bf16.mxu0 0
      %870 = vmatpush1.bf16.msra.mxu0 0
      %871 = vmatprep.subr.bf16.mxu0 0
      %872 = vmatpush1.bf16.msra.mxu0 0
      %873 = vmatprep.subr.bf16.mxu0 0
      %874 = vmatpush1.bf16.msra.mxu0 0
      %875 = vmatprep.subr.bf16.mxu0 0
      %876 = vmatpush1.bf16.msra.mxu0 0
      %877 = vmatprep.subr.bf16.mxu0 0
      %878 = vmatpush1.bf16.msra.mxu0 0
      %879 = vmatprep.subr.bf16.mxu0 0
      %880 = vmatpush1.bf16.msra.mxu0 0
      %881 = vmatprep.subr.bf16.mxu0 0
      %882 = vmatpush1.bf16.msra.mxu0 0
      %883 = vmatprep.subr.bf16.mxu0 0
      %884 = vmatpush1.bf16.msra.mxu0 0
      %885 = vmatprep.mubr.bf16.mxu0 0
      %886 = vmatmul.mubr.bf16.gmra.mrb[0].mxu0 %v447
      %v887 = vpop.f32.mrb[0].mxu0
      %v888 = vadd.f32 %v823, %v887
      %v889 = vpop.f32.mrb[0].mxu0
      %v890 = vpop.f32.mrb[0].mxu0
      %v891 = vadd.f32 %v826, %v890
      %v892 = vpop.f32.mrb[0].mxu0
      %893 = vmatprep.mubr.bf16.mxu0 0
      %894 = vmatmul.mubr.bf16.gmra.mrb[0].mxu0 %v452
      %v895 = vpop.f32.mrb[0].mxu0
      %v896 = vadd.f32 %v831, %v895
      %v897 = vpop.f32.mrb[0].mxu0
      %v898 = vpop.f32.mrb[0].mxu0
      %v899 = vadd.f32 %v834, %v898
      %v900 = vpop.f32.mrb[0].mxu0
      %901 = vmatprep.mubr.bf16.mxu0 0
      %902 = vmatmul.mubr.bf16.gmra.mrb[0].mxu0 %v457
      %v903 = vpop.f32.mrb[0].mxu0
      %v904 = vadd.f32 %v839, %v903
      %v905 = vpop.f32.mrb[0].mxu0
      %v906 = vpop.f32.mrb[0].mxu0
      %v907 = vadd.f32 %v842, %v906
      %v908 = vpop.f32.mrb[0].mxu0
      %909 = vmatprep.mubr.bf16.mxu0 0
      %910 = vmatmul.mubr.bf16.gmra.mrb[0].mxu0 %v462
      %v911 = vpop.f32.mrb[0].mxu0
      %v912 = vadd.f32 %v847, %v911
      %v913 = vpop.f32.mrb[0].mxu0
      %v914 = vpop.f32.mrb[0].mxu0
      %v915 = vadd.f32 %v850, %v914
      %v916 = vpop.f32.mrb[0].mxu0
      %917 = vdwg.mxu0
      %v918 = vmax.f32 %v888, 0.0
      %v919 = vmax.f32 %v891, 0.0
      %v920 = vmax.f32 %v896, 0.0
      %v921 = vmax.f32 %v899, 0.0
      %v922 = vmax.f32 %v904, 0.0
      %v923 = vmax.f32 %v907, 0.0
      %v924 = vmax.f32 %v912, 0.0
      %v925 = vmax.f32 %v915, 0.0
      %v926 = vpack.c.bf16 %v919, %v918
      %v927 = vpack.c.bf16 %v921, %v920
      %v928 = vpack.c.bf16 %v923, %v922
      %v929 = vpack.c.bf16 %v925, %v924
      %v934 = vunpack.c.l.b16 %v926
      %v935 = vunpack.c.h.b16 %v926
      %v936 = vunpack.c.l.b16 %v927
      %v937 = vunpack.c.h.b16 %v927
      %v938 = vunpack.c.l.b16 %v928
      %v939 = vunpack.c.h.b16 %v928
      %v940 = vunpack.c.l.b16 %v929
      %v941 = vunpack.c.h.b16 %v929
      %v942 = vpack.c.b16 %v934, %v934
      %v943 = vpack.c.b16 %v935, %v935
      %v944 = vpack.c.b16 %v936, %v936
      %v945 = vpack.c.b16 %v937, %v937
      %v946 = vpack.c.b16 %v938, %v938
      %v947 = vpack.c.b16 %v939, %v939
      %v948 = vpack.c.b16 %v940, %v940
      %v949 = vpack.c.b16 %v941, %v941
      %vm958 = vcmask 519168
      %959 = vst.msk [vmem:[%s265] sm:$0xf] %vm958, %v942
      %960 = vst.msk [vmem:[%s265 + $0x4] sm:$0xf] %vm958, %v943
      %961 = vst.msk [vmem:[%s265 + $0x8] sm:$0xf] %vm958, %v944
      %962 = vst.msk [vmem:[%s265 + $0xc] sm:$0xf] %vm958, %v945
      %963 = vst.msk [vmem:[%s265 + $0x10] sm:$0xf] %vm958, %v946
      %964 = vst.msk [vmem:[%s265 + $0x14] sm:$0xf] %vm958, %v947
      %965 = vst.msk [vmem:[%s265 + $0x18] sm:$0xf] %vm958, %v948
      %966 = vst.msk [vmem:[%s265 + $0x1c] sm:$0xf] %vm958, %v949
      %s967 = smul.u32 8, %s19
      %p968 = scmp.lt.s32.totalorder %s967, 15
      %s969 = scalar_select %p968, %s967, 15
      %p970 = scmp.lt.s32.totalorder %s20, 0
      %s971 = scalar_select %p970, %s20, 0
      %s972 = sadd.s32 %s971, %s969
      %s973 = smul.addr %s972, 4
      %s974 = scalar_lea.vmem %s3, %s973
      // Predicated region
      $region33: #{resnet_forward.29} parent=31 // pred_check
        %p975 = pneg %p135
      $region34: #{resnet_forward.29} parent=31 // pred_check_branch
        %977 = sbr.rel (%p975) target = $region36
      $region35: #{resnet_forward.29} parent=31 // pred_region
        %s978 = smul.u32 8, %s19
      $region36: #{resnet_forward.29} parent=31 // pred_fallthru
        _
    $region32: #{resnet_forward.29} parent=5 // pred_fallthru
      _
    %p979 = scmp.le.s32.totalorder 2, %s9
    // Predicated region
    $region37: #{resnet_forward.29} parent=5 // pred_check
      %p980 = pneg %p979
    $region38: #{resnet_forward.29} parent=5 // pred_check_branch
      %982 = sbr.rel (%p980) target = $region40
    $region39: #{resnet_forward.29} parent=5 // pred_region
      %s983 = ssub.s32 %s9, 2
      // Predicated region
      $region41: #{resnet_forward.29} parent=39 // pred_check
        %p984 = pneg %p141
      $region42: #{resnet_forward.29} parent=39 // pred_check_branch
        %986 = sbr.rel (%p984) target = $region44
      $region43: #{resnet_forward.29} parent=39 // pred_region
        %s987 = smul.u32 8, %s22
        %p988 = scmp.lt.s32.totalorder %s987, 15
        %s989 = scalar_select %p988, %s987, 15
        %p990 = scmp.lt.s32.totalorder %s23, 0
        %s991 = scalar_select %p990, %s23, 0
        %s992 = sadd.s32 %s991, %s989
        %s993 = smul.addr %s992, 4
        %s994 = scalar_lea.vmem %s3, %s993
      $region44: #{resnet_forward.29} parent=39 // pred_fallthru
        _
    $region40: #{resnet_forward.29} parent=5 // pred_fallthru
      _
  $region6: #{resnet_forward.29} parent=0 // loop_footer
    %s13 = sadd.s32 1, %s9
  $region7: #{resnet_forward.29} parent=0 // loop_footer_branch
    %8 = sbr.rel target = $region3
  $region8: #{resnet_forward.29} parent=0 // loop_exit
    _

// kernel: resnet_forward.30
$region0: #{resnet_forward.30}
  #allocation0 [shape = 'u32[]', space=smem, size = 0x4, offset = 0x4, fixed_abs, tag = 'smem constant byte address 0x4 - core index']
  #allocation1 [shape = 'u32[144,128]{1,0:T(1,128)}', space=vmem, size = 0x12000, scoped, tag = 'internal scratch']
  %s0 = inlined_call_operand.vmem [shape: bf16[128,128], index: 0, kind: input, shape index: {}]
  %s1 = inlined_call_operand.vmem [shape: bf16[128,256], index: 1, kind: input, shape index: {}]
  %s2 = inlined_call_operand.vmem [shape: f32[1,256], index: 2, kind: input, shape index: {}]
  %s3 = inlined_call_operand.vmem [shape: bf16[128,256], index: 3, kind: input, shape index: {}]
  %s4 = inlined_call_operand.vmem [shape: bf16[128,256], index: 4, kind: output, shape index: {}]
  %s5 = sld [smem:[#allocation0]]
  $region49: #{resnet_forward.30} parent=0
    _
  %s7 = ssub.s32 1, %s5
  %s8 = scalar_select 0, %s7, %s5
  loop: start=0, step=1, limit=4
  $region2: #{resnet_forward.30} parent=0 // loop_pre_header
    _
  $region3: #{resnet_forward.30} parent=0 // loop_header
    %s10 = sphi 0, %s14
    %p11 = scmp.ge.s32.totalorder %s10, 4
    %s17 = sphi 0, %s36
    %s18 = sphi 0, %s32
    %s19 = sphi 0, %s28
    %s20 = sphi 0, %s17
    %s21 = sphi 0, %s18
    %s22 = sphi 0, %s19
    %s23 = sphi 0, %s20
    %s24 = sphi 0, %s21
    %s25 = sphi 0, %s22
    %s41 = sphi 0, %s43
    %s44 = sphi 0, %s41
    %s45 = sphi 0, %s44
    %s61 = sphi 0, %s45
    %s69 = sphi 0, %s71
    %s72 = sphi 0, %s69
    %s73 = sphi 0, %s72
    %s89 = sphi 0, %s73
    %s95 = sphi 0, %s97
    %s98 = sphi 0, %s95
    %s99 = sphi 0, %s98
    %s115 = sphi 0, %s99
    %s123 = sphi 0, %s125
    %s126 = sphi 0, %s123
    %s127 = sphi 0, %s126
    %s143 = sphi 0, %s127
    %s151 = sphi 0, %s153
    %s154 = sphi 0, %s151
    %s155 = sphi 0, %s154
    %s171 = sphi 0, %s155
  $region4: #{resnet_forward.30} parent=0 // loop_header_branch
    %13 = sbr.rel (%p11) target = $region8
  $region5: #{resnet_forward.30} parent=0 // loop_body
    %s15 = ssub.s32 %s10, 1
    %s16 = ssub.s32 %s10, 2
    %s26 = sadd.s32 1, %s19
    %p27 = scmp.ge.s32.totalorder %s26, 1
    %s28 = scalar_select %p27, 0, %s26
    %s29 = sadd.s32 1, %s18
    %s30 = scalar_select %p27, %s29, %s18
    %p31 = scmp.ge.s32.totalorder %s30, 1
    %s32 = scalar_select %p31, 0, %s30
    %s33 = sadd.s32 1, %s17
    %s34 = scalar_select %p31, %s33, %s17
    %p35 = scmp.ge.s32.totalorder %s34, 2
    %s36 = scalar_select %p35, 0, %s34
    %s37 = ssub.s32 %s17, %s36
    %s38 = ssub.s32 %s19, %s28
    %s39 = sor.u32 %s37, %s38
    %p40 = scmp.eq.s32.totalorder %s39, 0
    %s42 = sadd.s32 %s41, 1
    %s43 = scalar_select %p40, %s41, %s42
    %p46 = pneg %p40
    %p47 = scmp.eq.s32.totalorder %s10, 1
    %p48 = por %p46, %p47
    %p49 = scmp.ne.s32.totalorder %s41, %s44
    %p50 = scmp.eq.s32.totalorder %s10, 0
    %p51 = por %p49, %p50
    %p52 = scmp.ne.s32.totalorder %s41, %s44
    %p53 = scmp.eq.s32.totalorder %s15, 1
    %p54 = por %p52, %p53
    %p55 = scmp.ne.s32.totalorder %s44, %s45
    %p56 = scmp.eq.s32.totalorder %s15, 0
    %p57 = por %p55, %p56
    %p58 = scmp.ne.s32.totalorder %s44, %s45
    %p59 = scmp.eq.s32.totalorder %s16, 1
    %p60 = por %p58, %p59
    %p62 = scmp.ne.s32.totalorder %s45, %s61
    %p63 = scmp.eq.s32.totalorder %s16, 0
    %p64 = por %p62, %p63
    %s65 = ssub.s32 %s19, %s28
    %s66 = ssub.s32 %s18, %s32
    %s67 = sor.u32 %s65, %s66
    %p68 = scmp.eq.s32.totalorder %s67, 0
    %s70 = sadd.s32 %s69, 1
    %s71 = scalar_select %p68, %s69, %s70
    %p74 = pneg %p68
    %p75 = scmp.eq.s32.totalorder %s10, 1
    %p76 = por %p74, %p75
    %p77 = scmp.ne.s32.totalorder %s69, %s72
    %p78 = scmp.eq.s32.totalorder %s10, 0
    %p79 = por %p77, %p78
    %p80 = scmp.ne.s32.totalorder %s69, %s72
    %p81 = scmp.eq.s32.totalorder %s15, 1
    %p82 = por %p80, %p81
    %p83 = scmp.ne.s32.totalorder %s72, %s73
    %p84 = scmp.eq.s32.totalorder %s15, 0
    %p85 = por %p83, %p84
    %p86 = scmp.ne.s32.totalorder %s72, %s73
    %p87 = scmp.eq.s32.totalorder %s16, 1
    %p88 = por %p86, %p87
    %p90 = scmp.ne.s32.totalorder %s73, %s89
    %p91 = scmp.eq.s32.totalorder %s16, 0
    %p92 = por %p90, %p91
    %s93 = ssub.s32 %s18, %s32
    %p94 = scmp.eq.s32.totalorder %s93, 0
    %s96 = sadd.s32 %s95, 1
    %s97 = scalar_select %p94, %s95, %s96
    %p100 = pneg %p94
    %p101 = scmp.eq.s32.totalorder %s10, 1
    %p102 = por %p100, %p101
    %p103 = scmp.ne.s32.totalorder %s95, %s98
    %p104 = scmp.eq.s32.totalorder %s10, 0
    %p105 = por %p103, %p104
    %p106 = scmp.ne.s32.totalorder %s95, %s98
    %p107 = scmp.eq.s32.totalorder %s15, 1
    %p108 = por %p106, %p107
    %p109 = scmp.ne.s32.totalorder %s98, %s99
    %p110 = scmp.eq.s32.totalorder %s15, 0
    %p111 = por %p109, %p110
    %p112 = scmp.ne.s32.totalorder %s98, %s99
    %p113 = scmp.eq.s32.totalorder %s16, 1
    %p114 = por %p112, %p113
    %p116 = scmp.ne.s32.totalorder %s99, %s115
    %p117 = scmp.eq.s32.totalorder %s16, 0
    %p118 = por %p116, %p117
    %s119 = ssub.s32 %s17, %s36
    %s120 = ssub.s32 %s18, %s32
    %s121 = sor.u32 %s119, %s120
    %p122 = scmp.eq.s32.totalorder %s121, 0
    %s124 = sadd.s32 %s123, 1
    %s125 = scalar_select %p122, %s123, %s124
    %p128 = pneg %p122
    %p129 = scmp.eq.s32.totalorder %s10, 1
    %p130 = por %p128, %p129
    %p131 = scmp.ne.s32.totalorder %s123, %s126
    %p132 = scmp.eq.s32.totalorder %s10, 0
    %p133 = por %p131, %p132
    %p134 = scmp.ne.s32.totalorder %s123, %s126
    %p135 = scmp.eq.s32.totalorder %s15, 1
    %p136 = por %p134, %p135
    %p137 = scmp.ne.s32.totalorder %s126, %s127
    %p138 = scmp.eq.s32.totalorder %s15, 0
    %p139 = por %p137, %p138
    %p140 = scmp.ne.s32.totalorder %s126, %s127
    %p141 = scmp.eq.s32.totalorder %s16, 1
    %p142 = por %p140, %p141
    %p144 = scmp.ne.s32.totalorder %s127, %s143
    %p145 = scmp.eq.s32.totalorder %s16, 0
    %p146 = por %p144, %p145
    %s147 = ssub.s32 %s17, %s36
    %s148 = ssub.s32 %s18, %s32
    %s149 = sor.u32 %s147, %s148
    %p150 = scmp.eq.s32.totalorder %s149, 0
    %s152 = sadd.s32 %s151, 1
    %s153 = scalar_select %p150, %s151, %s152
    %p156 = pneg %p150
    %p157 = scmp.eq.s32.totalorder %s10, 1
    %p158 = por %p156, %p157
    %p159 = scmp.ne.s32.totalorder %s151, %s154
    %p160 = scmp.eq.s32.totalorder %s10, 0
    %p161 = por %p159, %p160
    %p162 = scmp.ne.s32.totalorder %s151, %s154
    %p163 = scmp.eq.s32.totalorder %s15, 1
    %p164 = por %p162, %p163
    %p165 = scmp.ne.s32.totalorder %s154, %s155
    %p166 = scmp.eq.s32.totalorder %s15, 0
    %p167 = por %p165, %p166
    %p168 = scmp.ne.s32.totalorder %s154, %s155
    %p169 = scmp.eq.s32.totalorder %s16, 1
    %p170 = por %p168, %p169
    %p172 = scmp.ne.s32.totalorder %s155, %s171
    %p173 = scmp.eq.s32.totalorder %s16, 0
    %p174 = por %p172, %p173
    %p175 = scmp.le.s32.totalorder 1, %s10
    %p176 = scmp.lt.s32.totalorder %s10, 3
    %p177 = pnand %p175, %p176
    %p178 = pneg %p177
    // Predicated region
    $region9: #{resnet_forward.30} parent=5 // pred_check
      _
    $region10: #{resnet_forward.30} parent=5 // pred_check_branch
      %180 = sbr.rel (%p177) target = $region12
    $region11: #{resnet_forward.30} parent=5 // pred_region
      %s181 = ssub.s32 %s10, 1
      // Predicated region
      $region13: #{resnet_forward.30} parent=11 // pred_check
        %p182 = pneg %p85
      $region14: #{resnet_forward.30} parent=11 // pred_check_branch
        %184 = sbr.rel (%p182) target = $region16
      $region15: #{resnet_forward.30} parent=11 // pred_region
        %s185 = smul.u32 16, %s22
        %s186 = smul.u32 2, %s21
        %p187 = scmp.lt.s32.totalorder %s185, 15
        %s188 = scalar_select %p187, %s185, 15
        %p189 = scmp.lt.s32.totalorder %s186, 1
        %s190 = scalar_select %p189, %s186, 1
        %s191 = smul.addr %s188, 2
        %s192 = sadd.s32 %s190, %s191
        %s193 = smul.addr %s192, 4
        %s194 = scalar_lea.vmem %s1, %s193
        %s195 = smul.u32 16, %s22
        %s196 = smul.u32 2, %s21
      $region16: #{resnet_forward.30} parent=11 // pred_fallthru
        _
      // Predicated region
      $region17: #{resnet_forward.30} parent=11 // pred_check
        %p197 = pneg %p111
      $region18: #{resnet_forward.30} parent=11 // pred_check_branch
        %199 = sbr.rel (%p197) target = $region20
      $region19: #{resnet_forward.30} parent=11 // pred_region
        %s200 = smul.u32 2, %s21
        %p201 = scmp.lt.s32.totalorder %s200, 1
        %s202 = scalar_select %p201, %s200, 1
        %s203 = scalar_lea.vmem %s2, %s202
        %s204 = smul.u32 2, %s21
      $region20: #{resnet_forward.30} parent=11 // pred_fallthru
        _
    $region12: #{resnet_forward.30} parent=5 // pred_fallthru
      _
    %p205 = scmp.lt.s32.totalorder %s10, 2
    // Predicated region
    $region21: #{resnet_forward.30} parent=5 // pred_check
      %p206 = pneg %p205
    $region22: #{resnet_forward.30} parent=5 // pred_check_branch
      %208 = sbr.rel (%p206) target = $region24
    $region23: #{resnet_forward.30} parent=5 // pred_region
      // Predicated region
      $region25: #{resnet_forward.30} parent=23 // pred_check
        %p209 = pneg %p51
      $region26: #{resnet_forward.30} parent=23 // pred_check_branch
        %211 = sbr.rel (%p209) target = $region28
      $region27: #{resnet_forward.30} parent=23 // pred_region
        %s212 = smul.u32 8, %s17
        %p213 = scmp.lt.s32.totalorder %s212, 15
        %s214 = scalar_select %p213, %s212, 15
        %p215 = scmp.lt.s32.totalorder %s19, 0
        %s216 = scalar_select %p215, %s19, 0
        %s217 = sadd.s32 %s216, %s214
        %s218 = smul.addr %s217, 4
        %s219 = scalar_lea.vmem %s0, %s218
        %s220 = smul.u32 8, %s17
      $region28: #{resnet_forward.30} parent=23 // pred_fallthru
        _
      // Predicated region
      $region29: #{resnet_forward.30} parent=23 // pred_check
        %p221 = pneg %p133
      $region30: #{resnet_forward.30} parent=23 // pred_check_branch
        %223 = sbr.rel (%p221) target = $region32
      $region31: #{resnet_forward.30} parent=23 // pred_region
        %s224 = smul.u32 8, %s17
        %s225 = smul.u32 2, %s18
        %p226 = scmp.lt.s32.totalorder %s224, 15
        %s227 = scalar_select %p226, %s224, 15
        %p228 = scmp.lt.s32.totalorder %s225, 1
        %s229 = scalar_select %p228, %s225, 1
        %s230 = smul.addr %s227, 2
        %s231 = sadd.s32 %s229, %s230
        %s232 = smul.addr %s231, 4
        %s233 = scalar_lea.vmem %s3, %s232
        %s234 = smul.u32 8, %s17
        %s235 = smul.u32 2, %s18
      $region32: #{resnet_forward.30} parent=23 // pred_fallthru
        _
    $region24: #{resnet_forward.30} parent=5 // pred_fallthru
      _
    %p236 = scmp.le.s32.totalorder 1, %s10
    %p237 = scmp.lt.s32.totalorder %s10, 3
    %p238 = pnand %p236, %p237
    %p239 = pneg %p238
    // Predicated region
    $region33: #{resnet_forward.30} parent=5 // pred_check
      _
    $region34: #{resnet_forward.30} parent=5 // pred_check_branch
      %241 = sbr.rel (%p238) target = $region36
    $region35: #{resnet_forward.30} parent=5 // pred_region
      %s242 = ssub.s32 %s10, 1
      %s243 = smul.u32 8, %s20
      %p244 = scmp.lt.s32.totalorder %s243, 15
      %s245 = scalar_select %p244, %s243, 15
      %p246 = scmp.lt.s32.totalorder %s22, 0
      %s247 = scalar_select %p246, %s22, 0
      %s248 = sadd.s32 %s247, %s245
      %s249 = smul.addr %s248, 4
      %s250 = scalar_lea.vmem %s0, %s249
      %p251 = pneg %p57
      %p252 = pneg %p54
      %s253 = smul.u32 16, %s22
      %s254 = smul.u32 2, %s21
      %p255 = scmp.lt.s32.totalorder %s253, 15
      %s256 = scalar_select %p255, %s253, 15
      %p257 = scmp.lt.s32.totalorder %s254, 1
      %s258 = scalar_select %p257, %s254, 1
      %s259 = smul.addr %s256, 2
      %s260 = sadd.s32 %s258, %s259
      %s261 = smul.addr %s260, 4
      %s262 = scalar_lea.vmem %s1, %s261
      %p263 = pneg %p85
      %p264 = pneg %p82
      %s265 = smul.u32 2, %s21
      %p266 = scmp.lt.s32.totalorder %s265, 1
      %s267 = scalar_select %p266, %s265, 1
      %s268 = scalar_lea.vmem %s2, %s267
      %p269 = pneg %p111
      %p270 = pneg %p108
      %s271 = smul.u32 8, %s20
      %s272 = smul.u32 2, %s21
      %p273 = scmp.lt.s32.totalorder %s271, 15
      %s274 = scalar_select %p273, %s271, 15
      %p275 = scmp.lt.s32.totalorder %s272, 1
      %s276 = scalar_select %p275, %s272, 1
      %s277 = smul.addr %s274, 2
      %s278 = sadd.s32 %s276, %s277
      %s279 = smul.addr %s278, 4
      %s280 = scalar_lea.vmem %s3, %s279
      %p281 = pneg %p139
      %p282 = pneg %p136
      %p283 = pneg %p167
      %p284 = pneg %p164
      %s285 = smul.u32 8, %s20
      %s286 = smul.u32 2, %s21
      %p287 = scmp.lt.s32.totalorder %s285, 15
      %s288 = scalar_select %p287, %s285, 15
      %p289 = scmp.lt.s32.totalorder %s286, 1
      %s290 = scalar_select %p289, %s286, 1
      %s291 = smul.addr %s288, 2
      %s292 = sadd.s32 %s290, %s291
      %s293 = smul.addr %s292, 4
      %s294 = scalar_lea.vmem %s4, %s293
      %s295 = smul.u32 8, %s20
      %p296 = scmp.lt.s32.totalorder %s295, 15
      %s297 = scalar_select %p296, %s295, 15
      %p298 = scmp.lt.s32.totalorder %s22, 0
      %s299 = scalar_select %p298, %s22, 0
      %s300 = sadd.s32 %s299, %s297
      %s301 = smul.addr %s300, 4
      %s302 = scalar_lea.vmem %s0, %s301
      %s303 = smul.u32 8, %s20
      %s304 = smul.u32 16, %s22
      %s305 = smul.u32 2, %s21
      %p306 = scmp.lt.s32.totalorder %s304, 15
      %s307 = scalar_select %p306, %s304, 15
      %p308 = scmp.lt.s32.totalorder %s305, 1
      %s309 = scalar_select %p308, %s305, 1
      %s310 = smul.addr %s307, 2
      %s311 = sadd.s32 %s309, %s310
      %s312 = smul.addr %s311, 4
      %s313 = scalar_lea.vmem %s1, %s312
      %s314 = smul.u32 16, %s22
      %s315 = smul.u32 2, %s21
      %s316 = smul.u32 2, %s21
      %p317 = scmp.lt.s32.totalorder %s316, 1
      %s318 = scalar_select %p317, %s316, 1
      %s319 = scalar_lea.vmem %s2, %s318
      %s320 = smul.u32 2, %s21
      %s321 = smul.u32 8, %s20
      %s322 = smul.u32 2, %s21
      %p323 = scmp.lt.s32.totalorder %s321, 15
      %s324 = scalar_select %p323, %s321, 15
      %p325 = scmp.lt.s32.totalorder %s322, 1
      %s326 = scalar_select %p325, %s322, 1
      %s327 = smul.addr %s324, 2
      %s328 = sadd.s32 %s326, %s327
      %s329 = smul.addr %s328, 4
      %s330 = scalar_lea.vmem %s3, %s329
      %s331 = smul.u32 8, %s20
      %s332 = smul.u32 2, %s21
      %s333 = smul.u32 8, %s20
      %s334 = smul.u32 2, %s21
      %p335 = scmp.lt.s32.totalorder %s333, 15
      %s336 = scalar_select %p335, %s333, 15
      %p337 = scmp.lt.s32.totalorder %s334, 1
      %s338 = scalar_select %p337, %s334, 1
      %s339 = smul.addr %s336, 2
      %s340 = sadd.s32 %s338, %s339
      %s341 = smul.addr %s340, 4
      %s342 = scalar_lea.vmem %s4, %s341
      %s343 = smul.u32 8, %s20
      %s344 = smul.u32 2, %s21
      %v346 = vld [vmem:[%s302] sm:$0xf]
      %v347 = vld [vmem:[%s302 + $0x4] sm:$0xf]
      %v348 = vld [vmem:[%s302 + $0x8] sm:$0xf]
      %v349 = vld [vmem:[%s302 + $0xc] sm:$0xf]
      %v350 = vld [vmem:[%s302 + $0x10] sm:$0xf]
      %v351 = vld [vmem:[%s302 + $0x14] sm:$0xf]
      %v352 = vld [vmem:[%s302 + $0x18] sm:$0xf]
      %v353 = vld [vmem:[%s302 + $0x1c] sm:$0xf]
      %v354 = vld [vmem:[%s313] sm:$0xff]
      %v355 = vld [vmem:[%s313 + $0x8] sm:$0xff]
      %v356 = vld [vmem:[%s313 + $0x10] sm:$0xff]
      %v357 = vld [vmem:[%s313 + $0x18] sm:$0xff]
      %v358 = vld [vmem:[%s313 + $0x20] sm:$0xff]
      %v359 = vld [vmem:[%s313 + $0x28] sm:$0xff]
      %v360 = vld [vmem:[%s313 + $0x30] sm:$0xff]
      %v361 = vld [vmem:[%s313 + $0x38] sm:$0xff]
      %v362 = vld [vmem:[%s313 + $0x40] sm:$0xff]
      %v363 = vld [vmem:[%s313 + $0x48] sm:$0xff]
      %v364 = vld [vmem:[%s313 + $0x50] sm:$0xff]
      %v365 = vld [vmem:[%s313 + $0x58] sm:$0xff]
      %v366 = vld [vmem:[%s313 + $0x60] sm:$0xff]
      %v367 = vld [vmem:[%s313 + $0x68] sm:$0xff]
      %v368 = vld [vmem:[%s313 + $0x70] sm:$0xff]
      %v369 = vld [vmem:[%s313 + $0x78] sm:$0xff]
      %v370 = vld [vmem:[%s319] sm:$0x3]
      %v372 = vlaneseq
      %v373 = vshrl.u32 %v372, 7
      %v374 = vsub.s32 0, %v373
      %v375 = vrot.slane %v370, %v374
      %v376 = vlaneseq
      %v377 = vshrl.u32 %v376, 7
      %v378 = vsub.s32 1, %v377
      %v379 = vrot.slane %v370, %v378
      %v390 = vunpack.c.l.b16 %v346
      %v391 = vunpack.c.l.b16 %v347
      %v392 = vunpack.c.l.b16 %v348
      %v393 = vunpack.c.l.b16 %v349
      %v394 = vunpack.c.l.b16 %v350
      %v395 = vunpack.c.l.b16 %v351
      %v396 = vunpack.c.l.b16 %v352
      %v397 = vunpack.c.l.b16 %v353
      %v398 = vpack.c.b16 %v391, %v390
      %v399 = vpack.c.b16 %v393, %v392
      %v400 = vpack.c.b16 %v395, %v394
      %v401 = vpack.c.b16 %v397, %v396
      %v422 = vunpack.c.l.b16 %v354
      %v423 = vunpack.c.h.b16 %v354
      %v424 = vunpack.c.l.b16 %v355
      %v425 = vunpack.c.h.b16 %v355
      %v426 = vunpack.c.l.b16 %v356
      %v427 = vunpack.c.h.b16 %v356
      %v428 = vunpack.c.l.b16 %v357
      %v429 = vunpack.c.h.b16 %v357
      %v430 = vunpack.c.l.b16 %v358
      %v431 = vunpack.c.h.b16 %v358
      %v432 = vunpack.c.l.b16 %v359
      %v433 = vunpack.c.h.b16 %v359
      %v434 = vunpack.c.l.b16 %v360
      %v435 = vunpack.c.h.b16 %v360
      %v436 = vunpack.c.l.b16 %v361
      %v437 = vunpack.c.h.b16 %v361
      %v438 = vunpack.c.l.b16 %v362
      %v439 = vunpack.c.h.b16 %v362
      %v440 = vunpack.c.l.b16 %v363
      %v441 = vunpack.c.h.b16 %v363
      %v442 = vunpack.c.l.b16 %v364
      %v443 = vunpack.c.h.b16 %v364
      %v444 = vunpack.c.l.b16 %v365
      %v445 = vunpack.c.h.b16 %v365
      %v446 = vunpack.c.l.b16 %v366
      %v447 = vunpack.c.h.b16 %v366
      %v448 = vunpack.c.l.b16 %v367
      %v449 = vunpack.c.h.b16 %v367
      %v450 = vunpack.c.l.b16 %v368
      %v451 = vunpack.c.h.b16 %v368
      %v452 = vunpack.c.l.b16 %v369
      %v453 = vunpack.c.h.b16 %v369
      %v454 = vpack.c.b16 %v424, %v422
      %v455 = vpack.c.b16 %v425, %v423
      %v456 = vpack.c.b16 %v428, %v426
      %v457 = vpack.c.b16 %v429, %v427
      %v458 = vpack.c.b16 %v432, %v430
      %v459 = vpack.c.b16 %v433, %v431
      %v460 = vpack.c.b16 %v436, %v434
      %v461 = vpack.c.b16 %v437, %v435
      %v462 = vpack.c.b16 %v440, %v438
      %v463 = vpack.c.b16 %v441, %v439
      %v464 = vpack.c.b16 %v444, %v442
      %v465 = vpack.c.b16 %v445, %v443
      %v466 = vpack.c.b16 %v448, %v446
      %v467 = vpack.c.b16 %v449, %v447
      %v468 = vpack.c.b16 %v452, %v450
      %v469 = vpack.c.b16 %v453, %v451
      %486 = vmatprep.subr.bf16.mxu0 %v455
      %487 = vmatpush1.bf16.msra.mxu0 %v454
      %488 = vmatprep.subr.bf16.mxu0 %v457
      %489 = vmatpush1.bf16.msra.mxu0 %v456
      %490 = vmatprep.subr.bf16.mxu0 %v459
      %491 = vmatpush1.bf16.msra.mxu0 %v458
      %492 = vmatprep.subr.bf16.mxu0 %v461
      %493 = vmatpush1.bf16.msra.mxu0 %v460
      %494 = vmatprep.subr.bf16.mxu0 %v463
      %495 = vmatpush1.bf16.msra.mxu0 %v462
      %496 = vmatprep.subr.bf16.mxu0 %v465
      %497 = vmatpush1.bf16.msra.mxu0 %v464
      %498 = vmatprep.subr.bf16.mxu0 %v467
      %499 = vmatpush1.bf16.msra.mxu0 %v466
      %500 = vmatprep.subr.bf16.mxu0 %v469
      %501 = vmatpush1.bf16.msra.mxu0 %v468
      %502 = vmatprep.subr.bf16.mxu0 0
      %503 = vmatpush1.bf16.msra.mxu0 0
      %504 = vmatprep.subr.bf16.mxu0 0
      %505 = vmatpush1.bf16.msra.mxu0 0
      %506 = vmatprep.subr.bf16.mxu0 0
      %507 = vmatpush1.bf16.msra.mxu0 0
      %508 = vmatprep.subr.bf16.mxu0 0
      %509 = vmatpush1.bf16.msra.mxu0 0
      %510 = vmatprep.subr.bf16.mxu0 0
      %511 = vmatpush1.bf16.msra.mxu0 0
      %512 = vmatprep.subr.bf16.mxu0 0
      %513 = vmatpush1.bf16.msra.mxu0 0
      %514 = vmatprep.subr.bf16.mxu0 0
      %515 = vmatpush1.bf16.msra.mxu0 0
      %516 = vmatprep.subr.bf16.mxu0 0
      %517 = vmatpush1.bf16.msra.mxu0 0
      %518 = vmatprep.mubr.bf16.mxu0 0
      %519 = vmatmul.mubr.bf16.gmra.mrb[0].mxu0 %v398
      %v520 = vpop.f32.mrb[0].mxu0
      %v521 = vadd.f32 %v375, %v520
      %v522 = vpop.f32.mrb[0].mxu0
      %v523 = vadd.f32 %v379, %v522
      %v524 = vpop.f32.mrb[0].mxu0
      %v525 = vadd.f32 %v375, %v524
      %v526 = vpop.f32.mrb[0].mxu0
      %v527 = vadd.f32 %v379, %v526
      %528 = vmatprep.mubr.bf16.mxu0 0
      %529 = vmatmul.mubr.bf16.gmra.mrb[0].mxu0 %v399
      %v530 = vpop.f32.mrb[0].mxu0
      %v531 = vadd.f32 %v375, %v530
      %v532 = vpop.f32.mrb[0].mxu0
      %v533 = vadd.f32 %v379, %v532
      %v534 = vpop.f32.mrb[0].mxu0
      %v535 = vadd.f32 %v375, %v534
      %v536 = vpop.f32.mrb[0].mxu0
      %v537 = vadd.f32 %v379, %v536
      %538 = vmatprep.mubr.bf16.mxu0 0
      %539 = vmatmul.mubr.bf16.gmra.mrb[0].mxu0 %v400
      %v540 = vpop.f32.mrb[0].mxu0
      %v541 = vadd.f32 %v375, %v540
      %v542 = vpop.f32.mrb[0].mxu0
      %v543 = vadd.f32 %v379, %v542
      %v544 = vpop.f32.mrb[0].mxu0
      %v545 = vadd.f32 %v375, %v544
      %v546 = vpop.f32.mrb[0].mxu0
      %v547 = vadd.f32 %v379, %v546
      %548 = vmatprep.mubr.bf16.mxu0 0
      %549 = vmatmul.mubr.bf16.gmra.mrb[0].mxu0 %v401
      %v550 = vpop.f32.mrb[0].mxu0
      %v551 = vadd.f32 %v375, %v550
      %v552 = vpop.f32.mrb[0].mxu0
      %v553 = vadd.f32 %v379, %v552
      %v554 = vpop.f32.mrb[0].mxu0
      %v555 = vadd.f32 %v375, %v554
      %v556 = vpop.f32.mrb[0].mxu0
      %v557 = vadd.f32 %v379, %v556
      %558 = vdwg.mxu0
      %v559 = vld [vmem:[%s330] sm:$0xff]
      %v560 = vld [vmem:[%s330 + $0x8] sm:$0xff]
      %v561 = vld [vmem:[%s330 + $0x10] sm:$0xff]
      %v562 = vld [vmem:[%s330 + $0x18] sm:$0xff]
      %v563 = vld [vmem:[%s330 + $0x20] sm:$0xff]
      %v564 = vld [vmem:[%s330 + $0x28] sm:$0xff]
      %v565 = vld [vmem:[%s330 + $0x30] sm:$0xff]
      %v566 = vld [vmem:[%s330 + $0x38] sm:$0xff]
      %v567 = vunpack.c.l.bf16 %v559
      %v568 = vunpack.c.h.bf16 %v559
      %v569 = vunpack.c.l.bf16 %v560
      %v570 = vunpack.c.h.bf16 %v560
      %v571 = vunpack.c.l.bf16 %v561
      %v572 = vunpack.c.h.bf16 %v561
      %v573 = vunpack.c.l.bf16 %v562
      %v574 = vunpack.c.h.bf16 %v562
      %v575 = vunpack.c.l.bf16 %v563
      %v576 = vunpack.c.h.bf16 %v563
      %v577 = vunpack.c.l.bf16 %v564
      %v578 = vunpack.c.h.bf16 %v564
      %v579 = vunpack.c.l.bf16 %v565
      %v580 = vunpack.c.h.bf16 %v565
      %v581 = vunpack.c.l.bf16 %v566
      %v582 = vunpack.c.h.bf16 %v566
      %v583 = vadd.f32 %v521, %v567
      %v584 = vadd.f32 %v523, %v568
      %v585 = vadd.f32 %v525, %v569
      %v586 = vadd.f32 %v527, %v570
      %v587 = vadd.f32 %v531, %v571
      %v588 = vadd.f32 %v533, %v572
      %v589 = vadd.f32 %v535, %v573
      %v590 = vadd.f32 %v537, %v574
      %v591 = vadd.f32 %v541, %v575
      %v592 = vadd.f32 %v543, %v576
      %v593 = vadd.f32 %v545, %v577
      %v594 = vadd.f32 %v547, %v578
      %v595 = vadd.f32 %v551, %v579
      %v596 = vadd.f32 %v553, %v580
      %v597 = vadd.f32 %v555, %v581
      %v598 = vadd.f32 %v557, %v582
      %v599 = vmax.f32 %v583, 0.0
      %v600 = vmax.f32 %v584, 0.0
      %v601 = vmax.f32 %v585, 0.0
      %v602 = vmax.f32 %v586, 0.0
      %v603 = vmax.f32 %v587, 0.0
      %v604 = vmax.f32 %v588, 0.0
      %v605 = vmax.f32 %v589, 0.0
      %v606 = vmax.f32 %v590, 0.0
      %v607 = vmax.f32 %v591, 0.0
      %v608 = vmax.f32 %v592, 0.0
      %v609 = vmax.f32 %v593, 0.0
      %v610 = vmax.f32 %v594, 0.0
      %v611 = vmax.f32 %v595, 0.0
      %v612 = vmax.f32 %v596, 0.0
      %v613 = vmax.f32 %v597, 0.0
      %v614 = vmax.f32 %v598, 0.0
      %v615 = vpack.c.bf16 %v601, %v599
      %v616 = vpack.c.bf16 %v602, %v600
      %v617 = vpack.c.bf16 %v605, %v603
      %v618 = vpack.c.bf16 %v606, %v604
      %v619 = vpack.c.bf16 %v609, %v607
      %v620 = vpack.c.bf16 %v610, %v608
      %v621 = vpack.c.bf16 %v613, %v611
      %v622 = vpack.c.bf16 %v614, %v612
      %v631 = vunpack.c.l.b16 %v615
      %v632 = vunpack.c.l.b16 %v616
      %v633 = vunpack.c.h.b16 %v615
      %v634 = vunpack.c.h.b16 %v616
      %v635 = vunpack.c.l.b16 %v617
      %v636 = vunpack.c.l.b16 %v618
      %v637 = vunpack.c.h.b16 %v617
      %v638 = vunpack.c.h.b16 %v618
      %v639 = vunpack.c.l.b16 %v619
      %v640 = vunpack.c.l.b16 %v620
      %v641 = vunpack.c.h.b16 %v619
      %v642 = vunpack.c.h.b16 %v620
      %v643 = vunpack.c.l.b16 %v621
      %v644 = vunpack.c.l.b16 %v622
      %v645 = vunpack.c.h.b16 %v621
      %v646 = vunpack.c.h.b16 %v622
      %v647 = vpack.c.b16 %v632, %v631
      %v648 = vpack.c.b16 %v634, %v633
      %v649 = vpack.c.b16 %v636, %v635
      %v650 = vpack.c.b16 %v638, %v637
      %v651 = vpack.c.b16 %v640, %v639
      %v652 = vpack.c.b16 %v642, %v641
      %v653 = vpack.c.b16 %v644, %v643
      %v654 = vpack.c.b16 %v646, %v645
      %663 = vst [vmem:[%s342] sm:$0xff] %v647
      %664 = vst [vmem:[%s342 + $0x8] sm:$0xff] %v648
      %665 = vst [vmem:[%s342 + $0x10] sm:$0xff] %v649
      %666 = vst [vmem:[%s342 + $0x18] sm:$0xff] %v650
      %667 = vst [vmem:[%s342 + $0x20] sm:$0xff] %v651
      %668 = vst [vmem:[%s342 + $0x28] sm:$0xff] %v652
      %669 = vst [vmem:[%s342 + $0x30] sm:$0xff] %v653
      %670 = vst [vmem:[%s342 + $0x38] sm:$0xff] %v654
      %s671 = smul.u32 8, %s20
      %s672 = smul.u32 2, %s21
      %p673 = scmp.lt.s32.totalorder %s671, 15
      %s674 = scalar_select %p673, %s671, 15
      %p675 = scmp.lt.s32.totalorder %s672, 1
      %s676 = scalar_select %p675, %s672, 1
      %s677 = smul.addr %s674, 2
      %s678 = sadd.s32 %s676, %s677
      %s679 = smul.addr %s678, 4
      %s680 = scalar_lea.vmem %s4, %s679
      // Predicated region
      $region37: #{resnet_forward.30} parent=35 // pred_check
        %p681 = pneg %p164
      $region38: #{resnet_forward.30} parent=35 // pred_check_branch
        %683 = sbr.rel (%p681) target = $region40
      $region39: #{resnet_forward.30} parent=35 // pred_region
        %s684 = smul.u32 8, %s20
        %s685 = smul.u32 2, %s21
      $region40: #{resnet_forward.30} parent=35 // pred_fallthru
        _
    $region36: #{resnet_forward.30} parent=5 // pred_fallthru
      _
    %p686 = scmp.le.s32.totalorder 2, %s10
    // Predicated region
    $region41: #{resnet_forward.30} parent=5 // pred_check
      %p687 = pneg %p686
    $region42: #{resnet_forward.30} parent=5 // pred_check_branch
      %689 = sbr.rel (%p687) target = $region44
    $region43: #{resnet_forward.30} parent=5 // pred_region
      %s690 = ssub.s32 %s10, 2
      // Predicated region
      $region45: #{resnet_forward.30} parent=43 // pred_check
        %p691 = pneg %p170
      $region46: #{resnet_forward.30} parent=43 // pred_check_branch
        %693 = sbr.rel (%p691) target = $region48
      $region47: #{resnet_forward.30} parent=43 // pred_region
        %s694 = smul.u32 8, %s23
        %s695 = smul.u32 2, %s24
        %p696 = scmp.lt.s32.totalorder %s694, 15
        %s697 = scalar_select %p696, %s694, 15
        %p698 = scmp.lt.s32.totalorder %s695, 1
        %s699 = scalar_select %p698, %s695, 1
        %s700 = smul.addr %s697, 2
        %s701 = sadd.s32 %s699, %s700
        %s702 = smul.addr %s701, 4
        %s703 = scalar_lea.vmem %s4, %s702
      $region48: #{resnet_forward.30} parent=43 // pred_fallthru
        _
    $region44: #{resnet_forward.30} parent=5 // pred_fallthru
      _
  $region6: #{resnet_forward.30} parent=0 // loop_footer
    %s14 = sadd.s32 1, %s10
  $region7: #{resnet_forward.30} parent=0 // loop_footer_branch
    %9 = sbr.rel target = $region3
  $region8: #{resnet_forward.30} parent=0 // loop_exit
    _

// kernel: resnet_forward.27
$region0: #{resnet_forward.27}
  #allocation0 [shape = 'u32[]', space=smem, size = 0x4, offset = 0x4, fixed_abs, tag = 'smem constant byte address 0x4 - core index']
  #allocation1 [shape = 'u32[144,128]{1,0:T(1,128)}', space=vmem, size = 0x12000, scoped, tag = 'internal scratch']
  %s0 = inlined_call_operand.vmem [shape: bf16[128,128], index: 0, kind: input, shape index: {}]
  %s1 = inlined_call_operand.vmem [shape: bf16[128,256], index: 1, kind: input, shape index: {}]
  %s2 = inlined_call_operand.vmem [shape: f32[1,256], index: 2, kind: input, shape index: {}]
  %s3 = inlined_call_operand.vmem [shape: bf16[128,256], index: 3, kind: output, shape index: {}]
  %s4 = sld [smem:[#allocation0]]
  $region45: #{resnet_forward.27} parent=0
    _
  %s6 = ssub.s32 1, %s4
  %s7 = scalar_select 0, %s6, %s4
  loop: start=0, step=1, limit=4
  $region2: #{resnet_forward.27} parent=0 // loop_pre_header
    _
  $region3: #{resnet_forward.27} parent=0 // loop_header
    %s9 = sphi 0, %s13
    %p10 = scmp.ge.s32.totalorder %s9, 4
    %s16 = sphi 0, %s35
    %s17 = sphi 0, %s31
    %s18 = sphi 0, %s27
    %s19 = sphi 0, %s16
    %s20 = sphi 0, %s17
    %s21 = sphi 0, %s18
    %s22 = sphi 0, %s19
    %s23 = sphi 0, %s20
    %s24 = sphi 0, %s21
    %s40 = sphi 0, %s42
    %s43 = sphi 0, %s40
    %s44 = sphi 0, %s43
    %s60 = sphi 0, %s44
    %s68 = sphi 0, %s70
    %s71 = sphi 0, %s68
    %s72 = sphi 0, %s71
    %s88 = sphi 0, %s72
    %s94 = sphi 0, %s96
    %s97 = sphi 0, %s94
    %s98 = sphi 0, %s97
    %s114 = sphi 0, %s98
    %s122 = sphi 0, %s124
    %s125 = sphi 0, %s122
    %s126 = sphi 0, %s125
    %s142 = sphi 0, %s126
  $region4: #{resnet_forward.27} parent=0 // loop_header_branch
    %12 = sbr.rel (%p10) target = $region8
  $region5: #{resnet_forward.27} parent=0 // loop_body
    %s14 = ssub.s32 %s9, 1
    %s15 = ssub.s32 %s9, 2
    %s25 = sadd.s32 1, %s18
    %p26 = scmp.ge.s32.totalorder %s25, 1
    %s27 = scalar_select %p26, 0, %s25
    %s28 = sadd.s32 1, %s17
    %s29 = scalar_select %p26, %s28, %s17
    %p30 = scmp.ge.s32.totalorder %s29, 1
    %s31 = scalar_select %p30, 0, %s29
    %s32 = sadd.s32 1, %s16
    %s33 = scalar_select %p30, %s32, %s16
    %p34 = scmp.ge.s32.totalorder %s33, 2
    %s35 = scalar_select %p34, 0, %s33
    %s36 = ssub.s32 %s16, %s35
    %s37 = ssub.s32 %s18, %s27
    %s38 = sor.u32 %s36, %s37
    %p39 = scmp.eq.s32.totalorder %s38, 0
    %s41 = sadd.s32 %s40, 1
    %s42 = scalar_select %p39, %s40, %s41
    %p45 = pneg %p39
    %p46 = scmp.eq.s32.totalorder %s9, 1
    %p47 = por %p45, %p46
    %p48 = scmp.ne.s32.totalorder %s40, %s43
    %p49 = scmp.eq.s32.totalorder %s9, 0
    %p50 = por %p48, %p49
    %p51 = scmp.ne.s32.totalorder %s40, %s43
    %p52 = scmp.eq.s32.totalorder %s14, 1
    %p53 = por %p51, %p52
    %p54 = scmp.ne.s32.totalorder %s43, %s44
    %p55 = scmp.eq.s32.totalorder %s14, 0
    %p56 = por %p54, %p55
    %p57 = scmp.ne.s32.totalorder %s43, %s44
    %p58 = scmp.eq.s32.totalorder %s15, 1
    %p59 = por %p57, %p58
    %p61 = scmp.ne.s32.totalorder %s44, %s60
    %p62 = scmp.eq.s32.totalorder %s15, 0
    %p63 = por %p61, %p62
    %s64 = ssub.s32 %s18, %s27
    %s65 = ssub.s32 %s17, %s31
    %s66 = sor.u32 %s64, %s65
    %p67 = scmp.eq.s32.totalorder %s66, 0
    %s69 = sadd.s32 %s68, 1
    %s70 = scalar_select %p67, %s68, %s69
    %p73 = pneg %p67
    %p74 = scmp.eq.s32.totalorder %s9, 1
    %p75 = por %p73, %p74
    %p76 = scmp.ne.s32.totalorder %s68, %s71
    %p77 = scmp.eq.s32.totalorder %s9, 0
    %p78 = por %p76, %p77
    %p79 = scmp.ne.s32.totalorder %s68, %s71
    %p80 = scmp.eq.s32.totalorder %s14, 1
    %p81 = por %p79, %p80
    %p82 = scmp.ne.s32.totalorder %s71, %s72
    %p83 = scmp.eq.s32.totalorder %s14, 0
    %p84 = por %p82, %p83
    %p85 = scmp.ne.s32.totalorder %s71, %s72
    %p86 = scmp.eq.s32.totalorder %s15, 1
    %p87 = por %p85, %p86
    %p89 = scmp.ne.s32.totalorder %s72, %s88
    %p90 = scmp.eq.s32.totalorder %s15, 0
    %p91 = por %p89, %p90
    %s92 = ssub.s32 %s17, %s31
    %p93 = scmp.eq.s32.totalorder %s92, 0
    %s95 = sadd.s32 %s94, 1
    %s96 = scalar_select %p93, %s94, %s95
    %p99 = pneg %p93
    %p100 = scmp.eq.s32.totalorder %s9, 1
    %p101 = por %p99, %p100
    %p102 = scmp.ne.s32.totalorder %s94, %s97
    %p103 = scmp.eq.s32.totalorder %s9, 0
    %p104 = por %p102, %p103
    %p105 = scmp.ne.s32.totalorder %s94, %s97
    %p106 = scmp.eq.s32.totalorder %s14, 1
    %p107 = por %p105, %p106
    %p108 = scmp.ne.s32.totalorder %s97, %s98
    %p109 = scmp.eq.s32.totalorder %s14, 0
    %p110 = por %p108, %p109
    %p111 = scmp.ne.s32.totalorder %s97, %s98
    %p112 = scmp.eq.s32.totalorder %s15, 1
    %p113 = por %p111, %p112
    %p115 = scmp.ne.s32.totalorder %s98, %s114
    %p116 = scmp.eq.s32.totalorder %s15, 0
    %p117 = por %p115, %p116
    %s118 = ssub.s32 %s16, %s35
    %s119 = ssub.s32 %s17, %s31
    %s120 = sor.u32 %s118, %s119
    %p121 = scmp.eq.s32.totalorder %s120, 0
    %s123 = sadd.s32 %s122, 1
    %s124 = scalar_select %p121, %s122, %s123
    %p127 = pneg %p121
    %p128 = scmp.eq.s32.totalorder %s9, 1
    %p129 = por %p127, %p128
    %p130 = scmp.ne.s32.totalorder %s122, %s125
    %p131 = scmp.eq.s32.totalorder %s9, 0
    %p132 = por %p130, %p131
    %p133 = scmp.ne.s32.totalorder %s122, %s125
    %p134 = scmp.eq.s32.totalorder %s14, 1
    %p135 = por %p133, %p134
    %p136 = scmp.ne.s32.totalorder %s125, %s126
    %p137 = scmp.eq.s32.totalorder %s14, 0
    %p138 = por %p136, %p137
    %p139 = scmp.ne.s32.totalorder %s125, %s126
    %p140 = scmp.eq.s32.totalorder %s15, 1
    %p141 = por %p139, %p140
    %p143 = scmp.ne.s32.totalorder %s126, %s142
    %p144 = scmp.eq.s32.totalorder %s15, 0
    %p145 = por %p143, %p144
    %p146 = scmp.le.s32.totalorder 1, %s9
    %p147 = scmp.lt.s32.totalorder %s9, 3
    %p148 = pnand %p146, %p147
    %p149 = pneg %p148
    // Predicated region
    $region9: #{resnet_forward.27} parent=5 // pred_check
      _
    $region10: #{resnet_forward.27} parent=5 // pred_check_branch
      %151 = sbr.rel (%p148) target = $region12
    $region11: #{resnet_forward.27} parent=5 // pred_region
      %s152 = ssub.s32 %s9, 1
      // Predicated region
      $region13: #{resnet_forward.27} parent=11 // pred_check
        %p153 = pneg %p84
      $region14: #{resnet_forward.27} parent=11 // pred_check_branch
        %155 = sbr.rel (%p153) target = $region16
      $region15: #{resnet_forward.27} parent=11 // pred_region
        %s156 = smul.u32 16, %s21
        %s157 = smul.u32 2, %s20
        %p158 = scmp.lt.s32.totalorder %s156, 15
        %s159 = scalar_select %p158, %s156, 15
        %p160 = scmp.lt.s32.totalorder %s157, 1
        %s161 = scalar_select %p160, %s157, 1
        %s162 = smul.addr %s159, 2
        %s163 = sadd.s32 %s161, %s162
        %s164 = smul.addr %s163, 4
        %s165 = scalar_lea.vmem %s1, %s164
        %s166 = smul.u32 16, %s21
        %s167 = smul.u32 2, %s20
      $region16: #{resnet_forward.27} parent=11 // pred_fallthru
        _
      // Predicated region
      $region17: #{resnet_forward.27} parent=11 // pred_check
        %p168 = pneg %p110
      $region18: #{resnet_forward.27} parent=11 // pred_check_branch
        %170 = sbr.rel (%p168) target = $region20
      $region19: #{resnet_forward.27} parent=11 // pred_region
        %s171 = smul.u32 2, %s20
        %p172 = scmp.lt.s32.totalorder %s171, 1
        %s173 = scalar_select %p172, %s171, 1
        %s174 = scalar_lea.vmem %s2, %s173
        %s175 = smul.u32 2, %s20
      $region20: #{resnet_forward.27} parent=11 // pred_fallthru
        _
    $region12: #{resnet_forward.27} parent=5 // pred_fallthru
      _
    %p176 = scmp.lt.s32.totalorder %s9, 2
    // Predicated region
    $region21: #{resnet_forward.27} parent=5 // pred_check
      %p177 = pneg %p176
    $region22: #{resnet_forward.27} parent=5 // pred_check_branch
      %179 = sbr.rel (%p177) target = $region24
    $region23: #{resnet_forward.27} parent=5 // pred_region
      // Predicated region
      $region25: #{resnet_forward.27} parent=23 // pred_check
        %p180 = pneg %p50
      $region26: #{resnet_forward.27} parent=23 // pred_check_branch
        %182 = sbr.rel (%p180) target = $region28
      $region27: #{resnet_forward.27} parent=23 // pred_region
        %s183 = smul.u32 8, %s16
        %p184 = scmp.lt.s32.totalorder %s183, 15
        %s185 = scalar_select %p184, %s183, 15
        %p186 = scmp.lt.s32.totalorder %s18, 0
        %s187 = scalar_select %p186, %s18, 0
        %s188 = sadd.s32 %s187, %s185
        %s189 = smul.addr %s188, 4
        %s190 = scalar_lea.vmem %s0, %s189
        %s191 = smul.u32 8, %s16
      $region28: #{resnet_forward.27} parent=23 // pred_fallthru
        _
    $region24: #{resnet_forward.27} parent=5 // pred_fallthru
      _
    %p192 = scmp.le.s32.totalorder 1, %s9
    %p193 = scmp.lt.s32.totalorder %s9, 3
    %p194 = pnand %p192, %p193
    %p195 = pneg %p194
    // Predicated region
    $region29: #{resnet_forward.27} parent=5 // pred_check
      _
    $region30: #{resnet_forward.27} parent=5 // pred_check_branch
      %197 = sbr.rel (%p194) target = $region32
    $region31: #{resnet_forward.27} parent=5 // pred_region
      %s198 = ssub.s32 %s9, 1
      %s199 = smul.u32 8, %s19
      %p200 = scmp.lt.s32.totalorder %s199, 15
      %s201 = scalar_select %p200, %s199, 15
      %p202 = scmp.lt.s32.totalorder %s21, 0
      %s203 = scalar_select %p202, %s21, 0
      %s204 = sadd.s32 %s203, %s201
      %s205 = smul.addr %s204, 4
      %s206 = scalar_lea.vmem %s0, %s205
      %p207 = pneg %p56
      %p208 = pneg %p53
      %s209 = smul.u32 16, %s21
      %s210 = smul.u32 2, %s20
      %p211 = scmp.lt.s32.totalorder %s209, 15
      %s212 = scalar_select %p211, %s209, 15
      %p213 = scmp.lt.s32.totalorder %s210, 1
      %s214 = scalar_select %p213, %s210, 1
      %s215 = smul.addr %s212, 2
      %s216 = sadd.s32 %s214, %s215
      %s217 = smul.addr %s216, 4
      %s218 = scalar_lea.vmem %s1, %s217
      %p219 = pneg %p84
      %p220 = pneg %p81
      %s221 = smul.u32 2, %s20
      %p222 = scmp.lt.s32.totalorder %s221, 1
      %s223 = scalar_select %p222, %s221, 1
      %s224 = scalar_lea.vmem %s2, %s223
      %p225 = pneg %p110
      %p226 = pneg %p107
      %p227 = pneg %p138
      %p228 = pneg %p135
      %s229 = smul.u32 8, %s19
      %s230 = smul.u32 2, %s20
      %p231 = scmp.lt.s32.totalorder %s229, 15
      %s232 = scalar_select %p231, %s229, 15
      %p233 = scmp.lt.s32.totalorder %s230, 1
      %s234 = scalar_select %p233, %s230, 1
      %s235 = smul.addr %s232, 2
      %s236 = sadd.s32 %s234, %s235
      %s237 = smul.addr %s236, 4
      %s238 = scalar_lea.vmem %s3, %s237
      %s239 = smul.u32 8, %s19
      %p240 = scmp.lt.s32.totalorder %s239, 15
      %s241 = scalar_select %p240, %s239, 15
      %p242 = scmp.lt.s32.totalorder %s21, 0
      %s243 = scalar_select %p242, %s21, 0
      %s244 = sadd.s32 %s243, %s241
      %s245 = smul.addr %s244, 4
      %s246 = scalar_lea.vmem %s0, %s245
      %s247 = smul.u32 8, %s19
      %s248 = smul.u32 16, %s21
      %s249 = smul.u32 2, %s20
      %p250 = scmp.lt.s32.totalorder %s248, 15
      %s251 = scalar_select %p250, %s248, 15
      %p252 = scmp.lt.s32.totalorder %s249, 1
      %s253 = scalar_select %p252, %s249, 1
      %s254 = smul.addr %s251, 2
      %s255 = sadd.s32 %s253, %s254
      %s256 = smul.addr %s255, 4
      %s257 = scalar_lea.vmem %s1, %s256
      %s258 = smul.u32 16, %s21
      %s259 = smul.u32 2, %s20
      %s260 = smul.u32 2, %s20
      %p261 = scmp.lt.s32.totalorder %s260, 1
      %s262 = scalar_select %p261, %s260, 1
      %s263 = scalar_lea.vmem %s2, %s262
      %s264 = smul.u32 2, %s20
      %s265 = smul.u32 8, %s19
      %s266 = smul.u32 2, %s20
      %p267 = scmp.lt.s32.totalorder %s265, 15
      %s268 = scalar_select %p267, %s265, 15
      %p269 = scmp.lt.s32.totalorder %s266, 1
      %s270 = scalar_select %p269, %s266, 1
      %s271 = smul.addr %s268, 2
      %s272 = sadd.s32 %s270, %s271
      %s273 = smul.addr %s272, 4
      %s274 = scalar_lea.vmem %s3, %s273
      %s275 = smul.u32 8, %s19
      %s276 = smul.u32 2, %s20
      %v278 = vld [vmem:[%s246] sm:$0xf]
      %v279 = vld [vmem:[%s246 + $0x4] sm:$0xf]
      %v280 = vld [vmem:[%s246 + $0x8] sm:$0xf]
      %v281 = vld [vmem:[%s246 + $0xc] sm:$0xf]
      %v282 = vld [vmem:[%s246 + $0x10] sm:$0xf]
      %v283 = vld [vmem:[%s246 + $0x14] sm:$0xf]
      %v284 = vld [vmem:[%s246 + $0x18] sm:$0xf]
      %v285 = vld [vmem:[%s246 + $0x1c] sm:$0xf]
      %v286 = vld [vmem:[%s257] sm:$0xff]
      %v287 = vld [vmem:[%s257 + $0x8] sm:$0xff]
      %v288 = vld [vmem:[%s257 + $0x10] sm:$0xff]
      %v289 = vld [vmem:[%s257 + $0x18] sm:$0xff]
      %v290 = vld [vmem:[%s257 + $0x20] sm:$0xff]
      %v291 = vld [vmem:[%s257 + $0x28] sm:$0xff]
      %v292 = vld [vmem:[%s257 + $0x30] sm:$0xff]
      %v293 = vld [vmem:[%s257 + $0x38] sm:$0xff]
      %v294 = vld [vmem:[%s257 + $0x40] sm:$0xff]
      %v295 = vld [vmem:[%s257 + $0x48] sm:$0xff]
      %v296 = vld [vmem:[%s257 + $0x50] sm:$0xff]
      %v297 = vld [vmem:[%s257 + $0x58] sm:$0xff]
      %v298 = vld [vmem:[%s257 + $0x60] sm:$0xff]
      %v299 = vld [vmem:[%s257 + $0x68] sm:$0xff]
      %v300 = vld [vmem:[%s257 + $0x70] sm:$0xff]
      %v301 = vld [vmem:[%s257 + $0x78] sm:$0xff]
      %v302 = vld [vmem:[%s263] sm:$0x3]
      %v304 = vlaneseq
      %v305 = vshrl.u32 %v304, 7
      %v306 = vsub.s32 0, %v305
      %v307 = vrot.slane %v302, %v306
      %v308 = vlaneseq
      %v309 = vshrl.u32 %v308, 7
      %v310 = vsub.s32 1, %v309
      %v311 = vrot.slane %v302, %v310
      %v322 = vunpack.c.l.b16 %v278
      %v323 = vunpack.c.l.b16 %v279
      %v324 = vunpack.c.l.b16 %v280
      %v325 = vunpack.c.l.b16 %v281
      %v326 = vunpack.c.l.b16 %v282
      %v327 = vunpack.c.l.b16 %v283
      %v328 = vunpack.c.l.b16 %v284
      %v329 = vunpack.c.l.b16 %v285
      %v330 = vpack.c.b16 %v323, %v322
      %v331 = vpack.c.b16 %v325, %v324
      %v332 = vpack.c.b16 %v327, %v326
      %v333 = vpack.c.b16 %v329, %v328
      %v354 = vunpack.c.l.b16 %v286
      %v355 = vunpack.c.h.b16 %v286
      %v356 = vunpack.c.l.b16 %v287
      %v357 = vunpack.c.h.b16 %v287
      %v358 = vunpack.c.l.b16 %v288
      %v359 = vunpack.c.h.b16 %v288
      %v360 = vunpack.c.l.b16 %v289
      %v361 = vunpack.c.h.b16 %v289
      %v362 = vunpack.c.l.b16 %v290
      %v363 = vunpack.c.h.b16 %v290
      %v364 = vunpack.c.l.b16 %v291
      %v365 = vunpack.c.h.b16 %v291
      %v366 = vunpack.c.l.b16 %v292
      %v367 = vunpack.c.h.b16 %v292
      %v368 = vunpack.c.l.b16 %v293
      %v369 = vunpack.c.h.b16 %v293
      %v370 = vunpack.c.l.b16 %v294
      %v371 = vunpack.c.h.b16 %v294
      %v372 = vunpack.c.l.b16 %v295
      %v373 = vunpack.c.h.b16 %v295
      %v374 = vunpack.c.l.b16 %v296
      %v375 = vunpack.c.h.b16 %v296
      %v376 = vunpack.c.l.b16 %v297
      %v377 = vunpack.c.h.b16 %v297
      %v378 = vunpack.c.l.b16 %v298
      %v379 = vunpack.c.h.b16 %v298
      %v380 = vunpack.c.l.b16 %v299
      %v381 = vunpack.c.h.b16 %v299
      %v382 = vunpack.c.l.b16 %v300
      %v383 = vunpack.c.h.b16 %v300
      %v384 = vunpack.c.l.b16 %v301
      %v385 = vunpack.c.h.b16 %v301
      %v386 = vpack.c.b16 %v356, %v354
      %v387 = vpack.c.b16 %v357, %v355
      %v388 = vpack.c.b16 %v360, %v358
      %v389 = vpack.c.b16 %v361, %v359
      %v390 = vpack.c.b16 %v364, %v362
      %v391 = vpack.c.b16 %v365, %v363
      %v392 = vpack.c.b16 %v368, %v366
      %v393 = vpack.c.b16 %v369, %v367
      %v394 = vpack.c.b16 %v372, %v370
      %v395 = vpack.c.b16 %v373, %v371
      %v396 = vpack.c.b16 %v376, %v374
      %v397 = vpack.c.b16 %v377, %v375
      %v398 = vpack.c.b16 %v380, %v378
      %v399 = vpack.c.b16 %v381, %v379
      %v400 = vpack.c.b16 %v384, %v382
      %v401 = vpack.c.b16 %v385, %v383
      %418 = vmatprep.subr.bf16.mxu0 %v387
      %419 = vmatpush1.bf16.msra.mxu0 %v386
      %420 = vmatprep.subr.bf16.mxu0 %v389
      %421 = vmatpush1.bf16.msra.mxu0 %v388
      %422 = vmatprep.subr.bf16.mxu0 %v391
      %423 = vmatpush1.bf16.msra.mxu0 %v390
      %424 = vmatprep.subr.bf16.mxu0 %v393
      %425 = vmatpush1.bf16.msra.mxu0 %v392
      %426 = vmatprep.subr.bf16.mxu0 %v395
      %427 = vmatpush1.bf16.msra.mxu0 %v394
      %428 = vmatprep.subr.bf16.mxu0 %v397
      %429 = vmatpush1.bf16.msra.mxu0 %v396
      %430 = vmatprep.subr.bf16.mxu0 %v399
      %431 = vmatpush1.bf16.msra.mxu0 %v398
      %432 = vmatprep.subr.bf16.mxu0 %v401
      %433 = vmatpush1.bf16.msra.mxu0 %v400
      %434 = vmatprep.subr.bf16.mxu0 0
      %435 = vmatpush1.bf16.msra.mxu0 0
      %436 = vmatprep.subr.bf16.mxu0 0
      %437 = vmatpush1.bf16.msra.mxu0 0
      %438 = vmatprep.subr.bf16.mxu0 0
      %439 = vmatpush1.bf16.msra.mxu0 0
      %440 = vmatprep.subr.bf16.mxu0 0
      %441 = vmatpush1.bf16.msra.mxu0 0
      %442 = vmatprep.subr.bf16.mxu0 0
      %443 = vmatpush1.bf16.msra.mxu0 0
      %444 = vmatprep.subr.bf16.mxu0 0
      %445 = vmatpush1.bf16.msra.mxu0 0
      %446 = vmatprep.subr.bf16.mxu0 0
      %447 = vmatpush1.bf16.msra.mxu0 0
      %448 = vmatprep.subr.bf16.mxu0 0
      %449 = vmatpush1.bf16.msra.mxu0 0
      %450 = vmatprep.mubr.bf16.mxu0 0
      %451 = vmatmul.mubr.bf16.gmra.mrb[0].mxu0 %v330
      %v452 = vpop.f32.mrb[0].mxu0
      %v453 = vadd.f32 %v307, %v452
      %v454 = vpop.f32.mrb[0].mxu0
      %v455 = vadd.f32 %v311, %v454
      %v456 = vpop.f32.mrb[0].mxu0
      %v457 = vadd.f32 %v307, %v456
      %v458 = vpop.f32.mrb[0].mxu0
      %v459 = vadd.f32 %v311, %v458
      %460 = vmatprep.mubr.bf16.mxu0 0
      %461 = vmatmul.mubr.bf16.gmra.mrb[0].mxu0 %v331
      %v462 = vpop.f32.mrb[0].mxu0
      %v463 = vadd.f32 %v307, %v462
      %v464 = vpop.f32.mrb[0].mxu0
      %v465 = vadd.f32 %v311, %v464
      %v466 = vpop.f32.mrb[0].mxu0
      %v467 = vadd.f32 %v307, %v466
      %v468 = vpop.f32.mrb[0].mxu0
      %v469 = vadd.f32 %v311, %v468
      %470 = vmatprep.mubr.bf16.mxu0 0
      %471 = vmatmul.mubr.bf16.gmra.mrb[0].mxu0 %v332
      %v472 = vpop.f32.mrb[0].mxu0
      %v473 = vadd.f32 %v307, %v472
      %v474 = vpop.f32.mrb[0].mxu0
      %v475 = vadd.f32 %v311, %v474
      %v476 = vpop.f32.mrb[0].mxu0
      %v477 = vadd.f32 %v307, %v476
      %v478 = vpop.f32.mrb[0].mxu0
      %v479 = vadd.f32 %v311, %v478
      %480 = vmatprep.mubr.bf16.mxu0 0
      %481 = vmatmul.mubr.bf16.gmra.mrb[0].mxu0 %v333
      %v482 = vpop.f32.mrb[0].mxu0
      %v483 = vadd.f32 %v307, %v482
      %v484 = vpop.f32.mrb[0].mxu0
      %v485 = vadd.f32 %v311, %v484
      %v486 = vpop.f32.mrb[0].mxu0
      %v487 = vadd.f32 %v307, %v486
      %v488 = vpop.f32.mrb[0].mxu0
      %v489 = vadd.f32 %v311, %v488
      %490 = vdwg.mxu0
      %v491 = vpack.c.bf16 %v457, %v453
      %v492 = vpack.c.bf16 %v459, %v455
      %v493 = vpack.c.bf16 %v467, %v463
      %v494 = vpack.c.bf16 %v469, %v465
      %v495 = vpack.c.bf16 %v477, %v473
      %v496 = vpack.c.bf16 %v479, %v475
      %v497 = vpack.c.bf16 %v487, %v483
      %v498 = vpack.c.bf16 %v489, %v485
      %v507 = vunpack.c.l.b16 %v491
      %v508 = vunpack.c.l.b16 %v492
      %v509 = vunpack.c.h.b16 %v491
      %v510 = vunpack.c.h.b16 %v492
      %v511 = vunpack.c.l.b16 %v493
      %v512 = vunpack.c.l.b16 %v494
      %v513 = vunpack.c.h.b16 %v493
      %v514 = vunpack.c.h.b16 %v494
      %v515 = vunpack.c.l.b16 %v495
      %v516 = vunpack.c.l.b16 %v496
      %v517 = vunpack.c.h.b16 %v495
      %v518 = vunpack.c.h.b16 %v496
      %v519 = vunpack.c.l.b16 %v497
      %v520 = vunpack.c.l.b16 %v498
      %v521 = vunpack.c.h.b16 %v497
      %v522 = vunpack.c.h.b16 %v498
      %v523 = vpack.c.b16 %v508, %v507
      %v524 = vpack.c.b16 %v510, %v509
      %v525 = vpack.c.b16 %v512, %v511
      %v526 = vpack.c.b16 %v514, %v513
      %v527 = vpack.c.b16 %v516, %v515
      %v528 = vpack.c.b16 %v518, %v517
      %v529 = vpack.c.b16 %v520, %v519
      %v530 = vpack.c.b16 %v522, %v521
      %539 = vst [vmem:[%s274] sm:$0xff] %v523
      %540 = vst [vmem:[%s274 + $0x8] sm:$0xff] %v524
      %541 = vst [vmem:[%s274 + $0x10] sm:$0xff] %v525
      %542 = vst [vmem:[%s274 + $0x18] sm:$0xff] %v526
      %543 = vst [vmem:[%s274 + $0x20] sm:$0xff] %v527
      %544 = vst [vmem:[%s274 + $0x28] sm:$0xff] %v528
      %545 = vst [vmem:[%s274 + $0x30] sm:$0xff] %v529
      %546 = vst [vmem:[%s274 + $0x38] sm:$0xff] %v530
      %s547 = smul.u32 8, %s19
      %s548 = smul.u32 2, %s20
      %p549 = scmp.lt.s32.totalorder %s547, 15
      %s550 = scalar_select %p549, %s547, 15
      %p551 = scmp.lt.s32.totalorder %s548, 1
      %s552 = scalar_select %p551, %s548, 1
      %s553 = smul.addr %s550, 2
      %s554 = sadd.s32 %s552, %s553
      %s555 = smul.addr %s554, 4
      %s556 = scalar_lea.vmem %s3, %s555
      // Predicated region
      $region33: #{resnet_forward.27} parent=31 // pred_check
        %p557 = pneg %p135
      $region34: #{resnet_forward.27} parent=31 // pred_check_branch
        %559 = sbr.rel (%p557) target = $region36
      $region35: #{resnet_forward.27} parent=31 // pred_region
        %s560 = smul.u32 8, %s19
        %s561 = smul.u32 2, %s20
      $region36: #{resnet_forward.27} parent=31 // pred_fallthru
        _
    $region32: #{resnet_forward.27} parent=5 // pred_fallthru
      _
    %p562 = scmp.le.s32.totalorder 2, %s9
    // Predicated region
    $region37: #{resnet_forward.27} parent=5 // pred_check
      %p563 = pneg %p562
    $region38: #{resnet_forward.27} parent=5 // pred_check_branch
      %565 = sbr.rel (%p563) target = $region40
    $region39: #{resnet_forward.27} parent=5 // pred_region
      %s566 = ssub.s32 %s9, 2
      // Predicated region
      $region41: #{resnet_forward.27} parent=39 // pred_check
        %p567 = pneg %p141
      $region42: #{resnet_forward.27} parent=39 // pred_check_branch
        %569 = sbr.rel (%p567) target = $region44
      $region43: #{resnet_forward.27} parent=39 // pred_region
        %s570 = smul.u32 8, %s22
        %s571 = smul.u32 2, %s23
        %p572 = scmp.lt.s32.totalorder %s570, 15
        %s573 = scalar_select %p572, %s570, 15
        %p574 = scmp.lt.s32.totalorder %s571, 1
        %s575 = scalar_select %p574, %s571, 1
        %s576 = smul.addr %s573, 2
        %s577 = sadd.s32 %s575, %s576
        %s578 = smul.addr %s577, 4
        %s579 = scalar_lea.vmem %s3, %s578
      $region44: #{resnet_forward.27} parent=39 // pred_fallthru
        _
    $region40: #{resnet_forward.27} parent=5 // pred_fallthru
      _
  $region6: #{resnet_forward.27} parent=0 // loop_footer
    %s13 = sadd.s32 1, %s9
  $region7: #{resnet_forward.27} parent=0 // loop_footer_branch
    %8 = sbr.rel target = $region3
  $region8: #{resnet_forward.27} parent=0 // loop_exit
    _

// kernel: resnet_forward.38
$region0: #{resnet_forward.38}
  #allocation0 [shape = 'u32[]', space=smem, size = 0x4, offset = 0x4, fixed_abs, tag = 'smem constant byte address 0x4 - core index']
  #allocation1 [shape = 'u32[144,128]{1,0:T(1,128)}', space=vmem, size = 0x12000, scoped, tag = 'internal scratch']
  %s0 = inlined_call_operand.vmem [shape: bf16[128,256], index: 0, kind: input, shape index: {}]
  %s1 = inlined_call_operand.vmem [shape: bf16[256,128], index: 1, kind: input, shape index: {}]
  %s2 = inlined_call_operand.vmem [shape: f32[1,128], index: 2, kind: input, shape index: {}]
  %s3 = inlined_call_operand.vmem [shape: bf16[128,128], index: 3, kind: output, shape index: {}]
  %s4 = sld [smem:[#allocation0]]
  $region45: #{resnet_forward.38} parent=0
    _
  %s6 = ssub.s32 1, %s4
  %s7 = scalar_select 0, %s6, %s4
  loop: start=0, step=1, limit=4
  $region2: #{resnet_forward.38} parent=0 // loop_pre_header
    _
  $region3: #{resnet_forward.38} parent=0 // loop_header
    %s9 = sphi 0, %s13
    %p10 = scmp.ge.s32.totalorder %s9, 4
    %s16 = sphi 0, %s35
    %s17 = sphi 0, %s31
    %s18 = sphi 0, %s27
    %s19 = sphi 0, %s16
    %s20 = sphi 0, %s17
    %s21 = sphi 0, %s18
    %s22 = sphi 0, %s19
    %s23 = sphi 0, %s20
    %s24 = sphi 0, %s21
    %s40 = sphi 0, %s42
    %s43 = sphi 0, %s40
    %s44 = sphi 0, %s43
    %s60 = sphi 0, %s44
    %s68 = sphi 0, %s70
    %s71 = sphi 0, %s68
    %s72 = sphi 0, %s71
    %s88 = sphi 0, %s72
    %s94 = sphi 0, %s96
    %s97 = sphi 0, %s94
    %s98 = sphi 0, %s97
    %s114 = sphi 0, %s98
    %s122 = sphi 0, %s124
    %s125 = sphi 0, %s122
    %s126 = sphi 0, %s125
    %s142 = sphi 0, %s126
  $region4: #{resnet_forward.38} parent=0 // loop_header_branch
    %12 = sbr.rel (%p10) target = $region8
  $region5: #{resnet_forward.38} parent=0 // loop_body
    %s14 = ssub.s32 %s9, 1
    %s15 = ssub.s32 %s9, 2
    %s25 = sadd.s32 1, %s18
    %p26 = scmp.ge.s32.totalorder %s25, 1
    %s27 = scalar_select %p26, 0, %s25
    %s28 = sadd.s32 1, %s17
    %s29 = scalar_select %p26, %s28, %s17
    %p30 = scmp.ge.s32.totalorder %s29, 1
    %s31 = scalar_select %p30, 0, %s29
    %s32 = sadd.s32 1, %s16
    %s33 = scalar_select %p30, %s32, %s16
    %p34 = scmp.ge.s32.totalorder %s33, 2
    %s35 = scalar_select %p34, 0, %s33
    %s36 = ssub.s32 %s16, %s35
    %s37 = ssub.s32 %s18, %s27
    %s38 = sor.u32 %s36, %s37
    %p39 = scmp.eq.s32.totalorder %s38, 0
    %s41 = sadd.s32 %s40, 1
    %s42 = scalar_select %p39, %s40, %s41
    %p45 = pneg %p39
    %p46 = scmp.eq.s32.totalorder %s9, 1
    %p47 = por %p45, %p46
    %p48 = scmp.ne.s32.totalorder %s40, %s43
    %p49 = scmp.eq.s32.totalorder %s9, 0
    %p50 = por %p48, %p49
    %p51 = scmp.ne.s32.totalorder %s40, %s43
    %p52 = scmp.eq.s32.totalorder %s14, 1
    %p53 = por %p51, %p52
    %p54 = scmp.ne.s32.totalorder %s43, %s44
    %p55 = scmp.eq.s32.totalorder %s14, 0
    %p56 = por %p54, %p55
    %p57 = scmp.ne.s32.totalorder %s43, %s44
    %p58 = scmp.eq.s32.totalorder %s15, 1
    %p59 = por %p57, %p58
    %p61 = scmp.ne.s32.totalorder %s44, %s60
    %p62 = scmp.eq.s32.totalorder %s15, 0
    %p63 = por %p61, %p62
    %s64 = ssub.s32 %s18, %s27
    %s65 = ssub.s32 %s17, %s31
    %s66 = sor.u32 %s64, %s65
    %p67 = scmp.eq.s32.totalorder %s66, 0
    %s69 = sadd.s32 %s68, 1
    %s70 = scalar_select %p67, %s68, %s69
    %p73 = pneg %p67
    %p74 = scmp.eq.s32.totalorder %s9, 1
    %p75 = por %p73, %p74
    %p76 = scmp.ne.s32.totalorder %s68, %s71
    %p77 = scmp.eq.s32.totalorder %s9, 0
    %p78 = por %p76, %p77
    %p79 = scmp.ne.s32.totalorder %s68, %s71
    %p80 = scmp.eq.s32.totalorder %s14, 1
    %p81 = por %p79, %p80
    %p82 = scmp.ne.s32.totalorder %s71, %s72
    %p83 = scmp.eq.s32.totalorder %s14, 0
    %p84 = por %p82, %p83
    %p85 = scmp.ne.s32.totalorder %s71, %s72
    %p86 = scmp.eq.s32.totalorder %s15, 1
    %p87 = por %p85, %p86
    %p89 = scmp.ne.s32.totalorder %s72, %s88
    %p90 = scmp.eq.s32.totalorder %s15, 0
    %p91 = por %p89, %p90
    %s92 = ssub.s32 %s17, %s31
    %p93 = scmp.eq.s32.totalorder %s92, 0
    %s95 = sadd.s32 %s94, 1
    %s96 = scalar_select %p93, %s94, %s95
    %p99 = pneg %p93
    %p100 = scmp.eq.s32.totalorder %s9, 1
    %p101 = por %p99, %p100
    %p102 = scmp.ne.s32.totalorder %s94, %s97
    %p103 = scmp.eq.s32.totalorder %s9, 0
    %p104 = por %p102, %p103
    %p105 = scmp.ne.s32.totalorder %s94, %s97
    %p106 = scmp.eq.s32.totalorder %s14, 1
    %p107 = por %p105, %p106
    %p108 = scmp.ne.s32.totalorder %s97, %s98
    %p109 = scmp.eq.s32.totalorder %s14, 0
    %p110 = por %p108, %p109
    %p111 = scmp.ne.s32.totalorder %s97, %s98
    %p112 = scmp.eq.s32.totalorder %s15, 1
    %p113 = por %p111, %p112
    %p115 = scmp.ne.s32.totalorder %s98, %s114
    %p116 = scmp.eq.s32.totalorder %s15, 0
    %p117 = por %p115, %p116
    %s118 = ssub.s32 %s16, %s35
    %s119 = ssub.s32 %s17, %s31
    %s120 = sor.u32 %s118, %s119
    %p121 = scmp.eq.s32.totalorder %s120, 0
    %s123 = sadd.s32 %s122, 1
    %s124 = scalar_select %p121, %s122, %s123
    %p127 = pneg %p121
    %p128 = scmp.eq.s32.totalorder %s9, 1
    %p129 = por %p127, %p128
    %p130 = scmp.ne.s32.totalorder %s122, %s125
    %p131 = scmp.eq.s32.totalorder %s9, 0
    %p132 = por %p130, %p131
    %p133 = scmp.ne.s32.totalorder %s122, %s125
    %p134 = scmp.eq.s32.totalorder %s14, 1
    %p135 = por %p133, %p134
    %p136 = scmp.ne.s32.totalorder %s125, %s126
    %p137 = scmp.eq.s32.totalorder %s14, 0
    %p138 = por %p136, %p137
    %p139 = scmp.ne.s32.totalorder %s125, %s126
    %p140 = scmp.eq.s32.totalorder %s15, 1
    %p141 = por %p139, %p140
    %p143 = scmp.ne.s32.totalorder %s126, %s142
    %p144 = scmp.eq.s32.totalorder %s15, 0
    %p145 = por %p143, %p144
    %p146 = scmp.le.s32.totalorder 1, %s9
    %p147 = scmp.lt.s32.totalorder %s9, 3
    %p148 = pnand %p146, %p147
    %p149 = pneg %p148
    // Predicated region
    $region9: #{resnet_forward.38} parent=5 // pred_check
      _
    $region10: #{resnet_forward.38} parent=5 // pred_check_branch
      %151 = sbr.rel (%p148) target = $region12
    $region11: #{resnet_forward.38} parent=5 // pred_region
      %s152 = ssub.s32 %s9, 1
      // Predicated region
      $region13: #{resnet_forward.38} parent=11 // pred_check
        %p153 = pneg %p84
      $region14: #{resnet_forward.38} parent=11 // pred_check_branch
        %155 = sbr.rel (%p153) target = $region16
      $region15: #{resnet_forward.38} parent=11 // pred_region
        %s156 = smul.u32 32, %s21
        %p157 = scmp.lt.s32.totalorder %s156, 31
        %s158 = scalar_select %p157, %s156, 31
        %p159 = scmp.lt.s32.totalorder %s20, 0
        %s160 = scalar_select %p159, %s20, 0
        %s161 = sadd.s32 %s160, %s158
        %s162 = smul.addr %s161, 4
        %s163 = scalar_lea.vmem %s1, %s162
        %s164 = smul.u32 32, %s21
      $region16: #{resnet_forward.38} parent=11 // pred_fallthru
        _
      // Predicated region
      $region17: #{resnet_forward.38} parent=11 // pred_check
        %p165 = pneg %p110
      $region18: #{resnet_forward.38} parent=11 // pred_check_branch
        %167 = sbr.rel (%p165) target = $region20
      $region19: #{resnet_forward.38} parent=11 // pred_region
        %p168 = scmp.lt.s32.totalorder %s20, 0
        %s169 = scalar_select %p168, %s20, 0
        %s170 = scalar_lea.vmem %s2, %s169
      $region20: #{resnet_forward.38} parent=11 // pred_fallthru
        _
    $region12: #{resnet_forward.38} parent=5 // pred_fallthru
      _
    %p171 = scmp.lt.s32.totalorder %s9, 2
    // Predicated region
    $region21: #{resnet_forward.38} parent=5 // pred_check
      %p172 = pneg %p171
    $region22: #{resnet_forward.38} parent=5 // pred_check_branch
      %174 = sbr.rel (%p172) target = $region24
    $region23: #{resnet_forward.38} parent=5 // pred_region
      // Predicated region
      $region25: #{resnet_forward.38} parent=23 // pred_check
        %p175 = pneg %p50
      $region26: #{resnet_forward.38} parent=23 // pred_check_branch
        %177 = sbr.rel (%p175) target = $region28
      $region27: #{resnet_forward.38} parent=23 // pred_region
        %s178 = smul.u32 8, %s16
        %s179 = smul.u32 2, %s18
        %p180 = scmp.lt.s32.totalorder %s178, 15
        %s181 = scalar_select %p180, %s178, 15
        %p182 = scmp.lt.s32.totalorder %s179, 1
        %s183 = scalar_select %p182, %s179, 1
        %s184 = smul.addr %s181, 2
        %s185 = sadd.s32 %s183, %s184
        %s186 = smul.addr %s185, 4
        %s187 = scalar_lea.vmem %s0, %s186
        %s188 = smul.u32 8, %s16
        %s189 = smul.u32 2, %s18
      $region28: #{resnet_forward.38} parent=23 // pred_fallthru
        _
    $region24: #{resnet_forward.38} parent=5 // pred_fallthru
      _
    %p190 = scmp.le.s32.totalorder 1, %s9
    %p191 = scmp.lt.s32.totalorder %s9, 3
    %p192 = pnand %p190, %p191
    %p193 = pneg %p192
    // Predicated region
    $region29: #{resnet_forward.38} parent=5 // pred_check
      _
    $region30: #{resnet_forward.38} parent=5 // pred_check_branch
      %195 = sbr.rel (%p192) target = $region32
    $region31: #{resnet_forward.38} parent=5 // pred_region
      %s196 = ssub.s32 %s9, 1
      %s197 = smul.u32 8, %s19
      %s198 = smul.u32 2, %s21
      %p199 = scmp.lt.s32.totalorder %s197, 15
      %s200 = scalar_select %p199, %s197, 15
      %p201 = scmp.lt.s32.totalorder %s198, 1
      %s202 = scalar_select %p201, %s198, 1
      %s203 = smul.addr %s200, 2
      %s204 = sadd.s32 %s202, %s203
      %s205 = smul.addr %s204, 4
      %s206 = scalar_lea.vmem %s0, %s205
      %p207 = pneg %p56
      %p208 = pneg %p53
      %s209 = smul.u32 32, %s21
      %p210 = scmp.lt.s32.totalorder %s209, 31
      %s211 = scalar_select %p210, %s209, 31
      %p212 = scmp.lt.s32.totalorder %s20, 0
      %s213 = scalar_select %p212, %s20, 0
      %s214 = sadd.s32 %s213, %s211
      %s215 = smul.addr %s214, 4
      %s216 = scalar_lea.vmem %s1, %s215
      %p217 = pneg %p84
      %p218 = pneg %p81
      %p219 = scmp.lt.s32.totalorder %s20, 0
      %s220 = scalar_select %p219, %s20, 0
      %s221 = scalar_lea.vmem %s2, %s220
      %p222 = pneg %p110
      %p223 = pneg %p107
      %p224 = pneg %p138
      %p225 = pneg %p135
      %s226 = smul.u32 8, %s19
      %p227 = scmp.lt.s32.totalorder %s226, 15
      %s228 = scalar_select %p227, %s226, 15
      %p229 = scmp.lt.s32.totalorder %s20, 0
      %s230 = scalar_select %p229, %s20, 0
      %s231 = sadd.s32 %s230, %s228
      %s232 = smul.addr %s231, 4
      %s233 = scalar_lea.vmem %s3, %s232
      %s234 = smul.u32 8, %s19
      %s235 = smul.u32 2, %s21
      %p236 = scmp.lt.s32.totalorder %s234, 15
      %s237 = scalar_select %p236, %s234, 15
      %p238 = scmp.lt.s32.totalorder %s235, 1
      %s239 = scalar_select %p238, %s235, 1
      %s240 = smul.addr %s237, 2
      %s241 = sadd.s32 %s239, %s240
      %s242 = smul.addr %s241, 4
      %s243 = scalar_lea.vmem %s0, %s242
      %s244 = smul.u32 8, %s19
      %s245 = smul.u32 2, %s21
      %s246 = smul.u32 32, %s21
      %p247 = scmp.lt.s32.totalorder %s246, 31
      %s248 = scalar_select %p247, %s246, 31
      %p249 = scmp.lt.s32.totalorder %s20, 0
      %s250 = scalar_select %p249, %s20, 0
      %s251 = sadd.s32 %s250, %s248
      %s252 = smul.addr %s251, 4
      %s253 = scalar_lea.vmem %s1, %s252
      %s254 = smul.u32 32, %s21
      %p255 = scmp.lt.s32.totalorder %s20, 0
      %s256 = scalar_select %p255, %s20, 0
      %s257 = scalar_lea.vmem %s2, %s256
      %s258 = smul.u32 8, %s19
      %p259 = scmp.lt.s32.totalorder %s258, 15
      %s260 = scalar_select %p259, %s258, 15
      %p261 = scmp.lt.s32.totalorder %s20, 0
      %s262 = scalar_select %p261, %s20, 0
      %s263 = sadd.s32 %s262, %s260
      %s264 = smul.addr %s263, 4
      %s265 = scalar_lea.vmem %s3, %s264
      %s266 = smul.u32 8, %s19
      %v268 = vld [vmem:[%s243] sm:$0xff]
      %v269 = vld [vmem:[%s243 + $0x8] sm:$0xff]
      %v270 = vld [vmem:[%s243 + $0x10] sm:$0xff]
      %v271 = vld [vmem:[%s243 + $0x18] sm:$0xff]
      %v272 = vld [vmem:[%s243 + $0x20] sm:$0xff]
      %v273 = vld [vmem:[%s243 + $0x28] sm:$0xff]
      %v274 = vld [vmem:[%s243 + $0x30] sm:$0xff]
      %v275 = vld [vmem:[%s243 + $0x38] sm:$0xff]
      %v276 = vld [vmem:[%s253] sm:$0xf]
      %v277 = vld [vmem:[%s253 + $0x4] sm:$0xf]
      %v278 = vld [vmem:[%s253 + $0x8] sm:$0xf]
      %v279 = vld [vmem:[%s253 + $0xc] sm:$0xf]
      %v280 = vld [vmem:[%s253 + $0x10] sm:$0xf]
      %v281 = vld [vmem:[%s253 + $0x14] sm:$0xf]
      %v282 = vld [vmem:[%s253 + $0x18] sm:$0xf]
      %v283 = vld [vmem:[%s253 + $0x1c] sm:$0xf]
      %v284 = vld [vmem:[%s253 + $0x20] sm:$0xf]
      %v285 = vld [vmem:[%s253 + $0x24] sm:$0xf]
      %v286 = vld [vmem:[%s253 + $0x28] sm:$0xf]
      %v287 = vld [vmem:[%s253 + $0x2c] sm:$0xf]
      %v288 = vld [vmem:[%s253 + $0x30] sm:$0xf]
      %v289 = vld [vmem:[%s253 + $0x34] sm:$0xf]
      %v290 = vld [vmem:[%s253 + $0x38] sm:$0xf]
      %v291 = vld [vmem:[%s253 + $0x3c] sm:$0xf]
      %v292 = vld [vmem:[%s253 + $0x40] sm:$0xf]
      %v293 = vld [vmem:[%s253 + $0x44] sm:$0xf]
      %v294 = vld [vmem:[%s253 + $0x48] sm:$0xf]
      %v295 = vld [vmem:[%s253 + $0x4c] sm:$0xf]
      %v296 = vld [vmem:[%s253 + $0x50] sm:$0xf]
      %v297 = vld [vmem:[%s253 + $0x54] sm:$0xf]
      %v298 = vld [vmem:[%s253 + $0x58] sm:$0xf]
      %v299 = vld [vmem:[%s253 + $0x5c] sm:$0xf]
      %v300 = vld [vmem:[%s253 + $0x60] sm:$0xf]
      %v301 = vld [vmem:[%s253 + $0x64] sm:$0xf]
      %v302 = vld [vmem:[%s253 + $0x68] sm:$0xf]
      %v303 = vld [vmem:[%s253 + $0x6c] sm:$0xf]
      %v304 = vld [vmem:[%s253 + $0x70] sm:$0xf]
      %v305 = vld [vmem:[%s253 + $0x74] sm:$0xf]
      %v306 = vld [vmem:[%s253 + $0x78] sm:$0xf]
      %v307 = vld [vmem:[%s253 + $0x7c] sm:$0xf]
      %v308 = vld [vmem:[%s257] sm:$0x1]
      %v310 = vlaneseq
      %v311 = vshrl.u32 %v310, 7
      %v312 = vsub.s32 0, %v311
      %v313 = vrot.slane %v308, %v312
      %v323 = vunpack.c.l.b16 %v268
      %v324 = vunpack.c.h.b16 %v268
      %v325 = vunpack.c.l.b16 %v269
      %v326 = vunpack.c.h.b16 %v269
      %v327 = vunpack.c.l.b16 %v270
      %v328 = vunpack.c.h.b16 %v270
      %v329 = vunpack.c.l.b16 %v271
      %v330 = vunpack.c.h.b16 %v271
      %v331 = vunpack.c.l.b16 %v272
      %v332 = vunpack.c.h.b16 %v272
      %v333 = vunpack.c.l.b16 %v273
      %v334 = vunpack.c.h.b16 %v273
      %v335 = vunpack.c.l.b16 %v274
      %v336 = vunpack.c.h.b16 %v274
      %v337 = vunpack.c.l.b16 %v275
      %v338 = vunpack.c.h.b16 %v275
      %v339 = vpack.c.b16 %v325, %v323
      %v340 = vpack.c.b16 %v326, %v324
      %v341 = vpack.c.b16 %v329, %v327
      %v342 = vpack.c.b16 %v330, %v328
      %v343 = vpack.c.b16 %v333, %v331
      %v344 = vpack.c.b16 %v334, %v332
      %v345 = vpack.c.b16 %v337, %v335
      %v346 = vpack.c.b16 %v338, %v336
      %v387 = vunpack.c.l.b16 %v276
      %v388 = vunpack.c.l.b16 %v277
      %v389 = vunpack.c.l.b16 %v278
      %v390 = vunpack.c.l.b16 %v279
      %v391 = vunpack.c.l.b16 %v280
      %v392 = vunpack.c.l.b16 %v281
      %v393 = vunpack.c.l.b16 %v282
      %v394 = vunpack.c.l.b16 %v283
      %v395 = vunpack.c.l.b16 %v284
      %v396 = vunpack.c.l.b16 %v285
      %v397 = vunpack.c.l.b16 %v286
      %v398 = vunpack.c.l.b16 %v287
      %v399 = vunpack.c.l.b16 %v288
      %v400 = vunpack.c.l.b16 %v289
      %v401 = vunpack.c.l.b16 %v290
      %v402 = vunpack.c.l.b16 %v291
      %v403 = vunpack.c.l.b16 %v292
      %v404 = vunpack.c.l.b16 %v293
      %v405 = vunpack.c.l.b16 %v294
      %v406 = vunpack.c.l.b16 %v295
      %v407 = vunpack.c.l.b16 %v296
      %v408 = vunpack.c.l.b16 %v297
      %v409 = vunpack.c.l.b16 %v298
      %v410 = vunpack.c.l.b16 %v299
      %v411 = vunpack.c.l.b16 %v300
      %v412 = vunpack.c.l.b16 %v301
      %v413 = vunpack.c.l.b16 %v302
      %v414 = vunpack.c.l.b16 %v303
      %v415 = vunpack.c.l.b16 %v304
      %v416 = vunpack.c.l.b16 %v305
      %v417 = vunpack.c.l.b16 %v306
      %v418 = vunpack.c.l.b16 %v307
      %v419 = vpack.c.b16 %v388, %v387
      %v420 = vpack.c.b16 %v390, %v389
      %v421 = vpack.c.b16 %v392, %v391
      %v422 = vpack.c.b16 %v394, %v393
      %v423 = vpack.c.b16 %v396, %v395
      %v424 = vpack.c.b16 %v398, %v397
      %v425 = vpack.c.b16 %v400, %v399
      %v426 = vpack.c.b16 %v402, %v401
      %v427 = vpack.c.b16 %v404, %v403
      %v428 = vpack.c.b16 %v406, %v405
      %v429 = vpack.c.b16 %v408, %v407
      %v430 = vpack.c.b16 %v410, %v409
      %v431 = vpack.c.b16 %v412, %v411
      %v432 = vpack.c.b16 %v414, %v413
      %v433 = vpack.c.b16 %v416, %v415
      %v434 = vpack.c.b16 %v418, %v417
      %451 = vmatprep.subr.bf16.mxu0 0
      %452 = vmatpush1.bf16.msra.mxu0 %v419
      %453 = vmatprep.subr.bf16.mxu0 0
      %454 = vmatpush1.bf16.msra.mxu0 %v420
      %455 = vmatprep.subr.bf16.mxu0 0
      %456 = vmatpush1.bf16.msra.mxu0 %v421
      %457 = vmatprep.subr.bf16.mxu0 0
      %458 = vmatpush1.bf16.msra.mxu0 %v422
      %459 = vmatprep.subr.bf16.mxu0 0
      %460 = vmatpush1.bf16.msra.mxu0 %v423
      %461 = vmatprep.subr.bf16.mxu0 0
      %462 = vmatpush1.bf16.msra.mxu0 %v424
      %463 = vmatprep.subr.bf16.mxu0 0
      %464 = vmatpush1.bf16.msra.mxu0 %v425
      %465 = vmatprep.subr.bf16.mxu0 0
      %466 = vmatpush1.bf16.msra.mxu0 %v426
      %467 = vmatprep.subr.bf16.mxu0 0
      %468 = vmatpush1.bf16.msra.mxu0 %v427
      %469 = vmatprep.subr.bf16.mxu0 0
      %470 = vmatpush1.bf16.msra.mxu0 %v428
      %471 = vmatprep.subr.bf16.mxu0 0
      %472 = vmatpush1.bf16.msra.mxu0 %v429
      %473 = vmatprep.subr.bf16.mxu0 0
      %474 = vmatpush1.bf16.msra.mxu0 %v430
      %475 = vmatprep.subr.bf16.mxu0 0
      %476 = vmatpush1.bf16.msra.mxu0 %v431
      %477 = vmatprep.subr.bf16.mxu0 0
      %478 = vmatpush1.bf16.msra.mxu0 %v432
      %479 = vmatprep.subr.bf16.mxu0 0
      %480 = vmatpush1.bf16.msra.mxu0 %v433
      %481 = vmatprep.subr.bf16.mxu0 0
      %482 = vmatpush1.bf16.msra.mxu0 %v434
      %483 = vmatprep.mubr.bf16.mxu0 %v340
      %484 = vmatmul.mubr.bf16.gmra.mrb[0].mxu0 %v339
      %v485 = vpop.f32.mrb[0].mxu0
      %v486 = vadd.f32 %v313, %v485
      %v487 = vpop.f32.mrb[0].mxu0
      %v488 = vpop.f32.mrb[0].mxu0
      %v489 = vadd.f32 %v313, %v488
      %v490 = vpop.f32.mrb[0].mxu0
      %491 = vmatprep.mubr.bf16.mxu0 %v342
      %492 = vmatmul.mubr.bf16.gmra.mrb[0].mxu0 %v341
      %v493 = vpop.f32.mrb[0].mxu0
      %v494 = vadd.f32 %v313, %v493
      %v495 = vpop.f32.mrb[0].mxu0
      %v496 = vpop.f32.mrb[0].mxu0
      %v497 = vadd.f32 %v313, %v496
      %v498 = vpop.f32.mrb[0].mxu0
      %499 = vmatprep.mubr.bf16.mxu0 %v344
      %500 = vmatmul.mubr.bf16.gmra.mrb[0].mxu0 %v343
      %v501 = vpop.f32.mrb[0].mxu0
      %v502 = vadd.f32 %v313, %v501
      %v503 = vpop.f32.mrb[0].mxu0
      %v504 = vpop.f32.mrb[0].mxu0
      %v505 = vadd.f32 %v313, %v504
      %v506 = vpop.f32.mrb[0].mxu0
      %507 = vmatprep.mubr.bf16.mxu0 %v346
      %508 = vmatmul.mubr.bf16.gmra.mrb[0].mxu0 %v345
      %v509 = vpop.f32.mrb[0].mxu0
      %v510 = vadd.f32 %v313, %v509
      %v511 = vpop.f32.mrb[0].mxu0
      %v512 = vpop.f32.mrb[0].mxu0
      %v513 = vadd.f32 %v313, %v512
      %v514 = vpop.f32.mrb[0].mxu0
      %515 = vdwg.mxu0
      %v516 = vmax.f32 %v486, 0.0
      %v517 = vmax.f32 %v489, 0.0
      %v518 = vmax.f32 %v494, 0.0
      %v519 = vmax.f32 %v497, 0.0
      %v520 = vmax.f32 %v502, 0.0
      %v521 = vmax.f32 %v505, 0.0
      %v522 = vmax.f32 %v510, 0.0
      %v523 = vmax.f32 %v513, 0.0
      %v524 = vpack.c.bf16 %v517, %v516
      %v525 = vpack.c.bf16 %v519, %v518
      %v526 = vpack.c.bf16 %v521, %v520
      %v527 = vpack.c.bf16 %v523, %v522
      %v532 = vunpack.c.l.b16 %v524
      %v533 = vunpack.c.h.b16 %v524
      %v534 = vunpack.c.l.b16 %v525
      %v535 = vunpack.c.h.b16 %v525
      %v536 = vunpack.c.l.b16 %v526
      %v537 = vunpack.c.h.b16 %v526
      %v538 = vunpack.c.l.b16 %v527
      %v539 = vunpack.c.h.b16 %v527
      %v540 = vpack.c.b16 %v532, %v532
      %v541 = vpack.c.b16 %v533, %v533
      %v542 = vpack.c.b16 %v534, %v534
      %v543 = vpack.c.b16 %v535, %v535
      %v544 = vpack.c.b16 %v536, %v536
      %v545 = vpack.c.b16 %v537, %v537
      %v546 = vpack.c.b16 %v538, %v538
      %v547 = vpack.c.b16 %v539, %v539
      %556 = vst [vmem:[%s265] sm:$0xf] %v540
      %557 = vst [vmem:[%s265 + $0x4] sm:$0xf] %v541
      %558 = vst [vmem:[%s265 + $0x8] sm:$0xf] %v542
      %559 = vst [vmem:[%s265 + $0xc] sm:$0xf] %v543
      %560 = vst [vmem:[%s265 + $0x10] sm:$0xf] %v544
      %561 = vst [vmem:[%s265 + $0x14] sm:$0xf] %v545
      %562 = vst [vmem:[%s265 + $0x18] sm:$0xf] %v546
      %563 = vst [vmem:[%s265 + $0x1c] sm:$0xf] %v547
      %s564 = smul.u32 8, %s19
      %p565 = scmp.lt.s32.totalorder %s564, 15
      %s566 = scalar_select %p565, %s564, 15
      %p567 = scmp.lt.s32.totalorder %s20, 0
      %s568 = scalar_select %p567, %s20, 0
      %s569 = sadd.s32 %s568, %s566
      %s570 = smul.addr %s569, 4
      %s571 = scalar_lea.vmem %s3, %s570
      // Predicated region
      $region33: #{resnet_forward.38} parent=31 // pred_check
        %p572 = pneg %p135
      $region34: #{resnet_forward.38} parent=31 // pred_check_branch
        %574 = sbr.rel (%p572) target = $region36
      $region35: #{resnet_forward.38} parent=31 // pred_region
        %s575 = smul.u32 8, %s19
      $region36: #{resnet_forward.38} parent=31 // pred_fallthru
        _
    $region32: #{resnet_forward.38} parent=5 // pred_fallthru
      _
    %p576 = scmp.le.s32.totalorder 2, %s9
    // Predicated region
    $region37: #{resnet_forward.38} parent=5 // pred_check
      %p577 = pneg %p576
    $region38: #{resnet_forward.38} parent=5 // pred_check_branch
      %579 = sbr.rel (%p577) target = $region40
    $region39: #{resnet_forward.38} parent=5 // pred_region
      %s580 = ssub.s32 %s9, 2
      // Predicated region
      $region41: #{resnet_forward.38} parent=39 // pred_check
        %p581 = pneg %p141
      $region42: #{resnet_forward.38} parent=39 // pred_check_branch
        %583 = sbr.rel (%p581) target = $region44
      $region43: #{resnet_forward.38} parent=39 // pred_region
        %s584 = smul.u32 8, %s22
        %p585 = scmp.lt.s32.totalorder %s584, 15
        %s586 = scalar_select %p585, %s584, 15
        %p587 = scmp.lt.s32.totalorder %s23, 0
        %s588 = scalar_select %p587, %s23, 0
        %s589 = sadd.s32 %s588, %s586
        %s590 = smul.addr %s589, 4
        %s591 = scalar_lea.vmem %s3, %s590
      $region44: #{resnet_forward.38} parent=39 // pred_fallthru
        _
    $region40: #{resnet_forward.38} parent=5 // pred_fallthru
      _
  $region6: #{resnet_forward.38} parent=0 // loop_footer
    %s13 = sadd.s32 1, %s9
  $region7: #{resnet_forward.38} parent=0 // loop_footer_branch
    %8 = sbr.rel target = $region3
  $region8: #{resnet_forward.38} parent=0 // loop_exit
    _

// kernel: resnet_forward.31
$region0: #{resnet_forward.31}
  #allocation0 [shape = 'u32[]', space=smem, size = 0x4, offset = 0x4, fixed_abs, tag = 'smem constant byte address 0x4 - core index']
  #allocation1 [shape = 'u32[144,128]{1,0:T(1,128)}', space=vmem, size = 0x12000, scoped, tag = 'internal scratch']
  %s0 = inlined_call_operand.vmem [shape: bf16[128,256], index: 0, kind: input, shape index: {}]
  %s1 = inlined_call_operand.vmem [shape: bf16[256,64], index: 1, kind: input, shape index: {}]
  %s2 = inlined_call_operand.vmem [shape: f32[1,64], index: 2, kind: input, shape index: {}]
  %s3 = inlined_call_operand.vmem [shape: bf16[128,64], index: 3, kind: output, shape index: {}]
  %s4 = sld [smem:[#allocation0]]
  $region45: #{resnet_forward.31} parent=0
    _
  %s6 = ssub.s32 1, %s4
  %s7 = scalar_select 0, %s6, %s4
  loop: start=0, step=1, limit=4
  $region2: #{resnet_forward.31} parent=0 // loop_pre_header
    _
  $region3: #{resnet_forward.31} parent=0 // loop_header
    %s9 = sphi 0, %s13
    %p10 = scmp.ge.s32.totalorder %s9, 4
    %s16 = sphi 0, %s35
    %s17 = sphi 0, %s31
    %s18 = sphi 0, %s27
    %s19 = sphi 0, %s16
    %s20 = sphi 0, %s17
    %s21 = sphi 0, %s18
    %s22 = sphi 0, %s19
    %s23 = sphi 0, %s20
    %s24 = sphi 0, %s21
    %s40 = sphi 0, %s42
    %s43 = sphi 0, %s40
    %s44 = sphi 0, %s43
    %s60 = sphi 0, %s44
    %s68 = sphi 0, %s70
    %s71 = sphi 0, %s68
    %s72 = sphi 0, %s71
    %s88 = sphi 0, %s72
    %s94 = sphi 0, %s96
    %s97 = sphi 0, %s94
    %s98 = sphi 0, %s97
    %s114 = sphi 0, %s98
    %s122 = sphi 0, %s124
    %s125 = sphi 0, %s122
    %s126 = sphi 0, %s125
    %s142 = sphi 0, %s126
  $region4: #{resnet_forward.31} parent=0 // loop_header_branch
    %12 = sbr.rel (%p10) target = $region8
  $region5: #{resnet_forward.31} parent=0 // loop_body
    %s14 = ssub.s32 %s9, 1
    %s15 = ssub.s32 %s9, 2
    %s25 = sadd.s32 1, %s18
    %p26 = scmp.ge.s32.totalorder %s25, 1
    %s27 = scalar_select %p26, 0, %s25
    %s28 = sadd.s32 1, %s17
    %s29 = scalar_select %p26, %s28, %s17
    %p30 = scmp.ge.s32.totalorder %s29, 1
    %s31 = scalar_select %p30, 0, %s29
    %s32 = sadd.s32 1, %s16
    %s33 = scalar_select %p30, %s32, %s16
    %p34 = scmp.ge.s32.totalorder %s33, 2
    %s35 = scalar_select %p34, 0, %s33
    %s36 = ssub.s32 %s16, %s35
    %s37 = ssub.s32 %s18, %s27
    %s38 = sor.u32 %s36, %s37
    %p39 = scmp.eq.s32.totalorder %s38, 0
    %s41 = sadd.s32 %s40, 1
    %s42 = scalar_select %p39, %s40, %s41
    %p45 = pneg %p39
    %p46 = scmp.eq.s32.totalorder %s9, 1
    %p47 = por %p45, %p46
    %p48 = scmp.ne.s32.totalorder %s40, %s43
    %p49 = scmp.eq.s32.totalorder %s9, 0
    %p50 = por %p48, %p49
    %p51 = scmp.ne.s32.totalorder %s40, %s43
    %p52 = scmp.eq.s32.totalorder %s14, 1
    %p53 = por %p51, %p52
    %p54 = scmp.ne.s32.totalorder %s43, %s44
    %p55 = scmp.eq.s32.totalorder %s14, 0
    %p56 = por %p54, %p55
    %p57 = scmp.ne.s32.totalorder %s43, %s44
    %p58 = scmp.eq.s32.totalorder %s15, 1
    %p59 = por %p57, %p58
    %p61 = scmp.ne.s32.totalorder %s44, %s60
    %p62 = scmp.eq.s32.totalorder %s15, 0
    %p63 = por %p61, %p62
    %s64 = ssub.s32 %s18, %s27
    %s65 = ssub.s32 %s17, %s31
    %s66 = sor.u32 %s64, %s65
    %p67 = scmp.eq.s32.totalorder %s66, 0
    %s69 = sadd.s32 %s68, 1
    %s70 = scalar_select %p67, %s68, %s69
    %p73 = pneg %p67
    %p74 = scmp.eq.s32.totalorder %s9, 1
    %p75 = por %p73, %p74
    %p76 = scmp.ne.s32.totalorder %s68, %s71
    %p77 = scmp.eq.s32.totalorder %s9, 0
    %p78 = por %p76, %p77
    %p79 = scmp.ne.s32.totalorder %s68, %s71
    %p80 = scmp.eq.s32.totalorder %s14, 1
    %p81 = por %p79, %p80
    %p82 = scmp.ne.s32.totalorder %s71, %s72
    %p83 = scmp.eq.s32.totalorder %s14, 0
    %p84 = por %p82, %p83
    %p85 = scmp.ne.s32.totalorder %s71, %s72
    %p86 = scmp.eq.s32.totalorder %s15, 1
    %p87 = por %p85, %p86
    %p89 = scmp.ne.s32.totalorder %s72, %s88
    %p90 = scmp.eq.s32.totalorder %s15, 0
    %p91 = por %p89, %p90
    %s92 = ssub.s32 %s17, %s31
    %p93 = scmp.eq.s32.totalorder %s92, 0
    %s95 = sadd.s32 %s94, 1
    %s96 = scalar_select %p93, %s94, %s95
    %p99 = pneg %p93
    %p100 = scmp.eq.s32.totalorder %s9, 1
    %p101 = por %p99, %p100
    %p102 = scmp.ne.s32.totalorder %s94, %s97
    %p103 = scmp.eq.s32.totalorder %s9, 0
    %p104 = por %p102, %p103
    %p105 = scmp.ne.s32.totalorder %s94, %s97
    %p106 = scmp.eq.s32.totalorder %s14, 1
    %p107 = por %p105, %p106
    %p108 = scmp.ne.s32.totalorder %s97, %s98
    %p109 = scmp.eq.s32.totalorder %s14, 0
    %p110 = por %p108, %p109
    %p111 = scmp.ne.s32.totalorder %s97, %s98
    %p112 = scmp.eq.s32.totalorder %s15, 1
    %p113 = por %p111, %p112
    %p115 = scmp.ne.s32.totalorder %s98, %s114
    %p116 = scmp.eq.s32.totalorder %s15, 0
    %p117 = por %p115, %p116
    %s118 = ssub.s32 %s16, %s35
    %s119 = ssub.s32 %s17, %s31
    %s120 = sor.u32 %s118, %s119
    %p121 = scmp.eq.s32.totalorder %s120, 0
    %s123 = sadd.s32 %s122, 1
    %s124 = scalar_select %p121, %s122, %s123
    %p127 = pneg %p121
    %p128 = scmp.eq.s32.totalorder %s9, 1
    %p129 = por %p127, %p128
    %p130 = scmp.ne.s32.totalorder %s122, %s125
    %p131 = scmp.eq.s32.totalorder %s9, 0
    %p132 = por %p130, %p131
    %p133 = scmp.ne.s32.totalorder %s122, %s125
    %p134 = scmp.eq.s32.totalorder %s14, 1
    %p135 = por %p133, %p134
    %p136 = scmp.ne.s32.totalorder %s125, %s126
    %p137 = scmp.eq.s32.totalorder %s14, 0
    %p138 = por %p136, %p137
    %p139 = scmp.ne.s32.totalorder %s125, %s126
    %p140 = scmp.eq.s32.totalorder %s15, 1
    %p141 = por %p139, %p140
    %p143 = scmp.ne.s32.totalorder %s126, %s142
    %p144 = scmp.eq.s32.totalorder %s15, 0
    %p145 = por %p143, %p144
    %p146 = scmp.le.s32.totalorder 1, %s9
    %p147 = scmp.lt.s32.totalorder %s9, 3
    %p148 = pnand %p146, %p147
    %p149 = pneg %p148
    // Predicated region
    $region9: #{resnet_forward.31} parent=5 // pred_check
      _
    $region10: #{resnet_forward.31} parent=5 // pred_check_branch
      %151 = sbr.rel (%p148) target = $region12
    $region11: #{resnet_forward.31} parent=5 // pred_region
      %s152 = ssub.s32 %s9, 1
      // Predicated region
      $region13: #{resnet_forward.31} parent=11 // pred_check
        %p153 = pneg %p84
      $region14: #{resnet_forward.31} parent=11 // pred_check_branch
        %155 = sbr.rel (%p153) target = $region16
      $region15: #{resnet_forward.31} parent=11 // pred_region
        %s156 = smul.u32 32, %s21
        %p157 = scmp.lt.s32.totalorder %s156, 31
        %s158 = scalar_select %p157, %s156, 31
        %p159 = scmp.lt.s32.totalorder %s20, 0
        %s160 = scalar_select %p159, %s20, 0
        %s161 = sadd.s32 %s160, %s158
        %s162 = smul.addr %s161, 4
        %s163 = scalar_lea.vmem %s1, %s162
        %s164 = smul.u32 32, %s21
      $region16: #{resnet_forward.31} parent=11 // pred_fallthru
        _
      // Predicated region
      $region17: #{resnet_forward.31} parent=11 // pred_check
        %p165 = pneg %p110
      $region18: #{resnet_forward.31} parent=11 // pred_check_branch
        %167 = sbr.rel (%p165) target = $region20
      $region19: #{resnet_forward.31} parent=11 // pred_region
        %p168 = scmp.lt.s32.totalorder %s20, 0
        %s169 = scalar_select %p168, %s20, 0
        %s170 = scalar_lea.vmem %s2, %s169
      $region20: #{resnet_forward.31} parent=11 // pred_fallthru
        _
    $region12: #{resnet_forward.31} parent=5 // pred_fallthru
      _
    %p171 = scmp.lt.s32.totalorder %s9, 2
    // Predicated region
    $region21: #{resnet_forward.31} parent=5 // pred_check
      %p172 = pneg %p171
    $region22: #{resnet_forward.31} parent=5 // pred_check_branch
      %174 = sbr.rel (%p172) target = $region24
    $region23: #{resnet_forward.31} parent=5 // pred_region
      // Predicated region
      $region25: #{resnet_forward.31} parent=23 // pred_check
        %p175 = pneg %p50
      $region26: #{resnet_forward.31} parent=23 // pred_check_branch
        %177 = sbr.rel (%p175) target = $region28
      $region27: #{resnet_forward.31} parent=23 // pred_region
        %s178 = smul.u32 8, %s16
        %s179 = smul.u32 2, %s18
        %p180 = scmp.lt.s32.totalorder %s178, 15
        %s181 = scalar_select %p180, %s178, 15
        %p182 = scmp.lt.s32.totalorder %s179, 1
        %s183 = scalar_select %p182, %s179, 1
        %s184 = smul.addr %s181, 2
        %s185 = sadd.s32 %s183, %s184
        %s186 = smul.addr %s185, 4
        %s187 = scalar_lea.vmem %s0, %s186
        %s188 = smul.u32 8, %s16
        %s189 = smul.u32 2, %s18
      $region28: #{resnet_forward.31} parent=23 // pred_fallthru
        _
    $region24: #{resnet_forward.31} parent=5 // pred_fallthru
      _
    %p190 = scmp.le.s32.totalorder 1, %s9
    %p191 = scmp.lt.s32.totalorder %s9, 3
    %p192 = pnand %p190, %p191
    %p193 = pneg %p192
    // Predicated region
    $region29: #{resnet_forward.31} parent=5 // pred_check
      _
    $region30: #{resnet_forward.31} parent=5 // pred_check_branch
      %195 = sbr.rel (%p192) target = $region32
    $region31: #{resnet_forward.31} parent=5 // pred_region
      %s196 = ssub.s32 %s9, 1
      %s197 = smul.u32 8, %s19
      %s198 = smul.u32 2, %s21
      %p199 = scmp.lt.s32.totalorder %s197, 15
      %s200 = scalar_select %p199, %s197, 15
      %p201 = scmp.lt.s32.totalorder %s198, 1
      %s202 = scalar_select %p201, %s198, 1
      %s203 = smul.addr %s200, 2
      %s204 = sadd.s32 %s202, %s203
      %s205 = smul.addr %s204, 4
      %s206 = scalar_lea.vmem %s0, %s205
      %p207 = pneg %p56
      %p208 = pneg %p53
      %s209 = smul.u32 32, %s21
      %p210 = scmp.lt.s32.totalorder %s209, 31
      %s211 = scalar_select %p210, %s209, 31
      %p212 = scmp.lt.s32.totalorder %s20, 0
      %s213 = scalar_select %p212, %s20, 0
      %s214 = sadd.s32 %s213, %s211
      %s215 = smul.addr %s214, 4
      %s216 = scalar_lea.vmem %s1, %s215
      %p217 = pneg %p84
      %p218 = pneg %p81
      %p219 = scmp.lt.s32.totalorder %s20, 0
      %s220 = scalar_select %p219, %s20, 0
      %s221 = scalar_lea.vmem %s2, %s220
      %p222 = pneg %p110
      %p223 = pneg %p107
      %p224 = pneg %p138
      %p225 = pneg %p135
      %s226 = smul.u32 8, %s19
      %p227 = scmp.lt.s32.totalorder %s226, 15
      %s228 = scalar_select %p227, %s226, 15
      %p229 = scmp.lt.s32.totalorder %s20, 0
      %s230 = scalar_select %p229, %s20, 0
      %s231 = sadd.s32 %s230, %s228
      %s232 = smul.addr %s231, 4
      %s233 = scalar_lea.vmem %s3, %s232
      %s234 = smul.u32 8, %s19
      %s235 = smul.u32 2, %s21
      %p236 = scmp.lt.s32.totalorder %s234, 15
      %s237 = scalar_select %p236, %s234, 15
      %p238 = scmp.lt.s32.totalorder %s235, 1
      %s239 = scalar_select %p238, %s235, 1
      %s240 = smul.addr %s237, 2
      %s241 = sadd.s32 %s239, %s240
      %s242 = smul.addr %s241, 4
      %s243 = scalar_lea.vmem %s0, %s242
      %s244 = smul.u32 8, %s19
      %s245 = smul.u32 2, %s21
      %s246 = smul.u32 32, %s21
      %p247 = scmp.lt.s32.totalorder %s246, 31
      %s248 = scalar_select %p247, %s246, 31
      %p249 = scmp.lt.s32.totalorder %s20, 0
      %s250 = scalar_select %p249, %s20, 0
      %s251 = sadd.s32 %s250, %s248
      %s252 = smul.addr %s251, 4
      %s253 = scalar_lea.vmem %s1, %s252
      %s254 = smul.u32 32, %s21
      %p255 = scmp.lt.s32.totalorder %s20, 0
      %s256 = scalar_select %p255, %s20, 0
      %s257 = scalar_lea.vmem %s2, %s256
      %s258 = smul.u32 8, %s19
      %p259 = scmp.lt.s32.totalorder %s258, 15
      %s260 = scalar_select %p259, %s258, 15
      %p261 = scmp.lt.s32.totalorder %s20, 0
      %s262 = scalar_select %p261, %s20, 0
      %s263 = sadd.s32 %s262, %s260
      %s264 = smul.addr %s263, 4
      %s265 = scalar_lea.vmem %s3, %s264
      %s266 = smul.u32 8, %s19
      %v268 = vld [vmem:[%s243] sm:$0xff]
      %v269 = vld [vmem:[%s243 + $0x8] sm:$0xff]
      %v270 = vld [vmem:[%s243 + $0x10] sm:$0xff]
      %v271 = vld [vmem:[%s243 + $0x18] sm:$0xff]
      %v272 = vld [vmem:[%s243 + $0x20] sm:$0xff]
      %v273 = vld [vmem:[%s243 + $0x28] sm:$0xff]
      %v274 = vld [vmem:[%s243 + $0x30] sm:$0xff]
      %v275 = vld [vmem:[%s243 + $0x38] sm:$0xff]
      %v276 = vld [vmem:[%s253] sm:$0xf]
      %v277 = vld [vmem:[%s253 + $0x4] sm:$0xf]
      %v278 = vld [vmem:[%s253 + $0x8] sm:$0xf]
      %v279 = vld [vmem:[%s253 + $0xc] sm:$0xf]
      %v280 = vld [vmem:[%s253 + $0x10] sm:$0xf]
      %v281 = vld [vmem:[%s253 + $0x14] sm:$0xf]
      %v282 = vld [vmem:[%s253 + $0x18] sm:$0xf]
      %v283 = vld [vmem:[%s253 + $0x1c] sm:$0xf]
      %v284 = vld [vmem:[%s253 + $0x20] sm:$0xf]
      %v285 = vld [vmem:[%s253 + $0x24] sm:$0xf]
      %v286 = vld [vmem:[%s253 + $0x28] sm:$0xf]
      %v287 = vld [vmem:[%s253 + $0x2c] sm:$0xf]
      %v288 = vld [vmem:[%s253 + $0x30] sm:$0xf]
      %v289 = vld [vmem:[%s253 + $0x34] sm:$0xf]
      %v290 = vld [vmem:[%s253 + $0x38] sm:$0xf]
      %v291 = vld [vmem:[%s253 + $0x3c] sm:$0xf]
      %v292 = vld [vmem:[%s253 + $0x40] sm:$0xf]
      %v293 = vld [vmem:[%s253 + $0x44] sm:$0xf]
      %v294 = vld [vmem:[%s253 + $0x48] sm:$0xf]
      %v295 = vld [vmem:[%s253 + $0x4c] sm:$0xf]
      %v296 = vld [vmem:[%s253 + $0x50] sm:$0xf]
      %v297 = vld [vmem:[%s253 + $0x54] sm:$0xf]
      %v298 = vld [vmem:[%s253 + $0x58] sm:$0xf]
      %v299 = vld [vmem:[%s253 + $0x5c] sm:$0xf]
      %v300 = vld [vmem:[%s253 + $0x60] sm:$0xf]
      %v301 = vld [vmem:[%s253 + $0x64] sm:$0xf]
      %v302 = vld [vmem:[%s253 + $0x68] sm:$0xf]
      %v303 = vld [vmem:[%s253 + $0x6c] sm:$0xf]
      %v304 = vld [vmem:[%s253 + $0x70] sm:$0xf]
      %v305 = vld [vmem:[%s253 + $0x74] sm:$0xf]
      %v306 = vld [vmem:[%s253 + $0x78] sm:$0xf]
      %v307 = vld [vmem:[%s253 + $0x7c] sm:$0xf]
      %v308 = vld [vmem:[%s257] sm:$0x1]
      %v310 = vlaneseq
      %v311 = vshrl.u32 %v310, 7
      %v312 = vsub.s32 0, %v311
      %v313 = vrot.slane %v308, %v312
      %v323 = vunpack.c.l.b16 %v268
      %v324 = vunpack.c.h.b16 %v268
      %v325 = vunpack.c.l.b16 %v269
      %v326 = vunpack.c.h.b16 %v269
      %v327 = vunpack.c.l.b16 %v270
      %v328 = vunpack.c.h.b16 %v270
      %v329 = vunpack.c.l.b16 %v271
      %v330 = vunpack.c.h.b16 %v271
      %v331 = vunpack.c.l.b16 %v272
      %v332 = vunpack.c.h.b16 %v272
      %v333 = vunpack.c.l.b16 %v273
      %v334 = vunpack.c.h.b16 %v273
      %v335 = vunpack.c.l.b16 %v274
      %v336 = vunpack.c.h.b16 %v274
      %v337 = vunpack.c.l.b16 %v275
      %v338 = vunpack.c.h.b16 %v275
      %v339 = vpack.c.b16 %v325, %v323
      %v340 = vpack.c.b16 %v326, %v324
      %v341 = vpack.c.b16 %v329, %v327
      %v342 = vpack.c.b16 %v330, %v328
      %v343 = vpack.c.b16 %v333, %v331
      %v344 = vpack.c.b16 %v334, %v332
      %v345 = vpack.c.b16 %v337, %v335
      %v346 = vpack.c.b16 %v338, %v336
      %v387 = vunpack.c.l.b16 %v276
      %v388 = vunpack.c.l.b16 %v277
      %v389 = vunpack.c.l.b16 %v278
      %v390 = vunpack.c.l.b16 %v279
      %v391 = vunpack.c.l.b16 %v280
      %v392 = vunpack.c.l.b16 %v281
      %v393 = vunpack.c.l.b16 %v282
      %v394 = vunpack.c.l.b16 %v283
      %v395 = vunpack.c.l.b16 %v284
      %v396 = vunpack.c.l.b16 %v285
      %v397 = vunpack.c.l.b16 %v286
      %v398 = vunpack.c.l.b16 %v287
      %v399 = vunpack.c.l.b16 %v288
      %v400 = vunpack.c.l.b16 %v289
      %v401 = vunpack.c.l.b16 %v290
      %v402 = vunpack.c.l.b16 %v291
      %v403 = vunpack.c.l.b16 %v292
      %v404 = vunpack.c.l.b16 %v293
      %v405 = vunpack.c.l.b16 %v294
      %v406 = vunpack.c.l.b16 %v295
      %v407 = vunpack.c.l.b16 %v296
      %v408 = vunpack.c.l.b16 %v297
      %v409 = vunpack.c.l.b16 %v298
      %v410 = vunpack.c.l.b16 %v299
      %v411 = vunpack.c.l.b16 %v300
      %v412 = vunpack.c.l.b16 %v301
      %v413 = vunpack.c.l.b16 %v302
      %v414 = vunpack.c.l.b16 %v303
      %v415 = vunpack.c.l.b16 %v304
      %v416 = vunpack.c.l.b16 %v305
      %v417 = vunpack.c.l.b16 %v306
      %v418 = vunpack.c.l.b16 %v307
      %v419 = vpack.c.b16 %v388, %v387
      %v420 = vpack.c.b16 %v390, %v389
      %v421 = vpack.c.b16 %v392, %v391
      %v422 = vpack.c.b16 %v394, %v393
      %v423 = vpack.c.b16 %v396, %v395
      %v424 = vpack.c.b16 %v398, %v397
      %v425 = vpack.c.b16 %v400, %v399
      %v426 = vpack.c.b16 %v402, %v401
      %v427 = vpack.c.b16 %v404, %v403
      %v428 = vpack.c.b16 %v406, %v405
      %v429 = vpack.c.b16 %v408, %v407
      %v430 = vpack.c.b16 %v410, %v409
      %v431 = vpack.c.b16 %v412, %v411
      %v432 = vpack.c.b16 %v414, %v413
      %v433 = vpack.c.b16 %v416, %v415
      %v434 = vpack.c.b16 %v418, %v417
      %451 = vmatprep.subr.bf16.mxu0 0
      %452 = vmatpush1.bf16.msra.mxu0 %v419
      %453 = vmatprep.subr.bf16.mxu0 0
      %454 = vmatpush1.bf16.msra.mxu0 %v420
      %455 = vmatprep.subr.bf16.mxu0 0
      %456 = vmatpush1.bf16.msra.mxu0 %v421
      %457 = vmatprep.subr.bf16.mxu0 0
      %458 = vmatpush1.bf16.msra.mxu0 %v422
      %459 = vmatprep.subr.bf16.mxu0 0
      %460 = vmatpush1.bf16.msra.mxu0 %v423
      %461 = vmatprep.subr.bf16.mxu0 0
      %462 = vmatpush1.bf16.msra.mxu0 %v424
      %463 = vmatprep.subr.bf16.mxu0 0
      %464 = vmatpush1.bf16.msra.mxu0 %v425
      %465 = vmatprep.subr.bf16.mxu0 0
      %466 = vmatpush1.bf16.msra.mxu0 %v426
      %467 = vmatprep.subr.bf16.mxu0 0
      %468 = vmatpush1.bf16.msra.mxu0 %v427
      %469 = vmatprep.subr.bf16.mxu0 0
      %470 = vmatpush1.bf16.msra.mxu0 %v428
      %471 = vmatprep.subr.bf16.mxu0 0
      %472 = vmatpush1.bf16.msra.mxu0 %v429
      %473 = vmatprep.subr.bf16.mxu0 0
      %474 = vmatpush1.bf16.msra.mxu0 %v430
      %475 = vmatprep.subr.bf16.mxu0 0
      %476 = vmatpush1.bf16.msra.mxu0 %v431
      %477 = vmatprep.subr.bf16.mxu0 0
      %478 = vmatpush1.bf16.msra.mxu0 %v432
      %479 = vmatprep.subr.bf16.mxu0 0
      %480 = vmatpush1.bf16.msra.mxu0 %v433
      %481 = vmatprep.subr.bf16.mxu0 0
      %482 = vmatpush1.bf16.msra.mxu0 %v434
      %483 = vmatprep.mubr.bf16.mxu0 %v340
      %484 = vmatmul.mubr.bf16.gmra.mrb[0].mxu0 %v339
      %v485 = vpop.f32.mrb[0].mxu0
      %v486 = vadd.f32 %v313, %v485
      %v487 = vpop.f32.mrb[0].mxu0
      %v488 = vpop.f32.mrb[0].mxu0
      %v489 = vadd.f32 %v313, %v488
      %v490 = vpop.f32.mrb[0].mxu0
      %491 = vmatprep.mubr.bf16.mxu0 %v342
      %492 = vmatmul.mubr.bf16.gmra.mrb[0].mxu0 %v341
      %v493 = vpop.f32.mrb[0].mxu0
      %v494 = vadd.f32 %v313, %v493
      %v495 = vpop.f32.mrb[0].mxu0
      %v496 = vpop.f32.mrb[0].mxu0
      %v497 = vadd.f32 %v313, %v496
      %v498 = vpop.f32.mrb[0].mxu0
      %499 = vmatprep.mubr.bf16.mxu0 %v344
      %500 = vmatmul.mubr.bf16.gmra.mrb[0].mxu0 %v343
      %v501 = vpop.f32.mrb[0].mxu0
      %v502 = vadd.f32 %v313, %v501
      %v503 = vpop.f32.mrb[0].mxu0
      %v504 = vpop.f32.mrb[0].mxu0
      %v505 = vadd.f32 %v313, %v504
      %v506 = vpop.f32.mrb[0].mxu0
      %507 = vmatprep.mubr.bf16.mxu0 %v346
      %508 = vmatmul.mubr.bf16.gmra.mrb[0].mxu0 %v345
      %v509 = vpop.f32.mrb[0].mxu0
      %v510 = vadd.f32 %v313, %v509
      %v511 = vpop.f32.mrb[0].mxu0
      %v512 = vpop.f32.mrb[0].mxu0
      %v513 = vadd.f32 %v313, %v512
      %v514 = vpop.f32.mrb[0].mxu0
      %515 = vdwg.mxu0
      %v516 = vmax.f32 %v486, 0.0
      %v517 = vmax.f32 %v489, 0.0
      %v518 = vmax.f32 %v494, 0.0
      %v519 = vmax.f32 %v497, 0.0
      %v520 = vmax.f32 %v502, 0.0
      %v521 = vmax.f32 %v505, 0.0
      %v522 = vmax.f32 %v510, 0.0
      %v523 = vmax.f32 %v513, 0.0
      %v524 = vpack.c.bf16 %v517, %v516
      %v525 = vpack.c.bf16 %v519, %v518
      %v526 = vpack.c.bf16 %v521, %v520
      %v527 = vpack.c.bf16 %v523, %v522
      %v532 = vunpack.c.l.b16 %v524
      %v533 = vunpack.c.h.b16 %v524
      %v534 = vunpack.c.l.b16 %v525
      %v535 = vunpack.c.h.b16 %v525
      %v536 = vunpack.c.l.b16 %v526
      %v537 = vunpack.c.h.b16 %v526
      %v538 = vunpack.c.l.b16 %v527
      %v539 = vunpack.c.h.b16 %v527
      %v540 = vpack.c.b16 %v532, %v532
      %v541 = vpack.c.b16 %v533, %v533
      %v542 = vpack.c.b16 %v534, %v534
      %v543 = vpack.c.b16 %v535, %v535
      %v544 = vpack.c.b16 %v536, %v536
      %v545 = vpack.c.b16 %v537, %v537
      %v546 = vpack.c.b16 %v538, %v538
      %v547 = vpack.c.b16 %v539, %v539
      %vm556 = vcmask 519168
      %557 = vst.msk [vmem:[%s265] sm:$0xf] %vm556, %v540
      %558 = vst.msk [vmem:[%s265 + $0x4] sm:$0xf] %vm556, %v541
      %559 = vst.msk [vmem:[%s265 + $0x8] sm:$0xf] %vm556, %v542
      %560 = vst.msk [vmem:[%s265 + $0xc] sm:$0xf] %vm556, %v543
      %561 = vst.msk [vmem:[%s265 + $0x10] sm:$0xf] %vm556, %v544
      %562 = vst.msk [vmem:[%s265 + $0x14] sm:$0xf] %vm556, %v545
      %563 = vst.msk [vmem:[%s265 + $0x18] sm:$0xf] %vm556, %v546
      %564 = vst.msk [vmem:[%s265 + $0x1c] sm:$0xf] %vm556, %v547
      %s565 = smul.u32 8, %s19
      %p566 = scmp.lt.s32.totalorder %s565, 15
      %s567 = scalar_select %p566, %s565, 15
      %p568 = scmp.lt.s32.totalorder %s20, 0
      %s569 = scalar_select %p568, %s20, 0
      %s570 = sadd.s32 %s569, %s567
      %s571 = smul.addr %s570, 4
      %s572 = scalar_lea.vmem %s3, %s571
      // Predicated region
      $region33: #{resnet_forward.31} parent=31 // pred_check
        %p573 = pneg %p135
      $region34: #{resnet_forward.31} parent=31 // pred_check_branch
        %575 = sbr.rel (%p573) target = $region36
      $region35: #{resnet_forward.31} parent=31 // pred_region
        %s576 = smul.u32 8, %s19
      $region36: #{resnet_forward.31} parent=31 // pred_fallthru
        _
    $region32: #{resnet_forward.31} parent=5 // pred_fallthru
      _
    %p577 = scmp.le.s32.totalorder 2, %s9
    // Predicated region
    $region37: #{resnet_forward.31} parent=5 // pred_check
      %p578 = pneg %p577
    $region38: #{resnet_forward.31} parent=5 // pred_check_branch
      %580 = sbr.rel (%p578) target = $region40
    $region39: #{resnet_forward.31} parent=5 // pred_region
      %s581 = ssub.s32 %s9, 2
      // Predicated region
      $region41: #{resnet_forward.31} parent=39 // pred_check
        %p582 = pneg %p141
      $region42: #{resnet_forward.31} parent=39 // pred_check_branch
        %584 = sbr.rel (%p582) target = $region44
      $region43: #{resnet_forward.31} parent=39 // pred_region
        %s585 = smul.u32 8, %s22
        %p586 = scmp.lt.s32.totalorder %s585, 15
        %s587 = scalar_select %p586, %s585, 15
        %p588 = scmp.lt.s32.totalorder %s23, 0
        %s589 = scalar_select %p588, %s23, 0
        %s590 = sadd.s32 %s589, %s587
        %s591 = smul.addr %s590, 4
        %s592 = scalar_lea.vmem %s3, %s591
      $region44: #{resnet_forward.31} parent=39 // pred_fallthru
        _
    $region40: #{resnet_forward.31} parent=5 // pred_fallthru
      _
  $region6: #{resnet_forward.31} parent=0 // loop_footer
    %s13 = sadd.s32 1, %s9
  $region7: #{resnet_forward.31} parent=0 // loop_footer_branch
    %8 = sbr.rel target = $region3
  $region8: #{resnet_forward.31} parent=0 // loop_exit
    _

// kernel: resnet_forward.37
$region0: #{resnet_forward.37}
  #allocation0 [shape = 'u32[]', space=smem, size = 0x4, offset = 0x4, fixed_abs, tag = 'smem constant byte address 0x4 - core index']
  #allocation1 [shape = 'u32[144,128]{1,0:T(1,128)}', space=vmem, size = 0x12000, scoped, tag = 'internal scratch']
  %s0 = inlined_call_operand.vmem [shape: bf16[32,256], index: 0, kind: input, shape index: {}]
  %s1 = inlined_call_operand.vmem [shape: bf16[256,512], index: 1, kind: input, shape index: {}]
  %s2 = inlined_call_operand.vmem [shape: f32[1,512], index: 2, kind: input, shape index: {}]
  %s3 = inlined_call_operand.vmem [shape: bf16[32,512], index: 3, kind: output, shape index: {}]
  %s4 = sld [smem:[#allocation0]]
  $region117: #{resnet_forward.37} parent=0
    _
  %s6 = ssub.s32 1, %s4
  %s7 = scalar_select 0, %s6, %s4
  $region1: #{resnet_forward.37} parent=0
    #allocation2 [shape = 'u8[262144]{0}', space=vmem, size = 0x40000, scoped, tag = 'input window, operand 1']
    #allocation3 [shape = 'u8[32768]{0}', space=vmem, size = 0x8000, scoped, tag = 'output window, operand 0']
    loop: start=0, step=1, limit=4
    $region2: #{resnet_forward.37} parent=1 // loop_pre_header
      _
    $region3: #{resnet_forward.37} parent=1 // loop_header
      %s9 = sphi 0, %s13
      %p10 = scmp.ge.s32.totalorder %s9, 4
      %s16 = sphi 0, %s35
      %s17 = sphi 0, %s31
      %s18 = sphi 0, %s27
      %s19 = sphi 0, %s16
      %s20 = sphi 0, %s17
      %s21 = sphi 0, %s18
      %s22 = sphi 0, %s19
      %s23 = sphi 0, %s20
      %s24 = sphi 0, %s21
      %s40 = sphi 0, %s42
      %s43 = sphi 0, %s40
      %s44 = sphi 0, %s43
      %s60 = sphi 0, %s44
      %s68 = sphi 0, %s70
      %s71 = sphi 0, %s68
      %s72 = sphi 0, %s71
      %s88 = sphi 0, %s72
      %s94 = sphi 0, %s96
      %s97 = sphi 0, %s94
      %s98 = sphi 0, %s97
      %s114 = sphi 0, %s98
      %s122 = sphi 0, %s124
      %s125 = sphi 0, %s122
      %s126 = sphi 0, %s125
      %s142 = sphi 0, %s126
    $region4: #{resnet_forward.37} parent=1 // loop_header_branch
      %12 = sbr.rel (%p10) target = $region8
    $region5: #{resnet_forward.37} parent=1 // loop_body
      %s14 = ssub.s32 %s9, 1
      %s15 = ssub.s32 %s9, 2
      %s25 = sadd.s32 1, %s18
      %p26 = scmp.ge.s32.totalorder %s25, 1
      %s27 = scalar_select %p26, 0, %s25
      %s28 = sadd.s32 1, %s17
      %s29 = scalar_select %p26, %s28, %s17
      %p30 = scmp.ge.s32.totalorder %s29, 2
      %s31 = scalar_select %p30, 0, %s29
      %s32 = sadd.s32 1, %s16
      %s33 = scalar_select %p30, %s32, %s16
      %p34 = scmp.ge.s32.totalorder %s33, 1
      %s35 = scalar_select %p34, 0, %s33
      %s36 = ssub.s32 %s16, %s35
      %s37 = ssub.s32 %s18, %s27
      %s38 = sor.u32 %s36, %s37
      %p39 = scmp.eq.s32.totalorder %s38, 0
      %s41 = sadd.s32 %s40, 1
      %s42 = scalar_select %p39, %s40, %s41
      %p45 = pneg %p39
      %p46 = scmp.eq.s32.totalorder %s9, 1
      %p47 = por %p45, %p46
      %p48 = scmp.ne.s32.totalorder %s40, %s43
      %p49 = scmp.eq.s32.totalorder %s9, 0
      %p50 = por %p48, %p49
      %p51 = scmp.ne.s32.totalorder %s40, %s43
      %p52 = scmp.eq.s32.totalorder %s14, 1
      %p53 = por %p51, %p52
      %p54 = scmp.ne.s32.totalorder %s43, %s44
      %p55 = scmp.eq.s32.totalorder %s14, 0
      %p56 = por %p54, %p55
      %p57 = scmp.ne.s32.totalorder %s43, %s44
      %p58 = scmp.eq.s32.totalorder %s15, 1
      %p59 = por %p57, %p58
      %p61 = scmp.ne.s32.totalorder %s44, %s60
      %p62 = scmp.eq.s32.totalorder %s15, 0
      %p63 = por %p61, %p62
      %s64 = ssub.s32 %s18, %s27
      %s65 = ssub.s32 %s17, %s31
      %s66 = sor.u32 %s64, %s65
      %p67 = scmp.eq.s32.totalorder %s66, 0
      %s69 = sadd.s32 %s68, 1
      %s70 = scalar_select %p67, %s68, %s69
      %p73 = pneg %p67
      %p74 = scmp.eq.s32.totalorder %s9, 1
      %p75 = por %p73, %p74
      %p76 = scmp.ne.s32.totalorder %s68, %s71
      %p77 = scmp.eq.s32.totalorder %s9, 0
      %p78 = por %p76, %p77
      %p79 = scmp.ne.s32.totalorder %s68, %s71
      %p80 = scmp.eq.s32.totalorder %s14, 1
      %p81 = por %p79, %p80
      %p82 = scmp.ne.s32.totalorder %s71, %s72
      %p83 = scmp.eq.s32.totalorder %s14, 0
      %p84 = por %p82, %p83
      %p85 = scmp.ne.s32.totalorder %s71, %s72
      %p86 = scmp.eq.s32.totalorder %s15, 1
      %p87 = por %p85, %p86
      %p89 = scmp.ne.s32.totalorder %s72, %s88
      %p90 = scmp.eq.s32.totalorder %s15, 0
      %p91 = por %p89, %p90
      %s92 = ssub.s32 %s17, %s31
      %p93 = scmp.eq.s32.totalorder %s92, 0
      %s95 = sadd.s32 %s94, 1
      %s96 = scalar_select %p93, %s94, %s95
      %p99 = pneg %p93
      %p100 = scmp.eq.s32.totalorder %s9, 1
      %p101 = por %p99, %p100
      %p102 = scmp.ne.s32.totalorder %s94, %s97
      %p103 = scmp.eq.s32.totalorder %s9, 0
      %p104 = por %p102, %p103
      %p105 = scmp.ne.s32.totalorder %s94, %s97
      %p106 = scmp.eq.s32.totalorder %s14, 1
      %p107 = por %p105, %p106
      %p108 = scmp.ne.s32.totalorder %s97, %s98
      %p109 = scmp.eq.s32.totalorder %s14, 0
      %p110 = por %p108, %p109
      %p111 = scmp.ne.s32.totalorder %s97, %s98
      %p112 = scmp.eq.s32.totalorder %s15, 1
      %p113 = por %p111, %p112
      %p115 = scmp.ne.s32.totalorder %s98, %s114
      %p116 = scmp.eq.s32.totalorder %s15, 0
      %p117 = por %p115, %p116
      %s118 = ssub.s32 %s16, %s35
      %s119 = ssub.s32 %s17, %s31
      %s120 = sor.u32 %s118, %s119
      %p121 = scmp.eq.s32.totalorder %s120, 0
      %s123 = sadd.s32 %s122, 1
      %s124 = scalar_select %p121, %s122, %s123
      %p127 = pneg %p121
      %p128 = scmp.eq.s32.totalorder %s9, 1
      %p129 = por %p127, %p128
      %p130 = scmp.ne.s32.totalorder %s122, %s125
      %p131 = scmp.eq.s32.totalorder %s9, 0
      %p132 = por %p130, %p131
      %p133 = scmp.ne.s32.totalorder %s122, %s125
      %p134 = scmp.eq.s32.totalorder %s14, 1
      %p135 = por %p133, %p134
      %p136 = scmp.ne.s32.totalorder %s125, %s126
      %p137 = scmp.eq.s32.totalorder %s14, 0
      %p138 = por %p136, %p137
      %p139 = scmp.ne.s32.totalorder %s125, %s126
      %p140 = scmp.eq.s32.totalorder %s15, 1
      %p141 = por %p139, %p140
      %p143 = scmp.ne.s32.totalorder %s126, %s142
      %p144 = scmp.eq.s32.totalorder %s15, 0
      %p145 = por %p143, %p144
      %p146 = scmp.le.s32.totalorder 1, %s9
      %p147 = scmp.lt.s32.totalorder %s9, 3
      %p148 = pnand %p146, %p147
      %p149 = pneg %p148
      // Predicated region
      $region9: #{resnet_forward.37} parent=5 // pred_check
        _
      $region10: #{resnet_forward.37} parent=5 // pred_check_branch
        %151 = sbr.rel (%p148) target = $region12
      $region11: #{resnet_forward.37} parent=5 // pred_region
        %s152 = ssub.s32 %s9, 1
        // Predicated region
        $region13: #{resnet_forward.37} parent=11 // pred_check
          %p153 = pneg %p56
        $region14: #{resnet_forward.37} parent=11 // pred_check_branch
          %155 = sbr.rel (%p153) target = $region16
        $region15: #{resnet_forward.37} parent=11 // pred_region
          %s156 = smul.u32 4, %s19
          %s157 = smul.u32 2, %s21
          %p158 = scmp.lt.s32.totalorder %s156, 3
          %s159 = scalar_select %p158, %s156, 3
          %p160 = scmp.lt.s32.totalorder %s157, 1
          %s161 = scalar_select %p160, %s157, 1
          %s162 = smul.addr %s159, 2
          %s163 = sadd.s32 %s161, %s162
          %s164 = smul.addr %s163, 4
          %s165 = scalar_lea.vmem %s0, %s164
          %s166 = smul.u32 4, %s19
          %s167 = smul.u32 2, %s21
        $region16: #{resnet_forward.37} parent=11 // pred_fallthru
          _
      $region12: #{resnet_forward.37} parent=5 // pred_fallthru
        _
      %p168 = scmp.lt.s32.totalorder %s9, 2
      // Predicated region
      $region17: #{resnet_forward.37} parent=5 // pred_check
        %p169 = pneg %p168
      $region18: #{resnet_forward.37} parent=5 // pred_check_branch
        %171 = sbr.rel (%p169) target = $region20
      $region19: #{resnet_forward.37} parent=5 // pred_region
        // Predicated region
        $region21: #{resnet_forward.37} parent=19 // pred_check
          %p172 = pneg %p78
        $region22: #{resnet_forward.37} parent=19 // pred_check_branch
          %174 = sbr.rel (%p172) target = $region24
        $region23: #{resnet_forward.37} parent=19 // pred_region
          %s175 = sand.u32 %s68, 1
          %s176 = sand.u32 %s68, 1
          %s177 = smul.addr %s176, 256
          %s178 = scalar_lea.vmem [#allocation2], %s177
          %s179 = smul.u32 32, %s18
          %s180 = smul.u32 2, %s17
          %s181 = smul.addr %s179, 4
          %s182 = sadd.s32 %s180, %s181
          %s183 = smul.addr %s182, 4
          %s184 = scalar_lea.vmem %s1, %s183
          // Predicated region
          $region25: #{resnet_forward.37} parent=23 // pred_check
            _
          $region26: #{resnet_forward.37} parent=23 // pred_check_branch
            %186 = sbr.rel (0) target = $region28
          $region27: #{resnet_forward.37} parent=23 // pred_region
            // Predicated region
            $region29: #{resnet_forward.37} parent=27 // pred_check
              _
            $region30: #{resnet_forward.37} parent=27 // pred_check_branch
              %188 = sbr.rel (0) target = $region32
            $region31: #{resnet_forward.37} parent=27 // pred_region
              // Predicated region
              $region44: #{resnet_forward.37} parent=31 // pred_check
                _
              $region45: #{resnet_forward.37} parent=31 // pred_check_branch
                %265 = sbr.rel (0) target = $region47
              $region46: #{resnet_forward.37} parent=31 // pred_region
                loop: start=0, step=1, limit=1
                $region48: #{resnet_forward.37} parent=46 // loop_pre_header
                  _
                $region49: #{resnet_forward.37} parent=46 // loop_header
                  %s267 = sphi 0, %s271
                  %p268 = scmp.ge.s32.totalorder %s267, 1
                  %s272 = sphi %s184, %s184
                  %s273 = sphi %s178, %s178
                $region50: #{resnet_forward.37} parent=46 // loop_header_branch
                  %270 = sbr.rel (%p268) target = $region54
                $region51: #{resnet_forward.37} parent=46 // loop_body
                  %v274 = vld [vmem:[%s272] sm:$0xff]
                  %275 = vst [vmem:[%s273] sm:$0xff] %v274
                  %v276 = vld [vmem:[%s272 + $0x10] sm:$0xff]
                  %277 = vst [vmem:[%s273 + $0x8] sm:$0xff] %v276
                  %v278 = vld [vmem:[%s272 + $0x20] sm:$0xff]
                  %279 = vst [vmem:[%s273 + $0x10] sm:$0xff] %v278
                  %v280 = vld [vmem:[%s272 + $0x30] sm:$0xff]
                  %281 = vst [vmem:[%s273 + $0x18] sm:$0xff] %v280
                  %v282 = vld [vmem:[%s272 + $0x40] sm:$0xff]
                  %283 = vst [vmem:[%s273 + $0x20] sm:$0xff] %v282
                  %v284 = vld [vmem:[%s272 + $0x50] sm:$0xff]
                  %285 = vst [vmem:[%s273 + $0x28] sm:$0xff] %v284
                  %v286 = vld [vmem:[%s272 + $0x60] sm:$0xff]
                  %287 = vst [vmem:[%s273 + $0x30] sm:$0xff] %v286
                  %v288 = vld [vmem:[%s272 + $0x70] sm:$0xff]
                  %289 = vst [vmem:[%s273 + $0x38] sm:$0xff] %v288
                  %v290 = vld [vmem:[%s272 + $0x80] sm:$0xff]
                  %291 = vst [vmem:[%s273 + $0x40] sm:$0xff] %v290
                  %v292 = vld [vmem:[%s272 + $0x90] sm:$0xff]
                  %293 = vst [vmem:[%s273 + $0x48] sm:$0xff] %v292
                  %v294 = vld [vmem:[%s272 + $0xa0] sm:$0xff]
                  %295 = vst [vmem:[%s273 + $0x50] sm:$0xff] %v294
                  %v296 = vld [vmem:[%s272 + $0xb0] sm:$0xff]
                  %297 = vst [vmem:[%s273 + $0x58] sm:$0xff] %v296
                  %v298 = vld [vmem:[%s272 + $0xc0] sm:$0xff]
                  %299 = vst [vmem:[%s273 + $0x60] sm:$0xff] %v298
                  %v300 = vld [vmem:[%s272 + $0xd0] sm:$0xff]
                  %301 = vst [vmem:[%s273 + $0x68] sm:$0xff] %v300
                  %v302 = vld [vmem:[%s272 + $0xe0] sm:$0xff]
                  %303 = vst [vmem:[%s273 + $0x70] sm:$0xff] %v302
                  %v304 = vld [vmem:[%s272 + $0xf0] sm:$0xff]
                  %305 = vst [vmem:[%s273 + $0x78] sm:$0xff] %v304
                  %v306 = vld [vmem:[%s272 + $0x100] sm:$0xff]
                  %307 = vst [vmem:[%s273 + $0x80] sm:$0xff] %v306
                  %v308 = vld [vmem:[%s272 + $0x110] sm:$0xff]
                  %309 = vst [vmem:[%s273 + $0x88] sm:$0xff] %v308
                  %v310 = vld [vmem:[%s272 + $0x120] sm:$0xff]
                  %311 = vst [vmem:[%s273 + $0x90] sm:$0xff] %v310
                  %v312 = vld [vmem:[%s272 + $0x130] sm:$0xff]
                  %313 = vst [vmem:[%s273 + $0x98] sm:$0xff] %v312
                  %v314 = vld [vmem:[%s272 + $0x140] sm:$0xff]
                  %315 = vst [vmem:[%s273 + $0xa0] sm:$0xff] %v314
                  %v316 = vld [vmem:[%s272 + $0x150] sm:$0xff]
                  %317 = vst [vmem:[%s273 + $0xa8] sm:$0xff] %v316
                  %v318 = vld [vmem:[%s272 + $0x160] sm:$0xff]
                  %319 = vst [vmem:[%s273 + $0xb0] sm:$0xff] %v318
                  %v320 = vld [vmem:[%s272 + $0x170] sm:$0xff]
                  %321 = vst [vmem:[%s273 + $0xb8] sm:$0xff] %v320
                  %v322 = vld [vmem:[%s272 + $0x180] sm:$0xff]
                  %323 = vst [vmem:[%s273 + $0xc0] sm:$0xff] %v322
                  %v324 = vld [vmem:[%s272 + $0x190] sm:$0xff]
                  %325 = vst [vmem:[%s273 + $0xc8] sm:$0xff] %v324
                  %v326 = vld [vmem:[%s272 + $0x1a0] sm:$0xff]
                  %327 = vst [vmem:[%s273 + $0xd0] sm:$0xff] %v326
                  %v328 = vld [vmem:[%s272 + $0x1b0] sm:$0xff]
                  %329 = vst [vmem:[%s273 + $0xd8] sm:$0xff] %v328
                  %v330 = vld [vmem:[%s272 + $0x1c0] sm:$0xff]
                  %331 = vst [vmem:[%s273 + $0xe0] sm:$0xff] %v330
                  %v332 = vld [vmem:[%s272 + $0x1d0] sm:$0xff]
                  %333 = vst [vmem:[%s273 + $0xe8] sm:$0xff] %v332
                  %v334 = vld [vmem:[%s272 + $0x1e0] sm:$0xff]
                  %335 = vst [vmem:[%s273 + $0xf0] sm:$0xff] %v334
                  %v336 = vld [vmem:[%s272 + $0x1f0] sm:$0xff]
                  %337 = vst [vmem:[%s273 + $0xf8] sm:$0xff] %v336
                $region52: #{resnet_forward.37} parent=46 // loop_footer
                  %s271 = sadd.s32 1, %s267
                $region53: #{resnet_forward.37} parent=46 // loop_footer_branch
                  %266 = sbr.rel target = $region49
                $region54: #{resnet_forward.37} parent=46 // loop_exit
                  _
              $region47: #{resnet_forward.37} parent=31 // pred_fallthru
                _
              // Predicated region
              $region55: #{resnet_forward.37} parent=31 // pred_check
                _
              $region56: #{resnet_forward.37} parent=31 // pred_check_branch
                %339 = sbr.rel target = $region58
              $region57: #{resnet_forward.37} parent=31 // pred_region
                _
              $region58: #{resnet_forward.37} parent=31 // pred_fallthru
                _
            $region32: #{resnet_forward.37} parent=27 // pred_fallthru
              _
            // Predicated region
            $region33: #{resnet_forward.37} parent=27 // pred_check
              _
            $region34: #{resnet_forward.37} parent=27 // pred_check_branch
              %190 = sbr.rel target = $region36
            $region35: #{resnet_forward.37} parent=27 // pred_region
              loop: start=0, step=1, limit=1
              $region37: #{resnet_forward.37} parent=35 // loop_pre_header
                _
              $region38: #{resnet_forward.37} parent=35 // loop_header
                %s193 = sphi 0, %s197
                %p194 = scmp.ge.s32.totalorder %s193, 1
                %s198 = sphi %s184, %s184
                %s199 = sphi %s178, %s178
              $region39: #{resnet_forward.37} parent=35 // loop_header_branch
                %196 = sbr.rel (%p194) target = $region43
              $region40: #{resnet_forward.37} parent=35 // loop_body
                %v200 = vld [vmem:[%s198] sm:$0xff]
                %201 = vst [vmem:[%s199] sm:$0xff] %v200
                %v202 = vld [vmem:[%s198 + $0x10] sm:$0xff]
                %203 = vst [vmem:[%s199 + $0x8] sm:$0xff] %v202
                %v204 = vld [vmem:[%s198 + $0x20] sm:$0xff]
                %205 = vst [vmem:[%s199 + $0x10] sm:$0xff] %v204
                %v206 = vld [vmem:[%s198 + $0x30] sm:$0xff]
                %207 = vst [vmem:[%s199 + $0x18] sm:$0xff] %v206
                %v208 = vld [vmem:[%s198 + $0x40] sm:$0xff]
                %209 = vst [vmem:[%s199 + $0x20] sm:$0xff] %v208
                %v210 = vld [vmem:[%s198 + $0x50] sm:$0xff]
                %211 = vst [vmem:[%s199 + $0x28] sm:$0xff] %v210
                %v212 = vld [vmem:[%s198 + $0x60] sm:$0xff]
                %213 = vst [vmem:[%s199 + $0x30] sm:$0xff] %v212
                %v214 = vld [vmem:[%s198 + $0x70] sm:$0xff]
                %215 = vst [vmem:[%s199 + $0x38] sm:$0xff] %v214
                %v216 = vld [vmem:[%s198 + $0x80] sm:$0xff]
                %217 = vst [vmem:[%s199 + $0x40] sm:$0xff] %v216
                %v218 = vld [vmem:[%s198 + $0x90] sm:$0xff]
                %219 = vst [vmem:[%s199 + $0x48] sm:$0xff] %v218
                %v220 = vld [vmem:[%s198 + $0xa0] sm:$0xff]
                %221 = vst [vmem:[%s199 + $0x50] sm:$0xff] %v220
                %v222 = vld [vmem:[%s198 + $0xb0] sm:$0xff]
                %223 = vst [vmem:[%s199 + $0x58] sm:$0xff] %v222
                %v224 = vld [vmem:[%s198 + $0xc0] sm:$0xff]
                %225 = vst [vmem:[%s199 + $0x60] sm:$0xff] %v224
                %v226 = vld [vmem:[%s198 + $0xd0] sm:$0xff]
                %227 = vst [vmem:[%s199 + $0x68] sm:$0xff] %v226
                %v228 = vld [vmem:[%s198 + $0xe0] sm:$0xff]
                %229 = vst [vmem:[%s199 + $0x70] sm:$0xff] %v228
                %v230 = vld [vmem:[%s198 + $0xf0] sm:$0xff]
                %231 = vst [vmem:[%s199 + $0x78] sm:$0xff] %v230
                %v232 = vld [vmem:[%s198 + $0x100] sm:$0xff]
                %233 = vst [vmem:[%s199 + $0x80] sm:$0xff] %v232
                %v234 = vld [vmem:[%s198 + $0x110] sm:$0xff]
                %235 = vst [vmem:[%s199 + $0x88] sm:$0xff] %v234
                %v236 = vld [vmem:[%s198 + $0x120] sm:$0xff]
                %237 = vst [vmem:[%s199 + $0x90] sm:$0xff] %v236
                %v238 = vld [vmem:[%s198 + $0x130] sm:$0xff]
                %239 = vst [vmem:[%s199 + $0x98] sm:$0xff] %v238
                %v240 = vld [vmem:[%s198 + $0x140] sm:$0xff]
                %241 = vst [vmem:[%s199 + $0xa0] sm:$0xff] %v240
                %v242 = vld [vmem:[%s198 + $0x150] sm:$0xff]
                %243 = vst [vmem:[%s199 + $0xa8] sm:$0xff] %v242
                %v244 = vld [vmem:[%s198 + $0x160] sm:$0xff]
                %245 = vst [vmem:[%s199 + $0xb0] sm:$0xff] %v244
                %v246 = vld [vmem:[%s198 + $0x170] sm:$0xff]
                %247 = vst [vmem:[%s199 + $0xb8] sm:$0xff] %v246
                %v248 = vld [vmem:[%s198 + $0x180] sm:$0xff]
                %249 = vst [vmem:[%s199 + $0xc0] sm:$0xff] %v248
                %v250 = vld [vmem:[%s198 + $0x190] sm:$0xff]
                %251 = vst [vmem:[%s199 + $0xc8] sm:$0xff] %v250
                %v252 = vld [vmem:[%s198 + $0x1a0] sm:$0xff]
                %253 = vst [vmem:[%s199 + $0xd0] sm:$0xff] %v252
                %v254 = vld [vmem:[%s198 + $0x1b0] sm:$0xff]
                %255 = vst [vmem:[%s199 + $0xd8] sm:$0xff] %v254
                %v256 = vld [vmem:[%s198 + $0x1c0] sm:$0xff]
                %257 = vst [vmem:[%s199 + $0xe0] sm:$0xff] %v256
                %v258 = vld [vmem:[%s198 + $0x1d0] sm:$0xff]
                %259 = vst [vmem:[%s199 + $0xe8] sm:$0xff] %v258
                %v260 = vld [vmem:[%s198 + $0x1e0] sm:$0xff]
                %261 = vst [vmem:[%s199 + $0xf0] sm:$0xff] %v260
                %v262 = vld [vmem:[%s198 + $0x1f0] sm:$0xff]
                %263 = vst [vmem:[%s199 + $0xf8] sm:$0xff] %v262
              $region41: #{resnet_forward.37} parent=35 // loop_footer
                %s197 = sadd.s32 1, %s193
              $region42: #{resnet_forward.37} parent=35 // loop_footer_branch
                %192 = sbr.rel target = $region38
              $region43: #{resnet_forward.37} parent=35 // loop_exit
                _
            $region36: #{resnet_forward.37} parent=27 // pred_fallthru
              _
          $region28: #{resnet_forward.37} parent=23 // pred_fallthru
            _
          %340 = vnop
        $region24: #{resnet_forward.37} parent=19 // pred_fallthru
          _
        // Predicated region
        $region59: #{resnet_forward.37} parent=19 // pred_check
          %p341 = pneg %p104
        $region60: #{resnet_forward.37} parent=19 // pred_check_branch
          %343 = sbr.rel (%p341) target = $region62
        $region61: #{resnet_forward.37} parent=19 // pred_region
          %s344 = smul.u32 2, %s17
          %p345 = scmp.lt.s32.totalorder %s344, 3
          %s346 = scalar_select %p345, %s344, 3
          %s347 = scalar_lea.vmem %s2, %s346
          %s348 = smul.u32 2, %s17
        $region62: #{resnet_forward.37} parent=19 // pred_fallthru
          _
      $region20: #{resnet_forward.37} parent=5 // pred_fallthru
        _
      %p349 = scmp.le.s32.totalorder 1, %s9
      %p350 = scmp.lt.s32.totalorder %s9, 3
      %p351 = pnand %p349, %p350
      %p352 = pneg %p351
      // Predicated region
      $region63: #{resnet_forward.37} parent=5 // pred_check
        _
      $region64: #{resnet_forward.37} parent=5 // pred_check_branch
        %354 = sbr.rel (%p351) target = $region66
      $region65: #{resnet_forward.37} parent=5 // pred_region
        %s355 = ssub.s32 %s9, 1
        %s356 = sand.u32 %s71, 1
        %s357 = sand.u32 %s71, 1
        %s358 = smul.addr %s357, 256
        %s359 = scalar_lea.vmem [#allocation2], %s358
        // Predicated region
        $region67: #{resnet_forward.37} parent=65 // pred_check
          %p360 = pneg %p84
        $region68: #{resnet_forward.37} parent=65 // pred_check_branch
          %362 = sbr.rel (%p360) target = $region70
        $region69: #{resnet_forward.37} parent=65 // pred_region
          _
        $region70: #{resnet_forward.37} parent=65 // pred_fallthru
          _
        %s363 = smul.u32 4, %s19
        %s364 = smul.u32 2, %s21
        %p365 = scmp.lt.s32.totalorder %s363, 3
        %s366 = scalar_select %p365, %s363, 3
        %p367 = scmp.lt.s32.totalorder %s364, 1
        %s368 = scalar_select %p367, %s364, 1
        %s369 = smul.addr %s366, 2
        %s370 = sadd.s32 %s368, %s369
        %s371 = smul.addr %s370, 4
        %s372 = scalar_lea.vmem %s0, %s371
        %p373 = pneg %p56
        %p374 = pneg %p53
        %s375 = sand.u32 %s71, 1
        %s376 = sand.u32 %s71, 1
        %s377 = smul.addr %s376, 256
        %s378 = scalar_lea.vmem [#allocation2], %s377
        %p379 = pneg %p84
        %p380 = pneg %p81
        %s381 = smul.u32 2, %s20
        %p382 = scmp.lt.s32.totalorder %s381, 3
        %s383 = scalar_select %p382, %s381, 3
        %s384 = scalar_lea.vmem %s2, %s383
        %p385 = pneg %p110
        %p386 = pneg %p107
        %p387 = pneg %p138
        %p388 = pneg %p135
        %s389 = sand.u32 %s125, 1
        %s390 = sand.u32 %s125, 1
        %s391 = smul.addr %s390, 32
        %s392 = scalar_lea.vmem [#allocation3], %s391
        %s393 = smul.u32 4, %s19
        %s394 = smul.u32 2, %s21
        %p395 = scmp.lt.s32.totalorder %s393, 3
        %s396 = scalar_select %p395, %s393, 3
        %p397 = scmp.lt.s32.totalorder %s394, 1
        %s398 = scalar_select %p397, %s394, 1
        %s399 = smul.addr %s396, 2
        %s400 = sadd.s32 %s398, %s399
        %s401 = smul.addr %s400, 4
        %s402 = scalar_lea.vmem %s0, %s401
        %s403 = smul.u32 4, %s19
        %s404 = smul.u32 2, %s21
        %s405 = smul.u32 32, %s21
        %s406 = smul.u32 2, %s20
        %s407 = smul.u32 2, %s20
        %p408 = scmp.lt.s32.totalorder %s407, 3
        %s409 = scalar_select %p408, %s407, 3
        %s410 = scalar_lea.vmem %s2, %s409
        %s411 = smul.u32 2, %s20
        %s412 = smul.u32 4, %s19
        %s413 = smul.u32 2, %s20
        %v414 = vld [vmem:[%s402] sm:$0xff]
        %v415 = vld [vmem:[%s402 + $0x8] sm:$0xff]
        %v416 = vld [vmem:[%s402 + $0x10] sm:$0xff]
        %v417 = vld [vmem:[%s402 + $0x18] sm:$0xff]
        %v418 = vld [vmem:[%s359] sm:$0xff]
        %v419 = vld [vmem:[%s359 + $0x8] sm:$0xff]
        %v420 = vld [vmem:[%s359 + $0x10] sm:$0xff]
        %v421 = vld [vmem:[%s359 + $0x18] sm:$0xff]
        %v422 = vld [vmem:[%s359 + $0x20] sm:$0xff]
        %v423 = vld [vmem:[%s359 + $0x28] sm:$0xff]
        %v424 = vld [vmem:[%s359 + $0x30] sm:$0xff]
        %v425 = vld [vmem:[%s359 + $0x38] sm:$0xff]
        %v426 = vld [vmem:[%s359 + $0x40] sm:$0xff]
        %v427 = vld [vmem:[%s359 + $0x48] sm:$0xff]
        %v428 = vld [vmem:[%s359 + $0x50] sm:$0xff]
        %v429 = vld [vmem:[%s359 + $0x58] sm:$0xff]
        %v430 = vld [vmem:[%s359 + $0x60] sm:$0xff]
        %v431 = vld [vmem:[%s359 + $0x68] sm:$0xff]
        %v432 = vld [vmem:[%s359 + $0x70] sm:$0xff]
        %v433 = vld [vmem:[%s359 + $0x78] sm:$0xff]
        %v434 = vld [vmem:[%s359 + $0x80] sm:$0xff]
        %v435 = vld [vmem:[%s359 + $0x88] sm:$0xff]
        %v436 = vld [vmem:[%s359 + $0x90] sm:$0xff]
        %v437 = vld [vmem:[%s359 + $0x98] sm:$0xff]
        %v438 = vld [vmem:[%s359 + $0xa0] sm:$0xff]
        %v439 = vld [vmem:[%s359 + $0xa8] sm:$0xff]
        %v440 = vld [vmem:[%s359 + $0xb0] sm:$0xff]
        %v441 = vld [vmem:[%s359 + $0xb8] sm:$0xff]
        %v442 = vld [vmem:[%s359 + $0xc0] sm:$0xff]
        %v443 = vld [vmem:[%s359 + $0xc8] sm:$0xff]
        %v444 = vld [vmem:[%s359 + $0xd0] sm:$0xff]
        %v445 = vld [vmem:[%s359 + $0xd8] sm:$0xff]
        %v446 = vld [vmem:[%s359 + $0xe0] sm:$0xff]
        %v447 = vld [vmem:[%s359 + $0xe8] sm:$0xff]
        %v448 = vld [vmem:[%s359 + $0xf0] sm:$0xff]
        %v449 = vld [vmem:[%s359 + $0xf8] sm:$0xff]
        %v450 = vld [vmem:[%s410] sm:$0x3]
        %v452 = vlaneseq
        %v453 = vshrl.u32 %v452, 7
        %v454 = vsub.s32 0, %v453
        %v455 = vrot.slane %v450, %v454
        %v456 = vlaneseq
        %v457 = vshrl.u32 %v456, 7
        %v458 = vsub.s32 1, %v457
        %v459 = vrot.slane %v450, %v458
        %v466 = vunpack.c.l.b16 %v414
        %v467 = vunpack.c.h.b16 %v414
        %v468 = vunpack.c.l.b16 %v415
        %v469 = vunpack.c.h.b16 %v415
        %v470 = vunpack.c.l.b16 %v416
        %v471 = vunpack.c.h.b16 %v416
        %v472 = vunpack.c.l.b16 %v417
        %v473 = vunpack.c.h.b16 %v417
        %v474 = vpack.c.b16 %v468, %v466
        %v475 = vpack.c.b16 %v469, %v467
        %v476 = vpack.c.b16 %v472, %v470
        %v477 = vpack.c.b16 %v473, %v471
        %v514 = vunpack.c.l.b16 %v418
        %v515 = vunpack.c.h.b16 %v418
        %v516 = vunpack.c.l.b16 %v419
        %v517 = vunpack.c.h.b16 %v419
        %v518 = vunpack.c.l.b16 %v420
        %v519 = vunpack.c.h.b16 %v420
        %v520 = vunpack.c.l.b16 %v421
        %v521 = vunpack.c.h.b16 %v421
        %v522 = vunpack.c.l.b16 %v422
        %v523 = vunpack.c.h.b16 %v422
        %v524 = vunpack.c.l.b16 %v423
        %v525 = vunpack.c.h.b16 %v423
        %v526 = vunpack.c.l.b16 %v424
        %v527 = vunpack.c.h.b16 %v424
        %v528 = vunpack.c.l.b16 %v425
        %v529 = vunpack.c.h.b16 %v425
        %v530 = vunpack.c.l.b16 %v426
        %v531 = vunpack.c.h.b16 %v426
        %v532 = vunpack.c.l.b16 %v427
        %v533 = vunpack.c.h.b16 %v427
        %v534 = vunpack.c.l.b16 %v428
        %v535 = vunpack.c.h.b16 %v428
        %v536 = vunpack.c.l.b16 %v429
        %v537 = vunpack.c.h.b16 %v429
        %v538 = vunpack.c.l.b16 %v430
        %v539 = vunpack.c.h.b16 %v430
        %v540 = vunpack.c.l.b16 %v431
        %v541 = vunpack.c.h.b16 %v431
        %v542 = vunpack.c.l.b16 %v432
        %v543 = vunpack.c.h.b16 %v432
        %v544 = vunpack.c.l.b16 %v433
        %v545 = vunpack.c.h.b16 %v433
        %v546 = vunpack.c.l.b16 %v434
        %v547 = vunpack.c.h.b16 %v434
        %v548 = vunpack.c.l.b16 %v435
        %v549 = vunpack.c.h.b16 %v435
        %v550 = vunpack.c.l.b16 %v436
        %v551 = vunpack.c.h.b16 %v436
        %v552 = vunpack.c.l.b16 %v437
        %v553 = vunpack.c.h.b16 %v437
        %v554 = vunpack.c.l.b16 %v438
        %v555 = vunpack.c.h.b16 %v438
        %v556 = vunpack.c.l.b16 %v439
        %v557 = vunpack.c.h.b16 %v439
        %v558 = vunpack.c.l.b16 %v440
        %v559 = vunpack.c.h.b16 %v440
        %v560 = vunpack.c.l.b16 %v441
        %v561 = vunpack.c.h.b16 %v441
        %v562 = vunpack.c.l.b16 %v442
        %v563 = vunpack.c.h.b16 %v442
        %v564 = vunpack.c.l.b16 %v443
        %v565 = vunpack.c.h.b16 %v443
        %v566 = vunpack.c.l.b16 %v444
        %v567 = vunpack.c.h.b16 %v444
        %v568 = vunpack.c.l.b16 %v445
        %v569 = vunpack.c.h.b16 %v445
        %v570 = vunpack.c.l.b16 %v446
        %v571 = vunpack.c.h.b16 %v446
        %v572 = vunpack.c.l.b16 %v447
        %v573 = vunpack.c.h.b16 %v447
        %v574 = vunpack.c.l.b16 %v448
        %v575 = vunpack.c.h.b16 %v448
        %v576 = vunpack.c.l.b16 %v449
        %v577 = vunpack.c.h.b16 %v449
        %v578 = vpack.c.b16 %v516, %v514
        %v579 = vpack.c.b16 %v517, %v515
        %v580 = vpack.c.b16 %v520, %v518
        %v581 = vpack.c.b16 %v521, %v519
        %v582 = vpack.c.b16 %v524, %v522
        %v583 = vpack.c.b16 %v525, %v523
        %v584 = vpack.c.b16 %v528, %v526
        %v585 = vpack.c.b16 %v529, %v527
        %v586 = vpack.c.b16 %v532, %v530
        %v587 = vpack.c.b16 %v533, %v531
        %v588 = vpack.c.b16 %v536, %v534
        %v589 = vpack.c.b16 %v537, %v535
        %v590 = vpack.c.b16 %v540, %v538
        %v591 = vpack.c.b16 %v541, %v539
        %v592 = vpack.c.b16 %v544, %v542
        %v593 = vpack.c.b16 %v545, %v543
        %v594 = vpack.c.b16 %v548, %v546
        %v595 = vpack.c.b16 %v549, %v547
        %v596 = vpack.c.b16 %v552, %v550
        %v597 = vpack.c.b16 %v553, %v551
        %v598 = vpack.c.b16 %v556, %v554
        %v599 = vpack.c.b16 %v557, %v555
        %v600 = vpack.c.b16 %v560, %v558
        %v601 = vpack.c.b16 %v561, %v559
        %v602 = vpack.c.b16 %v564, %v562
        %v603 = vpack.c.b16 %v565, %v563
        %v604 = vpack.c.b16 %v568, %v566
        %v605 = vpack.c.b16 %v569, %v567
        %v606 = vpack.c.b16 %v572, %v570
        %v607 = vpack.c.b16 %v573, %v571
        %v608 = vpack.c.b16 %v576, %v574
        %v609 = vpack.c.b16 %v577, %v575
        %642 = vmatprep.subr.bf16.mxu0 %v579
        %643 = vmatpush1.bf16.msra.mxu0 %v578
        %644 = vmatprep.subr.bf16.mxu0 %v581
        %645 = vmatpush1.bf16.msra.mxu0 %v580
        %646 = vmatprep.subr.bf16.mxu0 %v583
        %647 = vmatpush1.bf16.msra.mxu0 %v582
        %648 = vmatprep.subr.bf16.mxu0 %v585
        %649 = vmatpush1.bf16.msra.mxu0 %v584
        %650 = vmatprep.subr.bf16.mxu0 %v587
        %651 = vmatpush1.bf16.msra.mxu0 %v586
        %652 = vmatprep.subr.bf16.mxu0 %v589
        %653 = vmatpush1.bf16.msra.mxu0 %v588
        %654 = vmatprep.subr.bf16.mxu0 %v591
        %655 = vmatpush1.bf16.msra.mxu0 %v590
        %656 = vmatprep.subr.bf16.mxu0 %v593
        %657 = vmatpush1.bf16.msra.mxu0 %v592
        %658 = vmatprep.subr.bf16.mxu0 %v595
        %659 = vmatpush1.bf16.msra.mxu0 %v594
        %660 = vmatprep.subr.bf16.mxu0 %v597
        %661 = vmatpush1.bf16.msra.mxu0 %v596
        %662 = vmatprep.subr.bf16.mxu0 %v599
        %663 = vmatpush1.bf16.msra.mxu0 %v598
        %664 = vmatprep.subr.bf16.mxu0 %v601
        %665 = vmatpush1.bf16.msra.mxu0 %v600
        %666 = vmatprep.subr.bf16.mxu0 %v603
        %667 = vmatpush1.bf16.msra.mxu0 %v602
        %668 = vmatprep.subr.bf16.mxu0 %v605
        %669 = vmatpush1.bf16.msra.mxu0 %v604
        %670 = vmatprep.subr.bf16.mxu0 %v607
        %671 = vmatpush1.bf16.msra.mxu0 %v606
        %672 = vmatprep.subr.bf16.mxu0 %v609
        %673 = vmatpush1.bf16.msra.mxu0 %v608
        %674 = vmatprep.mubr.bf16.mxu0 %v475
        %675 = vmatmul.mubr.bf16.gmra.mrb[0].mxu0 %v474
        %v676 = vpop.f32.mrb[0].mxu0
        %v677 = vadd.f32 %v455, %v676
        %v678 = vpop.f32.mrb[0].mxu0
        %v679 = vadd.f32 %v459, %v678
        %v680 = vpop.f32.mrb[0].mxu0
        %v681 = vadd.f32 %v455, %v680
        %v682 = vpop.f32.mrb[0].mxu0
        %v683 = vadd.f32 %v459, %v682
        %684 = vmatprep.mubr.bf16.mxu0 %v477
        %685 = vmatmul.mubr.bf16.gmra.mrb[0].mxu0 %v476
        %v686 = vpop.f32.mrb[0].mxu0
        %v687 = vadd.f32 %v455, %v686
        %v688 = vpop.f32.mrb[0].mxu0
        %v689 = vadd.f32 %v459, %v688
        %v690 = vpop.f32.mrb[0].mxu0
        %v691 = vadd.f32 %v455, %v690
        %v692 = vpop.f32.mrb[0].mxu0
        %v693 = vadd.f32 %v459, %v692
        %694 = vdwg.mxu0
        %v695 = vpack.c.bf16 %v681, %v677
        %v696 = vpack.c.bf16 %v683, %v679
        %v697 = vpack.c.bf16 %v691, %v687
        %v698 = vpack.c.bf16 %v693, %v689
        %v703 = vunpack.c.l.b16 %v695
        %v704 = vunpack.c.l.b16 %v696
        %v705 = vunpack.c.h.b16 %v695
        %v706 = vunpack.c.h.b16 %v696
        %v707 = vunpack.c.l.b16 %v697
        %v708 = vunpack.c.l.b16 %v698
        %v709 = vunpack.c.h.b16 %v697
        %v710 = vunpack.c.h.b16 %v698
        %v711 = vpack.c.b16 %v704, %v703
        %v712 = vpack.c.b16 %v706, %v705
        %v713 = vpack.c.b16 %v708, %v707
        %v714 = vpack.c.b16 %v710, %v709
        %719 = vst [vmem:[%s392] sm:$0xff] %v711
        %720 = vst [vmem:[%s392 + $0x8] sm:$0xff] %v712
        %721 = vst [vmem:[%s392 + $0x10] sm:$0xff] %v713
        %722 = vst [vmem:[%s392 + $0x18] sm:$0xff] %v714
        %s723 = sand.u32 %s125, 1
        %s724 = sand.u32 %s125, 1
        %s725 = smul.addr %s724, 32
        %s726 = scalar_lea.vmem [#allocation3], %s725
        // Predicated region
        $region71: #{resnet_forward.37} parent=65 // pred_check
          %p727 = pneg %p135
        $region72: #{resnet_forward.37} parent=65 // pred_check_branch
          %729 = sbr.rel (%p727) target = $region74
        $region73: #{resnet_forward.37} parent=65 // pred_region
          %s730 = smul.u32 4, %s19
          %s731 = smul.u32 2, %s20
          %s732 = smul.addr %s730, 4
          %s733 = sadd.s32 %s731, %s732
          %s734 = smul.addr %s733, 4
          %s735 = scalar_lea.vmem %s3, %s734
          // Predicated region
          $region75: #{resnet_forward.37} parent=73 // pred_check
            _
          $region76: #{resnet_forward.37} parent=73 // pred_check_branch
            %737 = sbr.rel (0) target = $region78
          $region77: #{resnet_forward.37} parent=73 // pred_region
            // Predicated region
            $region79: #{resnet_forward.37} parent=77 // pred_check
              _
            $region80: #{resnet_forward.37} parent=77 // pred_check_branch
              %739 = sbr.rel (0) target = $region82
            $region81: #{resnet_forward.37} parent=77 // pred_region
              // Predicated region
              $region94: #{resnet_forward.37} parent=81 // pred_check
                _
              $region95: #{resnet_forward.37} parent=81 // pred_check_branch
                %760 = sbr.rel (0) target = $region97
              $region96: #{resnet_forward.37} parent=81 // pred_region
                loop: start=0, step=1, limit=1
                $region98: #{resnet_forward.37} parent=96 // loop_pre_header
                  _
                $region99: #{resnet_forward.37} parent=96 // loop_header
                  %s762 = sphi 0, %s766
                  %p763 = scmp.ge.s32.totalorder %s762, 1
                  %s767 = sphi %s726, %s726
                  %s768 = sphi %s735, %s735
                $region100: #{resnet_forward.37} parent=96 // loop_header_branch
                  %765 = sbr.rel (%p763) target = $region104
                $region101: #{resnet_forward.37} parent=96 // loop_body
                  %v769 = vld [vmem:[%s767] sm:$0xff]
                  %770 = vst [vmem:[%s768] sm:$0xff] %v769
                  %v771 = vld [vmem:[%s767 + $0x8] sm:$0xff]
                  %772 = vst [vmem:[%s768 + $0x10] sm:$0xff] %v771
                  %v773 = vld [vmem:[%s767 + $0x10] sm:$0xff]
                  %774 = vst [vmem:[%s768 + $0x20] sm:$0xff] %v773
                  %v775 = vld [vmem:[%s767 + $0x18] sm:$0xff]
                  %776 = vst [vmem:[%s768 + $0x30] sm:$0xff] %v775
                $region102: #{resnet_forward.37} parent=96 // loop_footer
                  %s766 = sadd.s32 1, %s762
                $region103: #{resnet_forward.37} parent=96 // loop_footer_branch
                  %761 = sbr.rel target = $region99
                $region104: #{resnet_forward.37} parent=96 // loop_exit
                  _
              $region97: #{resnet_forward.37} parent=81 // pred_fallthru
                _
              // Predicated region
              $region105: #{resnet_forward.37} parent=81 // pred_check
                _
              $region106: #{resnet_forward.37} parent=81 // pred_check_branch
                %778 = sbr.rel target = $region108
              $region107: #{resnet_forward.37} parent=81 // pred_region
                _
              $region108: #{resnet_forward.37} parent=81 // pred_fallthru
                _
            $region82: #{resnet_forward.37} parent=77 // pred_fallthru
              _
            // Predicated region
            $region83: #{resnet_forward.37} parent=77 // pred_check
              _
            $region84: #{resnet_forward.37} parent=77 // pred_check_branch
              %741 = sbr.rel target = $region86
            $region85: #{resnet_forward.37} parent=77 // pred_region
              loop: start=0, step=1, limit=1
              $region87: #{resnet_forward.37} parent=85 // loop_pre_header
                _
              $region88: #{resnet_forward.37} parent=85 // loop_header
                %s744 = sphi 0, %s748
                %p745 = scmp.ge.s32.totalorder %s744, 1
                %s749 = sphi %s726, %s726
                %s750 = sphi %s735, %s735
              $region89: #{resnet_forward.37} parent=85 // loop_header_branch
                %747 = sbr.rel (%p745) target = $region93
              $region90: #{resnet_forward.37} parent=85 // loop_body
                %v751 = vld [vmem:[%s749] sm:$0xff]
                %752 = vst [vmem:[%s750] sm:$0xff] %v751
                %v753 = vld [vmem:[%s749 + $0x8] sm:$0xff]
                %754 = vst [vmem:[%s750 + $0x10] sm:$0xff] %v753
                %v755 = vld [vmem:[%s749 + $0x10] sm:$0xff]
                %756 = vst [vmem:[%s750 + $0x20] sm:$0xff] %v755
                %v757 = vld [vmem:[%s749 + $0x18] sm:$0xff]
                %758 = vst [vmem:[%s750 + $0x30] sm:$0xff] %v757
              $region91: #{resnet_forward.37} parent=85 // loop_footer
                %s748 = sadd.s32 1, %s744
              $region92: #{resnet_forward.37} parent=85 // loop_footer_branch
                %743 = sbr.rel target = $region88
              $region93: #{resnet_forward.37} parent=85 // loop_exit
                _
            $region86: #{resnet_forward.37} parent=77 // pred_fallthru
              _
          $region78: #{resnet_forward.37} parent=73 // pred_fallthru
            _
          %779 = vnop
        $region74: #{resnet_forward.37} parent=65 // pred_fallthru
          _
      $region66: #{resnet_forward.37} parent=5 // pred_fallthru
        _
      %p780 = scmp.le.s32.totalorder 2, %s9
      // Predicated region
      $region109: #{resnet_forward.37} parent=5 // pred_check
        %p781 = pneg %p780
      $region110: #{resnet_forward.37} parent=5 // pred_check_branch
        %783 = sbr.rel (%p781) target = $region112
      $region111: #{resnet_forward.37} parent=5 // pred_region
        %s784 = ssub.s32 %s9, 2
        // Predicated region
        $region113: #{resnet_forward.37} parent=111 // pred_check
          %p785 = pneg %p141
        $region114: #{resnet_forward.37} parent=111 // pred_check_branch
          %787 = sbr.rel (%p785) target = $region116
        $region115: #{resnet_forward.37} parent=111 // pred_region
          %s788 = sand.u32 %s126, 1
          %s789 = sand.u32 %s126, 1
          %s790 = smul.addr %s789, 32
          %s791 = scalar_lea.vmem [#allocation3], %s790
        $region116: #{resnet_forward.37} parent=111 // pred_fallthru
          _
      $region112: #{resnet_forward.37} parent=5 // pred_fallthru
        _
    $region6: #{resnet_forward.37} parent=1 // loop_footer
      %s13 = sadd.s32 1, %s9
    $region7: #{resnet_forward.37} parent=1 // loop_footer_branch
      %8 = sbr.rel target = $region3
    $region8: #{resnet_forward.37} parent=1 // loop_exit
      _

// kernel: resnet_forward.40
$region0: #{resnet_forward.40}
  #allocation0 [shape = 'u32[]', space=smem, size = 0x4, offset = 0x4, fixed_abs, tag = 'smem constant byte address 0x4 - core index']
  #allocation1 [shape = 'u32[144,128]{1,0:T(1,128)}', space=vmem, size = 0x12000, scoped, tag = 'internal scratch']
  %s0 = inlined_call_operand.vmem [shape: bf16[32,128], index: 0, kind: input, shape index: {}]
  %s1 = inlined_call_operand.vmem [shape: bf16[128,512], index: 1, kind: input, shape index: {}]
  %s2 = inlined_call_operand.vmem [shape: f32[1,512], index: 2, kind: input, shape index: {}]
  %s3 = inlined_call_operand.vmem [shape: bf16[32,512], index: 3, kind: input, shape index: {}]
  %s4 = inlined_call_operand.vmem [shape: bf16[32,512], index: 4, kind: output, shape index: {}]
  %s5 = sld [smem:[#allocation0]]
  $region159: #{resnet_forward.40} parent=0
    _
  %s7 = ssub.s32 1, %s5
  %s8 = scalar_select 0, %s7, %s5
  $region1: #{resnet_forward.40} parent=0
    #allocation2 [shape = 'u8[131072]{0}', space=vmem, size = 0x20000, scoped, tag = 'input window, operand 1']
    #allocation3 [shape = 'u8[32768]{0}', space=vmem, size = 0x8000, scoped, tag = 'input window, operand 3']
    #allocation4 [shape = 'u8[32768]{0}', space=vmem, size = 0x8000, scoped, tag = 'output window, operand 0']
    loop: start=0, step=1, limit=4
    $region2: #{resnet_forward.40} parent=1 // loop_pre_header
      _
    $region3: #{resnet_forward.40} parent=1 // loop_header
      %s10 = sphi 0, %s14
      %p11 = scmp.ge.s32.totalorder %s10, 4
      %s17 = sphi 0, %s36
      %s18 = sphi 0, %s32
      %s19 = sphi 0, %s28
      %s20 = sphi 0, %s17
      %s21 = sphi 0, %s18
      %s22 = sphi 0, %s19
      %s23 = sphi 0, %s20
      %s24 = sphi 0, %s21
      %s25 = sphi 0, %s22
      %s41 = sphi 0, %s43
      %s44 = sphi 0, %s41
      %s45 = sphi 0, %s44
      %s61 = sphi 0, %s45
      %s69 = sphi 0, %s71
      %s72 = sphi 0, %s69
      %s73 = sphi 0, %s72
      %s89 = sphi 0, %s73
      %s95 = sphi 0, %s97
      %s98 = sphi 0, %s95
      %s99 = sphi 0, %s98
      %s115 = sphi 0, %s99
      %s123 = sphi 0, %s125
      %s126 = sphi 0, %s123
      %s127 = sphi 0, %s126
      %s143 = sphi 0, %s127
      %s151 = sphi 0, %s153
      %s154 = sphi 0, %s151
      %s155 = sphi 0, %s154
      %s171 = sphi 0, %s155
    $region4: #{resnet_forward.40} parent=1 // loop_header_branch
      %13 = sbr.rel (%p11) target = $region8
    $region5: #{resnet_forward.40} parent=1 // loop_body
      %s15 = ssub.s32 %s10, 1
      %s16 = ssub.s32 %s10, 2
      %s26 = sadd.s32 1, %s19
      %p27 = scmp.ge.s32.totalorder %s26, 1
      %s28 = scalar_select %p27, 0, %s26
      %s29 = sadd.s32 1, %s18
      %s30 = scalar_select %p27, %s29, %s18
      %p31 = scmp.ge.s32.totalorder %s30, 2
      %s32 = scalar_select %p31, 0, %s30
      %s33 = sadd.s32 1, %s17
      %s34 = scalar_select %p31, %s33, %s17
      %p35 = scmp.ge.s32.totalorder %s34, 1
      %s36 = scalar_select %p35, 0, %s34
      %s37 = ssub.s32 %s17, %s36
      %s38 = ssub.s32 %s19, %s28
      %s39 = sor.u32 %s37, %s38
      %p40 = scmp.eq.s32.totalorder %s39, 0
      %s42 = sadd.s32 %s41, 1
      %s43 = scalar_select %p40, %s41, %s42
      %p46 = pneg %p40
      %p47 = scmp.eq.s32.totalorder %s10, 1
      %p48 = por %p46, %p47
      %p49 = scmp.ne.s32.totalorder %s41, %s44
      %p50 = scmp.eq.s32.totalorder %s10, 0
      %p51 = por %p49, %p50
      %p52 = scmp.ne.s32.totalorder %s41, %s44
      %p53 = scmp.eq.s32.totalorder %s15, 1
      %p54 = por %p52, %p53
      %p55 = scmp.ne.s32.totalorder %s44, %s45
      %p56 = scmp.eq.s32.totalorder %s15, 0
      %p57 = por %p55, %p56
      %p58 = scmp.ne.s32.totalorder %s44, %s45
      %p59 = scmp.eq.s32.totalorder %s16, 1
      %p60 = por %p58, %p59
      %p62 = scmp.ne.s32.totalorder %s45, %s61
      %p63 = scmp.eq.s32.totalorder %s16, 0
      %p64 = por %p62, %p63
      %s65 = ssub.s32 %s19, %s28
      %s66 = ssub.s32 %s18, %s32
      %s67 = sor.u32 %s65, %s66
      %p68 = scmp.eq.s32.totalorder %s67, 0
      %s70 = sadd.s32 %s69, 1
      %s71 = scalar_select %p68, %s69, %s70
      %p74 = pneg %p68
      %p75 = scmp.eq.s32.totalorder %s10, 1
      %p76 = por %p74, %p75
      %p77 = scmp.ne.s32.totalorder %s69, %s72
      %p78 = scmp.eq.s32.totalorder %s10, 0
      %p79 = por %p77, %p78
      %p80 = scmp.ne.s32.totalorder %s69, %s72
      %p81 = scmp.eq.s32.totalorder %s15, 1
      %p82 = por %p80, %p81
      %p83 = scmp.ne.s32.totalorder %s72, %s73
      %p84 = scmp.eq.s32.totalorder %s15, 0
      %p85 = por %p83, %p84
      %p86 = scmp.ne.s32.totalorder %s72, %s73
      %p87 = scmp.eq.s32.totalorder %s16, 1
      %p88 = por %p86, %p87
      %p90 = scmp.ne.s32.totalorder %s73, %s89
      %p91 = scmp.eq.s32.totalorder %s16, 0
      %p92 = por %p90, %p91
      %s93 = ssub.s32 %s18, %s32
      %p94 = scmp.eq.s32.totalorder %s93, 0
      %s96 = sadd.s32 %s95, 1
      %s97 = scalar_select %p94, %s95, %s96
      %p100 = pneg %p94
      %p101 = scmp.eq.s32.totalorder %s10, 1
      %p102 = por %p100, %p101
      %p103 = scmp.ne.s32.totalorder %s95, %s98
      %p104 = scmp.eq.s32.totalorder %s10, 0
      %p105 = por %p103, %p104
      %p106 = scmp.ne.s32.totalorder %s95, %s98
      %p107 = scmp.eq.s32.totalorder %s15, 1
      %p108 = por %p106, %p107
      %p109 = scmp.ne.s32.totalorder %s98, %s99
      %p110 = scmp.eq.s32.totalorder %s15, 0
      %p111 = por %p109, %p110
      %p112 = scmp.ne.s32.totalorder %s98, %s99
      %p113 = scmp.eq.s32.totalorder %s16, 1
      %p114 = por %p112, %p113
      %p116 = scmp.ne.s32.totalorder %s99, %s115
      %p117 = scmp.eq.s32.totalorder %s16, 0
      %p118 = por %p116, %p117
      %s119 = ssub.s32 %s17, %s36
      %s120 = ssub.s32 %s18, %s32
      %s121 = sor.u32 %s119, %s120
      %p122 = scmp.eq.s32.totalorder %s121, 0
      %s124 = sadd.s32 %s123, 1
      %s125 = scalar_select %p122, %s123, %s124
      %p128 = pneg %p122
      %p129 = scmp.eq.s32.totalorder %s10, 1
      %p130 = por %p128, %p129
      %p131 = scmp.ne.s32.totalorder %s123, %s126
      %p132 = scmp.eq.s32.totalorder %s10, 0
      %p133 = por %p131, %p132
      %p134 = scmp.ne.s32.totalorder %s123, %s126
      %p135 = scmp.eq.s32.totalorder %s15, 1
      %p136 = por %p134, %p135
      %p137 = scmp.ne.s32.totalorder %s126, %s127
      %p138 = scmp.eq.s32.totalorder %s15, 0
      %p139 = por %p137, %p138
      %p140 = scmp.ne.s32.totalorder %s126, %s127
      %p141 = scmp.eq.s32.totalorder %s16, 1
      %p142 = por %p140, %p141
      %p144 = scmp.ne.s32.totalorder %s127, %s143
      %p145 = scmp.eq.s32.totalorder %s16, 0
      %p146 = por %p144, %p145
      %s147 = ssub.s32 %s17, %s36
      %s148 = ssub.s32 %s18, %s32
      %s149 = sor.u32 %s147, %s148
      %p150 = scmp.eq.s32.totalorder %s149, 0
      %s152 = sadd.s32 %s151, 1
      %s153 = scalar_select %p150, %s151, %s152
      %p156 = pneg %p150
      %p157 = scmp.eq.s32.totalorder %s10, 1
      %p158 = por %p156, %p157
      %p159 = scmp.ne.s32.totalorder %s151, %s154
      %p160 = scmp.eq.s32.totalorder %s10, 0
      %p161 = por %p159, %p160
      %p162 = scmp.ne.s32.totalorder %s151, %s154
      %p163 = scmp.eq.s32.totalorder %s15, 1
      %p164 = por %p162, %p163
      %p165 = scmp.ne.s32.totalorder %s154, %s155
      %p166 = scmp.eq.s32.totalorder %s15, 0
      %p167 = por %p165, %p166
      %p168 = scmp.ne.s32.totalorder %s154, %s155
      %p169 = scmp.eq.s32.totalorder %s16, 1
      %p170 = por %p168, %p169
      %p172 = scmp.ne.s32.totalorder %s155, %s171
      %p173 = scmp.eq.s32.totalorder %s16, 0
      %p174 = por %p172, %p173
      %p175 = scmp.le.s32.totalorder 1, %s10
      %p176 = scmp.lt.s32.totalorder %s10, 3
      %p177 = pnand %p175, %p176
      %p178 = pneg %p177
      // Predicated region
      $region9: #{resnet_forward.40} parent=5 // pred_check
        _
      $region10: #{resnet_forward.40} parent=5 // pred_check_branch
        %180 = sbr.rel (%p177) target = $region12
      $region11: #{resnet_forward.40} parent=5 // pred_region
        %s181 = ssub.s32 %s10, 1
        // Predicated region
        $region13: #{resnet_forward.40} parent=11 // pred_check
          %p182 = pneg %p57
        $region14: #{resnet_forward.40} parent=11 // pred_check_branch
          %184 = sbr.rel (%p182) target = $region16
        $region15: #{resnet_forward.40} parent=11 // pred_region
          %s185 = smul.u32 4, %s20
          %p186 = scmp.lt.s32.totalorder %s185, 3
          %s187 = scalar_select %p186, %s185, 3
          %p188 = scmp.lt.s32.totalorder %s22, 0
          %s189 = scalar_select %p188, %s22, 0
          %s190 = sadd.s32 %s189, %s187
          %s191 = smul.addr %s190, 4
          %s192 = scalar_lea.vmem %s0, %s191
          %s193 = smul.u32 4, %s20
        $region16: #{resnet_forward.40} parent=11 // pred_fallthru
          _
      $region12: #{resnet_forward.40} parent=5 // pred_fallthru
        _
      %p194 = scmp.lt.s32.totalorder %s10, 2
      // Predicated region
      $region17: #{resnet_forward.40} parent=5 // pred_check
        %p195 = pneg %p194
      $region18: #{resnet_forward.40} parent=5 // pred_check_branch
        %197 = sbr.rel (%p195) target = $region20
      $region19: #{resnet_forward.40} parent=5 // pred_region
        // Predicated region
        $region21: #{resnet_forward.40} parent=19 // pred_check
          %p198 = pneg %p79
        $region22: #{resnet_forward.40} parent=19 // pred_check_branch
          %200 = sbr.rel (%p198) target = $region24
        $region23: #{resnet_forward.40} parent=19 // pred_region
          %s201 = sand.u32 %s69, 1
          %s202 = sand.u32 %s69, 1
          %s203 = smul.addr %s202, 128
          %s204 = scalar_lea.vmem [#allocation2], %s203
          %s205 = smul.u32 16, %s19
          %s206 = smul.u32 2, %s18
          %s207 = smul.addr %s205, 4
          %s208 = sadd.s32 %s206, %s207
          %s209 = smul.addr %s208, 4
          %s210 = scalar_lea.vmem %s1, %s209
          // Predicated region
          $region25: #{resnet_forward.40} parent=23 // pred_check
            _
          $region26: #{resnet_forward.40} parent=23 // pred_check_branch
            %212 = sbr.rel (0) target = $region28
          $region27: #{resnet_forward.40} parent=23 // pred_region
            // Predicated region
            $region29: #{resnet_forward.40} parent=27 // pred_check
              _
            $region30: #{resnet_forward.40} parent=27 // pred_check_branch
              %214 = sbr.rel (0) target = $region32
            $region31: #{resnet_forward.40} parent=27 // pred_region
              // Predicated region
              $region44: #{resnet_forward.40} parent=31 // pred_check
                _
              $region45: #{resnet_forward.40} parent=31 // pred_check_branch
                %259 = sbr.rel (0) target = $region47
              $region46: #{resnet_forward.40} parent=31 // pred_region
                loop: start=0, step=1, limit=1
                $region48: #{resnet_forward.40} parent=46 // loop_pre_header
                  _
                $region49: #{resnet_forward.40} parent=46 // loop_header
                  %s261 = sphi 0, %s265
                  %p262 = scmp.ge.s32.totalorder %s261, 1
                  %s266 = sphi %s210, %s210
                  %s267 = sphi %s204, %s204
                $region50: #{resnet_forward.40} parent=46 // loop_header_branch
                  %264 = sbr.rel (%p262) target = $region54
                $region51: #{resnet_forward.40} parent=46 // loop_body
                  %v268 = vld [vmem:[%s266] sm:$0xff]
                  %269 = vst [vmem:[%s267] sm:$0xff] %v268
                  %v270 = vld [vmem:[%s266 + $0x10] sm:$0xff]
                  %271 = vst [vmem:[%s267 + $0x8] sm:$0xff] %v270
                  %v272 = vld [vmem:[%s266 + $0x20] sm:$0xff]
                  %273 = vst [vmem:[%s267 + $0x10] sm:$0xff] %v272
                  %v274 = vld [vmem:[%s266 + $0x30] sm:$0xff]
                  %275 = vst [vmem:[%s267 + $0x18] sm:$0xff] %v274
                  %v276 = vld [vmem:[%s266 + $0x40] sm:$0xff]
                  %277 = vst [vmem:[%s267 + $0x20] sm:$0xff] %v276
                  %v278 = vld [vmem:[%s266 + $0x50] sm:$0xff]
                  %279 = vst [vmem:[%s267 + $0x28] sm:$0xff] %v278
                  %v280 = vld [vmem:[%s266 + $0x60] sm:$0xff]
                  %281 = vst [vmem:[%s267 + $0x30] sm:$0xff] %v280
                  %v282 = vld [vmem:[%s266 + $0x70] sm:$0xff]
                  %283 = vst [vmem:[%s267 + $0x38] sm:$0xff] %v282
                  %v284 = vld [vmem:[%s266 + $0x80] sm:$0xff]
                  %285 = vst [vmem:[%s267 + $0x40] sm:$0xff] %v284
                  %v286 = vld [vmem:[%s266 + $0x90] sm:$0xff]
                  %287 = vst [vmem:[%s267 + $0x48] sm:$0xff] %v286
                  %v288 = vld [vmem:[%s266 + $0xa0] sm:$0xff]
                  %289 = vst [vmem:[%s267 + $0x50] sm:$0xff] %v288
                  %v290 = vld [vmem:[%s266 + $0xb0] sm:$0xff]
                  %291 = vst [vmem:[%s267 + $0x58] sm:$0xff] %v290
                  %v292 = vld [vmem:[%s266 + $0xc0] sm:$0xff]
                  %293 = vst [vmem:[%s267 + $0x60] sm:$0xff] %v292
                  %v294 = vld [vmem:[%s266 + $0xd0] sm:$0xff]
                  %295 = vst [vmem:[%s267 + $0x68] sm:$0xff] %v294
                  %v296 = vld [vmem:[%s266 + $0xe0] sm:$0xff]
                  %297 = vst [vmem:[%s267 + $0x70] sm:$0xff] %v296
                  %v298 = vld [vmem:[%s266 + $0xf0] sm:$0xff]
                  %299 = vst [vmem:[%s267 + $0x78] sm:$0xff] %v298
                $region52: #{resnet_forward.40} parent=46 // loop_footer
                  %s265 = sadd.s32 1, %s261
                $region53: #{resnet_forward.40} parent=46 // loop_footer_branch
                  %260 = sbr.rel target = $region49
                $region54: #{resnet_forward.40} parent=46 // loop_exit
                  _
              $region47: #{resnet_forward.40} parent=31 // pred_fallthru
                _
              // Predicated region
              $region55: #{resnet_forward.40} parent=31 // pred_check
                _
              $region56: #{resnet_forward.40} parent=31 // pred_check_branch
                %301 = sbr.rel target = $region58
              $region57: #{resnet_forward.40} parent=31 // pred_region
                _
              $region58: #{resnet_forward.40} parent=31 // pred_fallthru
                _
            $region32: #{resnet_forward.40} parent=27 // pred_fallthru
              _
            // Predicated region
            $region33: #{resnet_forward.40} parent=27 // pred_check
              _
            $region34: #{resnet_forward.40} parent=27 // pred_check_branch
              %216 = sbr.rel target = $region36
            $region35: #{resnet_forward.40} parent=27 // pred_region
              loop: start=0, step=1, limit=1
              $region37: #{resnet_forward.40} parent=35 // loop_pre_header
                _
              $region38: #{resnet_forward.40} parent=35 // loop_header
                %s219 = sphi 0, %s223
                %p220 = scmp.ge.s32.totalorder %s219, 1
                %s224 = sphi %s210, %s210
                %s225 = sphi %s204, %s204
              $region39: #{resnet_forward.40} parent=35 // loop_header_branch
                %222 = sbr.rel (%p220) target = $region43
              $region40: #{resnet_forward.40} parent=35 // loop_body
                %v226 = vld [vmem:[%s224] sm:$0xff]
                %227 = vst [vmem:[%s225] sm:$0xff] %v226
                %v228 = vld [vmem:[%s224 + $0x10] sm:$0xff]
                %229 = vst [vmem:[%s225 + $0x8] sm:$0xff] %v228
                %v230 = vld [vmem:[%s224 + $0x20] sm:$0xff]
                %231 = vst [vmem:[%s225 + $0x10] sm:$0xff] %v230
                %v232 = vld [vmem:[%s224 + $0x30] sm:$0xff]
                %233 = vst [vmem:[%s225 + $0x18] sm:$0xff] %v232
                %v234 = vld [vmem:[%s224 + $0x40] sm:$0xff]
                %235 = vst [vmem:[%s225 + $0x20] sm:$0xff] %v234
                %v236 = vld [vmem:[%s224 + $0x50] sm:$0xff]
                %237 = vst [vmem:[%s225 + $0x28] sm:$0xff] %v236
                %v238 = vld [vmem:[%s224 + $0x60] sm:$0xff]
                %239 = vst [vmem:[%s225 + $0x30] sm:$0xff] %v238
                %v240 = vld [vmem:[%s224 + $0x70] sm:$0xff]
                %241 = vst [vmem:[%s225 + $0x38] sm:$0xff] %v240
                %v242 = vld [vmem:[%s224 + $0x80] sm:$0xff]
                %243 = vst [vmem:[%s225 + $0x40] sm:$0xff] %v242
                %v244 = vld [vmem:[%s224 + $0x90] sm:$0xff]
                %245 = vst [vmem:[%s225 + $0x48] sm:$0xff] %v244
                %v246 = vld [vmem:[%s224 + $0xa0] sm:$0xff]
                %247 = vst [vmem:[%s225 + $0x50] sm:$0xff] %v246
                %v248 = vld [vmem:[%s224 + $0xb0] sm:$0xff]
                %249 = vst [vmem:[%s225 + $0x58] sm:$0xff] %v248
                %v250 = vld [vmem:[%s224 + $0xc0] sm:$0xff]
                %251 = vst [vmem:[%s225 + $0x60] sm:$0xff] %v250
                %v252 = vld [vmem:[%s224 + $0xd0] sm:$0xff]
                %253 = vst [vmem:[%s225 + $0x68] sm:$0xff] %v252
                %v254 = vld [vmem:[%s224 + $0xe0] sm:$0xff]
                %255 = vst [vmem:[%s225 + $0x70] sm:$0xff] %v254
                %v256 = vld [vmem:[%s224 + $0xf0] sm:$0xff]
                %257 = vst [vmem:[%s225 + $0x78] sm:$0xff] %v256
              $region41: #{resnet_forward.40} parent=35 // loop_footer
                %s223 = sadd.s32 1, %s219
              $region42: #{resnet_forward.40} parent=35 // loop_footer_branch
                %218 = sbr.rel target = $region38
              $region43: #{resnet_forward.40} parent=35 // loop_exit
                _
            $region36: #{resnet_forward.40} parent=27 // pred_fallthru
              _
          $region28: #{resnet_forward.40} parent=23 // pred_fallthru
            _
          %302 = vnop
        $region24: #{resnet_forward.40} parent=19 // pred_fallthru
          _
        // Predicated region
        $region59: #{resnet_forward.40} parent=19 // pred_check
          %p303 = pneg %p105
        $region60: #{resnet_forward.40} parent=19 // pred_check_branch
          %305 = sbr.rel (%p303) target = $region62
        $region61: #{resnet_forward.40} parent=19 // pred_region
          %s306 = smul.u32 2, %s18
          %p307 = scmp.lt.s32.totalorder %s306, 3
          %s308 = scalar_select %p307, %s306, 3
          %s309 = scalar_lea.vmem %s2, %s308
          %s310 = smul.u32 2, %s18
        $region62: #{resnet_forward.40} parent=19 // pred_fallthru
          _
        // Predicated region
        $region63: #{resnet_forward.40} parent=19 // pred_check
          %p311 = pneg %p133
        $region64: #{resnet_forward.40} parent=19 // pred_check_branch
          %313 = sbr.rel (%p311) target = $region66
        $region65: #{resnet_forward.40} parent=19 // pred_region
          %s314 = sand.u32 %s123, 1
          %s315 = sand.u32 %s123, 1
          %s316 = smul.addr %s315, 32
          %s317 = scalar_lea.vmem [#allocation3], %s316
          %s318 = smul.u32 4, %s17
          %s319 = smul.u32 2, %s18
          %s320 = smul.addr %s318, 4
          %s321 = sadd.s32 %s319, %s320
          %s322 = smul.addr %s321, 4
          %s323 = scalar_lea.vmem %s3, %s322
          // Predicated region
          $region67: #{resnet_forward.40} parent=65 // pred_check
            _
          $region68: #{resnet_forward.40} parent=65 // pred_check_branch
            %325 = sbr.rel (0) target = $region70
          $region69: #{resnet_forward.40} parent=65 // pred_region
            // Predicated region
            $region71: #{resnet_forward.40} parent=69 // pred_check
              _
            $region72: #{resnet_forward.40} parent=69 // pred_check_branch
              %327 = sbr.rel (0) target = $region74
            $region73: #{resnet_forward.40} parent=69 // pred_region
              // Predicated region
              $region86: #{resnet_forward.40} parent=73 // pred_check
                _
              $region87: #{resnet_forward.40} parent=73 // pred_check_branch
                %348 = sbr.rel (0) target = $region89
              $region88: #{resnet_forward.40} parent=73 // pred_region
                loop: start=0, step=1, limit=1
                $region90: #{resnet_forward.40} parent=88 // loop_pre_header
                  _
                $region91: #{resnet_forward.40} parent=88 // loop_header
                  %s350 = sphi 0, %s354
                  %p351 = scmp.ge.s32.totalorder %s350, 1
                  %s355 = sphi %s323, %s323
                  %s356 = sphi %s317, %s317
                $region92: #{resnet_forward.40} parent=88 // loop_header_branch
                  %353 = sbr.rel (%p351) target = $region96
                $region93: #{resnet_forward.40} parent=88 // loop_body
                  %v357 = vld [vmem:[%s355] sm:$0xff]
                  %358 = vst [vmem:[%s356] sm:$0xff] %v357
                  %v359 = vld [vmem:[%s355 + $0x10] sm:$0xff]
                  %360 = vst [vmem:[%s356 + $0x8] sm:$0xff] %v359
                  %v361 = vld [vmem:[%s355 + $0x20] sm:$0xff]
                  %362 = vst [vmem:[%s356 + $0x10] sm:$0xff] %v361
                  %v363 = vld [vmem:[%s355 + $0x30] sm:$0xff]
                  %364 = vst [vmem:[%s356 + $0x18] sm:$0xff] %v363
                $region94: #{resnet_forward.40} parent=88 // loop_footer
                  %s354 = sadd.s32 1, %s350
                $region95: #{resnet_forward.40} parent=88 // loop_footer_branch
                  %349 = sbr.rel target = $region91
                $region96: #{resnet_forward.40} parent=88 // loop_exit
                  _
              $region89: #{resnet_forward.40} parent=73 // pred_fallthru
                _
              // Predicated region
              $region97: #{resnet_forward.40} parent=73 // pred_check
                _
              $region98: #{resnet_forward.40} parent=73 // pred_check_branch
                %366 = sbr.rel target = $region100
              $region99: #{resnet_forward.40} parent=73 // pred_region
                _
              $region100: #{resnet_forward.40} parent=73 // pred_fallthru
                _
            $region74: #{resnet_forward.40} parent=69 // pred_fallthru
              _
            // Predicated region
            $region75: #{resnet_forward.40} parent=69 // pred_check
              _
            $region76: #{resnet_forward.40} parent=69 // pred_check_branch
              %329 = sbr.rel target = $region78
            $region77: #{resnet_forward.40} parent=69 // pred_region
              loop: start=0, step=1, limit=1
              $region79: #{resnet_forward.40} parent=77 // loop_pre_header
                _
              $region80: #{resnet_forward.40} parent=77 // loop_header
                %s332 = sphi 0, %s336
                %p333 = scmp.ge.s32.totalorder %s332, 1
                %s337 = sphi %s323, %s323
                %s338 = sphi %s317, %s317
              $region81: #{resnet_forward.40} parent=77 // loop_header_branch
                %335 = sbr.rel (%p333) target = $region85
              $region82: #{resnet_forward.40} parent=77 // loop_body
                %v339 = vld [vmem:[%s337] sm:$0xff]
                %340 = vst [vmem:[%s338] sm:$0xff] %v339
                %v341 = vld [vmem:[%s337 + $0x10] sm:$0xff]
                %342 = vst [vmem:[%s338 + $0x8] sm:$0xff] %v341
                %v343 = vld [vmem:[%s337 + $0x20] sm:$0xff]
                %344 = vst [vmem:[%s338 + $0x10] sm:$0xff] %v343
                %v345 = vld [vmem:[%s337 + $0x30] sm:$0xff]
                %346 = vst [vmem:[%s338 + $0x18] sm:$0xff] %v345
              $region83: #{resnet_forward.40} parent=77 // loop_footer
                %s336 = sadd.s32 1, %s332
              $region84: #{resnet_forward.40} parent=77 // loop_footer_branch
                %331 = sbr.rel target = $region80
              $region85: #{resnet_forward.40} parent=77 // loop_exit
                _
            $region78: #{resnet_forward.40} parent=69 // pred_fallthru
              _
          $region70: #{resnet_forward.40} parent=65 // pred_fallthru
            _
          %367 = vnop
        $region66: #{resnet_forward.40} parent=19 // pred_fallthru
          _
      $region20: #{resnet_forward.40} parent=5 // pred_fallthru
        _
      %p368 = scmp.le.s32.totalorder 1, %s10
      %p369 = scmp.lt.s32.totalorder %s10, 3
      %p370 = pnand %p368, %p369
      %p371 = pneg %p370
      // Predicated region
      $region101: #{resnet_forward.40} parent=5 // pred_check
        _
      $region102: #{resnet_forward.40} parent=5 // pred_check_branch
        %373 = sbr.rel (%p370) target = $region104
      $region103: #{resnet_forward.40} parent=5 // pred_region
        %s374 = ssub.s32 %s10, 1
        %s375 = sand.u32 %s72, 1
        %s376 = sand.u32 %s72, 1
        %s377 = smul.addr %s376, 128
        %s378 = scalar_lea.vmem [#allocation2], %s377
        // Predicated region
        $region105: #{resnet_forward.40} parent=103 // pred_check
          %p379 = pneg %p85
        $region106: #{resnet_forward.40} parent=103 // pred_check_branch
          %381 = sbr.rel (%p379) target = $region108
        $region107: #{resnet_forward.40} parent=103 // pred_region
          _
        $region108: #{resnet_forward.40} parent=103 // pred_fallthru
          _
        %s382 = sand.u32 %s126, 1
        %s383 = sand.u32 %s126, 1
        %s384 = smul.addr %s383, 32
        %s385 = scalar_lea.vmem [#allocation3], %s384
        // Predicated region
        $region109: #{resnet_forward.40} parent=103 // pred_check
          %p386 = pneg %p139
        $region110: #{resnet_forward.40} parent=103 // pred_check_branch
          %388 = sbr.rel (%p386) target = $region112
        $region111: #{resnet_forward.40} parent=103 // pred_region
          _
        $region112: #{resnet_forward.40} parent=103 // pred_fallthru
          _
        %s389 = smul.u32 4, %s20
        %p390 = scmp.lt.s32.totalorder %s389, 3
        %s391 = scalar_select %p390, %s389, 3
        %p392 = scmp.lt.s32.totalorder %s22, 0
        %s393 = scalar_select %p392, %s22, 0
        %s394 = sadd.s32 %s393, %s391
        %s395 = smul.addr %s394, 4
        %s396 = scalar_lea.vmem %s0, %s395
        %p397 = pneg %p57
        %p398 = pneg %p54
        %s399 = sand.u32 %s72, 1
        %s400 = sand.u32 %s72, 1
        %s401 = smul.addr %s400, 128
        %s402 = scalar_lea.vmem [#allocation2], %s401
        %p403 = pneg %p85
        %p404 = pneg %p82
        %s405 = smul.u32 2, %s21
        %p406 = scmp.lt.s32.totalorder %s405, 3
        %s407 = scalar_select %p406, %s405, 3
        %s408 = scalar_lea.vmem %s2, %s407
        %p409 = pneg %p111
        %p410 = pneg %p108
        %s411 = sand.u32 %s126, 1
        %s412 = sand.u32 %s126, 1
        %s413 = smul.addr %s412, 32
        %s414 = scalar_lea.vmem [#allocation3], %s413
        %p415 = pneg %p139
        %p416 = pneg %p136
        %p417 = pneg %p167
        %p418 = pneg %p164
        %s419 = sand.u32 %s154, 1
        %s420 = sand.u32 %s154, 1
        %s421 = smul.addr %s420, 32
        %s422 = scalar_lea.vmem [#allocation4], %s421
        %s423 = smul.u32 4, %s20
        %p424 = scmp.lt.s32.totalorder %s423, 3
        %s425 = scalar_select %p424, %s423, 3
        %p426 = scmp.lt.s32.totalorder %s22, 0
        %s427 = scalar_select %p426, %s22, 0
        %s428 = sadd.s32 %s427, %s425
        %s429 = smul.addr %s428, 4
        %s430 = scalar_lea.vmem %s0, %s429
        %s431 = smul.u32 4, %s20
        %s432 = smul.u32 16, %s22
        %s433 = smul.u32 2, %s21
        %s434 = smul.u32 2, %s21
        %p435 = scmp.lt.s32.totalorder %s434, 3
        %s436 = scalar_select %p435, %s434, 3
        %s437 = scalar_lea.vmem %s2, %s436
        %s438 = smul.u32 2, %s21
        %s439 = smul.u32 4, %s20
        %s440 = smul.u32 2, %s21
        %s441 = smul.u32 4, %s20
        %s442 = smul.u32 2, %s21
        %v444 = vld [vmem:[%s430] sm:$0xf]
        %v445 = vld [vmem:[%s430 + $0x4] sm:$0xf]
        %v446 = vld [vmem:[%s430 + $0x8] sm:$0xf]
        %v447 = vld [vmem:[%s430 + $0xc] sm:$0xf]
        %v448 = vld [vmem:[%s378] sm:$0xff]
        %v449 = vld [vmem:[%s378 + $0x8] sm:$0xff]
        %v450 = vld [vmem:[%s378 + $0x10] sm:$0xff]
        %v451 = vld [vmem:[%s378 + $0x18] sm:$0xff]
        %v452 = vld [vmem:[%s378 + $0x20] sm:$0xff]
        %v453 = vld [vmem:[%s378 + $0x28] sm:$0xff]
        %v454 = vld [vmem:[%s378 + $0x30] sm:$0xff]
        %v455 = vld [vmem:[%s378 + $0x38] sm:$0xff]
        %v456 = vld [vmem:[%s378 + $0x40] sm:$0xff]
        %v457 = vld [vmem:[%s378 + $0x48] sm:$0xff]
        %v458 = vld [vmem:[%s378 + $0x50] sm:$0xff]
        %v459 = vld [vmem:[%s378 + $0x58] sm:$0xff]
        %v460 = vld [vmem:[%s378 + $0x60] sm:$0xff]
        %v461 = vld [vmem:[%s378 + $0x68] sm:$0xff]
        %v462 = vld [vmem:[%s378 + $0x70] sm:$0xff]
        %v463 = vld [vmem:[%s378 + $0x78] sm:$0xff]
        %v464 = vld [vmem:[%s437] sm:$0x3]
        %v466 = vlaneseq
        %v467 = vshrl.u32 %v466, 7
        %v468 = vsub.s32 0, %v467
        %v469 = vrot.slane %v464, %v468
        %v470 = vlaneseq
        %v471 = vshrl.u32 %v470, 7
        %v472 = vsub.s32 1, %v471
        %v473 = vrot.slane %v464, %v472
        %v480 = vunpack.c.l.b16 %v444
        %v481 = vunpack.c.l.b16 %v445
        %v482 = vunpack.c.l.b16 %v446
        %v483 = vunpack.c.l.b16 %v447
        %v484 = vpack.c.b16 %v481, %v480
        %v485 = vpack.c.b16 %v483, %v482
        %v504 = vunpack.c.l.b16 %v448
        %v505 = vunpack.c.h.b16 %v448
        %v506 = vunpack.c.l.b16 %v449
        %v507 = vunpack.c.h.b16 %v449
        %v508 = vunpack.c.l.b16 %v450
        %v509 = vunpack.c.h.b16 %v450
        %v510 = vunpack.c.l.b16 %v451
        %v511 = vunpack.c.h.b16 %v451
        %v512 = vunpack.c.l.b16 %v452
        %v513 = vunpack.c.h.b16 %v452
        %v514 = vunpack.c.l.b16 %v453
        %v515 = vunpack.c.h.b16 %v453
        %v516 = vunpack.c.l.b16 %v454
        %v517 = vunpack.c.h.b16 %v454
        %v518 = vunpack.c.l.b16 %v455
        %v519 = vunpack.c.h.b16 %v455
        %v520 = vunpack.c.l.b16 %v456
        %v521 = vunpack.c.h.b16 %v456
        %v522 = vunpack.c.l.b16 %v457
        %v523 = vunpack.c.h.b16 %v457
        %v524 = vunpack.c.l.b16 %v458
        %v525 = vunpack.c.h.b16 %v458
        %v526 = vunpack.c.l.b16 %v459
        %v527 = vunpack.c.h.b16 %v459
        %v528 = vunpack.c.l.b16 %v460
        %v529 = vunpack.c.h.b16 %v460
        %v530 = vunpack.c.l.b16 %v461
        %v531 = vunpack.c.h.b16 %v461
        %v532 = vunpack.c.l.b16 %v462
        %v533 = vunpack.c.h.b16 %v462
        %v534 = vunpack.c.l.b16 %v463
        %v535 = vunpack.c.h.b16 %v463
        %v536 = vpack.c.b16 %v506, %v504
        %v537 = vpack.c.b16 %v507, %v505
        %v538 = vpack.c.b16 %v510, %v508
        %v539 = vpack.c.b16 %v511, %v509
        %v540 = vpack.c.b16 %v514, %v512
        %v541 = vpack.c.b16 %v515, %v513
        %v542 = vpack.c.b16 %v518, %v516
        %v543 = vpack.c.b16 %v519, %v517
        %v544 = vpack.c.b16 %v522, %v520
        %v545 = vpack.c.b16 %v523, %v521
        %v546 = vpack.c.b16 %v526, %v524
        %v547 = vpack.c.b16 %v527, %v525
        %v548 = vpack.c.b16 %v530, %v528
        %v549 = vpack.c.b16 %v531, %v529
        %v550 = vpack.c.b16 %v534, %v532
        %v551 = vpack.c.b16 %v535, %v533
        %568 = vmatprep.subr.bf16.mxu0 %v537
        %569 = vmatpush1.bf16.msra.mxu0 %v536
        %570 = vmatprep.subr.bf16.mxu0 %v539
        %571 = vmatpush1.bf16.msra.mxu0 %v538
        %572 = vmatprep.subr.bf16.mxu0 %v541
        %573 = vmatpush1.bf16.msra.mxu0 %v540
        %574 = vmatprep.subr.bf16.mxu0 %v543
        %575 = vmatpush1.bf16.msra.mxu0 %v542
        %576 = vmatprep.subr.bf16.mxu0 %v545
        %577 = vmatpush1.bf16.msra.mxu0 %v544
        %578 = vmatprep.subr.bf16.mxu0 %v547
        %579 = vmatpush1.bf16.msra.mxu0 %v546
        %580 = vmatprep.subr.bf16.mxu0 %v549
        %581 = vmatpush1.bf16.msra.mxu0 %v548
        %582 = vmatprep.subr.bf16.mxu0 %v551
        %583 = vmatpush1.bf16.msra.mxu0 %v550
        %584 = vmatprep.subr.bf16.mxu0 0
        %585 = vmatpush1.bf16.msra.mxu0 0
        %586 = vmatprep.subr.bf16.mxu0 0
        %587 = vmatpush1.bf16.msra.mxu0 0
        %588 = vmatprep.subr.bf16.mxu0 0
        %589 = vmatpush1.bf16.msra.mxu0 0
        %590 = vmatprep.subr.bf16.mxu0 0
        %591 = vmatpush1.bf16.msra.mxu0 0
        %592 = vmatprep.subr.bf16.mxu0 0
        %593 = vmatpush1.bf16.msra.mxu0 0
        %594 = vmatprep.subr.bf16.mxu0 0
        %595 = vmatpush1.bf16.msra.mxu0 0
        %596 = vmatprep.subr.bf16.mxu0 0
        %597 = vmatpush1.bf16.msra.mxu0 0
        %598 = vmatprep.subr.bf16.mxu0 0
        %599 = vmatpush1.bf16.msra.mxu0 0
        %600 = vmatprep.mubr.bf16.mxu0 0
        %601 = vmatmul.mubr.bf16.gmra.mrb[0].mxu0 %v484
        %v602 = vpop.f32.mrb[0].mxu0
        %v603 = vadd.f32 %v469, %v602
        %v604 = vpop.f32.mrb[0].mxu0
        %v605 = vadd.f32 %v473, %v604
        %v606 = vpop.f32.mrb[0].mxu0
        %v607 = vadd.f32 %v469, %v606
        %v608 = vpop.f32.mrb[0].mxu0
        %v609 = vadd.f32 %v473, %v608
        %610 = vmatprep.mubr.bf16.mxu0 0
        %611 = vmatmul.mubr.bf16.gmra.mrb[0].mxu0 %v485
        %v612 = vpop.f32.mrb[0].mxu0
        %v613 = vadd.f32 %v469, %v612
        %v614 = vpop.f32.mrb[0].mxu0
        %v615 = vadd.f32 %v473, %v614
        %v616 = vpop.f32.mrb[0].mxu0
        %v617 = vadd.f32 %v469, %v616
        %v618 = vpop.f32.mrb[0].mxu0
        %v619 = vadd.f32 %v473, %v618
        %620 = vdwg.mxu0
        %v621 = vld [vmem:[%s385] sm:$0xff]
        %v622 = vld [vmem:[%s385 + $0x8] sm:$0xff]
        %v623 = vld [vmem:[%s385 + $0x10] sm:$0xff]
        %v624 = vld [vmem:[%s385 + $0x18] sm:$0xff]
        %v625 = vunpack.c.l.bf16 %v621
        %v626 = vunpack.c.h.bf16 %v621
        %v627 = vunpack.c.l.bf16 %v622
        %v628 = vunpack.c.h.bf16 %v622
        %v629 = vunpack.c.l.bf16 %v623
        %v630 = vunpack.c.h.bf16 %v623
        %v631 = vunpack.c.l.bf16 %v624
        %v632 = vunpack.c.h.bf16 %v624
        %v633 = vadd.f32 %v603, %v625
        %v634 = vadd.f32 %v605, %v626
        %v635 = vadd.f32 %v607, %v627
        %v636 = vadd.f32 %v609, %v628
        %v637 = vadd.f32 %v613, %v629
        %v638 = vadd.f32 %v615, %v630
        %v639 = vadd.f32 %v617, %v631
        %v640 = vadd.f32 %v619, %v632
        %v641 = vmax.f32 %v633, 0.0
        %v642 = vmax.f32 %v634, 0.0
        %v643 = vmax.f32 %v635, 0.0
        %v644 = vmax.f32 %v636, 0.0
        %v645 = vmax.f32 %v637, 0.0
        %v646 = vmax.f32 %v638, 0.0
        %v647 = vmax.f32 %v639, 0.0
        %v648 = vmax.f32 %v640, 0.0
        %v649 = vpack.c.bf16 %v643, %v641
        %v650 = vpack.c.bf16 %v644, %v642
        %v651 = vpack.c.bf16 %v647, %v645
        %v652 = vpack.c.bf16 %v648, %v646
        %v657 = vunpack.c.l.b16 %v649
        %v658 = vunpack.c.l.b16 %v650
        %v659 = vunpack.c.h.b16 %v649
        %v660 = vunpack.c.h.b16 %v650
        %v661 = vunpack.c.l.b16 %v651
        %v662 = vunpack.c.l.b16 %v652
        %v663 = vunpack.c.h.b16 %v651
        %v664 = vunpack.c.h.b16 %v652
        %v665 = vpack.c.b16 %v658, %v657
        %v666 = vpack.c.b16 %v660, %v659
        %v667 = vpack.c.b16 %v662, %v661
        %v668 = vpack.c.b16 %v664, %v663
        %673 = vst [vmem:[%s422] sm:$0xff] %v665
        %674 = vst [vmem:[%s422 + $0x8] sm:$0xff] %v666
        %675 = vst [vmem:[%s422 + $0x10] sm:$0xff] %v667
        %676 = vst [vmem:[%s422 + $0x18] sm:$0xff] %v668
        %s677 = sand.u32 %s154, 1
        %s678 = sand.u32 %s154, 1
        %s679 = smul.addr %s678, 32
        %s680 = scalar_lea.vmem [#allocation4], %s679
        // Predicated region
        $region113: #{resnet_forward.40} parent=103 // pred_check
          %p681 = pneg %p164
        $region114: #{resnet_forward.40} parent=103 // pred_check_branch
          %683 = sbr.rel (%p681) target = $region116
        $region115: #{resnet_forward.40} parent=103 // pred_region
          %s684 = smul.u32 4, %s20
          %s685 = smul.u32 2, %s21
          %s686 = smul.addr %s684, 4
          %s687 = sadd.s32 %s685, %s686
          %s688 = smul.addr %s687, 4
          %s689 = scalar_lea.vmem %s4, %s688
          // Predicated region
          $region117: #{resnet_forward.40} parent=115 // pred_check
            _
          $region118: #{resnet_forward.40} parent=115 // pred_check_branch
            %691 = sbr.rel (0) target = $region120
          $region119: #{resnet_forward.40} parent=115 // pred_region
            // Predicated region
            $region121: #{resnet_forward.40} parent=119 // pred_check
              _
            $region122: #{resnet_forward.40} parent=119 // pred_check_branch
              %693 = sbr.rel (0) target = $region124
            $region123: #{resnet_forward.40} parent=119 // pred_region
              // Predicated region
              $region136: #{resnet_forward.40} parent=123 // pred_check
                _
              $region137: #{resnet_forward.40} parent=123 // pred_check_branch
                %714 = sbr.rel (0) target = $region139
              $region138: #{resnet_forward.40} parent=123 // pred_region
                loop: start=0, step=1, limit=1
                $region140: #{resnet_forward.40} parent=138 // loop_pre_header
                  _
                $region141: #{resnet_forward.40} parent=138 // loop_header
                  %s716 = sphi 0, %s720
                  %p717 = scmp.ge.s32.totalorder %s716, 1
                  %s721 = sphi %s680, %s680
                  %s722 = sphi %s689, %s689
                $region142: #{resnet_forward.40} parent=138 // loop_header_branch
                  %719 = sbr.rel (%p717) target = $region146
                $region143: #{resnet_forward.40} parent=138 // loop_body
                  %v723 = vld [vmem:[%s721] sm:$0xff]
                  %724 = vst [vmem:[%s722] sm:$0xff] %v723
                  %v725 = vld [vmem:[%s721 + $0x8] sm:$0xff]
                  %726 = vst [vmem:[%s722 + $0x10] sm:$0xff] %v725
                  %v727 = vld [vmem:[%s721 + $0x10] sm:$0xff]
                  %728 = vst [vmem:[%s722 + $0x20] sm:$0xff] %v727
                  %v729 = vld [vmem:[%s721 + $0x18] sm:$0xff]
                  %730 = vst [vmem:[%s722 + $0x30] sm:$0xff] %v729
                $region144: #{resnet_forward.40} parent=138 // loop_footer
                  %s720 = sadd.s32 1, %s716
                $region145: #{resnet_forward.40} parent=138 // loop_footer_branch
                  %715 = sbr.rel target = $region141
                $region146: #{resnet_forward.40} parent=138 // loop_exit
                  _
              $region139: #{resnet_forward.40} parent=123 // pred_fallthru
                _
              // Predicated region
              $region147: #{resnet_forward.40} parent=123 // pred_check
                _
              $region148: #{resnet_forward.40} parent=123 // pred_check_branch
                %732 = sbr.rel target = $region150
              $region149: #{resnet_forward.40} parent=123 // pred_region
                _
              $region150: #{resnet_forward.40} parent=123 // pred_fallthru
                _
            $region124: #{resnet_forward.40} parent=119 // pred_fallthru
              _
            // Predicated region
            $region125: #{resnet_forward.40} parent=119 // pred_check
              _
            $region126: #{resnet_forward.40} parent=119 // pred_check_branch
              %695 = sbr.rel target = $region128
            $region127: #{resnet_forward.40} parent=119 // pred_region
              loop: start=0, step=1, limit=1
              $region129: #{resnet_forward.40} parent=127 // loop_pre_header
                _
              $region130: #{resnet_forward.40} parent=127 // loop_header
                %s698 = sphi 0, %s702
                %p699 = scmp.ge.s32.totalorder %s698, 1
                %s703 = sphi %s680, %s680
                %s704 = sphi %s689, %s689
              $region131: #{resnet_forward.40} parent=127 // loop_header_branch
                %701 = sbr.rel (%p699) target = $region135
              $region132: #{resnet_forward.40} parent=127 // loop_body
                %v705 = vld [vmem:[%s703] sm:$0xff]
                %706 = vst [vmem:[%s704] sm:$0xff] %v705
                %v707 = vld [vmem:[%s703 + $0x8] sm:$0xff]
                %708 = vst [vmem:[%s704 + $0x10] sm:$0xff] %v707
                %v709 = vld [vmem:[%s703 + $0x10] sm:$0xff]
                %710 = vst [vmem:[%s704 + $0x20] sm:$0xff] %v709
                %v711 = vld [vmem:[%s703 + $0x18] sm:$0xff]
                %712 = vst [vmem:[%s704 + $0x30] sm:$0xff] %v711
              $region133: #{resnet_forward.40} parent=127 // loop_footer
                %s702 = sadd.s32 1, %s698
              $region134: #{resnet_forward.40} parent=127 // loop_footer_branch
                %697 = sbr.rel target = $region130
              $region135: #{resnet_forward.40} parent=127 // loop_exit
                _
            $region128: #{resnet_forward.40} parent=119 // pred_fallthru
              _
          $region120: #{resnet_forward.40} parent=115 // pred_fallthru
            _
          %733 = vnop
        $region116: #{resnet_forward.40} parent=103 // pred_fallthru
          _
      $region104: #{resnet_forward.40} parent=5 // pred_fallthru
        _
      %p734 = scmp.le.s32.totalorder 2, %s10
      // Predicated region
      $region151: #{resnet_forward.40} parent=5 // pred_check
        %p735 = pneg %p734
      $region152: #{resnet_forward.40} parent=5 // pred_check_branch
        %737 = sbr.rel (%p735) target = $region154
      $region153: #{resnet_forward.40} parent=5 // pred_region
        %s738 = ssub.s32 %s10, 2
        // Predicated region
        $region155: #{resnet_forward.40} parent=153 // pred_check
          %p739 = pneg %p170
        $region156: #{resnet_forward.40} parent=153 // pred_check_branch
          %741 = sbr.rel (%p739) target = $region158
        $region157: #{resnet_forward.40} parent=153 // pred_region
          %s742 = sand.u32 %s155, 1
          %s743 = sand.u32 %s155, 1
          %s744 = smul.addr %s743, 32
          %s745 = scalar_lea.vmem [#allocation4], %s744
        $region158: #{resnet_forward.40} parent=153 // pred_fallthru
          _
      $region154: #{resnet_forward.40} parent=5 // pred_fallthru
        _
    $region6: #{resnet_forward.40} parent=1 // loop_footer
      %s14 = sadd.s32 1, %s10
    $region7: #{resnet_forward.40} parent=1 // loop_footer_branch
      %9 = sbr.rel target = $region3
    $region8: #{resnet_forward.40} parent=1 // loop_exit
      _

// kernel: resnet_forward.39
$region0: #{resnet_forward.39}
  #allocation0 [shape = 'u32[]', space=smem, size = 0x4, offset = 0x4, fixed_abs, tag = 'smem constant byte address 0x4 - core index']
  #allocation1 [shape = 'u32[144,128]{1,0:T(1,128)}', space=vmem, size = 0x12000, scoped, tag = 'internal scratch']
  %s0 = inlined_call_operand.vmem [shape: bf16[32,1152], index: 0, kind: input, shape index: {}]
  %s1 = inlined_call_operand.vmem [shape: bf16[1152,128], index: 1, kind: input, shape index: {}]
  %s2 = inlined_call_operand.vmem [shape: f32[1,128], index: 2, kind: input, shape index: {}]
  %s3 = inlined_call_operand.vmem [shape: bf16[32,128], index: 3, kind: output, shape index: {}]
  %s4 = sld [smem:[#allocation0]]
  $region45: #{resnet_forward.39} parent=0
    _
  %s6 = ssub.s32 1, %s4
  %s7 = scalar_select 0, %s6, %s4
  loop: start=0, step=1, limit=4
  $region2: #{resnet_forward.39} parent=0 // loop_pre_header
    _
  $region3: #{resnet_forward.39} parent=0 // loop_header
    %s9 = sphi 0, %s13
    %p10 = scmp.ge.s32.totalorder %s9, 4
    %s16 = sphi 0, %s35
    %s17 = sphi 0, %s31
    %s18 = sphi 0, %s27
    %s19 = sphi 0, %s16
    %s20 = sphi 0, %s17
    %s21 = sphi 0, %s18
    %s22 = sphi 0, %s19
    %s23 = sphi 0, %s20
    %s24 = sphi 0, %s21
    %s40 = sphi 0, %s42
    %s43 = sphi 0, %s40
    %s44 = sphi 0, %s43
    %s60 = sphi 0, %s44
    %s68 = sphi 0, %s70
    %s71 = sphi 0, %s68
    %s72 = sphi 0, %s71
    %s88 = sphi 0, %s72
    %s94 = sphi 0, %s96
    %s97 = sphi 0, %s94
    %s98 = sphi 0, %s97
    %s114 = sphi 0, %s98
    %s122 = sphi 0, %s124
    %s125 = sphi 0, %s122
    %s126 = sphi 0, %s125
    %s142 = sphi 0, %s126
  $region4: #{resnet_forward.39} parent=0 // loop_header_branch
    %12 = sbr.rel (%p10) target = $region8
  $region5: #{resnet_forward.39} parent=0 // loop_body
    %s14 = ssub.s32 %s9, 1
    %s15 = ssub.s32 %s9, 2
    %s25 = sadd.s32 1, %s18
    %p26 = scmp.ge.s32.totalorder %s25, 1
    %s27 = scalar_select %p26, 0, %s25
    %s28 = sadd.s32 1, %s17
    %s29 = scalar_select %p26, %s28, %s17
    %p30 = scmp.ge.s32.totalorder %s29, 1
    %s31 = scalar_select %p30, 0, %s29
    %s32 = sadd.s32 1, %s16
    %s33 = scalar_select %p30, %s32, %s16
    %p34 = scmp.ge.s32.totalorder %s33, 2
    %s35 = scalar_select %p34, 0, %s33
    %s36 = ssub.s32 %s16, %s35
    %s37 = ssub.s32 %s18, %s27
    %s38 = sor.u32 %s36, %s37
    %p39 = scmp.eq.s32.totalorder %s38, 0
    %s41 = sadd.s32 %s40, 1
    %s42 = scalar_select %p39, %s40, %s41
    %p45 = pneg %p39
    %p46 = scmp.eq.s32.totalorder %s9, 1
    %p47 = por %p45, %p46
    %p48 = scmp.ne.s32.totalorder %s40, %s43
    %p49 = scmp.eq.s32.totalorder %s9, 0
    %p50 = por %p48, %p49
    %p51 = scmp.ne.s32.totalorder %s40, %s43
    %p52 = scmp.eq.s32.totalorder %s14, 1
    %p53 = por %p51, %p52
    %p54 = scmp.ne.s32.totalorder %s43, %s44
    %p55 = scmp.eq.s32.totalorder %s14, 0
    %p56 = por %p54, %p55
    %p57 = scmp.ne.s32.totalorder %s43, %s44
    %p58 = scmp.eq.s32.totalorder %s15, 1
    %p59 = por %p57, %p58
    %p61 = scmp.ne.s32.totalorder %s44, %s60
    %p62 = scmp.eq.s32.totalorder %s15, 0
    %p63 = por %p61, %p62
    %s64 = ssub.s32 %s18, %s27
    %s65 = ssub.s32 %s17, %s31
    %s66 = sor.u32 %s64, %s65
    %p67 = scmp.eq.s32.totalorder %s66, 0
    %s69 = sadd.s32 %s68, 1
    %s70 = scalar_select %p67, %s68, %s69
    %p73 = pneg %p67
    %p74 = scmp.eq.s32.totalorder %s9, 1
    %p75 = por %p73, %p74
    %p76 = scmp.ne.s32.totalorder %s68, %s71
    %p77 = scmp.eq.s32.totalorder %s9, 0
    %p78 = por %p76, %p77
    %p79 = scmp.ne.s32.totalorder %s68, %s71
    %p80 = scmp.eq.s32.totalorder %s14, 1
    %p81 = por %p79, %p80
    %p82 = scmp.ne.s32.totalorder %s71, %s72
    %p83 = scmp.eq.s32.totalorder %s14, 0
    %p84 = por %p82, %p83
    %p85 = scmp.ne.s32.totalorder %s71, %s72
    %p86 = scmp.eq.s32.totalorder %s15, 1
    %p87 = por %p85, %p86
    %p89 = scmp.ne.s32.totalorder %s72, %s88
    %p90 = scmp.eq.s32.totalorder %s15, 0
    %p91 = por %p89, %p90
    %s92 = ssub.s32 %s17, %s31
    %p93 = scmp.eq.s32.totalorder %s92, 0
    %s95 = sadd.s32 %s94, 1
    %s96 = scalar_select %p93, %s94, %s95
    %p99 = pneg %p93
    %p100 = scmp.eq.s32.totalorder %s9, 1
    %p101 = por %p99, %p100
    %p102 = scmp.ne.s32.totalorder %s94, %s97
    %p103 = scmp.eq.s32.totalorder %s9, 0
    %p104 = por %p102, %p103
    %p105 = scmp.ne.s32.totalorder %s94, %s97
    %p106 = scmp.eq.s32.totalorder %s14, 1
    %p107 = por %p105, %p106
    %p108 = scmp.ne.s32.totalorder %s97, %s98
    %p109 = scmp.eq.s32.totalorder %s14, 0
    %p110 = por %p108, %p109
    %p111 = scmp.ne.s32.totalorder %s97, %s98
    %p112 = scmp.eq.s32.totalorder %s15, 1
    %p113 = por %p111, %p112
    %p115 = scmp.ne.s32.totalorder %s98, %s114
    %p116 = scmp.eq.s32.totalorder %s15, 0
    %p117 = por %p115, %p116
    %s118 = ssub.s32 %s16, %s35
    %s119 = ssub.s32 %s17, %s31
    %s120 = sor.u32 %s118, %s119
    %p121 = scmp.eq.s32.totalorder %s120, 0
    %s123 = sadd.s32 %s122, 1
    %s124 = scalar_select %p121, %s122, %s123
    %p127 = pneg %p121
    %p128 = scmp.eq.s32.totalorder %s9, 1
    %p129 = por %p127, %p128
    %p130 = scmp.ne.s32.totalorder %s122, %s125
    %p131 = scmp.eq.s32.totalorder %s9, 0
    %p132 = por %p130, %p131
    %p133 = scmp.ne.s32.totalorder %s122, %s125
    %p134 = scmp.eq.s32.totalorder %s14, 1
    %p135 = por %p133, %p134
    %p136 = scmp.ne.s32.totalorder %s125, %s126
    %p137 = scmp.eq.s32.totalorder %s14, 0
    %p138 = por %p136, %p137
    %p139 = scmp.ne.s32.totalorder %s125, %s126
    %p140 = scmp.eq.s32.totalorder %s15, 1
    %p141 = por %p139, %p140
    %p143 = scmp.ne.s32.totalorder %s126, %s142
    %p144 = scmp.eq.s32.totalorder %s15, 0
    %p145 = por %p143, %p144
    %p146 = scmp.le.s32.totalorder 1, %s9
    %p147 = scmp.lt.s32.totalorder %s9, 3
    %p148 = pnand %p146, %p147
    %p149 = pneg %p148
    // Predicated region
    $region9: #{resnet_forward.39} parent=5 // pred_check
      _
    $region10: #{resnet_forward.39} parent=5 // pred_check_branch
      %151 = sbr.rel (%p148) target = $region12
    $region11: #{resnet_forward.39} parent=5 // pred_region
      %s152 = ssub.s32 %s9, 1
      // Predicated region
      $region13: #{resnet_forward.39} parent=11 // pred_check
        %p153 = pneg %p84
      $region14: #{resnet_forward.39} parent=11 // pred_check_branch
        %155 = sbr.rel (%p153) target = $region16
      $region15: #{resnet_forward.39} parent=11 // pred_region
        %s156 = smul.u32 144, %s21
        %p157 = scmp.lt.s32.totalorder %s156, 143
        %s158 = scalar_select %p157, %s156, 143
        %p159 = scmp.lt.s32.totalorder %s20, 0
        %s160 = scalar_select %p159, %s20, 0
        %s161 = sadd.s32 %s160, %s158
        %s162 = smul.addr %s161, 4
        %s163 = scalar_lea.vmem %s1, %s162
        %s164 = smul.u32 144, %s21
      $region16: #{resnet_forward.39} parent=11 // pred_fallthru
        _
      // Predicated region
      $region17: #{resnet_forward.39} parent=11 // pred_check
        %p165 = pneg %p110
      $region18: #{resnet_forward.39} parent=11 // pred_check_branch
        %167 = sbr.rel (%p165) target = $region20
      $region19: #{resnet_forward.39} parent=11 // pred_region
        %p168 = scmp.lt.s32.totalorder %s20, 0
        %s169 = scalar_select %p168, %s20, 0
        %s170 = scalar_lea.vmem %s2, %s169
      $region20: #{resnet_forward.39} parent=11 // pred_fallthru
        _
    $region12: #{resnet_forward.39} parent=5 // pred_fallthru
      _
    %p171 = scmp.lt.s32.totalorder %s9, 2
    // Predicated region
    $region21: #{resnet_forward.39} parent=5 // pred_check
      %p172 = pneg %p171
    $region22: #{resnet_forward.39} parent=5 // pred_check_branch
      %174 = sbr.rel (%p172) target = $region24
    $region23: #{resnet_forward.39} parent=5 // pred_region
      // Predicated region
      $region25: #{resnet_forward.39} parent=23 // pred_check
        %p175 = pneg %p50
      $region26: #{resnet_forward.39} parent=23 // pred_check_branch
        %177 = sbr.rel (%p175) target = $region28
      $region27: #{resnet_forward.39} parent=23 // pred_region
        %s178 = smul.u32 2, %s16
        %s179 = smul.u32 9, %s18
        %p180 = scmp.lt.s32.totalorder %s178, 3
        %s181 = scalar_select %p180, %s178, 3
        %p182 = scmp.lt.s32.totalorder %s179, 8
        %s183 = scalar_select %p182, %s179, 8
        %s184 = smul.addr %s181, 9
        %s185 = sadd.s32 %s183, %s184
        %s186 = smul.addr %s185, 4
        %s187 = scalar_lea.vmem %s0, %s186
        %s188 = smul.u32 2, %s16
        %s189 = smul.u32 9, %s18
      $region28: #{resnet_forward.39} parent=23 // pred_fallthru
        _
    $region24: #{resnet_forward.39} parent=5 // pred_fallthru
      _
    %p190 = scmp.le.s32.totalorder 1, %s9
    %p191 = scmp.lt.s32.totalorder %s9, 3
    %p192 = pnand %p190, %p191
    %p193 = pneg %p192
    // Predicated region
    $region29: #{resnet_forward.39} parent=5 // pred_check
      _
    $region30: #{resnet_forward.39} parent=5 // pred_check_branch
      %195 = sbr.rel (%p192) target = $region32
    $region31: #{resnet_forward.39} parent=5 // pred_region
      %s196 = ssub.s32 %s9, 1
      %s197 = smul.u32 2, %s19
      %s198 = smul.u32 9, %s21
      %p199 = scmp.lt.s32.totalorder %s197, 3
      %s200 = scalar_select %p199, %s197, 3
      %p201 = scmp.lt.s32.totalorder %s198, 8
      %s202 = scalar_select %p201, %s198, 8
      %s203 = smul.addr %s200, 9
      %s204 = sadd.s32 %s202, %s203
      %s205 = smul.addr %s204, 4
      %s206 = scalar_lea.vmem %s0, %s205
      %p207 = pneg %p56
      %p208 = pneg %p53
      %s209 = smul.u32 144, %s21
      %p210 = scmp.lt.s32.totalorder %s209, 143
      %s211 = scalar_select %p210, %s209, 143
      %p212 = scmp.lt.s32.totalorder %s20, 0
      %s213 = scalar_select %p212, %s20, 0
      %s214 = sadd.s32 %s213, %s211
      %s215 = smul.addr %s214, 4
      %s216 = scalar_lea.vmem %s1, %s215
      %p217 = pneg %p84
      %p218 = pneg %p81
      %p219 = scmp.lt.s32.totalorder %s20, 0
      %s220 = scalar_select %p219, %s20, 0
      %s221 = scalar_lea.vmem %s2, %s220
      %p222 = pneg %p110
      %p223 = pneg %p107
      %p224 = pneg %p138
      %p225 = pneg %p135
      %s226 = smul.u32 2, %s19
      %p227 = scmp.lt.s32.totalorder %s226, 3
      %s228 = scalar_select %p227, %s226, 3
      %p229 = scmp.lt.s32.totalorder %s20, 0
      %s230 = scalar_select %p229, %s20, 0
      %s231 = sadd.s32 %s230, %s228
      %s232 = smul.addr %s231, 4
      %s233 = scalar_lea.vmem %s3, %s232
      %s234 = smul.u32 2, %s19
      %s235 = smul.u32 9, %s21
      %p236 = scmp.lt.s32.totalorder %s234, 3
      %s237 = scalar_select %p236, %s234, 3
      %p238 = scmp.lt.s32.totalorder %s235, 8
      %s239 = scalar_select %p238, %s235, 8
      %s240 = smul.addr %s237, 9
      %s241 = sadd.s32 %s239, %s240
      %s242 = smul.addr %s241, 4
      %s243 = scalar_lea.vmem %s0, %s242
      %s244 = smul.u32 2, %s19
      %s245 = smul.u32 9, %s21
      %s246 = smul.u32 144, %s21
      %p247 = scmp.lt.s32.totalorder %s246, 143
      %s248 = scalar_select %p247, %s246, 143
      %p249 = scmp.lt.s32.totalorder %s20, 0
      %s250 = scalar_select %p249, %s20, 0
      %s251 = sadd.s32 %s250, %s248
      %s252 = smul.addr %s251, 4
      %s253 = scalar_lea.vmem %s1, %s252
      %s254 = smul.u32 144, %s21
      %p255 = scmp.lt.s32.totalorder %s20, 0
      %s256 = scalar_select %p255, %s20, 0
      %s257 = scalar_lea.vmem %s2, %s256
      %s258 = smul.u32 2, %s19
      %p259 = scmp.lt.s32.totalorder %s258, 3
      %s260 = scalar_select %p259, %s258, 3
      %p261 = scmp.lt.s32.totalorder %s20, 0
      %s262 = scalar_select %p261, %s20, 0
      %s263 = sadd.s32 %s262, %s260
      %s264 = smul.addr %s263, 4
      %s265 = scalar_lea.vmem %s3, %s264
      %s266 = smul.u32 2, %s19
      %v268 = vld [vmem:[%s243] sm:$0xff]
      %v269 = vld [vmem:[%s243 + $0x8] sm:$0xff]
      %v270 = vld [vmem:[%s243 + $0x10] sm:$0xff]
      %v271 = vld [vmem:[%s243 + $0x18] sm:$0xff]
      %v272 = vld [vmem:[%s243 + $0x20] sm:$0xf]
      %v273 = vld [vmem:[%s243 + $0x24] sm:$0xff]
      %v274 = vld [vmem:[%s243 + $0x2c] sm:$0xff]
      %v275 = vld [vmem:[%s243 + $0x34] sm:$0xff]
      %v276 = vld [vmem:[%s243 + $0x3c] sm:$0xff]
      %v277 = vld [vmem:[%s243 + $0x44] sm:$0xf]
      %v278 = vld [vmem:[%s253] sm:$0xf]
      %v279 = vld [vmem:[%s253 + $0x4] sm:$0xf]
      %v280 = vld [vmem:[%s253 + $0x8] sm:$0xf]
      %v281 = vld [vmem:[%s253 + $0xc] sm:$0xf]
      %v282 = vld [vmem:[%s253 + $0x10] sm:$0xf]
      %v283 = vld [vmem:[%s253 + $0x14] sm:$0xf]
      %v284 = vld [vmem:[%s253 + $0x18] sm:$0xf]
      %v285 = vld [vmem:[%s253 + $0x1c] sm:$0xf]
      %v286 = vld [vmem:[%s253 + $0x20] sm:$0xf]
      %v287 = vld [vmem:[%s253 + $0x24] sm:$0xf]
      %v288 = vld [vmem:[%s253 + $0x28] sm:$0xf]
      %v289 = vld [vmem:[%s253 + $0x2c] sm:$0xf]
      %v290 = vld [vmem:[%s253 + $0x30] sm:$0xf]
      %v291 = vld [vmem:[%s253 + $0x34] sm:$0xf]
      %v292 = vld [vmem:[%s253 + $0x38] sm:$0xf]
      %v293 = vld [vmem:[%s253 + $0x3c] sm:$0xf]
      %v294 = vld [vmem:[%s253 + $0x40] sm:$0xf]
      %v295 = vld [vmem:[%s253 + $0x44] sm:$0xf]
      %v296 = vld [vmem:[%s253 + $0x48] sm:$0xf]
      %v297 = vld [vmem:[%s253 + $0x4c] sm:$0xf]
      %v298 = vld [vmem:[%s253 + $0x50] sm:$0xf]
      %v299 = vld [vmem:[%s253 + $0x54] sm:$0xf]
      %v300 = vld [vmem:[%s253 + $0x58] sm:$0xf]
      %v301 = vld [vmem:[%s253 + $0x5c] sm:$0xf]
      %v302 = vld [vmem:[%s253 + $0x60] sm:$0xf]
      %v303 = vld [vmem:[%s253 + $0x64] sm:$0xf]
      %v304 = vld [vmem:[%s253 + $0x68] sm:$0xf]
      %v305 = vld [vmem:[%s253 + $0x6c] sm:$0xf]
      %v306 = vld [vmem:[%s253 + $0x70] sm:$0xf]
      %v307 = vld [vmem:[%s253 + $0x74] sm:$0xf]
      %v308 = vld [vmem:[%s253 + $0x78] sm:$0xf]
      %v309 = vld [vmem:[%s253 + $0x7c] sm:$0xf]
      %v310 = vld [vmem:[%s253 + $0x80] sm:$0xf]
      %v311 = vld [vmem:[%s253 + $0x84] sm:$0xf]
      %v312 = vld [vmem:[%s253 + $0x88] sm:$0xf]
      %v313 = vld [vmem:[%s253 + $0x8c] sm:$0xf]
      %v314 = vld [vmem:[%s253 + $0x90] sm:$0xf]
      %v315 = vld [vmem:[%s253 + $0x94] sm:$0xf]
      %v316 = vld [vmem:[%s253 + $0x98] sm:$0xf]
      %v317 = vld [vmem:[%s253 + $0x9c] sm:$0xf]
      %v318 = vld [vmem:[%s253 + $0xa0] sm:$0xf]
      %v319 = vld [vmem:[%s253 + $0xa4] sm:$0xf]
      %v320 = vld [vmem:[%s253 + $0xa8] sm:$0xf]
      %v321 = vld [vmem:[%s253 + $0xac] sm:$0xf]
      %v322 = vld [vmem:[%s253 + $0xb0] sm:$0xf]
      %v323 = vld [vmem:[%s253 + $0xb4] sm:$0xf]
      %v324 = vld [vmem:[%s253 + $0xb8] sm:$0xf]
      %v325 = vld [vmem:[%s253 + $0xbc] sm:$0xf]
      %v326 = vld [vmem:[%s253 + $0xc0] sm:$0xf]
      %v327 = vld [vmem:[%s253 + $0xc4] sm:$0xf]
      %v328 = vld [vmem:[%s253 + $0xc8] sm:$0xf]
      %v329 = vld [vmem:[%s253 + $0xcc] sm:$0xf]
      %v330 = vld [vmem:[%s253 + $0xd0] sm:$0xf]
      %v331 = vld [vmem:[%s253 + $0xd4] sm:$0xf]
      %v332 = vld [vmem:[%s253 + $0xd8] sm:$0xf]
      %v333 = vld [vmem:[%s253 + $0xdc] sm:$0xf]
      %v334 = vld [vmem:[%s253 + $0xe0] sm:$0xf]
      %v335 = vld [vmem:[%s253 + $0xe4] sm:$0xf]
      %v336 = vld [vmem:[%s253 + $0xe8] sm:$0xf]
      %v337 = vld [vmem:[%s253 + $0xec] sm:$0xf]
      %v338 = vld [vmem:[%s253 + $0xf0] sm:$0xf]
      %v339 = vld [vmem:[%s253 + $0xf4] sm:$0xf]
      %v340 = vld [vmem:[%s253 + $0xf8] sm:$0xf]
      %v341 = vld [vmem:[%s253 + $0xfc] sm:$0xf]
      %v342 = vld [vmem:[%s253 + $0x100] sm:$0xf]
      %v343 = vld [vmem:[%s253 + $0x104] sm:$0xf]
      %v344 = vld [vmem:[%s253 + $0x108] sm:$0xf]
      %v345 = vld [vmem:[%s253 + $0x10c] sm:$0xf]
      %v346 = vld [vmem:[%s253 + $0x110] sm:$0xf]
      %v347 = vld [vmem:[%s253 + $0x114] sm:$0xf]
      %v348 = vld [vmem:[%s253 + $0x118] sm:$0xf]
      %v349 = vld [vmem:[%s253 + $0x11c] sm:$0xf]
      %v350 = vld [vmem:[%s253 + $0x120] sm:$0xf]
      %v351 = vld [vmem:[%s253 + $0x124] sm:$0xf]
      %v352 = vld [vmem:[%s253 + $0x128] sm:$0xf]
      %v353 = vld [vmem:[%s253 + $0x12c] sm:$0xf]
      %v354 = vld [vmem:[%s253 + $0x130] sm:$0xf]
      %v355 = vld [vmem:[%s253 + $0x134] sm:$0xf]
      %v356 = vld [vmem:[%s253 + $0x138] sm:$0xf]
      %v357 = vld [vmem:[%s253 + $0x13c] sm:$0xf]
      %v358 = vld [vmem:[%s253 + $0x140] sm:$0xf]
      %v359 = vld [vmem:[%s253 + $0x144] sm:$0xf]
      %v360 = vld [vmem:[%s253 + $0x148] sm:$0xf]
      %v361 = vld [vmem:[%s253 + $0x14c] sm:$0xf]
      %v362 = vld [vmem:[%s253 + $0x150] sm:$0xf]
      %v363 = vld [vmem:[%s253 + $0x154] sm:$0xf]
      %v364 = vld [vmem:[%s253 + $0x158] sm:$0xf]
      %v365 = vld [vmem:[%s253 + $0x15c] sm:$0xf]
      %v366 = vld [vmem:[%s253 + $0x160] sm:$0xf]
      %v367 = vld [vmem:[%s253 + $0x164] sm:$0xf]
      %v368 = vld [vmem:[%s253 + $0x168] sm:$0xf]
      %v369 = vld [vmem:[%s253 + $0x16c] sm:$0xf]
      %v370 = vld [vmem:[%s253 + $0x170] sm:$0xf]
      %v371 = vld [vmem:[%s253 + $0x174] sm:$0xf]
      %v372 = vld [vmem:[%s253 + $0x178] sm:$0xf]
      %v373 = vld [vmem:[%s253 + $0x17c] sm:$0xf]
      %v374 = vld [vmem:[%s253 + $0x180] sm:$0xf]
      %v375 = vld [vmem:[%s253 + $0x184] sm:$0xf]
      %v376 = vld [vmem:[%s253 + $0x188] sm:$0xf]
      %v377 = vld [vmem:[%s253 + $0x18c] sm:$0xf]
      %v378 = vld [vmem:[%s253 + $0x190] sm:$0xf]
      %v379 = vld [vmem:[%s253 + $0x194] sm:$0xf]
      %v380 = vld [vmem:[%s253 + $0x198] sm:$0xf]
      %v381 = vld [vmem:[%s253 + $0x19c] sm:$0xf]
      %v382 = vld [vmem:[%s253 + $0x1a0] sm:$0xf]
      %v383 = vld [vmem:[%s253 + $0x1a4] sm:$0xf]
      %v384 = vld [vmem:[%s253 + $0x1a8] sm:$0xf]
      %v385 = vld [vmem:[%s253 + $0x1ac] sm:$0xf]
      %v386 = vld [vmem:[%s253 + $0x1b0] sm:$0xf]
      %v387 = vld [vmem:[%s253 + $0x1b4] sm:$0xf]
      %v388 = vld [vmem:[%s253 + $0x1b8] sm:$0xf]
      %v389 = vld [vmem:[%s253 + $0x1bc] sm:$0xf]
      %v390 = vld [vmem:[%s253 + $0x1c0] sm:$0xf]
      %v391 = vld [vmem:[%s253 + $0x1c4] sm:$0xf]
      %v392 = vld [vmem:[%s253 + $0x1c8] sm:$0xf]
      %v393 = vld [vmem:[%s253 + $0x1cc] sm:$0xf]
      %v394 = vld [vmem:[%s253 + $0x1d0] sm:$0xf]
      %v395 = vld [vmem:[%s253 + $0x1d4] sm:$0xf]
      %v396 = vld [vmem:[%s253 + $0x1d8] sm:$0xf]
      %v397 = vld [vmem:[%s253 + $0x1dc] sm:$0xf]
      %v398 = vld [vmem:[%s253 + $0x1e0] sm:$0xf]
      %v399 = vld [vmem:[%s253 + $0x1e4] sm:$0xf]
      %v400 = vld [vmem:[%s253 + $0x1e8] sm:$0xf]
      %v401 = vld [vmem:[%s253 + $0x1ec] sm:$0xf]
      %v402 = vld [vmem:[%s253 + $0x1f0] sm:$0xf]
      %v403 = vld [vmem:[%s253 + $0x1f4] sm:$0xf]
      %v404 = vld [vmem:[%s253 + $0x1f8] sm:$0xf]
      %v405 = vld [vmem:[%s253 + $0x1fc] sm:$0xf]
      %v406 = vld [vmem:[%s253 + $0x200] sm:$0xf]
      %v407 = vld [vmem:[%s253 + $0x204] sm:$0xf]
      %v408 = vld [vmem:[%s253 + $0x208] sm:$0xf]
      %v409 = vld [vmem:[%s253 + $0x20c] sm:$0xf]
      %v410 = vld [vmem:[%s253 + $0x210] sm:$0xf]
      %v411 = vld [vmem:[%s253 + $0x214] sm:$0xf]
      %v412 = vld [vmem:[%s253 + $0x218] sm:$0xf]
      %v413 = vld [vmem:[%s253 + $0x21c] sm:$0xf]
      %v414 = vld [vmem:[%s253 + $0x220] sm:$0xf]
      %v415 = vld [vmem:[%s253 + $0x224] sm:$0xf]
      %v416 = vld [vmem:[%s253 + $0x228] sm:$0xf]
      %v417 = vld [vmem:[%s253 + $0x22c] sm:$0xf]
      %v418 = vld [vmem:[%s253 + $0x230] sm:$0xf]
      %v419 = vld [vmem:[%s253 + $0x234] sm:$0xf]
      %v420 = vld [vmem:[%s253 + $0x238] sm:$0xf]
      %v421 = vld [vmem:[%s253 + $0x23c] sm:$0xf]
      %v422 = vld [vmem:[%s257] sm:$0x1]
      %v424 = vlaneseq
      %v425 = vshrl.u32 %v424, 7
      %v426 = vsub.s32 0, %v425
      %v427 = vrot.slane %v422, %v426
      %v439 = vunpack.c.l.b16 %v268
      %v440 = vunpack.c.h.b16 %v268
      %v441 = vunpack.c.l.b16 %v269
      %v442 = vunpack.c.h.b16 %v269
      %v443 = vunpack.c.l.b16 %v270
      %v444 = vunpack.c.h.b16 %v270
      %v445 = vunpack.c.l.b16 %v271
      %v446 = vunpack.c.h.b16 %v271
      %v447 = vunpack.c.l.b16 %v272
      %v448 = vunpack.c.l.b16 %v273
      %v449 = vunpack.c.h.b16 %v273
      %v450 = vunpack.c.l.b16 %v274
      %v451 = vunpack.c.h.b16 %v274
      %v452 = vunpack.c.l.b16 %v275
      %v453 = vunpack.c.h.b16 %v275
      %v454 = vunpack.c.l.b16 %v276
      %v455 = vunpack.c.h.b16 %v276
      %v456 = vunpack.c.l.b16 %v277
      %v457 = vpack.c.b16 %v448, %v439
      %v458 = vpack.c.b16 %v449, %v440
      %v459 = vpack.c.b16 %v450, %v441
      %v460 = vpack.c.b16 %v451, %v442
      %v461 = vpack.c.b16 %v452, %v443
      %v462 = vpack.c.b16 %v453, %v444
      %v463 = vpack.c.b16 %v454, %v445
      %v464 = vpack.c.b16 %v455, %v446
      %v465 = vpack.c.b16 %v456, %v447
      %v619 = vunpack.c.l.b16 %v278
      %v620 = vunpack.c.l.b16 %v279
      %v621 = vunpack.c.l.b16 %v280
      %v622 = vunpack.c.l.b16 %v281
      %v623 = vunpack.c.l.b16 %v282
      %v624 = vunpack.c.l.b16 %v283
      %v625 = vunpack.c.l.b16 %v284
      %v626 = vunpack.c.l.b16 %v285
      %v627 = vunpack.c.l.b16 %v286
      %v628 = vunpack.c.l.b16 %v287
      %v629 = vunpack.c.l.b16 %v288
      %v630 = vunpack.c.l.b16 %v289
      %v631 = vunpack.c.l.b16 %v290
      %v632 = vunpack.c.l.b16 %v291
      %v633 = vunpack.c.l.b16 %v292
      %v634 = vunpack.c.l.b16 %v293
      %v635 = vunpack.c.l.b16 %v294
      %v636 = vunpack.c.l.b16 %v295
      %v637 = vunpack.c.l.b16 %v296
      %v638 = vunpack.c.l.b16 %v297
      %v639 = vunpack.c.l.b16 %v298
      %v640 = vunpack.c.l.b16 %v299
      %v641 = vunpack.c.l.b16 %v300
      %v642 = vunpack.c.l.b16 %v301
      %v643 = vunpack.c.l.b16 %v302
      %v644 = vunpack.c.l.b16 %v303
      %v645 = vunpack.c.l.b16 %v304
      %v646 = vunpack.c.l.b16 %v305
      %v647 = vunpack.c.l.b16 %v306
      %v648 = vunpack.c.l.b16 %v307
      %v649 = vunpack.c.l.b16 %v308
      %v650 = vunpack.c.l.b16 %v309
      %v651 = vunpack.c.l.b16 %v310
      %v652 = vunpack.c.l.b16 %v311
      %v653 = vunpack.c.l.b16 %v312
      %v654 = vunpack.c.l.b16 %v313
      %v655 = vunpack.c.l.b16 %v314
      %v656 = vunpack.c.l.b16 %v315
      %v657 = vunpack.c.l.b16 %v316
      %v658 = vunpack.c.l.b16 %v317
      %v659 = vunpack.c.l.b16 %v318
      %v660 = vunpack.c.l.b16 %v319
      %v661 = vunpack.c.l.b16 %v320
      %v662 = vunpack.c.l.b16 %v321
      %v663 = vunpack.c.l.b16 %v322
      %v664 = vunpack.c.l.b16 %v323
      %v665 = vunpack.c.l.b16 %v324
      %v666 = vunpack.c.l.b16 %v325
      %v667 = vunpack.c.l.b16 %v326
      %v668 = vunpack.c.l.b16 %v327
      %v669 = vunpack.c.l.b16 %v328
      %v670 = vunpack.c.l.b16 %v329
      %v671 = vunpack.c.l.b16 %v330
      %v672 = vunpack.c.l.b16 %v331
      %v673 = vunpack.c.l.b16 %v332
      %v674 = vunpack.c.l.b16 %v333
      %v675 = vunpack.c.l.b16 %v334
      %v676 = vunpack.c.l.b16 %v335
      %v677 = vunpack.c.l.b16 %v336
      %v678 = vunpack.c.l.b16 %v337
      %v679 = vunpack.c.l.b16 %v338
      %v680 = vunpack.c.l.b16 %v339
      %v681 = vunpack.c.l.b16 %v340
      %v682 = vunpack.c.l.b16 %v341
      %v683 = vunpack.c.l.b16 %v342
      %v684 = vunpack.c.l.b16 %v343
      %v685 = vunpack.c.l.b16 %v344
      %v686 = vunpack.c.l.b16 %v345
      %v687 = vunpack.c.l.b16 %v346
      %v688 = vunpack.c.l.b16 %v347
      %v689 = vunpack.c.l.b16 %v348
      %v690 = vunpack.c.l.b16 %v349
      %v691 = vunpack.c.l.b16 %v350
      %v692 = vunpack.c.l.b16 %v351
      %v693 = vunpack.c.l.b16 %v352
      %v694 = vunpack.c.l.b16 %v353
      %v695 = vunpack.c.l.b16 %v354
      %v696 = vunpack.c.l.b16 %v355
      %v697 = vunpack.c.l.b16 %v356
      %v698 = vunpack.c.l.b16 %v357
      %v699 = vunpack.c.l.b16 %v358
      %v700 = vunpack.c.l.b16 %v359
      %v701 = vunpack.c.l.b16 %v360
      %v702 = vunpack.c.l.b16 %v361
      %v703 = vunpack.c.l.b16 %v362
      %v704 = vunpack.c.l.b16 %v363
      %v705 = vunpack.c.l.b16 %v364
      %v706 = vunpack.c.l.b16 %v365
      %v707 = vunpack.c.l.b16 %v366
      %v708 = vunpack.c.l.b16 %v367
      %v709 = vunpack.c.l.b16 %v368
      %v710 = vunpack.c.l.b16 %v369
      %v711 = vunpack.c.l.b16 %v370
      %v712 = vunpack.c.l.b16 %v371
      %v713 = vunpack.c.l.b16 %v372
      %v714 = vunpack.c.l.b16 %v373
      %v715 = vunpack.c.l.b16 %v374
      %v716 = vunpack.c.l.b16 %v375
      %v717 = vunpack.c.l.b16 %v376
      %v718 = vunpack.c.l.b16 %v377
      %v719 = vunpack.c.l.b16 %v378
      %v720 = vunpack.c.l.b16 %v379
      %v721 = vunpack.c.l.b16 %v380
      %v722 = vunpack.c.l.b16 %v381
      %v723 = vunpack.c.l.b16 %v382
      %v724 = vunpack.c.l.b16 %v383
      %v725 = vunpack.c.l.b16 %v384
      %v726 = vunpack.c.l.b16 %v385
      %v727 = vunpack.c.l.b16 %v386
      %v728 = vunpack.c.l.b16 %v387
      %v729 = vunpack.c.l.b16 %v388
      %v730 = vunpack.c.l.b16 %v389
      %v731 = vunpack.c.l.b16 %v390
      %v732 = vunpack.c.l.b16 %v391
      %v733 = vunpack.c.l.b16 %v392
      %v734 = vunpack.c.l.b16 %v393
      %v735 = vunpack.c.l.b16 %v394
      %v736 = vunpack.c.l.b16 %v395
      %v737 = vunpack.c.l.b16 %v396
      %v738 = vunpack.c.l.b16 %v397
      %v739 = vunpack.c.l.b16 %v398
      %v740 = vunpack.c.l.b16 %v399
      %v741 = vunpack.c.l.b16 %v400
      %v742 = vunpack.c.l.b16 %v401
      %v743 = vunpack.c.l.b16 %v402
      %v744 = vunpack.c.l.b16 %v403
      %v745 = vunpack.c.l.b16 %v404
      %v746 = vunpack.c.l.b16 %v405
      %v747 = vunpack.c.l.b16 %v406
      %v748 = vunpack.c.l.b16 %v407
      %v749 = vunpack.c.l.b16 %v408
      %v750 = vunpack.c.l.b16 %v409
      %v751 = vunpack.c.l.b16 %v410
      %v752 = vunpack.c.l.b16 %v411
      %v753 = vunpack.c.l.b16 %v412
      %v754 = vunpack.c.l.b16 %v413
      %v755 = vunpack.c.l.b16 %v414
      %v756 = vunpack.c.l.b16 %v415
      %v757 = vunpack.c.l.b16 %v416
      %v758 = vunpack.c.l.b16 %v417
      %v759 = vunpack.c.l.b16 %v418
      %v760 = vunpack.c.l.b16 %v419
      %v761 = vunpack.c.l.b16 %v420
      %v762 = vunpack.c.l.b16 %v421
      %v763 = vpack.c.b16 %v620, %v619
      %v764 = vpack.c.b16 %v622, %v621
      %v765 = vpack.c.b16 %v624, %v623
      %v766 = vpack.c.b16 %v626, %v625
      %v767 = vpack.c.b16 %v628, %v627
      %v768 = vpack.c.b16 %v630, %v629
      %v769 = vpack.c.b16 %v632, %v631
      %v770 = vpack.c.b16 %v634, %v633
      %v771 = vpack.c.b16 %v636, %v635
      %v772 = vpack.c.b16 %v638, %v637
      %v773 = vpack.c.b16 %v640, %v639
      %v774 = vpack.c.b16 %v642, %v641
      %v775 = vpack.c.b16 %v644, %v643
      %v776 = vpack.c.b16 %v646, %v645
      %v777 = vpack.c.b16 %v648, %v647
      %v778 = vpack.c.b16 %v650, %v649
      %v779 = vpack.c.b16 %v652, %v651
      %v780 = vpack.c.b16 %v654, %v653
      %v781 = vpack.c.b16 %v656, %v655
      %v782 = vpack.c.b16 %v658, %v657
      %v783 = vpack.c.b16 %v660, %v659
      %v784 = vpack.c.b16 %v662, %v661
      %v785 = vpack.c.b16 %v664, %v663
      %v786 = vpack.c.b16 %v666, %v665
      %v787 = vpack.c.b16 %v668, %v667
      %v788 = vpack.c.b16 %v670, %v669
      %v789 = vpack.c.b16 %v672, %v671
      %v790 = vpack.c.b16 %v674, %v673
      %v791 = vpack.c.b16 %v676, %v675
      %v792 = vpack.c.b16 %v678, %v677
      %v793 = vpack.c.b16 %v680, %v679
      %v794 = vpack.c.b16 %v682, %v681
      %v795 = vpack.c.b16 %v684, %v683
      %v796 = vpack.c.b16 %v686, %v685
      %v797 = vpack.c.b16 %v688, %v687
      %v798 = vpack.c.b16 %v690, %v689
      %v799 = vpack.c.b16 %v692, %v691
      %v800 = vpack.c.b16 %v694, %v693
      %v801 = vpack.c.b16 %v696, %v695
      %v802 = vpack.c.b16 %v698, %v697
      %v803 = vpack.c.b16 %v700, %v699
      %v804 = vpack.c.b16 %v702, %v701
      %v805 = vpack.c.b16 %v704, %v703
      %v806 = vpack.c.b16 %v706, %v705
      %v807 = vpack.c.b16 %v708, %v707
      %v808 = vpack.c.b16 %v710, %v709
      %v809 = vpack.c.b16 %v712, %v711
      %v810 = vpack.c.b16 %v714, %v713
      %v811 = vpack.c.b16 %v716, %v715
      %v812 = vpack.c.b16 %v718, %v717
      %v813 = vpack.c.b16 %v720, %v719
      %v814 = vpack.c.b16 %v722, %v721
      %v815 = vpack.c.b16 %v724, %v723
      %v816 = vpack.c.b16 %v726, %v725
      %v817 = vpack.c.b16 %v728, %v727
      %v818 = vpack.c.b16 %v730, %v729
      %v819 = vpack.c.b16 %v732, %v731
      %v820 = vpack.c.b16 %v734, %v733
      %v821 = vpack.c.b16 %v736, %v735
      %v822 = vpack.c.b16 %v738, %v737
      %v823 = vpack.c.b16 %v740, %v739
      %v824 = vpack.c.b16 %v742, %v741
      %v825 = vpack.c.b16 %v744, %v743
      %v826 = vpack.c.b16 %v746, %v745
      %v827 = vpack.c.b16 %v748, %v747
      %v828 = vpack.c.b16 %v750, %v749
      %v829 = vpack.c.b16 %v752, %v751
      %v830 = vpack.c.b16 %v754, %v753
      %v831 = vpack.c.b16 %v756, %v755
      %v832 = vpack.c.b16 %v758, %v757
      %v833 = vpack.c.b16 %v760, %v759
      %v834 = vpack.c.b16 %v762, %v761
      %907 = vmatprep.subr.bf16.mxu0 0
      %908 = vmatpush1.bf16.msra.mxu0 %v763
      %909 = vmatprep.subr.bf16.mxu0 0
      %910 = vmatpush1.bf16.msra.mxu0 %v764
      %911 = vmatprep.subr.bf16.mxu0 0
      %912 = vmatpush1.bf16.msra.mxu0 %v765
      %913 = vmatprep.subr.bf16.mxu0 0
      %914 = vmatpush1.bf16.msra.mxu0 %v766
      %915 = vmatprep.subr.bf16.mxu0 0
      %916 = vmatpush1.bf16.msra.mxu0 %v767
      %917 = vmatprep.subr.bf16.mxu0 0
      %918 = vmatpush1.bf16.msra.mxu0 %v768
      %919 = vmatprep.subr.bf16.mxu0 0
      %920 = vmatpush1.bf16.msra.mxu0 %v769
      %921 = vmatprep.subr.bf16.mxu0 0
      %922 = vmatpush1.bf16.msra.mxu0 %v770
      %923 = vmatprep.subr.bf16.mxu0 0
      %924 = vmatpush1.bf16.msra.mxu0 %v771
      %925 = vmatprep.subr.bf16.mxu0 0
      %926 = vmatpush1.bf16.msra.mxu0 %v772
      %927 = vmatprep.subr.bf16.mxu0 0
      %928 = vmatpush1.bf16.msra.mxu0 %v773
      %929 = vmatprep.subr.bf16.mxu0 0
      %930 = vmatpush1.bf16.msra.mxu0 %v774
      %931 = vmatprep.subr.bf16.mxu0 0
      %932 = vmatpush1.bf16.msra.mxu0 %v775
      %933 = vmatprep.subr.bf16.mxu0 0
      %934 = vmatpush1.bf16.msra.mxu0 %v776
      %935 = vmatprep.subr.bf16.mxu0 0
      %936 = vmatpush1.bf16.msra.mxu0 %v777
      %937 = vmatprep.subr.bf16.mxu0 0
      %938 = vmatpush1.bf16.msra.mxu0 %v778
      %939 = vmatprep.mubr.bf16.mxu0 %v458
      %940 = vmatmul.mubr.bf16.gmra.mrb[0].mxu0 %v457
      %v941 = vpop.f32.mrb[0].mxu0
      %v942 = vadd.f32 %v427, %v941
      %v943 = vpop.f32.mrb[0].mxu0
      %v944 = vpop.f32.mrb[0].mxu0
      %v945 = vadd.f32 %v427, %v944
      %v946 = vpop.f32.mrb[0].mxu0
      %947 = vdwg.mxu0
      %948 = vmatprep.subr.bf16.mxu0 0
      %949 = vmatpush1.bf16.msra.mxu0 %v779
      %950 = vmatprep.subr.bf16.mxu0 0
      %951 = vmatpush1.bf16.msra.mxu0 %v780
      %952 = vmatprep.subr.bf16.mxu0 0
      %953 = vmatpush1.bf16.msra.mxu0 %v781
      %954 = vmatprep.subr.bf16.mxu0 0
      %955 = vmatpush1.bf16.msra.mxu0 %v782
      %956 = vmatprep.subr.bf16.mxu0 0
      %957 = vmatpush1.bf16.msra.mxu0 %v783
      %958 = vmatprep.subr.bf16.mxu0 0
      %959 = vmatpush1.bf16.msra.mxu0 %v784
      %960 = vmatprep.subr.bf16.mxu0 0
      %961 = vmatpush1.bf16.msra.mxu0 %v785
      %962 = vmatprep.subr.bf16.mxu0 0
      %963 = vmatpush1.bf16.msra.mxu0 %v786
      %964 = vmatprep.subr.bf16.mxu0 0
      %965 = vmatpush1.bf16.msra.mxu0 %v787
      %966 = vmatprep.subr.bf16.mxu0 0
      %967 = vmatpush1.bf16.msra.mxu0 %v788
      %968 = vmatprep.subr.bf16.mxu0 0
      %969 = vmatpush1.bf16.msra.mxu0 %v789
      %970 = vmatprep.subr.bf16.mxu0 0
      %971 = vmatpush1.bf16.msra.mxu0 %v790
      %972 = vmatprep.subr.bf16.mxu0 0
      %973 = vmatpush1.bf16.msra.mxu0 %v791
      %974 = vmatprep.subr.bf16.mxu0 0
      %975 = vmatpush1.bf16.msra.mxu0 %v792
      %976 = vmatprep.subr.bf16.mxu0 0
      %977 = vmatpush1.bf16.msra.mxu0 %v793
      %978 = vmatprep.subr.bf16.mxu0 0
      %979 = vmatpush1.bf16.msra.mxu0 %v794
      %980 = vmatprep.mubr.bf16.mxu0 %v460
      %981 = vmatmul.mubr.bf16.gmra.mrb[0].mxu0 %v459
      %v982 = vpop.f32.mrb[0].mxu0
      %v983 = vadd.f32 %v942, %v982
      %v984 = vpop.f32.mrb[0].mxu0
      %v985 = vpop.f32.mrb[0].mxu0
      %v986 = vadd.f32 %v945, %v985
      %v987 = vpop.f32.mrb[0].mxu0
      %988 = vdwg.mxu0
      %989 = vmatprep.subr.bf16.mxu0 0
      %990 = vmatpush1.bf16.msra.mxu0 %v795
      %991 = vmatprep.subr.bf16.mxu0 0
      %992 = vmatpush1.bf16.msra.mxu0 %v796
      %993 = vmatprep.subr.bf16.mxu0 0
      %994 = vmatpush1.bf16.msra.mxu0 %v797
      %995 = vmatprep.subr.bf16.mxu0 0
      %996 = vmatpush1.bf16.msra.mxu0 %v798
      %997 = vmatprep.subr.bf16.mxu0 0
      %998 = vmatpush1.bf16.msra.mxu0 %v799
      %999 = vmatprep.subr.bf16.mxu0 0
      %1000 = vmatpush1.bf16.msra.mxu0 %v800
      %1001 = vmatprep.subr.bf16.mxu0 0
      %1002 = vmatpush1.bf16.msra.mxu0 %v801
      %1003 = vmatprep.subr.bf16.mxu0 0
      %1004 = vmatpush1.bf16.msra.mxu0 %v802
      %1005 = vmatprep.subr.bf16.mxu0 0
      %1006 = vmatpush1.bf16.msra.mxu0 %v803
      %1007 = vmatprep.subr.bf16.mxu0 0
      %1008 = vmatpush1.bf16.msra.mxu0 %v804
      %1009 = vmatprep.subr.bf16.mxu0 0
      %1010 = vmatpush1.bf16.msra.mxu0 %v805
      %1011 = vmatprep.subr.bf16.mxu0 0
      %1012 = vmatpush1.bf16.msra.mxu0 %v806
      %1013 = vmatprep.subr.bf16.mxu0 0
      %1014 = vmatpush1.bf16.msra.mxu0 %v807
      %1015 = vmatprep.subr.bf16.mxu0 0
      %1016 = vmatpush1.bf16.msra.mxu0 %v808
      %1017 = vmatprep.subr.bf16.mxu0 0
      %1018 = vmatpush1.bf16.msra.mxu0 %v809
      %1019 = vmatprep.subr.bf16.mxu0 0
      %1020 = vmatpush1.bf16.msra.mxu0 %v810
      %1021 = vmatprep.mubr.bf16.mxu0 %v462
      %1022 = vmatmul.mubr.bf16.gmra.mrb[0].mxu0 %v461
      %v1023 = vpop.f32.mrb[0].mxu0
      %v1024 = vadd.f32 %v983, %v1023
      %v1025 = vpop.f32.mrb[0].mxu0
      %v1026 = vpop.f32.mrb[0].mxu0
      %v1027 = vadd.f32 %v986, %v1026
      %v1028 = vpop.f32.mrb[0].mxu0
      %1029 = vdwg.mxu0
      %1030 = vmatprep.subr.bf16.mxu0 0
      %1031 = vmatpush1.bf16.msra.mxu0 %v811
      %1032 = vmatprep.subr.bf16.mxu0 0
      %1033 = vmatpush1.bf16.msra.mxu0 %v812
      %1034 = vmatprep.subr.bf16.mxu0 0
      %1035 = vmatpush1.bf16.msra.mxu0 %v813
      %1036 = vmatprep.subr.bf16.mxu0 0
      %1037 = vmatpush1.bf16.msra.mxu0 %v814
      %1038 = vmatprep.subr.bf16.mxu0 0
      %1039 = vmatpush1.bf16.msra.mxu0 %v815
      %1040 = vmatprep.subr.bf16.mxu0 0
      %1041 = vmatpush1.bf16.msra.mxu0 %v816
      %1042 = vmatprep.subr.bf16.mxu0 0
      %1043 = vmatpush1.bf16.msra.mxu0 %v817
      %1044 = vmatprep.subr.bf16.mxu0 0
      %1045 = vmatpush1.bf16.msra.mxu0 %v818
      %1046 = vmatprep.subr.bf16.mxu0 0
      %1047 = vmatpush1.bf16.msra.mxu0 %v819
      %1048 = vmatprep.subr.bf16.mxu0 0
      %1049 = vmatpush1.bf16.msra.mxu0 %v820
      %1050 = vmatprep.subr.bf16.mxu0 0
      %1051 = vmatpush1.bf16.msra.mxu0 %v821
      %1052 = vmatprep.subr.bf16.mxu0 0
      %1053 = vmatpush1.bf16.msra.mxu0 %v822
      %1054 = vmatprep.subr.bf16.mxu0 0
      %1055 = vmatpush1.bf16.msra.mxu0 %v823
      %1056 = vmatprep.subr.bf16.mxu0 0
      %1057 = vmatpush1.bf16.msra.mxu0 %v824
      %1058 = vmatprep.subr.bf16.mxu0 0
      %1059 = vmatpush1.bf16.msra.mxu0 %v825
      %1060 = vmatprep.subr.bf16.mxu0 0
      %1061 = vmatpush1.bf16.msra.mxu0 %v826
      %1062 = vmatprep.mubr.bf16.mxu0 %v464
      %1063 = vmatmul.mubr.bf16.gmra.mrb[0].mxu0 %v463
      %v1064 = vpop.f32.mrb[0].mxu0
      %v1065 = vadd.f32 %v1024, %v1064
      %v1066 = vpop.f32.mrb[0].mxu0
      %v1067 = vpop.f32.mrb[0].mxu0
      %v1068 = vadd.f32 %v1027, %v1067
      %v1069 = vpop.f32.mrb[0].mxu0
      %1070 = vdwg.mxu0
      %1071 = vmatprep.subr.bf16.mxu0 0
      %1072 = vmatpush1.bf16.msra.mxu0 %v827
      %1073 = vmatprep.subr.bf16.mxu0 0
      %1074 = vmatpush1.bf16.msra.mxu0 %v828
      %1075 = vmatprep.subr.bf16.mxu0 0
      %1076 = vmatpush1.bf16.msra.mxu0 %v829
      %1077 = vmatprep.subr.bf16.mxu0 0
      %1078 = vmatpush1.bf16.msra.mxu0 %v830
      %1079 = vmatprep.subr.bf16.mxu0 0
      %1080 = vmatpush1.bf16.msra.mxu0 %v831
      %1081 = vmatprep.subr.bf16.mxu0 0
      %1082 = vmatpush1.bf16.msra.mxu0 %v832
      %1083 = vmatprep.subr.bf16.mxu0 0
      %1084 = vmatpush1.bf16.msra.mxu0 %v833
      %1085 = vmatprep.subr.bf16.mxu0 0
      %1086 = vmatpush1.bf16.msra.mxu0 %v834
      %1087 = vmatprep.subr.bf16.mxu0 0
      %1088 = vmatpush1.bf16.msra.mxu0 0
      %1089 = vmatprep.subr.bf16.mxu0 0
      %1090 = vmatpush1.bf16.msra.mxu0 0
      %1091 = vmatprep.subr.bf16.mxu0 0
      %1092 = vmatpush1.bf16.msra.mxu0 0
      %1093 = vmatprep.subr.bf16.mxu0 0
      %1094 = vmatpush1.bf16.msra.mxu0 0
      %1095 = vmatprep.subr.bf16.mxu0 0
      %1096 = vmatpush1.bf16.msra.mxu0 0
      %1097 = vmatprep.subr.bf16.mxu0 0
      %1098 = vmatpush1.bf16.msra.mxu0 0
      %1099 = vmatprep.subr.bf16.mxu0 0
      %1100 = vmatpush1.bf16.msra.mxu0 0
      %1101 = vmatprep.subr.bf16.mxu0 0
      %1102 = vmatpush1.bf16.msra.mxu0 0
      %1103 = vmatprep.mubr.bf16.mxu0 0
      %1104 = vmatmul.mubr.bf16.gmra.mrb[0].mxu0 %v465
      %v1105 = vpop.f32.mrb[0].mxu0
      %v1106 = vadd.f32 %v1065, %v1105
      %v1107 = vpop.f32.mrb[0].mxu0
      %v1108 = vpop.f32.mrb[0].mxu0
      %v1109 = vadd.f32 %v1068, %v1108
      %v1110 = vpop.f32.mrb[0].mxu0
      %1111 = vdwg.mxu0
      %v1112 = vmax.f32 %v1106, 0.0
      %v1113 = vmax.f32 %v1109, 0.0
      %v1114 = vpack.c.bf16 %v1113, %v1112
      %v1116 = vunpack.c.l.b16 %v1114
      %v1117 = vunpack.c.h.b16 %v1114
      %v1118 = vpack.c.b16 %v1116, %v1116
      %v1119 = vpack.c.b16 %v1117, %v1117
      %1122 = vst [vmem:[%s265] sm:$0xf] %v1118
      %1123 = vst [vmem:[%s265 + $0x4] sm:$0xf] %v1119
      %s1124 = smul.u32 2, %s19
      %p1125 = scmp.lt.s32.totalorder %s1124, 3
      %s1126 = scalar_select %p1125, %s1124, 3
      %p1127 = scmp.lt.s32.totalorder %s20, 0
      %s1128 = scalar_select %p1127, %s20, 0
      %s1129 = sadd.s32 %s1128, %s1126
      %s1130 = smul.addr %s1129, 4
      %s1131 = scalar_lea.vmem %s3, %s1130
      // Predicated region
      $region33: #{resnet_forward.39} parent=31 // pred_check
        %p1132 = pneg %p135
      $region34: #{resnet_forward.39} parent=31 // pred_check_branch
        %1134 = sbr.rel (%p1132) target = $region36
      $region35: #{resnet_forward.39} parent=31 // pred_region
        %s1135 = smul.u32 2, %s19
      $region36: #{resnet_forward.39} parent=31 // pred_fallthru
        _
    $region32: #{resnet_forward.39} parent=5 // pred_fallthru
      _
    %p1136 = scmp.le.s32.totalorder 2, %s9
    // Predicated region
    $region37: #{resnet_forward.39} parent=5 // pred_check
      %p1137 = pneg %p1136
    $region38: #{resnet_forward.39} parent=5 // pred_check_branch
      %1139 = sbr.rel (%p1137) target = $region40
    $region39: #{resnet_forward.39} parent=5 // pred_region
      %s1140 = ssub.s32 %s9, 2
      // Predicated region
      $region41: #{resnet_forward.39} parent=39 // pred_check
        %p1141 = pneg %p141
      $region42: #{resnet_forward.39} parent=39 // pred_check_branch
        %1143 = sbr.rel (%p1141) target = $region44
      $region43: #{resnet_forward.39} parent=39 // pred_region
        %s1144 = smul.u32 2, %s22
        %p1145 = scmp.lt.s32.totalorder %s1144, 3
        %s1146 = scalar_select %p1145, %s1144, 3
        %p1147 = scmp.lt.s32.totalorder %s23, 0
        %s1148 = scalar_select %p1147, %s23, 0
        %s1149 = sadd.s32 %s1148, %s1146
        %s1150 = smul.addr %s1149, 4
        %s1151 = scalar_lea.vmem %s3, %s1150
      $region44: #{resnet_forward.39} parent=39 // pred_fallthru
        _
    $region40: #{resnet_forward.39} parent=5 // pred_fallthru
      _
  $region6: #{resnet_forward.39} parent=0 // loop_footer
    %s13 = sadd.s32 1, %s9
  $region7: #{resnet_forward.39} parent=0 // loop_footer_branch
    %8 = sbr.rel target = $region3
  $region8: #{resnet_forward.39} parent=0 // loop_exit
    _

// kernel: resnet_forward.41
$region0: #{resnet_forward.41}
  #allocation0 [shape = 'u32[]', space=smem, size = 0x4, offset = 0x4, fixed_abs, tag = 'smem constant byte address 0x4 - core index']
  #allocation1 [shape = 'u32[144,128]{1,0:T(1,128)}', space=vmem, size = 0x12000, scoped, tag = 'internal scratch']
  %s0 = inlined_call_operand.vmem [shape: bf16[32,512], index: 0, kind: input, shape index: {}]
  %s1 = inlined_call_operand.vmem [shape: bf16[512,128], index: 1, kind: input, shape index: {}]
  %s2 = inlined_call_operand.vmem [shape: f32[1,128], index: 2, kind: input, shape index: {}]
  %s3 = inlined_call_operand.vmem [shape: bf16[32,128], index: 3, kind: output, shape index: {}]
  %s4 = sld [smem:[#allocation0]]
  $region45: #{resnet_forward.41} parent=0
    _
  %s6 = ssub.s32 1, %s4
  %s7 = scalar_select 0, %s6, %s4
  loop: start=0, step=1, limit=4
  $region2: #{resnet_forward.41} parent=0 // loop_pre_header
    _
  $region3: #{resnet_forward.41} parent=0 // loop_header
    %s9 = sphi 0, %s13
    %p10 = scmp.ge.s32.totalorder %s9, 4
    %s16 = sphi 0, %s35
    %s17 = sphi 0, %s31
    %s18 = sphi 0, %s27
    %s19 = sphi 0, %s16
    %s20 = sphi 0, %s17
    %s21 = sphi 0, %s18
    %s22 = sphi 0, %s19
    %s23 = sphi 0, %s20
    %s24 = sphi 0, %s21
    %s40 = sphi 0, %s42
    %s43 = sphi 0, %s40
    %s44 = sphi 0, %s43
    %s60 = sphi 0, %s44
    %s68 = sphi 0, %s70
    %s71 = sphi 0, %s68
    %s72 = sphi 0, %s71
    %s88 = sphi 0, %s72
    %s94 = sphi 0, %s96
    %s97 = sphi 0, %s94
    %s98 = sphi 0, %s97
    %s114 = sphi 0, %s98
    %s122 = sphi 0, %s124
    %s125 = sphi 0, %s122
    %s126 = sphi 0, %s125
    %s142 = sphi 0, %s126
  $region4: #{resnet_forward.41} parent=0 // loop_header_branch
    %12 = sbr.rel (%p10) target = $region8
  $region5: #{resnet_forward.41} parent=0 // loop_body
    %s14 = ssub.s32 %s9, 1
    %s15 = ssub.s32 %s9, 2
    %s25 = sadd.s32 1, %s18
    %p26 = scmp.ge.s32.totalorder %s25, 1
    %s27 = scalar_select %p26, 0, %s25
    %s28 = sadd.s32 1, %s17
    %s29 = scalar_select %p26, %s28, %s17
    %p30 = scmp.ge.s32.totalorder %s29, 1
    %s31 = scalar_select %p30, 0, %s29
    %s32 = sadd.s32 1, %s16
    %s33 = scalar_select %p30, %s32, %s16
    %p34 = scmp.ge.s32.totalorder %s33, 2
    %s35 = scalar_select %p34, 0, %s33
    %s36 = ssub.s32 %s16, %s35
    %s37 = ssub.s32 %s18, %s27
    %s38 = sor.u32 %s36, %s37
    %p39 = scmp.eq.s32.totalorder %s38, 0
    %s41 = sadd.s32 %s40, 1
    %s42 = scalar_select %p39, %s40, %s41
    %p45 = pneg %p39
    %p46 = scmp.eq.s32.totalorder %s9, 1
    %p47 = por %p45, %p46
    %p48 = scmp.ne.s32.totalorder %s40, %s43
    %p49 = scmp.eq.s32.totalorder %s9, 0
    %p50 = por %p48, %p49
    %p51 = scmp.ne.s32.totalorder %s40, %s43
    %p52 = scmp.eq.s32.totalorder %s14, 1
    %p53 = por %p51, %p52
    %p54 = scmp.ne.s32.totalorder %s43, %s44
    %p55 = scmp.eq.s32.totalorder %s14, 0
    %p56 = por %p54, %p55
    %p57 = scmp.ne.s32.totalorder %s43, %s44
    %p58 = scmp.eq.s32.totalorder %s15, 1
    %p59 = por %p57, %p58
    %p61 = scmp.ne.s32.totalorder %s44, %s60
    %p62 = scmp.eq.s32.totalorder %s15, 0
    %p63 = por %p61, %p62
    %s64 = ssub.s32 %s18, %s27
    %s65 = ssub.s32 %s17, %s31
    %s66 = sor.u32 %s64, %s65
    %p67 = scmp.eq.s32.totalorder %s66, 0
    %s69 = sadd.s32 %s68, 1
    %s70 = scalar_select %p67, %s68, %s69
    %p73 = pneg %p67
    %p74 = scmp.eq.s32.totalorder %s9, 1
    %p75 = por %p73, %p74
    %p76 = scmp.ne.s32.totalorder %s68, %s71
    %p77 = scmp.eq.s32.totalorder %s9, 0
    %p78 = por %p76, %p77
    %p79 = scmp.ne.s32.totalorder %s68, %s71
    %p80 = scmp.eq.s32.totalorder %s14, 1
    %p81 = por %p79, %p80
    %p82 = scmp.ne.s32.totalorder %s71, %s72
    %p83 = scmp.eq.s32.totalorder %s14, 0
    %p84 = por %p82, %p83
    %p85 = scmp.ne.s32.totalorder %s71, %s72
    %p86 = scmp.eq.s32.totalorder %s15, 1
    %p87 = por %p85, %p86
    %p89 = scmp.ne.s32.totalorder %s72, %s88
    %p90 = scmp.eq.s32.totalorder %s15, 0
    %p91 = por %p89, %p90
    %s92 = ssub.s32 %s17, %s31
    %p93 = scmp.eq.s32.totalorder %s92, 0
    %s95 = sadd.s32 %s94, 1
    %s96 = scalar_select %p93, %s94, %s95
    %p99 = pneg %p93
    %p100 = scmp.eq.s32.totalorder %s9, 1
    %p101 = por %p99, %p100
    %p102 = scmp.ne.s32.totalorder %s94, %s97
    %p103 = scmp.eq.s32.totalorder %s9, 0
    %p104 = por %p102, %p103
    %p105 = scmp.ne.s32.totalorder %s94, %s97
    %p106 = scmp.eq.s32.totalorder %s14, 1
    %p107 = por %p105, %p106
    %p108 = scmp.ne.s32.totalorder %s97, %s98
    %p109 = scmp.eq.s32.totalorder %s14, 0
    %p110 = por %p108, %p109
    %p111 = scmp.ne.s32.totalorder %s97, %s98
    %p112 = scmp.eq.s32.totalorder %s15, 1
    %p113 = por %p111, %p112
    %p115 = scmp.ne.s32.totalorder %s98, %s114
    %p116 = scmp.eq.s32.totalorder %s15, 0
    %p117 = por %p115, %p116
    %s118 = ssub.s32 %s16, %s35
    %s119 = ssub.s32 %s17, %s31
    %s120 = sor.u32 %s118, %s119
    %p121 = scmp.eq.s32.totalorder %s120, 0
    %s123 = sadd.s32 %s122, 1
    %s124 = scalar_select %p121, %s122, %s123
    %p127 = pneg %p121
    %p128 = scmp.eq.s32.totalorder %s9, 1
    %p129 = por %p127, %p128
    %p130 = scmp.ne.s32.totalorder %s122, %s125
    %p131 = scmp.eq.s32.totalorder %s9, 0
    %p132 = por %p130, %p131
    %p133 = scmp.ne.s32.totalorder %s122, %s125
    %p134 = scmp.eq.s32.totalorder %s14, 1
    %p135 = por %p133, %p134
    %p136 = scmp.ne.s32.totalorder %s125, %s126
    %p137 = scmp.eq.s32.totalorder %s14, 0
    %p138 = por %p136, %p137
    %p139 = scmp.ne.s32.totalorder %s125, %s126
    %p140 = scmp.eq.s32.totalorder %s15, 1
    %p141 = por %p139, %p140
    %p143 = scmp.ne.s32.totalorder %s126, %s142
    %p144 = scmp.eq.s32.totalorder %s15, 0
    %p145 = por %p143, %p144
    %p146 = scmp.le.s32.totalorder 1, %s9
    %p147 = scmp.lt.s32.totalorder %s9, 3
    %p148 = pnand %p146, %p147
    %p149 = pneg %p148
    // Predicated region
    $region9: #{resnet_forward.41} parent=5 // pred_check
      _
    $region10: #{resnet_forward.41} parent=5 // pred_check_branch
      %151 = sbr.rel (%p148) target = $region12
    $region11: #{resnet_forward.41} parent=5 // pred_region
      %s152 = ssub.s32 %s9, 1
      // Predicated region
      $region13: #{resnet_forward.41} parent=11 // pred_check
        %p153 = pneg %p84
      $region14: #{resnet_forward.41} parent=11 // pred_check_branch
        %155 = sbr.rel (%p153) target = $region16
      $region15: #{resnet_forward.41} parent=11 // pred_region
        %s156 = smul.u32 64, %s21
        %p157 = scmp.lt.s32.totalorder %s156, 63
        %s158 = scalar_select %p157, %s156, 63
        %p159 = scmp.lt.s32.totalorder %s20, 0
        %s160 = scalar_select %p159, %s20, 0
        %s161 = sadd.s32 %s160, %s158
        %s162 = smul.addr %s161, 4
        %s163 = scalar_lea.vmem %s1, %s162
        %s164 = smul.u32 64, %s21
      $region16: #{resnet_forward.41} parent=11 // pred_fallthru
        _
      // Predicated region
      $region17: #{resnet_forward.41} parent=11 // pred_check
        %p165 = pneg %p110
      $region18: #{resnet_forward.41} parent=11 // pred_check_branch
        %167 = sbr.rel (%p165) target = $region20
      $region19: #{resnet_forward.41} parent=11 // pred_region
        %p168 = scmp.lt.s32.totalorder %s20, 0
        %s169 = scalar_select %p168, %s20, 0
        %s170 = scalar_lea.vmem %s2, %s169
      $region20: #{resnet_forward.41} parent=11 // pred_fallthru
        _
    $region12: #{resnet_forward.41} parent=5 // pred_fallthru
      _
    %p171 = scmp.lt.s32.totalorder %s9, 2
    // Predicated region
    $region21: #{resnet_forward.41} parent=5 // pred_check
      %p172 = pneg %p171
    $region22: #{resnet_forward.41} parent=5 // pred_check_branch
      %174 = sbr.rel (%p172) target = $region24
    $region23: #{resnet_forward.41} parent=5 // pred_region
      // Predicated region
      $region25: #{resnet_forward.41} parent=23 // pred_check
        %p175 = pneg %p50
      $region26: #{resnet_forward.41} parent=23 // pred_check_branch
        %177 = sbr.rel (%p175) target = $region28
      $region27: #{resnet_forward.41} parent=23 // pred_region
        %s178 = smul.u32 2, %s16
        %s179 = smul.u32 4, %s18
        %p180 = scmp.lt.s32.totalorder %s178, 3
        %s181 = scalar_select %p180, %s178, 3
        %p182 = scmp.lt.s32.totalorder %s179, 3
        %s183 = scalar_select %p182, %s179, 3
        %s184 = smul.addr %s181, 4
        %s185 = sadd.s32 %s183, %s184
        %s186 = smul.addr %s185, 4
        %s187 = scalar_lea.vmem %s0, %s186
        %s188 = smul.u32 2, %s16
        %s189 = smul.u32 4, %s18
      $region28: #{resnet_forward.41} parent=23 // pred_fallthru
        _
    $region24: #{resnet_forward.41} parent=5 // pred_fallthru
      _
    %p190 = scmp.le.s32.totalorder 1, %s9
    %p191 = scmp.lt.s32.totalorder %s9, 3
    %p192 = pnand %p190, %p191
    %p193 = pneg %p192
    // Predicated region
    $region29: #{resnet_forward.41} parent=5 // pred_check
      _
    $region30: #{resnet_forward.41} parent=5 // pred_check_branch
      %195 = sbr.rel (%p192) target = $region32
    $region31: #{resnet_forward.41} parent=5 // pred_region
      %s196 = ssub.s32 %s9, 1
      %s197 = smul.u32 2, %s19
      %s198 = smul.u32 4, %s21
      %p199 = scmp.lt.s32.totalorder %s197, 3
      %s200 = scalar_select %p199, %s197, 3
      %p201 = scmp.lt.s32.totalorder %s198, 3
      %s202 = scalar_select %p201, %s198, 3
      %s203 = smul.addr %s200, 4
      %s204 = sadd.s32 %s202, %s203
      %s205 = smul.addr %s204, 4
      %s206 = scalar_lea.vmem %s0, %s205
      %p207 = pneg %p56
      %p208 = pneg %p53
      %s209 = smul.u32 64, %s21
      %p210 = scmp.lt.s32.totalorder %s209, 63
      %s211 = scalar_select %p210, %s209, 63
      %p212 = scmp.lt.s32.totalorder %s20, 0
      %s213 = scalar_select %p212, %s20, 0
      %s214 = sadd.s32 %s213, %s211
      %s215 = smul.addr %s214, 4
      %s216 = scalar_lea.vmem %s1, %s215
      %p217 = pneg %p84
      %p218 = pneg %p81
      %p219 = scmp.lt.s32.totalorder %s20, 0
      %s220 = scalar_select %p219, %s20, 0
      %s221 = scalar_lea.vmem %s2, %s220
      %p222 = pneg %p110
      %p223 = pneg %p107
      %p224 = pneg %p138
      %p225 = pneg %p135
      %s226 = smul.u32 2, %s19
      %p227 = scmp.lt.s32.totalorder %s226, 3
      %s228 = scalar_select %p227, %s226, 3
      %p229 = scmp.lt.s32.totalorder %s20, 0
      %s230 = scalar_select %p229, %s20, 0
      %s231 = sadd.s32 %s230, %s228
      %s232 = smul.addr %s231, 4
      %s233 = scalar_lea.vmem %s3, %s232
      %s234 = smul.u32 2, %s19
      %s235 = smul.u32 4, %s21
      %p236 = scmp.lt.s32.totalorder %s234, 3
      %s237 = scalar_select %p236, %s234, 3
      %p238 = scmp.lt.s32.totalorder %s235, 3
      %s239 = scalar_select %p238, %s235, 3
      %s240 = smul.addr %s237, 4
      %s241 = sadd.s32 %s239, %s240
      %s242 = smul.addr %s241, 4
      %s243 = scalar_lea.vmem %s0, %s242
      %s244 = smul.u32 2, %s19
      %s245 = smul.u32 4, %s21
      %s246 = smul.u32 64, %s21
      %p247 = scmp.lt.s32.totalorder %s246, 63
      %s248 = scalar_select %p247, %s246, 63
      %p249 = scmp.lt.s32.totalorder %s20, 0
      %s250 = scalar_select %p249, %s20, 0
      %s251 = sadd.s32 %s250, %s248
      %s252 = smul.addr %s251, 4
      %s253 = scalar_lea.vmem %s1, %s252
      %s254 = smul.u32 64, %s21
      %p255 = scmp.lt.s32.totalorder %s20, 0
      %s256 = scalar_select %p255, %s20, 0
      %s257 = scalar_lea.vmem %s2, %s256
      %s258 = smul.u32 2, %s19
      %p259 = scmp.lt.s32.totalorder %s258, 3
      %s260 = scalar_select %p259, %s258, 3
      %p261 = scmp.lt.s32.totalorder %s20, 0
      %s262 = scalar_select %p261, %s20, 0
      %s263 = sadd.s32 %s262, %s260
      %s264 = smul.addr %s263, 4
      %s265 = scalar_lea.vmem %s3, %s264
      %s266 = smul.u32 2, %s19
      %v268 = vld [vmem:[%s243] sm:$0xff]
      %v269 = vld [vmem:[%s243 + $0x8] sm:$0xff]
      %v270 = vld [vmem:[%s243 + $0x10] sm:$0xff]
      %v271 = vld [vmem:[%s243 + $0x18] sm:$0xff]
      %v272 = vld [vmem:[%s253] sm:$0xf]
      %v273 = vld [vmem:[%s253 + $0x4] sm:$0xf]
      %v274 = vld [vmem:[%s253 + $0x8] sm:$0xf]
      %v275 = vld [vmem:[%s253 + $0xc] sm:$0xf]
      %v276 = vld [vmem:[%s253 + $0x10] sm:$0xf]
      %v277 = vld [vmem:[%s253 + $0x14] sm:$0xf]
      %v278 = vld [vmem:[%s253 + $0x18] sm:$0xf]
      %v279 = vld [vmem:[%s253 + $0x1c] sm:$0xf]
      %v280 = vld [vmem:[%s253 + $0x20] sm:$0xf]
      %v281 = vld [vmem:[%s253 + $0x24] sm:$0xf]
      %v282 = vld [vmem:[%s253 + $0x28] sm:$0xf]
      %v283 = vld [vmem:[%s253 + $0x2c] sm:$0xf]
      %v284 = vld [vmem:[%s253 + $0x30] sm:$0xf]
      %v285 = vld [vmem:[%s253 + $0x34] sm:$0xf]
      %v286 = vld [vmem:[%s253 + $0x38] sm:$0xf]
      %v287 = vld [vmem:[%s253 + $0x3c] sm:$0xf]
      %v288 = vld [vmem:[%s253 + $0x40] sm:$0xf]
      %v289 = vld [vmem:[%s253 + $0x44] sm:$0xf]
      %v290 = vld [vmem:[%s253 + $0x48] sm:$0xf]
      %v291 = vld [vmem:[%s253 + $0x4c] sm:$0xf]
      %v292 = vld [vmem:[%s253 + $0x50] sm:$0xf]
      %v293 = vld [vmem:[%s253 + $0x54] sm:$0xf]
      %v294 = vld [vmem:[%s253 + $0x58] sm:$0xf]
      %v295 = vld [vmem:[%s253 + $0x5c] sm:$0xf]
      %v296 = vld [vmem:[%s253 + $0x60] sm:$0xf]
      %v297 = vld [vmem:[%s253 + $0x64] sm:$0xf]
      %v298 = vld [vmem:[%s253 + $0x68] sm:$0xf]
      %v299 = vld [vmem:[%s253 + $0x6c] sm:$0xf]
      %v300 = vld [vmem:[%s253 + $0x70] sm:$0xf]
      %v301 = vld [vmem:[%s253 + $0x74] sm:$0xf]
      %v302 = vld [vmem:[%s253 + $0x78] sm:$0xf]
      %v303 = vld [vmem:[%s253 + $0x7c] sm:$0xf]
      %v304 = vld [vmem:[%s253 + $0x80] sm:$0xf]
      %v305 = vld [vmem:[%s253 + $0x84] sm:$0xf]
      %v306 = vld [vmem:[%s253 + $0x88] sm:$0xf]
      %v307 = vld [vmem:[%s253 + $0x8c] sm:$0xf]
      %v308 = vld [vmem:[%s253 + $0x90] sm:$0xf]
      %v309 = vld [vmem:[%s253 + $0x94] sm:$0xf]
      %v310 = vld [vmem:[%s253 + $0x98] sm:$0xf]
      %v311 = vld [vmem:[%s253 + $0x9c] sm:$0xf]
      %v312 = vld [vmem:[%s253 + $0xa0] sm:$0xf]
      %v313 = vld [vmem:[%s253 + $0xa4] sm:$0xf]
      %v314 = vld [vmem:[%s253 + $0xa8] sm:$0xf]
      %v315 = vld [vmem:[%s253 + $0xac] sm:$0xf]
      %v316 = vld [vmem:[%s253 + $0xb0] sm:$0xf]
      %v317 = vld [vmem:[%s253 + $0xb4] sm:$0xf]
      %v318 = vld [vmem:[%s253 + $0xb8] sm:$0xf]
      %v319 = vld [vmem:[%s253 + $0xbc] sm:$0xf]
      %v320 = vld [vmem:[%s253 + $0xc0] sm:$0xf]
      %v321 = vld [vmem:[%s253 + $0xc4] sm:$0xf]
      %v322 = vld [vmem:[%s253 + $0xc8] sm:$0xf]
      %v323 = vld [vmem:[%s253 + $0xcc] sm:$0xf]
      %v324 = vld [vmem:[%s253 + $0xd0] sm:$0xf]
      %v325 = vld [vmem:[%s253 + $0xd4] sm:$0xf]
      %v326 = vld [vmem:[%s253 + $0xd8] sm:$0xf]
      %v327 = vld [vmem:[%s253 + $0xdc] sm:$0xf]
      %v328 = vld [vmem:[%s253 + $0xe0] sm:$0xf]
      %v329 = vld [vmem:[%s253 + $0xe4] sm:$0xf]
      %v330 = vld [vmem:[%s253 + $0xe8] sm:$0xf]
      %v331 = vld [vmem:[%s253 + $0xec] sm:$0xf]
      %v332 = vld [vmem:[%s253 + $0xf0] sm:$0xf]
      %v333 = vld [vmem:[%s253 + $0xf4] sm:$0xf]
      %v334 = vld [vmem:[%s253 + $0xf8] sm:$0xf]
      %v335 = vld [vmem:[%s253 + $0xfc] sm:$0xf]
      %v336 = vld [vmem:[%s257] sm:$0x1]
      %v338 = vlaneseq
      %v339 = vshrl.u32 %v338, 7
      %v340 = vsub.s32 0, %v339
      %v341 = vrot.slane %v336, %v340
      %v347 = vunpack.c.l.b16 %v268
      %v348 = vunpack.c.h.b16 %v268
      %v349 = vunpack.c.l.b16 %v269
      %v350 = vunpack.c.h.b16 %v269
      %v351 = vunpack.c.l.b16 %v270
      %v352 = vunpack.c.h.b16 %v270
      %v353 = vunpack.c.l.b16 %v271
      %v354 = vunpack.c.h.b16 %v271
      %v355 = vpack.c.b16 %v351, %v347
      %v356 = vpack.c.b16 %v352, %v348
      %v357 = vpack.c.b16 %v353, %v349
      %v358 = vpack.c.b16 %v354, %v350
      %v427 = vunpack.c.l.b16 %v272
      %v428 = vunpack.c.l.b16 %v273
      %v429 = vunpack.c.l.b16 %v274
      %v430 = vunpack.c.l.b16 %v275
      %v431 = vunpack.c.l.b16 %v276
      %v432 = vunpack.c.l.b16 %v277
      %v433 = vunpack.c.l.b16 %v278
      %v434 = vunpack.c.l.b16 %v279
      %v435 = vunpack.c.l.b16 %v280
      %v436 = vunpack.c.l.b16 %v281
      %v437 = vunpack.c.l.b16 %v282
      %v438 = vunpack.c.l.b16 %v283
      %v439 = vunpack.c.l.b16 %v284
      %v440 = vunpack.c.l.b16 %v285
      %v441 = vunpack.c.l.b16 %v286
      %v442 = vunpack.c.l.b16 %v287
      %v443 = vunpack.c.l.b16 %v288
      %v444 = vunpack.c.l.b16 %v289
      %v445 = vunpack.c.l.b16 %v290
      %v446 = vunpack.c.l.b16 %v291
      %v447 = vunpack.c.l.b16 %v292
      %v448 = vunpack.c.l.b16 %v293
      %v449 = vunpack.c.l.b16 %v294
      %v450 = vunpack.c.l.b16 %v295
      %v451 = vunpack.c.l.b16 %v296
      %v452 = vunpack.c.l.b16 %v297
      %v453 = vunpack.c.l.b16 %v298
      %v454 = vunpack.c.l.b16 %v299
      %v455 = vunpack.c.l.b16 %v300
      %v456 = vunpack.c.l.b16 %v301
      %v457 = vunpack.c.l.b16 %v302
      %v458 = vunpack.c.l.b16 %v303
      %v459 = vunpack.c.l.b16 %v304
      %v460 = vunpack.c.l.b16 %v305
      %v461 = vunpack.c.l.b16 %v306
      %v462 = vunpack.c.l.b16 %v307
      %v463 = vunpack.c.l.b16 %v308
      %v464 = vunpack.c.l.b16 %v309
      %v465 = vunpack.c.l.b16 %v310
      %v466 = vunpack.c.l.b16 %v311
      %v467 = vunpack.c.l.b16 %v312
      %v468 = vunpack.c.l.b16 %v313
      %v469 = vunpack.c.l.b16 %v314
      %v470 = vunpack.c.l.b16 %v315
      %v471 = vunpack.c.l.b16 %v316
      %v472 = vunpack.c.l.b16 %v317
      %v473 = vunpack.c.l.b16 %v318
      %v474 = vunpack.c.l.b16 %v319
      %v475 = vunpack.c.l.b16 %v320
      %v476 = vunpack.c.l.b16 %v321
      %v477 = vunpack.c.l.b16 %v322
      %v478 = vunpack.c.l.b16 %v323
      %v479 = vunpack.c.l.b16 %v324
      %v480 = vunpack.c.l.b16 %v325
      %v481 = vunpack.c.l.b16 %v326
      %v482 = vunpack.c.l.b16 %v327
      %v483 = vunpack.c.l.b16 %v328
      %v484 = vunpack.c.l.b16 %v329
      %v485 = vunpack.c.l.b16 %v330
      %v486 = vunpack.c.l.b16 %v331
      %v487 = vunpack.c.l.b16 %v332
      %v488 = vunpack.c.l.b16 %v333
      %v489 = vunpack.c.l.b16 %v334
      %v490 = vunpack.c.l.b16 %v335
      %v491 = vpack.c.b16 %v428, %v427
      %v492 = vpack.c.b16 %v430, %v429
      %v493 = vpack.c.b16 %v432, %v431
      %v494 = vpack.c.b16 %v434, %v433
      %v495 = vpack.c.b16 %v436, %v435
      %v496 = vpack.c.b16 %v438, %v437
      %v497 = vpack.c.b16 %v440, %v439
      %v498 = vpack.c.b16 %v442, %v441
      %v499 = vpack.c.b16 %v444, %v443
      %v500 = vpack.c.b16 %v446, %v445
      %v501 = vpack.c.b16 %v448, %v447
      %v502 = vpack.c.b16 %v450, %v449
      %v503 = vpack.c.b16 %v452, %v451
      %v504 = vpack.c.b16 %v454, %v453
      %v505 = vpack.c.b16 %v456, %v455
      %v506 = vpack.c.b16 %v458, %v457
      %v507 = vpack.c.b16 %v460, %v459
      %v508 = vpack.c.b16 %v462, %v461
      %v509 = vpack.c.b16 %v464, %v463
      %v510 = vpack.c.b16 %v466, %v465
      %v511 = vpack.c.b16 %v468, %v467
      %v512 = vpack.c.b16 %v470, %v469
      %v513 = vpack.c.b16 %v472, %v471
      %v514 = vpack.c.b16 %v474, %v473
      %v515 = vpack.c.b16 %v476, %v475
      %v516 = vpack.c.b16 %v478, %v477
      %v517 = vpack.c.b16 %v480, %v479
      %v518 = vpack.c.b16 %v482, %v481
      %v519 = vpack.c.b16 %v484, %v483
      %v520 = vpack.c.b16 %v486, %v485
      %v521 = vpack.c.b16 %v488, %v487
      %v522 = vpack.c.b16 %v490, %v489
      %555 = vmatprep.subr.bf16.mxu0 0
      %556 = vmatpush1.bf16.msra.mxu0 %v491
      %557 = vmatprep.subr.bf16.mxu0 0
      %558 = vmatpush1.bf16.msra.mxu0 %v492
      %559 = vmatprep.subr.bf16.mxu0 0
      %560 = vmatpush1.bf16.msra.mxu0 %v493
      %561 = vmatprep.subr.bf16.mxu0 0
      %562 = vmatpush1.bf16.msra.mxu0 %v494
      %563 = vmatprep.subr.bf16.mxu0 0
      %564 = vmatpush1.bf16.msra.mxu0 %v495
      %565 = vmatprep.subr.bf16.mxu0 0
      %566 = vmatpush1.bf16.msra.mxu0 %v496
      %567 = vmatprep.subr.bf16.mxu0 0
      %568 = vmatpush1.bf16.msra.mxu0 %v497
      %569 = vmatprep.subr.bf16.mxu0 0
      %570 = vmatpush1.bf16.msra.mxu0 %v498
      %571 = vmatprep.subr.bf16.mxu0 0
      %572 = vmatpush1.bf16.msra.mxu0 %v499
      %573 = vmatprep.subr.bf16.mxu0 0
      %574 = vmatpush1.bf16.msra.mxu0 %v500
      %575 = vmatprep.subr.bf16.mxu0 0
      %576 = vmatpush1.bf16.msra.mxu0 %v501
      %577 = vmatprep.subr.bf16.mxu0 0
      %578 = vmatpush1.bf16.msra.mxu0 %v502
      %579 = vmatprep.subr.bf16.mxu0 0
      %580 = vmatpush1.bf16.msra.mxu0 %v503
      %581 = vmatprep.subr.bf16.mxu0 0
      %582 = vmatpush1.bf16.msra.mxu0 %v504
      %583 = vmatprep.subr.bf16.mxu0 0
      %584 = vmatpush1.bf16.msra.mxu0 %v505
      %585 = vmatprep.subr.bf16.mxu0 0
      %586 = vmatpush1.bf16.msra.mxu0 %v506
      %587 = vmatprep.mubr.bf16.mxu0 %v356
      %588 = vmatmul.mubr.bf16.gmra.mrb[0].mxu0 %v355
      %v589 = vpop.f32.mrb[0].mxu0
      %v590 = vadd.f32 %v341, %v589
      %v591 = vpop.f32.mrb[0].mxu0
      %v592 = vpop.f32.mrb[0].mxu0
      %v593 = vadd.f32 %v341, %v592
      %v594 = vpop.f32.mrb[0].mxu0
      %595 = vdwg.mxu0
      %596 = vmatprep.subr.bf16.mxu0 0
      %597 = vmatpush1.bf16.msra.mxu0 %v507
      %598 = vmatprep.subr.bf16.mxu0 0
      %599 = vmatpush1.bf16.msra.mxu0 %v508
      %600 = vmatprep.subr.bf16.mxu0 0
      %601 = vmatpush1.bf16.msra.mxu0 %v509
      %602 = vmatprep.subr.bf16.mxu0 0
      %603 = vmatpush1.bf16.msra.mxu0 %v510
      %604 = vmatprep.subr.bf16.mxu0 0
      %605 = vmatpush1.bf16.msra.mxu0 %v511
      %606 = vmatprep.subr.bf16.mxu0 0
      %607 = vmatpush1.bf16.msra.mxu0 %v512
      %608 = vmatprep.subr.bf16.mxu0 0
      %609 = vmatpush1.bf16.msra.mxu0 %v513
      %610 = vmatprep.subr.bf16.mxu0 0
      %611 = vmatpush1.bf16.msra.mxu0 %v514
      %612 = vmatprep.subr.bf16.mxu0 0
      %613 = vmatpush1.bf16.msra.mxu0 %v515
      %614 = vmatprep.subr.bf16.mxu0 0
      %615 = vmatpush1.bf16.msra.mxu0 %v516
      %616 = vmatprep.subr.bf16.mxu0 0
      %617 = vmatpush1.bf16.msra.mxu0 %v517
      %618 = vmatprep.subr.bf16.mxu0 0
      %619 = vmatpush1.bf16.msra.mxu0 %v518
      %620 = vmatprep.subr.bf16.mxu0 0
      %621 = vmatpush1.bf16.msra.mxu0 %v519
      %622 = vmatprep.subr.bf16.mxu0 0
      %623 = vmatpush1.bf16.msra.mxu0 %v520
      %624 = vmatprep.subr.bf16.mxu0 0
      %625 = vmatpush1.bf16.msra.mxu0 %v521
      %626 = vmatprep.subr.bf16.mxu0 0
      %627 = vmatpush1.bf16.msra.mxu0 %v522
      %628 = vmatprep.mubr.bf16.mxu0 %v358
      %629 = vmatmul.mubr.bf16.gmra.mrb[0].mxu0 %v357
      %v630 = vpop.f32.mrb[0].mxu0
      %v631 = vadd.f32 %v590, %v630
      %v632 = vpop.f32.mrb[0].mxu0
      %v633 = vpop.f32.mrb[0].mxu0
      %v634 = vadd.f32 %v593, %v633
      %v635 = vpop.f32.mrb[0].mxu0
      %636 = vdwg.mxu0
      %v637 = vmax.f32 %v631, 0.0
      %v638 = vmax.f32 %v634, 0.0
      %v639 = vpack.c.bf16 %v638, %v637
      %v641 = vunpack.c.l.b16 %v639
      %v642 = vunpack.c.h.b16 %v639
      %v643 = vpack.c.b16 %v641, %v641
      %v644 = vpack.c.b16 %v642, %v642
      %647 = vst [vmem:[%s265] sm:$0xf] %v643
      %648 = vst [vmem:[%s265 + $0x4] sm:$0xf] %v644
      %s649 = smul.u32 2, %s19
      %p650 = scmp.lt.s32.totalorder %s649, 3
      %s651 = scalar_select %p650, %s649, 3
      %p652 = scmp.lt.s32.totalorder %s20, 0
      %s653 = scalar_select %p652, %s20, 0
      %s654 = sadd.s32 %s653, %s651
      %s655 = smul.addr %s654, 4
      %s656 = scalar_lea.vmem %s3, %s655
      // Predicated region
      $region33: #{resnet_forward.41} parent=31 // pred_check
        %p657 = pneg %p135
      $region34: #{resnet_forward.41} parent=31 // pred_check_branch
        %659 = sbr.rel (%p657) target = $region36
      $region35: #{resnet_forward.41} parent=31 // pred_region
        %s660 = smul.u32 2, %s19
      $region36: #{resnet_forward.41} parent=31 // pred_fallthru
        _
    $region32: #{resnet_forward.41} parent=5 // pred_fallthru
      _
    %p661 = scmp.le.s32.totalorder 2, %s9
    // Predicated region
    $region37: #{resnet_forward.41} parent=5 // pred_check
      %p662 = pneg %p661
    $region38: #{resnet_forward.41} parent=5 // pred_check_branch
      %664 = sbr.rel (%p662) target = $region40
    $region39: #{resnet_forward.41} parent=5 // pred_region
      %s665 = ssub.s32 %s9, 2
      // Predicated region
      $region41: #{resnet_forward.41} parent=39 // pred_check
        %p666 = pneg %p141
      $region42: #{resnet_forward.41} parent=39 // pred_check_branch
        %668 = sbr.rel (%p666) target = $region44
      $region43: #{resnet_forward.41} parent=39 // pred_region
        %s669 = smul.u32 2, %s22
        %p670 = scmp.lt.s32.totalorder %s669, 3
        %s671 = scalar_select %p670, %s669, 3
        %p672 = scmp.lt.s32.totalorder %s23, 0
        %s673 = scalar_select %p672, %s23, 0
        %s674 = sadd.s32 %s673, %s671
        %s675 = smul.addr %s674, 4
        %s676 = scalar_lea.vmem %s3, %s675
      $region44: #{resnet_forward.41} parent=39 // pred_fallthru
        _
    $region40: #{resnet_forward.41} parent=5 // pred_fallthru
      _
  $region6: #{resnet_forward.41} parent=0 // loop_footer
    %s13 = sadd.s32 1, %s9
  $region7: #{resnet_forward.41} parent=0 // loop_footer_branch
    %8 = sbr.rel target = $region3
  $region8: #{resnet_forward.41} parent=0 // loop_exit
    _

</llo_original>
